<compile_context>
chip_gen: v7x
topology: tpu7x:2x2x1
jax: 0.10.0
libtpu: 0.0.40
codegen_flags: <defaults>
</compile_context>

<pallas_src>
import functools

import jax
import jax.numpy as jnp
from jax import lax
from jax.experimental import pallas as pl
from jax.experimental.pallas import tpu as pltpu

EPS = 1e-5  # nn.BatchNorm2d default eps


def _round_up(x, m):
    return (x + m - 1) // m * m


def _pick_rows_tile(rows):
    """Largest friendly row-tile that divides `rows` (falls back to full)."""
    for t in (512, 256, 128, 64, 32, 16):
        if rows % t == 0:
            return t
    return rows


# ----------------------------------------------------------------------------
# Pallas kernels
# ----------------------------------------------------------------------------
def _matmul_bias_kernel(a_ref, b_ref, bias_ref, o_ref, *, activation):
    """One M-tile of: out = A @ B + bias (optional tanh).  B is resident."""
    acc = jnp.dot(a_ref[...], b_ref[...], preferred_element_type=jnp.float32)
    acc = acc + bias_ref[...]
    if activation == "tanh":
        acc = jnp.tanh(acc)
    o_ref[...] = acc.astype(o_ref.dtype)


def _bn_stats_kernel(y_ref, sum_ref, sq_ref, *, valid_rows, tile_rows):
    """Accumulate per-channel sum / sum-of-squares over M-tiles (f32)."""
    m = pl.program_id(0)

    @pl.when(m == 0)
    def _():
        sum_ref[...] = jnp.zeros_like(sum_ref)
        sq_ref[...] = jnp.zeros_like(sq_ref)

    y = y_ref[...].astype(jnp.float32)
    if valid_rows is not None:  # mask padded rows (static decision)
        row = m * tile_rows + lax.broadcasted_iota(jnp.int32, y.shape, 0)
        y = jnp.where(row < valid_rows, y, 0.0)
    sum_ref[...] += jnp.sum(y, axis=0, keepdims=True)
    sq_ref[...] += jnp.sum(y * y, axis=0, keepdims=True)


def _bn_scale_shift(sum_v, sq_v, g, b, count, eps):
    inv_n = 1.0 / count
    mean = sum_v * inv_n
    var = jnp.maximum(sq_v * inv_n - mean * mean, 0.0)  # biased var
    scale = g * lax.rsqrt(var + eps)
    shift = b - mean * scale
    return scale, shift


def _bn_norm_kernel(y_ref, sum_ref, sq_ref, g_ref, b_ref, o_ref,
                    *, count, eps, act):
    scale, shift = _bn_scale_shift(sum_ref[...], sq_ref[...],
                                   g_ref[...], b_ref[...], count, eps)
    out = y_ref[...].astype(jnp.float32) * scale + shift
    if act == "relu":
        out = jnp.maximum(out, 0.0)
    o_ref[...] = out.astype(o_ref.dtype)


def _bn_norm_residual_kernel(y_ref, sum_ref, sq_ref, g_ref, b_ref, r_ref,
                             o_ref, *, count, eps):
    scale, shift = _bn_scale_shift(sum_ref[...], sq_ref[...],
                                   g_ref[...], b_ref[...], count, eps)
    out = y_ref[...].astype(jnp.float32) * scale + shift
    out = out + r_ref[...].astype(jnp.float32)
    o_ref[...] = out.astype(o_ref.dtype)


# ----------------------------------------------------------------------------
# Pallas wrappers
# ----------------------------------------------------------------------------
def matmul_bias(a, b, bias, activation="none", out_dtype=jnp.bfloat16):
    """a: (M, K), b: (K, Nc), bias: (Nc,).  Returns padded (Mp, Np) out_dtype.

    bf16 operands, f32 accumulation.  Weight block resident in VMEM; A tiles
    streamed over M (grid axis marked parallel for megacore sharding)."""
    M, K = a.shape
    _, Nc = b.shape
    Np = _round_up(Nc, 128)
    Kp = _round_up(K, 128)
    tm = min(512, _round_up(M, 8))
    Mp = _round_up(M, tm)

    a_p = a.astype(jnp.bfloat16)
    if (Mp, Kp) != (M, K):
        a_p = jnp.pad(a_p, ((0, Mp - M), (0, Kp - K)))
    b_p = b.astype(jnp.bfloat16)
    if (Kp, Np) != (K, Nc):
        b_p = jnp.pad(b_p, ((0, Kp - K), (0, Np - Nc)))
    bias_p = bias.astype(jnp.float32)
    if Np != Nc:
        bias_p = jnp.pad(bias_p, (0, Np - Nc))
    bias_p = bias_p.reshape(1, Np)

    grid_m = Mp // tm
    return pl.pallas_call(
        functools.partial(_matmul_bias_kernel, activation=activation),
        out_shape=jax.ShapeDtypeStruct((Mp, Np), out_dtype),
        grid_spec=pltpu.PrefetchScalarGridSpec(
            num_scalar_prefetch=0,
            grid=(grid_m,),
            in_specs=[
                pl.BlockSpec((tm, Kp), lambda m: (m, 0)),   # streamed A tile
                pl.BlockSpec((Kp, Np), lambda m: (0, 0)),   # resident weight
                pl.BlockSpec((1, Np), lambda m: (0, 0)),
            ],
            out_specs=pl.BlockSpec((tm, Np), lambda m: (m, 0)),
        ),
        compiler_params=pltpu.CompilerParams(
            dimension_semantics=("parallel",),
            vmem_limit_bytes=32 * 1024 * 1024),
    )(a_p, b_p, bias_p)


def batch_norm(y, gamma, beta, count, act="none", residual=None,
               out_dtype=jnp.bfloat16):
    """Two-pass gridded BatchNorm over y: (Mp, Np) (rows beyond `count` are
    padding and are masked out of the statistics).  Np must be a multiple of
    128 (lane-dense); gamma/beta of length C <= Np are zero-padded."""
    Mp, Np = y.shape
    C = gamma.shape[0]
    g = gamma.astype(jnp.float32)
    b = beta.astype(jnp.float32)
    if C != Np:
        g = jnp.pad(g, (0, Np - C))
        b = jnp.pad(b, (0, Np - C))
    g = g.reshape(1, Np)
    b = b.reshape(1, Np)

    tmb = _pick_rows_tile(Mp)
    grid_m = Mp // tmb
    valid = None if count == Mp else count

    # Pass 1: global per-channel sum / sumsq (resident accumulator outputs).
    ssum, ssq = pl.pallas_call(
        functools.partial(_bn_stats_kernel, valid_rows=valid, tile_rows=tmb),
        out_shape=(jax.ShapeDtypeStruct((1, Np), jnp.float32),
                   jax.ShapeDtypeStruct((1, Np), jnp.float32)),
        grid_spec=pltpu.PrefetchScalarGridSpec(
            num_scalar_prefetch=0,
            grid=(grid_m,),
            in_specs=[pl.BlockSpec((tmb, Np), lambda m: (m, 0))],
            out_specs=(pl.BlockSpec((1, Np), lambda m: (0, 0)),
                       pl.BlockSpec((1, Np), lambda m: (0, 0))),
        ),
        compiler_params=pltpu.CompilerParams(
            dimension_semantics=("arbitrary",)),
    )(y)

    # Pass 2: normalize (+ ReLU / + residual), tiled over M.
    vec_spec = lambda: pl.BlockSpec((1, Np), lambda m: (0, 0))
    row_spec = lambda: pl.BlockSpec((tmb, Np), lambda m: (m, 0))
    if residual is None:
        kern = functools.partial(_bn_norm_kernel, count=count, eps=EPS, act=act)
        inputs = (y, ssum, ssq, g, b)
        in_specs = [row_spec(), vec_spec(), vec_spec(), vec_spec(), vec_spec()]
    else:
        kern = functools.partial(_bn_norm_residual_kernel, count=count, eps=EPS)
        inputs = (y, ssum, ssq, g, b, residual)
        in_specs = [row_spec(), vec_spec(), vec_spec(), vec_spec(), vec_spec(),
                    row_spec()]

    return pl.pallas_call(
        kern,
        out_shape=jax.ShapeDtypeStruct((Mp, Np), out_dtype),
        grid_spec=pltpu.PrefetchScalarGridSpec(
            num_scalar_prefetch=0,
            grid=(grid_m,),
            in_specs=in_specs,
            out_specs=pl.BlockSpec((tmb, Np), lambda m: (m, 0)),
        ),
        compiler_params=pltpu.CompilerParams(
            dimension_semantics=("parallel",)),
    )(*inputs)


# ----------------------------------------------------------------------------
# Conv glue (patch extraction in plain JAX, GEMM in Pallas)
# ----------------------------------------------------------------------------
def _im2col(x, kh, kw, stride):
    N, H, W, C = x.shape
    Ho = (H - kh) // stride + 1
    Wo = (W - kw) // stride + 1
    cols = []
    for i in range(kh):
        for j in range(kw):
            cols.append(x[:, i:i + stride * (Ho - 1) + 1:stride,
                            j:j + stride * (Wo - 1) + 1:stride, :])
    patches = jnp.stack(cols, axis=3)  # (N, Ho, Wo, kh*kw, C)
    return patches.reshape(N * Ho * Wo, kh * kw * C), (N, Ho, Wo)


def conv2d(x, w_oihw, bias, stride=1, pad=0, pad_mode="constant",
           activation="none", out_dtype=jnp.bfloat16):
    """x: NHWC, w: PyTorch (Cout, Cin, KH, KW).  Returns flat padded GEMM
    output (Mp, Np) plus the true output geometry (N, Ho, Wo)."""
    x = x.astype(jnp.bfloat16)
    if pad > 0:
        x = jnp.pad(x, ((0, 0), (pad, pad), (pad, pad), (0, 0)), mode=pad_mode)
    cout, cin, kh, kw = w_oihw.shape
    # TODO(synk): replace the materialized im2col with an implicit-GEMM conv
    # (manual DMA of shifted windows) to cut activation HBM traffic by ~KH*KW.
    a, (n, ho, wo) = _im2col(x, kh, kw, stride)
    w2 = jnp.transpose(w_oihw, (2, 3, 1, 0)).reshape(kh * kw * cin, cout)
    y = matmul_bias(a, w2, bias, activation=activation, out_dtype=out_dtype)
    return y, (n, ho, wo)


def conv_transpose2d(x, w_iohw, bias, out_dtype=jnp.bfloat16):
    """PyTorch ConvTranspose2d(k=3, s=2, p=1, output_padding=1) via sub-pixel
    decomposition: a single GEMM over a 2x2 input window produces all four
    output phases (no zero-dilated input)."""
    n, h, w, cin = x.shape
    cin_w, cout, kh, kw = w_iohw.shape
    assert (kh, kw) == (3, 3) and cin_w == cin
    cpo = _round_up(cout, 128)

    xp = jnp.pad(x.astype(jnp.bfloat16), ((0, 0), (0, 1), (0, 1), (0, 0)))
    a, _ = _im2col(xp, 2, 2, 1)  # (N*H*W, 4*Cin), taps ordered (dh, dw)

    wt = w_iohw.astype(jnp.float32)  # (Cin, Cout, 3, 3)
    bmat = jnp.zeros((2, 2, cin, 2, 2, cpo), jnp.float32)
    for dh in range(2):
        for dw in range(2):
            for ah in range(2):
                for aw in range(2):
                    k_h = ah + 1 - 2 * dh
                    k_w = aw + 1 - 2 * dw
                    if 0 <= k_h < 3 and 0 <= k_w < 3:
                        bmat = bmat.at[dh, dw, :, ah, aw, :cout].set(
                            wt[:, :, k_h, k_w])
    bmat = bmat.reshape(4 * cin, 4 * cpo)
    bias4 = jnp.tile(jnp.pad(bias.astype(jnp.float32), (0, cpo - cout)), 4)

    y = matmul_bias(a, bmat, bias4, out_dtype=out_dtype)  # (Mp, 4*cpo)
    return y, (n, h, w, cpo)


# ----------------------------------------------------------------------------
# ResnetGenerator parameters and forward
# ----------------------------------------------------------------------------
def init_params(key, input_nc, output_nc, ngf, n_blocks):
    # norm_layer = BatchNorm2d  =>  use_bias = False for all but the final conv.
    keys = iter(jax.random.split(key, 10 + 2 * n_blocks))

    def conv_w(k, cout, cin, ksz):
        return jax.random.normal(k, (cout, cin, ksz, ksz), jnp.float32) * 0.05

    p = {}
    p["stem_w"] = conv_w(next(keys), ngf, input_nc, 7)
    p["stem_gamma"] = jnp.ones((ngf,), jnp.float32)
    p["stem_beta"] = jnp.zeros((ngf,), jnp.float32)

    p["down"] = []
    for i in range(2):
        mult = 2 ** i
        cin, cout = ngf * mult, ngf * mult * 2
        p["down"].append(dict(w=conv_w(next(keys), cout, cin, 3),
                              gamma=jnp.ones((cout,), jnp.float32),
                              beta=jnp.zeros((cout,), jnp.float32)))

    dim = ngf * 4
    p["blocks"] = []
    for _ in range(n_blocks):
        p["blocks"].append(dict(
            w1=conv_w(next(keys), dim, dim, 3),
            g1=jnp.ones((dim,), jnp.float32), b1=jnp.zeros((dim,), jnp.float32),
            w2=conv_w(next(keys), dim, dim, 3),
            g2=jnp.ones((dim,), jnp.float32), b2=jnp.zeros((dim,), jnp.float32)))

    p["up"] = []
    for i in range(2):
        mult = 2 ** (2 - i)
        cin, cout = ngf * mult, ngf * mult // 2
        # ConvTranspose2d weight layout: (Cin, Cout, KH, KW)
        w = jax.random.normal(next(keys), (cin, cout, 3, 3), jnp.float32) * 0.05
        p["up"].append(dict(w=w,
                            gamma=jnp.ones((cout,), jnp.float32),
                            beta=jnp.zeros((cout,), jnp.float32)))

    p["head_w"] = conv_w(next(keys), output_nc, ngf, 7)
    p["head_b"] = jax.random.normal(next(keys), (output_nc,), jnp.float32) * 0.05
    return p


def resnet_generator_forward(params, x_nchw, ngf, n_blocks):
    del ngf, n_blocks  # shapes come from params
    zero = lambda c: jnp.zeros((c,), jnp.float32)
    x = jnp.transpose(x_nchw, (0, 2, 3, 1))  # -> NHWC

    def conv_bn_relu(x, w, gamma, beta, stride, pad, pad_mode):
        cout = w.shape[0]
        y, (n, ho, wo) = conv2d(x, w, zero(cout), stride=stride, pad=pad,
                                pad_mode=pad_mode)
        m = n * ho * wo
        out = batch_norm(y, gamma, beta, count=m, act="relu")
        return out[:m, :cout].reshape(n, ho, wo, cout)

    # stem: ReflectionPad(3) + Conv7x7 (no bias) + BN + ReLU
    x = conv_bn_relu(x, params["stem_w"], params["stem_gamma"],
                     params["stem_beta"], 1, 3, "reflect")

    # two stride-2 downsampling convs (zero padding 1) + BN + ReLU
    for layer in params["down"]:
        x = conv_bn_relu(x, layer["w"], layer["gamma"], layer["beta"],
                         2, 1, "constant")

    # Resnet blocks (reflect pad 1, conv3x3, BN, ReLU, reflect pad 1, conv3x3,
    # BN, + residual).  use_dropout defaults to False -> no dropout layer.
    for blk in params["blocks"]:
        n, h, w_, c = x.shape
        m = n * h * w_
        res = x.reshape(m, c)
        y, _ = conv2d(x, blk["w1"], zero(c), stride=1, pad=1,
                      pad_mode="reflect")
        hmid = batch_norm(y, blk["g1"], blk["b1"], count=m, act="relu")
        hmid = hmid[:m, :c].reshape(n, h, w_, c)
        y, _ = conv2d(hmid, blk["w2"], zero(c), stride=1, pad=1,
                      pad_mode="reflect")
        mp, np_ = y.shape
        res_p = res if (mp, np_) == (m, c) else jnp.pad(
            res, ((0, mp - m), (0, np_ - c)))
        out = batch_norm(y, blk["g2"], blk["b2"], count=m, residual=res_p)
        x = out[:m, :c].reshape(n, h, w_, c)

    # two ConvTranspose upsampling layers (sub-pixel decomposition) + BN + ReLU
    for layer in params["up"]:
        cout = layer["w"].shape[1]
        y, (n, h, w_, cpo) = conv_transpose2d(x, layer["w"], zero(cout))
        m = n * h * w_
        y2 = y.reshape(-1, cpo)  # (4*Mp, Cpo); rows = (m, phase), cols = chan
        out = batch_norm(y2, layer["gamma"], layer["beta"],
                         count=4 * m, act="relu")
        out = out[:4 * m, :]
        out = out.reshape(n, h, w_, 2, 2, cpo).transpose(0, 1, 3, 2, 4, 5)
        x = out.reshape(n, 2 * h, 2 * w_, cpo)[..., :cout]

    # head: ReflectionPad(3) + Conv7x7 (with bias) + Tanh (fused in GEMM)
    cout = params["head_w"].shape[0]
    y, (n, ho, wo) = conv2d(x, params["head_w"], params["head_b"], stride=1,
                            pad=3, pad_mode="reflect", activation="tanh",
                            out_dtype=jnp.float32)
    m = n * ho * wo
    out = y[:m, :cout].reshape(n, ho, wo, cout)
    return jnp.transpose(out, (0, 3, 1, 2))  # back to NCHW


if __name__ == "__main__":
    key = jax.random.PRNGKey(0)
    kx, kp = jax.random.split(key)

    # small but structurally faithful config
    input_nc, output_nc, ngf, n_blocks = 3, 3, 8, 2
    x = jax.random.normal(kx, (2, input_nc, 16, 16), jnp.float32)
    params = init_params(kp, input_nc, output_nc, ngf, n_blocks)

    fwd = jax.jit(functools.partial(resnet_generator_forward,
                                    ngf=ngf, n_blocks=n_blocks))
    out = fwd(params, x)
    jax.block_until_ready(out)
    assert out.shape == (2, output_nc, 16, 16), out.shape
    assert bool(jnp.all(jnp.isfinite(out)))
    assert bool(jnp.all(jnp.abs(out) <= 1.0))  # tanh output range
    print("KERNEL_OK")
</pallas_src>

<mosaic_0001>
module attributes {stable_mosaic.version = 11 : i64} {
  func.func @_matmul_bias_kernel(%arg0: i32, %arg1: memref<512x256xbf16, #tpu.memory_space<vmem>>, %arg2: memref<256x128xbf16, #tpu.memory_space<vmem>>, %arg3: memref<1x128xf32, #tpu.memory_space<vmem>>, %arg4: memref<512x128xbf16, #tpu.memory_space<vmem>>) attributes {dimension_semantics = [#tpu.dimension_semantics<parallel>], iteration_bounds = array<i64: 1>, scalar_prefetch = 0 : i64, scratch_operands = 0 : i64, tpu.core_type = #tpu.core_type<tc>, window_params = [{transform_indices = @transform_0, window_bounds = array<i64: 512, 256>}, {pipeline_mode = #tpu.pipeline_mode<synchronous>, transform_indices = @transform_1, window_bounds = array<i64: 256, 128>}, {pipeline_mode = #tpu.pipeline_mode<synchronous>, transform_indices = @transform_2, window_bounds = array<i64: 1, 128>}, {transform_indices = @transform_3, window_bounds = array<i64: 512, 128>}]} {
    %c0 = arith.constant 0 : index
    %c0_0 = arith.constant 0 : index
    %0 = vector.load %arg1[%c0, %c0_0] : memref<512x256xbf16, #tpu.memory_space<vmem>>, vector<512x256xbf16>
    %c0_1 = arith.constant 0 : index
    %c0_2 = arith.constant 0 : index
    %1 = vector.load %arg2[%c0_1, %c0_2] : memref<256x128xbf16, #tpu.memory_space<vmem>>, vector<256x128xbf16>
    %cst = arith.constant dense<0.000000e+00> : vector<512x128xf32>
    %2 = tpu.matmul %0, %1, %cst {dimension_numbers = #tpu.dot_dimension_numbers<[1], [0], [0], [1], [0, 0, 1, 1], [], []>} : vector<512x256xbf16>, vector<256x128xbf16>, vector<512x128xf32> -> vector<512x128xf32>
    %c0_3 = arith.constant 0 : index
    %c0_4 = arith.constant 0 : index
    %3 = vector.load %arg3[%c0_3, %c0_4] : memref<1x128xf32, #tpu.memory_space<vmem>>, vector<1x128xf32>
    %4 = vector.broadcast %3 : vector<1x128xf32> to vector<512x128xf32>
    %5 = arith.addf %2, %4 : vector<512x128xf32>
    %6 = arith.truncf %5 : vector<512x128xf32> to vector<512x128xbf16>
    %c0_5 = arith.constant 0 : index
    %c0_6 = arith.constant 0 : index
    %7 = vector.load %arg4[%c0_5, %c0_6] : memref<512x128xbf16, #tpu.memory_space<vmem>>, vector<512x128xbf16>
    tpu.vector_store %arg4[%c0_5, %c0_6], %6 {strides = array<i32>} : memref<512x128xbf16, #tpu.memory_space<vmem>>, vector<512x128xbf16>,
    return
  }
  func.func @transform_0(%arg0: i32) -> (i32, i32) {
    %c0_i32 = arith.constant 0 : i32
    %c0_i32_0 = arith.constant 0 : i32
    return %arg0, %c0_i32 : i32, i32
  }
  func.func @transform_1(%arg0: i32) -> (i32, i32) {
    %c0_i32 = arith.constant 0 : i32
    %c0_i32_0 = arith.constant 0 : i32
    %c0_i32_1 = arith.constant 0 : i32
    return %c0_i32, %c0_i32_0 : i32, i32
  }
  func.func @transform_2(%arg0: i32) -> (i32, i32) {
    %c0_i32 = arith.constant 0 : i32
    %c0_i32_0 = arith.constant 0 : i32
    %c0_i32_1 = arith.constant 0 : i32
    return %c0_i32, %c0_i32_0 : i32, i32
  }
  func.func @transform_3(%arg0: i32) -> (i32, i32) {
    %c0_i32 = arith.constant 0 : i32
    %c0_i32_0 = arith.constant 0 : i32
    return %arg0, %c0_i32 : i32, i32
  }
}

module attributes {stable_mosaic.version = 11 : i64} {
  func.func @_bn_stats_kernel(%arg0: i32, %arg1: memref<512x128xbf16, #tpu.memory_space<vmem>>, %arg2: memref<1x128xf32, #tpu.memory_space<vmem>>, %arg3: memref<1x128xf32, #tpu.memory_space<vmem>>) attributes {dimension_semantics = [#tpu.dimension_semantics<arbitrary>], iteration_bounds = array<i64: 1>, scalar_prefetch = 0 : i64, scratch_operands = 0 : i64, tpu.core_type = #tpu.core_type<tc>, window_params = [{transform_indices = @transform_0, window_bounds = array<i64: 512, 128>}, {pipeline_mode = #tpu.pipeline_mode<synchronous>, transform_indices = @transform_1, window_bounds = array<i64: 1, 128>}, {pipeline_mode = #tpu.pipeline_mode<synchronous>, transform_indices = @transform_2, window_bounds = array<i64: 1, 128>}]} {
    %c0_i32 = arith.constant 0 : i32
    %0 = arith.cmpi eq, %arg0, %c0_i32 : i32
    %1 = arith.extui %0 : i1 to i32
    %c0_i32_0 = arith.constant 0 : i32
    %2 = arith.cmpi ne, %1, %c0_i32_0 : i32
    scf.if %2 {
      %cst_11 = arith.constant 0.000000e+00 : f32
      %16 = vector.broadcast %cst_11 : f32 to vector<1x128xf32>
      %c0_12 = arith.constant 0 : index
      %c0_13 = arith.constant 0 : index
      %17 = vector.load %arg2[%c0_12, %c0_13] : memref<1x128xf32, #tpu.memory_space<vmem>>, vector<1x128xf32>
      tpu.vector_store %arg2[%c0_12, %c0_13], %16 {strides = array<i32>} : memref<1x128xf32, #tpu.memory_space<vmem>>, vector<1x128xf32>,
      %cst_14 = arith.constant 0.000000e+00 : f32
      %18 = vector.broadcast %cst_14 : f32 to vector<1x128xf32>
      %c0_15 = arith.constant 0 : index
      %c0_16 = arith.constant 0 : index
      %19 = vector.load %arg3[%c0_15, %c0_16] : memref<1x128xf32, #tpu.memory_space<vmem>>, vector<1x128xf32>
      tpu.vector_store %arg3[%c0_15, %c0_16], %18 {strides = array<i32>} : memref<1x128xf32, #tpu.memory_space<vmem>>, vector<1x128xf32>,
    } else {
    }
    %c0 = arith.constant 0 : index
    %c0_1 = arith.constant 0 : index
    %3 = vector.load %arg1[%c0, %c0_1] : memref<512x128xbf16, #tpu.memory_space<vmem>>, vector<512x128xbf16>
    %4 = arith.extf %3 : vector<512x128xbf16> to vector<512x128xf32>
    %c0_2 = arith.constant 0 : index
    %c0_3 = arith.constant 0 : index
    %5 = vector.load %arg2[%c0_2, %c0_3] : memref<1x128xf32, #tpu.memory_space<vmem>>, vector<1x128xf32>
    %cst = arith.constant dense<0.000000e+00> : vector<128xf32>
    %6 = vector.multi_reduction <add>, %4, %cst [0] : vector<512x128xf32> to vector<128xf32>
    %7 = vector.shape_cast %6 : vector<128xf32> to vector<1x128xf32>
    %8 = arith.addf %5, %7 : vector<1x128xf32>
    %c0_4 = arith.constant 0 : index
    %c0_5 = arith.constant 0 : index
    %9 = vector.load %arg2[%c0_4, %c0_5] : memref<1x128xf32, #tpu.memory_space<vmem>>, vector<1x128xf32>
    tpu.vector_store %arg2[%c0_4, %c0_5], %8 {strides = array<i32>} : memref<1x128xf32, #tpu.memory_space<vmem>>, vector<1x128xf32>,
    %c0_6 = arith.constant 0 : index
    %c0_7 = arith.constant 0 : index
    %10 = vector.load %arg3[%c0_6, %c0_7] : memref<1x128xf32, #tpu.memory_space<vmem>>, vector<1x128xf32>
    %11 = arith.mulf %4, %4 : vector<512x128xf32>
    %cst_8 = arith.constant dense<0.000000e+00> : vector<128xf32>
    %12 = vector.multi_reduction <add>, %11, %cst_8 [0] : vector<512x128xf32> to vector<128xf32>
    %13 = vector.shape_cast %12 : vector<128xf32> to vector<1x128xf32>
    %14 = arith.addf %10, %13 : vector<1x128xf32>
    %c0_9 = arith.constant 0 : index
    %c0_10 = arith.constant 0 : index
    %15 = vector.load %arg3[%c0_9, %c0_10] : memref<1x128xf32, #tpu.memory_space<vmem>>, vector<1x128xf32>
    tpu.vector_store %arg3[%c0_9, %c0_10], %14 {strides = array<i32>} : memref<1x128xf32, #tpu.memory_space<vmem>>, vector<1x128xf32>,
    return
  }
  func.func @transform_0(%arg0: i32) -> (i32, i32) {
    %c0_i32 = arith.constant 0 : i32
    %c0_i32_0 = arith.constant 0 : i32
    return %arg0, %c0_i32 : i32, i32
  }
  func.func @transform_1(%arg0: i32) -> (i32, i32) {
    %c0_i32 = arith.constant 0 : i32
    %c0_i32_0 = arith.constant 0 : i32
    %c0_i32_1 = arith.constant 0 : i32
    return %c0_i32, %c0_i32_0 : i32, i32
  }
  func.func @transform_2(%arg0: i32) -> (i32, i32) {
    %c0_i32 = arith.constant 0 : i32
    %c0_i32_0 = arith.constant 0 : i32
    %c0_i32_1 = arith.constant 0 : i32
    return %c0_i32, %c0_i32_0 : i32, i32
  }
}

module attributes {stable_mosaic.version = 11 : i64} {
  func.func @_bn_norm_kernel(%arg0: i32, %arg1: memref<512x128xbf16, #tpu.memory_space<vmem>>, %arg2: memref<1x128xf32, #tpu.memory_space<vmem>>, %arg3: memref<1x128xf32, #tpu.memory_space<vmem>>, %arg4: memref<1x128xf32, #tpu.memory_space<vmem>>, %arg5: memref<1x128xf32, #tpu.memory_space<vmem>>, %arg6: memref<512x128xbf16, #tpu.memory_space<vmem>>) attributes {dimension_semantics = [#tpu.dimension_semantics<parallel>], iteration_bounds = array<i64: 1>, scalar_prefetch = 0 : i64, scratch_operands = 0 : i64, tpu.core_type = #tpu.core_type<tc>, window_params = [{transform_indices = @transform_0, window_bounds = array<i64: 512, 128>}, {pipeline_mode = #tpu.pipeline_mode<synchronous>, transform_indices = @transform_1, window_bounds = array<i64: 1, 128>}, {pipeline_mode = #tpu.pipeline_mode<synchronous>, transform_indices = @transform_2, window_bounds = array<i64: 1, 128>}, {pipeline_mode = #tpu.pipeline_mode<synchronous>, transform_indices = @transform_3, window_bounds = array<i64: 1, 128>}, {pipeline_mode = #tpu.pipeline_mode<synchronous>, transform_indices = @transform_4, window_bounds = array<i64: 1, 128>}, {transform_indices = @transform_5, window_bounds = array<i64: 512, 128>}]} {
    %c0 = arith.constant 0 : index
    %c0_0 = arith.constant 0 : index
    %0 = vector.load %arg2[%c0, %c0_0] : memref<1x128xf32, #tpu.memory_space<vmem>>, vector<1x128xf32>
    %c0_1 = arith.constant 0 : index
    %c0_2 = arith.constant 0 : index
    %1 = vector.load %arg3[%c0_1, %c0_2] : memref<1x128xf32, #tpu.memory_space<vmem>>, vector<1x128xf32>
    %c0_3 = arith.constant 0 : index
    %c0_4 = arith.constant 0 : index
    %2 = vector.load %arg4[%c0_3, %c0_4] : memref<1x128xf32, #tpu.memory_space<vmem>>, vector<1x128xf32>
    %c0_5 = arith.constant 0 : index
    %c0_6 = arith.constant 0 : index
    %3 = vector.load %arg5[%c0_5, %c0_6] : memref<1x128xf32, #tpu.memory_space<vmem>>, vector<1x128xf32>
    %cst = arith.constant 0.001953125 : f32
    %4 = vector.broadcast %cst : f32 to vector<1x128xf32>
    %5 = arith.mulf %0, %4 : vector<1x128xf32>
    %cst_7 = arith.constant 0.001953125 : f32
    %6 = vector.broadcast %cst_7 : f32 to vector<1x128xf32>
    %7 = arith.mulf %1, %6 : vector<1x128xf32>
    %8 = arith.mulf %5, %5 : vector<1x128xf32>
    %9 = arith.subf %7, %8 : vector<1x128xf32>
    %cst_8 = arith.constant 0.000000e+00 : f32
    %10 = vector.broadcast %cst_8 : f32 to vector<1x128xf32>
    %11 = arith.maximumf %9, %10 : vector<1x128xf32>
    %cst_9 = arith.constant 9.99999974E-6 : f32
    %12 = vector.broadcast %cst_9 : f32 to vector<1x128xf32>
    %13 = arith.addf %11, %12 : vector<1x128xf32>
    %14 = math.rsqrt %13 : vector<1x128xf32>
    %15 = arith.mulf %2, %14 : vector<1x128xf32>
    %16 = arith.mulf %5, %15 : vector<1x128xf32>
    %17 = arith.subf %3, %16 : vector<1x128xf32>
    %c0_10 = arith.constant 0 : index
    %c0_11 = arith.constant 0 : index
    %18 = vector.load %arg1[%c0_10, %c0_11] : memref<512x128xbf16, #tpu.memory_space<vmem>>, vector<512x128xbf16>
    %19 = arith.extf %18 : vector<512x128xbf16> to vector<512x128xf32>
    %20 = vector.broadcast %15 : vector<1x128xf32> to vector<512x128xf32>
    %21 = arith.mulf %19, %20 : vector<512x128xf32>
    %22 = vector.broadcast %17 : vector<1x128xf32> to vector<512x128xf32>
    %23 = arith.addf %21, %22 : vector<512x128xf32>
    %cst_12 = arith.constant 0.000000e+00 : f32
    %24 = vector.broadcast %cst_12 : f32 to vector<512x128xf32>
    %25 = arith.maximumf %23, %24 : vector<512x128xf32>
    %26 = arith.truncf %25 : vector<512x128xf32> to vector<512x128xbf16>
    %c0_13 = arith.constant 0 : index
    %c0_14 = arith.constant 0 : index
    %27 = vector.load %arg6[%c0_13, %c0_14] : memref<512x128xbf16, #tpu.memory_space<vmem>>, vector<512x128xbf16>
    tpu.vector_store %arg6[%c0_13, %c0_14], %26 {strides = array<i32>} : memref<512x128xbf16, #tpu.memory_space<vmem>>, vector<512x128xbf16>,
    return
  }
  func.func @transform_0(%arg0: i32) -> (i32, i32) {
    %c0_i32 = arith.constant 0 : i32
    %c0_i32_0 = arith.constant 0 : i32
    return %arg0, %c0_i32 : i32, i32
  }
  func.func @transform_1(%arg0: i32) -> (i32, i32) {
    %c0_i32 = arith.constant 0 : i32
    %c0_i32_0 = arith.constant 0 : i32
    %c0_i32_1 = arith.constant 0 : i32
    return %c0_i32, %c0_i32_0 : i32, i32
  }
  func.func @transform_2(%arg0: i32) -> (i32, i32) {
    %c0_i32 = arith.constant 0 : i32
    %c0_i32_0 = arith.constant 0 : i32
    %c0_i32_1 = arith.constant 0 : i32
    return %c0_i32, %c0_i32_0 : i32, i32
  }
  func.func @transform_3(%arg0: i32) -> (i32, i32) {
    %c0_i32 = arith.constant 0 : i32
    %c0_i32_0 = arith.constant 0 : i32
    %c0_i32_1 = arith.constant 0 : i32
    return %c0_i32, %c0_i32_0 : i32, i32
  }
  func.func @transform_4(%arg0: i32) -> (i32, i32) {
    %c0_i32 = arith.constant 0 : i32
    %c0_i32_0 = arith.constant 0 : i32
    %c0_i32_1 = arith.constant 0 : i32
    return %c0_i32, %c0_i32_0 : i32, i32
  }
  func.func @transform_5(%arg0: i32) -> (i32, i32) {
    %c0_i32 = arith.constant 0 : i32
    %c0_i32_0 = arith.constant 0 : i32
    return %arg0, %c0_i32 : i32, i32
  }
}

module attributes {stable_mosaic.version = 11 : i64} {
  func.func @_matmul_bias_kernel(%arg0: i32, %arg1: memref<128x128xbf16, #tpu.memory_space<vmem>>, %arg2: memref<128x128xbf16, #tpu.memory_space<vmem>>, %arg3: memref<1x128xf32, #tpu.memory_space<vmem>>, %arg4: memref<128x128xbf16, #tpu.memory_space<vmem>>) attributes {dimension_semantics = [#tpu.dimension_semantics<parallel>], iteration_bounds = array<i64: 1>, scalar_prefetch = 0 : i64, scratch_operands = 0 : i64, tpu.core_type = #tpu.core_type<tc>, window_params = [{transform_indices = @transform_0, window_bounds = array<i64: 128, 128>}, {pipeline_mode = #tpu.pipeline_mode<synchronous>, transform_indices = @transform_1, window_bounds = array<i64: 128, 128>}, {pipeline_mode = #tpu.pipeline_mode<synchronous>, transform_indices = @transform_2, window_bounds = array<i64: 1, 128>}, {transform_indices = @transform_3, window_bounds = array<i64: 128, 128>}]} {
    %c0 = arith.constant 0 : index
    %c0_0 = arith.constant 0 : index
    %0 = vector.load %arg1[%c0, %c0_0] : memref<128x128xbf16, #tpu.memory_space<vmem>>, vector<128x128xbf16>
    %c0_1 = arith.constant 0 : index
    %c0_2 = arith.constant 0 : index
    %1 = vector.load %arg2[%c0_1, %c0_2] : memref<128x128xbf16, #tpu.memory_space<vmem>>, vector<128x128xbf16>
    %cst = arith.constant dense<0.000000e+00> : vector<128x128xf32>
    %2 = tpu.matmul %0, %1, %cst {dimension_numbers = #tpu.dot_dimension_numbers<[1], [0], [0], [1], [0, 0, 1, 1], [], []>} : vector<128x128xbf16>, vector<128x128xbf16>, vector<128x128xf32> -> vector<128x128xf32>
    %c0_3 = arith.constant 0 : index
    %c0_4 = arith.constant 0 : index
    %3 = vector.load %arg3[%c0_3, %c0_4] : memref<1x128xf32, #tpu.memory_space<vmem>>, vector<1x128xf32>
    %4 = vector.broadcast %3 : vector<1x128xf32> to vector<128x128xf32>
    %5 = arith.addf %2, %4 : vector<128x128xf32>
    %6 = arith.truncf %5 : vector<128x128xf32> to vector<128x128xbf16>
    %c0_5 = arith.constant 0 : index
    %c0_6 = arith.constant 0 : index
    %7 = vector.load %arg4[%c0_5, %c0_6] : memref<128x128xbf16, #tpu.memory_space<vmem>>, vector<128x128xbf16>
    tpu.vector_store %arg4[%c0_5, %c0_6], %6 {strides = array<i32>} : memref<128x128xbf16, #tpu.memory_space<vmem>>, vector<128x128xbf16>,
    return
  }
  func.func @transform_0(%arg0: i32) -> (i32, i32) {
    %c0_i32 = arith.constant 0 : i32
    %c0_i32_0 = arith.constant 0 : i32
    return %arg0, %c0_i32 : i32, i32
  }
  func.func @transform_1(%arg0: i32) -> (i32, i32) {
    %c0_i32 = arith.constant 0 : i32
    %c0_i32_0 = arith.constant 0 : i32
    %c0_i32_1 = arith.constant 0 : i32
    return %c0_i32, %c0_i32_0 : i32, i32
  }
  func.func @transform_2(%arg0: i32) -> (i32, i32) {
    %c0_i32 = arith.constant 0 : i32
    %c0_i32_0 = arith.constant 0 : i32
    %c0_i32_1 = arith.constant 0 : i32
    return %c0_i32, %c0_i32_0 : i32, i32
  }
  func.func @transform_3(%arg0: i32) -> (i32, i32) {
    %c0_i32 = arith.constant 0 : i32
    %c0_i32_0 = arith.constant 0 : i32
    return %arg0, %c0_i32 : i32, i32
  }
}

module attributes {stable_mosaic.version = 11 : i64} {
  func.func @_bn_stats_kernel(%arg0: i32, %arg1: memref<128x128xbf16, #tpu.memory_space<vmem>>, %arg2: memref<1x128xf32, #tpu.memory_space<vmem>>, %arg3: memref<1x128xf32, #tpu.memory_space<vmem>>) attributes {dimension_semantics = [#tpu.dimension_semantics<arbitrary>], iteration_bounds = array<i64: 1>, scalar_prefetch = 0 : i64, scratch_operands = 0 : i64, tpu.core_type = #tpu.core_type<tc>, window_params = [{transform_indices = @transform_0, window_bounds = array<i64: 128, 128>}, {pipeline_mode = #tpu.pipeline_mode<synchronous>, transform_indices = @transform_1, window_bounds = array<i64: 1, 128>}, {pipeline_mode = #tpu.pipeline_mode<synchronous>, transform_indices = @transform_2, window_bounds = array<i64: 1, 128>}]} {
    %c0_i32 = arith.constant 0 : i32
    %0 = arith.cmpi eq, %arg0, %c0_i32 : i32
    %1 = arith.extui %0 : i1 to i32
    %c0_i32_0 = arith.constant 0 : i32
    %2 = arith.cmpi ne, %1, %c0_i32_0 : i32
    scf.if %2 {
      %cst_11 = arith.constant 0.000000e+00 : f32
      %16 = vector.broadcast %cst_11 : f32 to vector<1x128xf32>
      %c0_12 = arith.constant 0 : index
      %c0_13 = arith.constant 0 : index
      %17 = vector.load %arg2[%c0_12, %c0_13] : memref<1x128xf32, #tpu.memory_space<vmem>>, vector<1x128xf32>
      tpu.vector_store %arg2[%c0_12, %c0_13], %16 {strides = array<i32>} : memref<1x128xf32, #tpu.memory_space<vmem>>, vector<1x128xf32>,
      %cst_14 = arith.constant 0.000000e+00 : f32
      %18 = vector.broadcast %cst_14 : f32 to vector<1x128xf32>
      %c0_15 = arith.constant 0 : index
      %c0_16 = arith.constant 0 : index
      %19 = vector.load %arg3[%c0_15, %c0_16] : memref<1x128xf32, #tpu.memory_space<vmem>>, vector<1x128xf32>
      tpu.vector_store %arg3[%c0_15, %c0_16], %18 {strides = array<i32>} : memref<1x128xf32, #tpu.memory_space<vmem>>, vector<1x128xf32>,
    } else {
    }
    %c0 = arith.constant 0 : index
    %c0_1 = arith.constant 0 : index
    %3 = vector.load %arg1[%c0, %c0_1] : memref<128x128xbf16, #tpu.memory_space<vmem>>, vector<128x128xbf16>
    %4 = arith.extf %3 : vector<128x128xbf16> to vector<128x128xf32>
    %c0_2 = arith.constant 0 : index
    %c0_3 = arith.constant 0 : index
    %5 = vector.load %arg2[%c0_2, %c0_3] : memref<1x128xf32, #tpu.memory_space<vmem>>, vector<1x128xf32>
    %cst = arith.constant dense<0.000000e+00> : vector<128xf32>
    %6 = vector.multi_reduction <add>, %4, %cst [0] : vector<128x128xf32> to vector<128xf32>
    %7 = vector.shape_cast %6 : vector<128xf32> to vector<1x128xf32>
    %8 = arith.addf %5, %7 : vector<1x128xf32>
    %c0_4 = arith.constant 0 : index
    %c0_5 = arith.constant 0 : index
    %9 = vector.load %arg2[%c0_4, %c0_5] : memref<1x128xf32, #tpu.memory_space<vmem>>, vector<1x128xf32>
    tpu.vector_store %arg2[%c0_4, %c0_5], %8 {strides = array<i32>} : memref<1x128xf32, #tpu.memory_space<vmem>>, vector<1x128xf32>,
    %c0_6 = arith.constant 0 : index
    %c0_7 = arith.constant 0 : index
    %10 = vector.load %arg3[%c0_6, %c0_7] : memref<1x128xf32, #tpu.memory_space<vmem>>, vector<1x128xf32>
    %11 = arith.mulf %4, %4 : vector<128x128xf32>
    %cst_8 = arith.constant dense<0.000000e+00> : vector<128xf32>
    %12 = vector.multi_reduction <add>, %11, %cst_8 [0] : vector<128x128xf32> to vector<128xf32>
    %13 = vector.shape_cast %12 : vector<128xf32> to vector<1x128xf32>
    %14 = arith.addf %10, %13 : vector<1x128xf32>
    %c0_9 = arith.constant 0 : index
    %c0_10 = arith.constant 0 : index
    %15 = vector.load %arg3[%c0_9, %c0_10] : memref<1x128xf32, #tpu.memory_space<vmem>>, vector<1x128xf32>
    tpu.vector_store %arg3[%c0_9, %c0_10], %14 {strides = array<i32>} : memref<1x128xf32, #tpu.memory_space<vmem>>, vector<1x128xf32>,
    return
  }
  func.func @transform_0(%arg0: i32) -> (i32, i32) {
    %c0_i32 = arith.constant 0 : i32
    %c0_i32_0 = arith.constant 0 : i32
    return %arg0, %c0_i32 : i32, i32
  }
  func.func @transform_1(%arg0: i32) -> (i32, i32) {
    %c0_i32 = arith.constant 0 : i32
    %c0_i32_0 = arith.constant 0 : i32
    %c0_i32_1 = arith.constant 0 : i32
    return %c0_i32, %c0_i32_0 : i32, i32
  }
  func.func @transform_2(%arg0: i32) -> (i32, i32) {
    %c0_i32 = arith.constant 0 : i32
    %c0_i32_0 = arith.constant 0 : i32
    %c0_i32_1 = arith.constant 0 : i32
    return %c0_i32, %c0_i32_0 : i32, i32
  }
}

module attributes {stable_mosaic.version = 11 : i64} {
  func.func @_bn_norm_kernel(%arg0: i32, %arg1: memref<128x128xbf16, #tpu.memory_space<vmem>>, %arg2: memref<1x128xf32, #tpu.memory_space<vmem>>, %arg3: memref<1x128xf32, #tpu.memory_space<vmem>>, %arg4: memref<1x128xf32, #tpu.memory_space<vmem>>, %arg5: memref<1x128xf32, #tpu.memory_space<vmem>>, %arg6: memref<128x128xbf16, #tpu.memory_space<vmem>>) attributes {dimension_semantics = [#tpu.dimension_semantics<parallel>], iteration_bounds = array<i64: 1>, scalar_prefetch = 0 : i64, scratch_operands = 0 : i64, tpu.core_type = #tpu.core_type<tc>, window_params = [{transform_indices = @transform_0, window_bounds = array<i64: 128, 128>}, {pipeline_mode = #tpu.pipeline_mode<synchronous>, transform_indices = @transform_1, window_bounds = array<i64: 1, 128>}, {pipeline_mode = #tpu.pipeline_mode<synchronous>, transform_indices = @transform_2, window_bounds = array<i64: 1, 128>}, {pipeline_mode = #tpu.pipeline_mode<synchronous>, transform_indices = @transform_3, window_bounds = array<i64: 1, 128>}, {pipeline_mode = #tpu.pipeline_mode<synchronous>, transform_indices = @transform_4, window_bounds = array<i64: 1, 128>}, {transform_indices = @transform_5, window_bounds = array<i64: 128, 128>}]} {
    %c0 = arith.constant 0 : index
    %c0_0 = arith.constant 0 : index
    %0 = vector.load %arg2[%c0, %c0_0] : memref<1x128xf32, #tpu.memory_space<vmem>>, vector<1x128xf32>
    %c0_1 = arith.constant 0 : index
    %c0_2 = arith.constant 0 : index
    %1 = vector.load %arg3[%c0_1, %c0_2] : memref<1x128xf32, #tpu.memory_space<vmem>>, vector<1x128xf32>
    %c0_3 = arith.constant 0 : index
    %c0_4 = arith.constant 0 : index
    %2 = vector.load %arg4[%c0_3, %c0_4] : memref<1x128xf32, #tpu.memory_space<vmem>>, vector<1x128xf32>
    %c0_5 = arith.constant 0 : index
    %c0_6 = arith.constant 0 : index
    %3 = vector.load %arg5[%c0_5, %c0_6] : memref<1x128xf32, #tpu.memory_space<vmem>>, vector<1x128xf32>
    %cst = arith.constant 7.812500e-03 : f32
    %4 = vector.broadcast %cst : f32 to vector<1x128xf32>
    %5 = arith.mulf %0, %4 : vector<1x128xf32>
    %cst_7 = arith.constant 7.812500e-03 : f32
    %6 = vector.broadcast %cst_7 : f32 to vector<1x128xf32>
    %7 = arith.mulf %1, %6 : vector<1x128xf32>
    %8 = arith.mulf %5, %5 : vector<1x128xf32>
    %9 = arith.subf %7, %8 : vector<1x128xf32>
    %cst_8 = arith.constant 0.000000e+00 : f32
    %10 = vector.broadcast %cst_8 : f32 to vector<1x128xf32>
    %11 = arith.maximumf %9, %10 : vector<1x128xf32>
    %cst_9 = arith.constant 9.99999974E-6 : f32
    %12 = vector.broadcast %cst_9 : f32 to vector<1x128xf32>
    %13 = arith.addf %11, %12 : vector<1x128xf32>
    %14 = math.rsqrt %13 : vector<1x128xf32>
    %15 = arith.mulf %2, %14 : vector<1x128xf32>
    %16 = arith.mulf %5, %15 : vector<1x128xf32>
    %17 = arith.subf %3, %16 : vector<1x128xf32>
    %c0_10 = arith.constant 0 : index
    %c0_11 = arith.constant 0 : index
    %18 = vector.load %arg1[%c0_10, %c0_11] : memref<128x128xbf16, #tpu.memory_space<vmem>>, vector<128x128xbf16>
    %19 = arith.extf %18 : vector<128x128xbf16> to vector<128x128xf32>
    %20 = vector.broadcast %15 : vector<1x128xf32> to vector<128x128xf32>
    %21 = arith.mulf %19, %20 : vector<128x128xf32>
    %22 = vector.broadcast %17 : vector<1x128xf32> to vector<128x128xf32>
    %23 = arith.addf %21, %22 : vector<128x128xf32>
    %cst_12 = arith.constant 0.000000e+00 : f32
    %24 = vector.broadcast %cst_12 : f32 to vector<128x128xf32>
    %25 = arith.maximumf %23, %24 : vector<128x128xf32>
    %26 = arith.truncf %25 : vector<128x128xf32> to vector<128x128xbf16>
    %c0_13 = arith.constant 0 : index
    %c0_14 = arith.constant 0 : index
    %27 = vector.load %arg6[%c0_13, %c0_14] : memref<128x128xbf16, #tpu.memory_space<vmem>>, vector<128x128xbf16>
    tpu.vector_store %arg6[%c0_13, %c0_14], %26 {strides = array<i32>} : memref<128x128xbf16, #tpu.memory_space<vmem>>, vector<128x128xbf16>,
    return
  }
  func.func @transform_0(%arg0: i32) -> (i32, i32) {
    %c0_i32 = arith.constant 0 : i32
    %c0_i32_0 = arith.constant 0 : i32
    return %arg0, %c0_i32 : i32, i32
  }
  func.func @transform_1(%arg0: i32) -> (i32, i32) {
    %c0_i32 = arith.constant 0 : i32
    %c0_i32_0 = arith.constant 0 : i32
    %c0_i32_1 = arith.constant 0 : i32
    return %c0_i32, %c0_i32_0 : i32, i32
  }
  func.func @transform_2(%arg0: i32) -> (i32, i32) {
    %c0_i32 = arith.constant 0 : i32
    %c0_i32_0 = arith.constant 0 : i32
    %c0_i32_1 = arith.constant 0 : i32
    return %c0_i32, %c0_i32_0 : i32, i32
  }
  func.func @transform_3(%arg0: i32) -> (i32, i32) {
    %c0_i32 = arith.constant 0 : i32
    %c0_i32_0 = arith.constant 0 : i32
    %c0_i32_1 = arith.constant 0 : i32
    return %c0_i32, %c0_i32_0 : i32, i32
  }
  func.func @transform_4(%arg0: i32) -> (i32, i32) {
    %c0_i32 = arith.constant 0 : i32
    %c0_i32_0 = arith.constant 0 : i32
    %c0_i32_1 = arith.constant 0 : i32
    return %c0_i32, %c0_i32_0 : i32, i32
  }
  func.func @transform_5(%arg0: i32) -> (i32, i32) {
    %c0_i32 = arith.constant 0 : i32
    %c0_i32_0 = arith.constant 0 : i32
    return %arg0, %c0_i32 : i32, i32
  }
}

module attributes {stable_mosaic.version = 11 : i64} {
  func.func @_matmul_bias_kernel(%arg0: i32, %arg1: memref<32x256xbf16, #tpu.memory_space<vmem>>, %arg2: memref<256x128xbf16, #tpu.memory_space<vmem>>, %arg3: memref<1x128xf32, #tpu.memory_space<vmem>>, %arg4: memref<32x128xbf16, #tpu.memory_space<vmem>>) attributes {dimension_semantics = [#tpu.dimension_semantics<parallel>], iteration_bounds = array<i64: 1>, scalar_prefetch = 0 : i64, scratch_operands = 0 : i64, tpu.core_type = #tpu.core_type<tc>, window_params = [{transform_indices = @transform_0, window_bounds = array<i64: 32, 256>}, {pipeline_mode = #tpu.pipeline_mode<synchronous>, transform_indices = @transform_1, window_bounds = array<i64: 256, 128>}, {pipeline_mode = #tpu.pipeline_mode<synchronous>, transform_indices = @transform_2, window_bounds = array<i64: 1, 128>}, {transform_indices = @transform_3, window_bounds = array<i64: 32, 128>}]} {
    %c0 = arith.constant 0 : index
    %c0_0 = arith.constant 0 : index
    %0 = vector.load %arg1[%c0, %c0_0] : memref<32x256xbf16, #tpu.memory_space<vmem>>, vector<32x256xbf16>
    %c0_1 = arith.constant 0 : index
    %c0_2 = arith.constant 0 : index
    %1 = vector.load %arg2[%c0_1, %c0_2] : memref<256x128xbf16, #tpu.memory_space<vmem>>, vector<256x128xbf16>
    %cst = arith.constant dense<0.000000e+00> : vector<32x128xf32>
    %2 = tpu.matmul %0, %1, %cst {dimension_numbers = #tpu.dot_dimension_numbers<[1], [0], [0], [1], [0, 0, 1, 1], [], []>} : vector<32x256xbf16>, vector<256x128xbf16>, vector<32x128xf32> -> vector<32x128xf32>
    %c0_3 = arith.constant 0 : index
    %c0_4 = arith.constant 0 : index
    %3 = vector.load %arg3[%c0_3, %c0_4] : memref<1x128xf32, #tpu.memory_space<vmem>>, vector<1x128xf32>
    %4 = vector.broadcast %3 : vector<1x128xf32> to vector<32x128xf32>
    %5 = arith.addf %2, %4 : vector<32x128xf32>
    %6 = arith.truncf %5 : vector<32x128xf32> to vector<32x128xbf16>
    %c0_5 = arith.constant 0 : index
    %c0_6 = arith.constant 0 : index
    %7 = vector.load %arg4[%c0_5, %c0_6] : memref<32x128xbf16, #tpu.memory_space<vmem>>, vector<32x128xbf16>
    tpu.vector_store %arg4[%c0_5, %c0_6], %6 {strides = array<i32>} : memref<32x128xbf16, #tpu.memory_space<vmem>>, vector<32x128xbf16>,
    return
  }
  func.func @transform_0(%arg0: i32) -> (i32, i32) {
    %c0_i32 = arith.constant 0 : i32
    %c0_i32_0 = arith.constant 0 : i32
    return %arg0, %c0_i32 : i32, i32
  }
  func.func @transform_1(%arg0: i32) -> (i32, i32) {
    %c0_i32 = arith.constant 0 : i32
    %c0_i32_0 = arith.constant 0 : i32
    %c0_i32_1 = arith.constant 0 : i32
    return %c0_i32, %c0_i32_0 : i32, i32
  }
  func.func @transform_2(%arg0: i32) -> (i32, i32) {
    %c0_i32 = arith.constant 0 : i32
    %c0_i32_0 = arith.constant 0 : i32
    %c0_i32_1 = arith.constant 0 : i32
    return %c0_i32, %c0_i32_0 : i32, i32
  }
  func.func @transform_3(%arg0: i32) -> (i32, i32) {
    %c0_i32 = arith.constant 0 : i32
    %c0_i32_0 = arith.constant 0 : i32
    return %arg0, %c0_i32 : i32, i32
  }
}

module attributes {stable_mosaic.version = 11 : i64} {
  func.func @_bn_stats_kernel(%arg0: i32, %arg1: memref<32x128xbf16, #tpu.memory_space<vmem>>, %arg2: memref<1x128xf32, #tpu.memory_space<vmem>>, %arg3: memref<1x128xf32, #tpu.memory_space<vmem>>) attributes {dimension_semantics = [#tpu.dimension_semantics<arbitrary>], iteration_bounds = array<i64: 1>, scalar_prefetch = 0 : i64, scratch_operands = 0 : i64, tpu.core_type = #tpu.core_type<tc>, window_params = [{transform_indices = @transform_0, window_bounds = array<i64: 32, 128>}, {pipeline_mode = #tpu.pipeline_mode<synchronous>, transform_indices = @transform_1, window_bounds = array<i64: 1, 128>}, {pipeline_mode = #tpu.pipeline_mode<synchronous>, transform_indices = @transform_2, window_bounds = array<i64: 1, 128>}]} {
    %c0_i32 = arith.constant 0 : i32
    %0 = arith.cmpi eq, %arg0, %c0_i32 : i32
    %1 = arith.extui %0 : i1 to i32
    %c0_i32_0 = arith.constant 0 : i32
    %2 = arith.cmpi ne, %1, %c0_i32_0 : i32
    scf.if %2 {
      %cst_11 = arith.constant 0.000000e+00 : f32
      %16 = vector.broadcast %cst_11 : f32 to vector<1x128xf32>
      %c0_12 = arith.constant 0 : index
      %c0_13 = arith.constant 0 : index
      %17 = vector.load %arg2[%c0_12, %c0_13] : memref<1x128xf32, #tpu.memory_space<vmem>>, vector<1x128xf32>
      tpu.vector_store %arg2[%c0_12, %c0_13], %16 {strides = array<i32>} : memref<1x128xf32, #tpu.memory_space<vmem>>, vector<1x128xf32>,
      %cst_14 = arith.constant 0.000000e+00 : f32
      %18 = vector.broadcast %cst_14 : f32 to vector<1x128xf32>
      %c0_15 = arith.constant 0 : index
      %c0_16 = arith.constant 0 : index
      %19 = vector.load %arg3[%c0_15, %c0_16] : memref<1x128xf32, #tpu.memory_space<vmem>>, vector<1x128xf32>
      tpu.vector_store %arg3[%c0_15, %c0_16], %18 {strides = array<i32>} : memref<1x128xf32, #tpu.memory_space<vmem>>, vector<1x128xf32>,
    } else {
    }
    %c0 = arith.constant 0 : index
    %c0_1 = arith.constant 0 : index
    %3 = vector.load %arg1[%c0, %c0_1] : memref<32x128xbf16, #tpu.memory_space<vmem>>, vector<32x128xbf16>
    %4 = arith.extf %3 : vector<32x128xbf16> to vector<32x128xf32>
    %c0_2 = arith.constant 0 : index
    %c0_3 = arith.constant 0 : index
    %5 = vector.load %arg2[%c0_2, %c0_3] : memref<1x128xf32, #tpu.memory_space<vmem>>, vector<1x128xf32>
    %cst = arith.constant dense<0.000000e+00> : vector<128xf32>
    %6 = vector.multi_reduction <add>, %4, %cst [0] : vector<32x128xf32> to vector<128xf32>
    %7 = vector.shape_cast %6 : vector<128xf32> to vector<1x128xf32>
    %8 = arith.addf %5, %7 : vector<1x128xf32>
    %c0_4 = arith.constant 0 : index
    %c0_5 = arith.constant 0 : index
    %9 = vector.load %arg2[%c0_4, %c0_5] : memref<1x128xf32, #tpu.memory_space<vmem>>, vector<1x128xf32>
    tpu.vector_store %arg2[%c0_4, %c0_5], %8 {strides = array<i32>} : memref<1x128xf32, #tpu.memory_space<vmem>>, vector<1x128xf32>,
    %c0_6 = arith.constant 0 : index
    %c0_7 = arith.constant 0 : index
    %10 = vector.load %arg3[%c0_6, %c0_7] : memref<1x128xf32, #tpu.memory_space<vmem>>, vector<1x128xf32>
    %11 = arith.mulf %4, %4 : vector<32x128xf32>
    %cst_8 = arith.constant dense<0.000000e+00> : vector<128xf32>
    %12 = vector.multi_reduction <add>, %11, %cst_8 [0] : vector<32x128xf32> to vector<128xf32>
    %13 = vector.shape_cast %12 : vector<128xf32> to vector<1x128xf32>
    %14 = arith.addf %10, %13 : vector<1x128xf32>
    %c0_9 = arith.constant 0 : index
    %c0_10 = arith.constant 0 : index
    %15 = vector.load %arg3[%c0_9, %c0_10] : memref<1x128xf32, #tpu.memory_space<vmem>>, vector<1x128xf32>
    tpu.vector_store %arg3[%c0_9, %c0_10], %14 {strides = array<i32>} : memref<1x128xf32, #tpu.memory_space<vmem>>, vector<1x128xf32>,
    return
  }
  func.func @transform_0(%arg0: i32) -> (i32, i32) {
    %c0_i32 = arith.constant 0 : i32
    %c0_i32_0 = arith.constant 0 : i32
    return %arg0, %c0_i32 : i32, i32
  }
  func.func @transform_1(%arg0: i32) -> (i32, i32) {
    %c0_i32 = arith.constant 0 : i32
    %c0_i32_0 = arith.constant 0 : i32
    %c0_i32_1 = arith.constant 0 : i32
    return %c0_i32, %c0_i32_0 : i32, i32
  }
  func.func @transform_2(%arg0: i32) -> (i32, i32) {
    %c0_i32 = arith.constant 0 : i32
    %c0_i32_0 = arith.constant 0 : i32
    %c0_i32_1 = arith.constant 0 : i32
    return %c0_i32, %c0_i32_0 : i32, i32
  }
}

module attributes {stable_mosaic.version = 11 : i64} {
  func.func @_bn_norm_kernel(%arg0: i32, %arg1: memref<32x128xbf16, #tpu.memory_space<vmem>>, %arg2: memref<1x128xf32, #tpu.memory_space<vmem>>, %arg3: memref<1x128xf32, #tpu.memory_space<vmem>>, %arg4: memref<1x128xf32, #tpu.memory_space<vmem>>, %arg5: memref<1x128xf32, #tpu.memory_space<vmem>>, %arg6: memref<32x128xbf16, #tpu.memory_space<vmem>>) attributes {dimension_semantics = [#tpu.dimension_semantics<parallel>], iteration_bounds = array<i64: 1>, scalar_prefetch = 0 : i64, scratch_operands = 0 : i64, tpu.core_type = #tpu.core_type<tc>, window_params = [{transform_indices = @transform_0, window_bounds = array<i64: 32, 128>}, {pipeline_mode = #tpu.pipeline_mode<synchronous>, transform_indices = @transform_1, window_bounds = array<i64: 1, 128>}, {pipeline_mode = #tpu.pipeline_mode<synchronous>, transform_indices = @transform_2, window_bounds = array<i64: 1, 128>}, {pipeline_mode = #tpu.pipeline_mode<synchronous>, transform_indices = @transform_3, window_bounds = array<i64: 1, 128>}, {pipeline_mode = #tpu.pipeline_mode<synchronous>, transform_indices = @transform_4, window_bounds = array<i64: 1, 128>}, {transform_indices = @transform_5, window_bounds = array<i64: 32, 128>}]} {
    %c0 = arith.constant 0 : index
    %c0_0 = arith.constant 0 : index
    %0 = vector.load %arg2[%c0, %c0_0] : memref<1x128xf32, #tpu.memory_space<vmem>>, vector<1x128xf32>
    %c0_1 = arith.constant 0 : index
    %c0_2 = arith.constant 0 : index
    %1 = vector.load %arg3[%c0_1, %c0_2] : memref<1x128xf32, #tpu.memory_space<vmem>>, vector<1x128xf32>
    %c0_3 = arith.constant 0 : index
    %c0_4 = arith.constant 0 : index
    %2 = vector.load %arg4[%c0_3, %c0_4] : memref<1x128xf32, #tpu.memory_space<vmem>>, vector<1x128xf32>
    %c0_5 = arith.constant 0 : index
    %c0_6 = arith.constant 0 : index
    %3 = vector.load %arg5[%c0_5, %c0_6] : memref<1x128xf32, #tpu.memory_space<vmem>>, vector<1x128xf32>
    %cst = arith.constant 3.125000e-02 : f32
    %4 = vector.broadcast %cst : f32 to vector<1x128xf32>
    %5 = arith.mulf %0, %4 : vector<1x128xf32>
    %cst_7 = arith.constant 3.125000e-02 : f32
    %6 = vector.broadcast %cst_7 : f32 to vector<1x128xf32>
    %7 = arith.mulf %1, %6 : vector<1x128xf32>
    %8 = arith.mulf %5, %5 : vector<1x128xf32>
    %9 = arith.subf %7, %8 : vector<1x128xf32>
    %cst_8 = arith.constant 0.000000e+00 : f32
    %10 = vector.broadcast %cst_8 : f32 to vector<1x128xf32>
    %11 = arith.maximumf %9, %10 : vector<1x128xf32>
    %cst_9 = arith.constant 9.99999974E-6 : f32
    %12 = vector.broadcast %cst_9 : f32 to vector<1x128xf32>
    %13 = arith.addf %11, %12 : vector<1x128xf32>
    %14 = math.rsqrt %13 : vector<1x128xf32>
    %15 = arith.mulf %2, %14 : vector<1x128xf32>
    %16 = arith.mulf %5, %15 : vector<1x128xf32>
    %17 = arith.subf %3, %16 : vector<1x128xf32>
    %c0_10 = arith.constant 0 : index
    %c0_11 = arith.constant 0 : index
    %18 = vector.load %arg1[%c0_10, %c0_11] : memref<32x128xbf16, #tpu.memory_space<vmem>>, vector<32x128xbf16>
    %19 = arith.extf %18 : vector<32x128xbf16> to vector<32x128xf32>
    %20 = vector.broadcast %15 : vector<1x128xf32> to vector<32x128xf32>
    %21 = arith.mulf %19, %20 : vector<32x128xf32>
    %22 = vector.broadcast %17 : vector<1x128xf32> to vector<32x128xf32>
    %23 = arith.addf %21, %22 : vector<32x128xf32>
    %cst_12 = arith.constant 0.000000e+00 : f32
    %24 = vector.broadcast %cst_12 : f32 to vector<32x128xf32>
    %25 = arith.maximumf %23, %24 : vector<32x128xf32>
    %26 = arith.truncf %25 : vector<32x128xf32> to vector<32x128xbf16>
    %c0_13 = arith.constant 0 : index
    %c0_14 = arith.constant 0 : index
    %27 = vector.load %arg6[%c0_13, %c0_14] : memref<32x128xbf16, #tpu.memory_space<vmem>>, vector<32x128xbf16>
    tpu.vector_store %arg6[%c0_13, %c0_14], %26 {strides = array<i32>} : memref<32x128xbf16, #tpu.memory_space<vmem>>, vector<32x128xbf16>,
    return
  }
  func.func @transform_0(%arg0: i32) -> (i32, i32) {
    %c0_i32 = arith.constant 0 : i32
    %c0_i32_0 = arith.constant 0 : i32
    return %arg0, %c0_i32 : i32, i32
  }
  func.func @transform_1(%arg0: i32) -> (i32, i32) {
    %c0_i32 = arith.constant 0 : i32
    %c0_i32_0 = arith.constant 0 : i32
    %c0_i32_1 = arith.constant 0 : i32
    return %c0_i32, %c0_i32_0 : i32, i32
  }
  func.func @transform_2(%arg0: i32) -> (i32, i32) {
    %c0_i32 = arith.constant 0 : i32
    %c0_i32_0 = arith.constant 0 : i32
    %c0_i32_1 = arith.constant 0 : i32
    return %c0_i32, %c0_i32_0 : i32, i32
  }
  func.func @transform_3(%arg0: i32) -> (i32, i32) {
    %c0_i32 = arith.constant 0 : i32
    %c0_i32_0 = arith.constant 0 : i32
    %c0_i32_1 = arith.constant 0 : i32
    return %c0_i32, %c0_i32_0 : i32, i32
  }
  func.func @transform_4(%arg0: i32) -> (i32, i32) {
    %c0_i32 = arith.constant 0 : i32
    %c0_i32_0 = arith.constant 0 : i32
    %c0_i32_1 = arith.constant 0 : i32
    return %c0_i32, %c0_i32_0 : i32, i32
  }
  func.func @transform_5(%arg0: i32) -> (i32, i32) {
    %c0_i32 = arith.constant 0 : i32
    %c0_i32_0 = arith.constant 0 : i32
    return %arg0, %c0_i32 : i32, i32
  }
}

module attributes {stable_mosaic.version = 11 : i64} {
  func.func @_bn_norm_residual_kernel(%arg0: i32, %arg1: memref<32x128xbf16, #tpu.memory_space<vmem>>, %arg2: memref<1x128xf32, #tpu.memory_space<vmem>>, %arg3: memref<1x128xf32, #tpu.memory_space<vmem>>, %arg4: memref<1x128xf32, #tpu.memory_space<vmem>>, %arg5: memref<1x128xf32, #tpu.memory_space<vmem>>, %arg6: memref<32x128xbf16, #tpu.memory_space<vmem>>, %arg7: memref<32x128xbf16, #tpu.memory_space<vmem>>) attributes {dimension_semantics = [#tpu.dimension_semantics<parallel>], iteration_bounds = array<i64: 1>, scalar_prefetch = 0 : i64, scratch_operands = 0 : i64, tpu.core_type = #tpu.core_type<tc>, window_params = [{transform_indices = @transform_0, window_bounds = array<i64: 32, 128>}, {pipeline_mode = #tpu.pipeline_mode<synchronous>, transform_indices = @transform_1, window_bounds = array<i64: 1, 128>}, {pipeline_mode = #tpu.pipeline_mode<synchronous>, transform_indices = @transform_2, window_bounds = array<i64: 1, 128>}, {pipeline_mode = #tpu.pipeline_mode<synchronous>, transform_indices = @transform_3, window_bounds = array<i64: 1, 128>}, {pipeline_mode = #tpu.pipeline_mode<synchronous>, transform_indices = @transform_4, window_bounds = array<i64: 1, 128>}, {transform_indices = @transform_5, window_bounds = array<i64: 32, 128>}, {transform_indices = @transform_6, window_bounds = array<i64: 32, 128>}]} {
    %c0 = arith.constant 0 : index
    %c0_0 = arith.constant 0 : index
    %0 = vector.load %arg2[%c0, %c0_0] : memref<1x128xf32, #tpu.memory_space<vmem>>, vector<1x128xf32>
    %c0_1 = arith.constant 0 : index
    %c0_2 = arith.constant 0 : index
    %1 = vector.load %arg3[%c0_1, %c0_2] : memref<1x128xf32, #tpu.memory_space<vmem>>, vector<1x128xf32>
    %c0_3 = arith.constant 0 : index
    %c0_4 = arith.constant 0 : index
    %2 = vector.load %arg4[%c0_3, %c0_4] : memref<1x128xf32, #tpu.memory_space<vmem>>, vector<1x128xf32>
    %c0_5 = arith.constant 0 : index
    %c0_6 = arith.constant 0 : index
    %3 = vector.load %arg5[%c0_5, %c0_6] : memref<1x128xf32, #tpu.memory_space<vmem>>, vector<1x128xf32>
    %cst = arith.constant 3.125000e-02 : f32
    %4 = vector.broadcast %cst : f32 to vector<1x128xf32>
    %5 = arith.mulf %0, %4 : vector<1x128xf32>
    %cst_7 = arith.constant 3.125000e-02 : f32
    %6 = vector.broadcast %cst_7 : f32 to vector<1x128xf32>
    %7 = arith.mulf %1, %6 : vector<1x128xf32>
    %8 = arith.mulf %5, %5 : vector<1x128xf32>
    %9 = arith.subf %7, %8 : vector<1x128xf32>
    %cst_8 = arith.constant 0.000000e+00 : f32
    %10 = vector.broadcast %cst_8 : f32 to vector<1x128xf32>
    %11 = arith.maximumf %9, %10 : vector<1x128xf32>
    %cst_9 = arith.constant 9.99999974E-6 : f32
    %12 = vector.broadcast %cst_9 : f32 to vector<1x128xf32>
    %13 = arith.addf %11, %12 : vector<1x128xf32>
    %14 = math.rsqrt %13 : vector<1x128xf32>
    %15 = arith.mulf %2, %14 : vector<1x128xf32>
    %16 = arith.mulf %5, %15 : vector<1x128xf32>
    %17 = arith.subf %3, %16 : vector<1x128xf32>
    %c0_10 = arith.constant 0 : index
    %c0_11 = arith.constant 0 : index
    %18 = vector.load %arg1[%c0_10, %c0_11] : memref<32x128xbf16, #tpu.memory_space<vmem>>, vector<32x128xbf16>
    %19 = arith.extf %18 : vector<32x128xbf16> to vector<32x128xf32>
    %20 = vector.broadcast %15 : vector<1x128xf32> to vector<32x128xf32>
    %21 = arith.mulf %19, %20 : vector<32x128xf32>
    %22 = vector.broadcast %17 : vector<1x128xf32> to vector<32x128xf32>
    %23 = arith.addf %21, %22 : vector<32x128xf32>
    %c0_12 = arith.constant 0 : index
    %c0_13 = arith.constant 0 : index
    %24 = vector.load %arg6[%c0_12, %c0_13] : memref<32x128xbf16, #tpu.memory_space<vmem>>, vector<32x128xbf16>
    %25 = arith.extf %24 : vector<32x128xbf16> to vector<32x128xf32>
    %26 = arith.addf %23, %25 : vector<32x128xf32>
    %27 = arith.truncf %26 : vector<32x128xf32> to vector<32x128xbf16>
    %c0_14 = arith.constant 0 : index
    %c0_15 = arith.constant 0 : index
    %28 = vector.load %arg7[%c0_14, %c0_15] : memref<32x128xbf16, #tpu.memory_space<vmem>>, vector<32x128xbf16>
    tpu.vector_store %arg7[%c0_14, %c0_15], %27 {strides = array<i32>} : memref<32x128xbf16, #tpu.memory_space<vmem>>, vector<32x128xbf16>,
    return
  }
  func.func @transform_0(%arg0: i32) -> (i32, i32) {
    %c0_i32 = arith.constant 0 : i32
    %c0_i32_0 = arith.constant 0 : i32
    return %arg0, %c0_i32 : i32, i32
  }
  func.func @transform_1(%arg0: i32) -> (i32, i32) {
    %c0_i32 = arith.constant 0 : i32
    %c0_i32_0 = arith.constant 0 : i32
    %c0_i32_1 = arith.constant 0 : i32
    return %c0_i32, %c0_i32_0 : i32, i32
  }
  func.func @transform_2(%arg0: i32) -> (i32, i32) {
    %c0_i32 = arith.constant 0 : i32
    %c0_i32_0 = arith.constant 0 : i32
    %c0_i32_1 = arith.constant 0 : i32
    return %c0_i32, %c0_i32_0 : i32, i32
  }
  func.func @transform_3(%arg0: i32) -> (i32, i32) {
    %c0_i32 = arith.constant 0 : i32
    %c0_i32_0 = arith.constant 0 : i32
    %c0_i32_1 = arith.constant 0 : i32
    return %c0_i32, %c0_i32_0 : i32, i32
  }
  func.func @transform_4(%arg0: i32) -> (i32, i32) {
    %c0_i32 = arith.constant 0 : i32
    %c0_i32_0 = arith.constant 0 : i32
    %c0_i32_1 = arith.constant 0 : i32
    return %c0_i32, %c0_i32_0 : i32, i32
  }
  func.func @transform_5(%arg0: i32) -> (i32, i32) {
    %c0_i32 = arith.constant 0 : i32
    %c0_i32_0 = arith.constant 0 : i32
    return %arg0, %c0_i32 : i32, i32
  }
  func.func @transform_6(%arg0: i32) -> (i32, i32) {
    %c0_i32 = arith.constant 0 : i32
    %c0_i32_0 = arith.constant 0 : i32
    return %arg0, %c0_i32 : i32, i32
  }
}

module attributes {stable_mosaic.version = 11 : i64} {
  func.func @_matmul_bias_kernel(%arg0: i32, %arg1: memref<32x384xbf16, #tpu.memory_space<vmem>>, %arg2: memref<384x128xbf16, #tpu.memory_space<vmem>>, %arg3: memref<1x128xf32, #tpu.memory_space<vmem>>, %arg4: memref<32x128xbf16, #tpu.memory_space<vmem>>) attributes {dimension_semantics = [#tpu.dimension_semantics<parallel>], iteration_bounds = array<i64: 1>, scalar_prefetch = 0 : i64, scratch_operands = 0 : i64, tpu.core_type = #tpu.core_type<tc>, window_params = [{transform_indices = @transform_0, window_bounds = array<i64: 32, 384>}, {pipeline_mode = #tpu.pipeline_mode<synchronous>, transform_indices = @transform_1, window_bounds = array<i64: 384, 128>}, {pipeline_mode = #tpu.pipeline_mode<synchronous>, transform_indices = @transform_2, window_bounds = array<i64: 1, 128>}, {transform_indices = @transform_3, window_bounds = array<i64: 32, 128>}]} {
    %c0 = arith.constant 0 : index
    %c0_0 = arith.constant 0 : index
    %0 = vector.load %arg1[%c0, %c0_0] : memref<32x384xbf16, #tpu.memory_space<vmem>>, vector<32x384xbf16>
    %c0_1 = arith.constant 0 : index
    %c0_2 = arith.constant 0 : index
    %1 = vector.load %arg2[%c0_1, %c0_2] : memref<384x128xbf16, #tpu.memory_space<vmem>>, vector<384x128xbf16>
    %cst = arith.constant dense<0.000000e+00> : vector<32x128xf32>
    %2 = tpu.matmul %0, %1, %cst {dimension_numbers = #tpu.dot_dimension_numbers<[1], [0], [0], [1], [0, 0, 1, 1], [], []>} : vector<32x384xbf16>, vector<384x128xbf16>, vector<32x128xf32> -> vector<32x128xf32>
    %c0_3 = arith.constant 0 : index
    %c0_4 = arith.constant 0 : index
    %3 = vector.load %arg3[%c0_3, %c0_4] : memref<1x128xf32, #tpu.memory_space<vmem>>, vector<1x128xf32>
    %4 = vector.broadcast %3 : vector<1x128xf32> to vector<32x128xf32>
    %5 = arith.addf %2, %4 : vector<32x128xf32>
    %6 = arith.truncf %5 : vector<32x128xf32> to vector<32x128xbf16>
    %c0_5 = arith.constant 0 : index
    %c0_6 = arith.constant 0 : index
    %7 = vector.load %arg4[%c0_5, %c0_6] : memref<32x128xbf16, #tpu.memory_space<vmem>>, vector<32x128xbf16>
    tpu.vector_store %arg4[%c0_5, %c0_6], %6 {strides = array<i32>} : memref<32x128xbf16, #tpu.memory_space<vmem>>, vector<32x128xbf16>,
    return
  }
  func.func @transform_0(%arg0: i32) -> (i32, i32) {
    %c0_i32 = arith.constant 0 : i32
    %c0_i32_0 = arith.constant 0 : i32
    return %arg0, %c0_i32 : i32, i32
  }
  func.func @transform_1(%arg0: i32) -> (i32, i32) {
    %c0_i32 = arith.constant 0 : i32
    %c0_i32_0 = arith.constant 0 : i32
    %c0_i32_1 = arith.constant 0 : i32
    return %c0_i32, %c0_i32_0 : i32, i32
  }
  func.func @transform_2(%arg0: i32) -> (i32, i32) {
    %c0_i32 = arith.constant 0 : i32
    %c0_i32_0 = arith.constant 0 : i32
    %c0_i32_1 = arith.constant 0 : i32
    return %c0_i32, %c0_i32_0 : i32, i32
  }
  func.func @transform_3(%arg0: i32) -> (i32, i32) {
    %c0_i32 = arith.constant 0 : i32
    %c0_i32_0 = arith.constant 0 : i32
    return %arg0, %c0_i32 : i32, i32
  }
}

module attributes {stable_mosaic.version = 11 : i64} {
  func.func @_matmul_bias_kernel(%arg0: i32, %arg1: memref<32x128xbf16, #tpu.memory_space<vmem>>, %arg2: memref<128x512xbf16, #tpu.memory_space<vmem>>, %arg3: memref<1x512xf32, #tpu.memory_space<vmem>>, %arg4: memref<32x512xbf16, #tpu.memory_space<vmem>>) attributes {dimension_semantics = [#tpu.dimension_semantics<parallel>], iteration_bounds = array<i64: 1>, scalar_prefetch = 0 : i64, scratch_operands = 0 : i64, tpu.core_type = #tpu.core_type<tc>, window_params = [{transform_indices = @transform_0, window_bounds = array<i64: 32, 128>}, {pipeline_mode = #tpu.pipeline_mode<synchronous>, transform_indices = @transform_1, window_bounds = array<i64: 128, 512>}, {pipeline_mode = #tpu.pipeline_mode<synchronous>, transform_indices = @transform_2, window_bounds = array<i64: 1, 512>}, {transform_indices = @transform_3, window_bounds = array<i64: 32, 512>}]} {
    %c0 = arith.constant 0 : index
    %c0_0 = arith.constant 0 : index
    %0 = vector.load %arg1[%c0, %c0_0] : memref<32x128xbf16, #tpu.memory_space<vmem>>, vector<32x128xbf16>
    %c0_1 = arith.constant 0 : index
    %c0_2 = arith.constant 0 : index
    %1 = vector.load %arg2[%c0_1, %c0_2] : memref<128x512xbf16, #tpu.memory_space<vmem>>, vector<128x512xbf16>
    %cst = arith.constant dense<0.000000e+00> : vector<32x512xf32>
    %2 = tpu.matmul %0, %1, %cst {dimension_numbers = #tpu.dot_dimension_numbers<[1], [0], [0], [1], [0, 0, 1, 1], [], []>} : vector<32x128xbf16>, vector<128x512xbf16>, vector<32x512xf32> -> vector<32x512xf32>
    %c0_3 = arith.constant 0 : index
    %c0_4 = arith.constant 0 : index
    %3 = vector.load %arg3[%c0_3, %c0_4] : memref<1x512xf32, #tpu.memory_space<vmem>>, vector<1x512xf32>
    %4 = vector.broadcast %3 : vector<1x512xf32> to vector<32x512xf32>
    %5 = arith.addf %2, %4 : vector<32x512xf32>
    %6 = arith.truncf %5 : vector<32x512xf32> to vector<32x512xbf16>
    %c0_5 = arith.constant 0 : index
    %c0_6 = arith.constant 0 : index
    %7 = vector.load %arg4[%c0_5, %c0_6] : memref<32x512xbf16, #tpu.memory_space<vmem>>, vector<32x512xbf16>
    tpu.vector_store %arg4[%c0_5, %c0_6], %6 {strides = array<i32>} : memref<32x512xbf16, #tpu.memory_space<vmem>>, vector<32x512xbf16>,
    return
  }
  func.func @transform_0(%arg0: i32) -> (i32, i32) {
    %c0_i32 = arith.constant 0 : i32
    %c0_i32_0 = arith.constant 0 : i32
    return %arg0, %c0_i32 : i32, i32
  }
  func.func @transform_1(%arg0: i32) -> (i32, i32) {
    %c0_i32 = arith.constant 0 : i32
    %c0_i32_0 = arith.constant 0 : i32
    %c0_i32_1 = arith.constant 0 : i32
    return %c0_i32, %c0_i32_0 : i32, i32
  }
  func.func @transform_2(%arg0: i32) -> (i32, i32) {
    %c0_i32 = arith.constant 0 : i32
    %c0_i32_0 = arith.constant 0 : i32
    %c0_i32_1 = arith.constant 0 : i32
    return %c0_i32, %c0_i32_0 : i32, i32
  }
  func.func @transform_3(%arg0: i32) -> (i32, i32) {
    %c0_i32 = arith.constant 0 : i32
    %c0_i32_0 = arith.constant 0 : i32
    return %arg0, %c0_i32 : i32, i32
  }
}

module attributes {stable_mosaic.version = 11 : i64} {
  func.func @_matmul_bias_kernel(%arg0: i32, %arg1: memref<128x128xbf16, #tpu.memory_space<vmem>>, %arg2: memref<128x512xbf16, #tpu.memory_space<vmem>>, %arg3: memref<1x512xf32, #tpu.memory_space<vmem>>, %arg4: memref<128x512xbf16, #tpu.memory_space<vmem>>) attributes {dimension_semantics = [#tpu.dimension_semantics<parallel>], iteration_bounds = array<i64: 1>, scalar_prefetch = 0 : i64, scratch_operands = 0 : i64, tpu.core_type = #tpu.core_type<tc>, window_params = [{transform_indices = @transform_0, window_bounds = array<i64: 128, 128>}, {pipeline_mode = #tpu.pipeline_mode<synchronous>, transform_indices = @transform_1, window_bounds = array<i64: 128, 512>}, {pipeline_mode = #tpu.pipeline_mode<synchronous>, transform_indices = @transform_2, window_bounds = array<i64: 1, 512>}, {transform_indices = @transform_3, window_bounds = array<i64: 128, 512>}]} {
    %c0 = arith.constant 0 : index
    %c0_0 = arith.constant 0 : index
    %0 = vector.load %arg1[%c0, %c0_0] : memref<128x128xbf16, #tpu.memory_space<vmem>>, vector<128x128xbf16>
    %c0_1 = arith.constant 0 : index
    %c0_2 = arith.constant 0 : index
    %1 = vector.load %arg2[%c0_1, %c0_2] : memref<128x512xbf16, #tpu.memory_space<vmem>>, vector<128x512xbf16>
    %cst = arith.constant dense<0.000000e+00> : vector<128x512xf32>
    %2 = tpu.matmul %0, %1, %cst {dimension_numbers = #tpu.dot_dimension_numbers<[1], [0], [0], [1], [0, 0, 1, 1], [], []>} : vector<128x128xbf16>, vector<128x512xbf16>, vector<128x512xf32> -> vector<128x512xf32>
    %c0_3 = arith.constant 0 : index
    %c0_4 = arith.constant 0 : index
    %3 = vector.load %arg3[%c0_3, %c0_4] : memref<1x512xf32, #tpu.memory_space<vmem>>, vector<1x512xf32>
    %4 = vector.broadcast %3 : vector<1x512xf32> to vector<128x512xf32>
    %5 = arith.addf %2, %4 : vector<128x512xf32>
    %6 = arith.truncf %5 : vector<128x512xf32> to vector<128x512xbf16>
    %c0_5 = arith.constant 0 : index
    %c0_6 = arith.constant 0 : index
    %7 = vector.load %arg4[%c0_5, %c0_6] : memref<128x512xbf16, #tpu.memory_space<vmem>>, vector<128x512xbf16>
    tpu.vector_store %arg4[%c0_5, %c0_6], %6 {strides = array<i32>} : memref<128x512xbf16, #tpu.memory_space<vmem>>, vector<128x512xbf16>,
    return
  }
  func.func @transform_0(%arg0: i32) -> (i32, i32) {
    %c0_i32 = arith.constant 0 : i32
    %c0_i32_0 = arith.constant 0 : i32
    return %arg0, %c0_i32 : i32, i32
  }
  func.func @transform_1(%arg0: i32) -> (i32, i32) {
    %c0_i32 = arith.constant 0 : i32
    %c0_i32_0 = arith.constant 0 : i32
    %c0_i32_1 = arith.constant 0 : i32
    return %c0_i32, %c0_i32_0 : i32, i32
  }
  func.func @transform_2(%arg0: i32) -> (i32, i32) {
    %c0_i32 = arith.constant 0 : i32
    %c0_i32_0 = arith.constant 0 : i32
    %c0_i32_1 = arith.constant 0 : i32
    return %c0_i32, %c0_i32_0 : i32, i32
  }
  func.func @transform_3(%arg0: i32) -> (i32, i32) {
    %c0_i32 = arith.constant 0 : i32
    %c0_i32_0 = arith.constant 0 : i32
    return %arg0, %c0_i32 : i32, i32
  }
}

module attributes {stable_mosaic.version = 11 : i64} {
  func.func @_matmul_bias_kernel(%arg0: i32, %arg1: memref<512x512xbf16, #tpu.memory_space<vmem>>, %arg2: memref<512x128xbf16, #tpu.memory_space<vmem>>, %arg3: memref<1x128xf32, #tpu.memory_space<vmem>>, %arg4: memref<512x128xf32, #tpu.memory_space<vmem>>) attributes {dimension_semantics = [#tpu.dimension_semantics<parallel>], iteration_bounds = array<i64: 1>, scalar_prefetch = 0 : i64, scratch_operands = 0 : i64, tpu.core_type = #tpu.core_type<tc>, window_params = [{transform_indices = @transform_0, window_bounds = array<i64: 512, 512>}, {pipeline_mode = #tpu.pipeline_mode<synchronous>, transform_indices = @transform_1, window_bounds = array<i64: 512, 128>}, {pipeline_mode = #tpu.pipeline_mode<synchronous>, transform_indices = @transform_2, window_bounds = array<i64: 1, 128>}, {transform_indices = @transform_3, window_bounds = array<i64: 512, 128>}]} {
    %c0 = arith.constant 0 : index
    %c0_0 = arith.constant 0 : index
    %0 = vector.load %arg1[%c0, %c0_0] : memref<512x512xbf16, #tpu.memory_space<vmem>>, vector<512x512xbf16>
    %c0_1 = arith.constant 0 : index
    %c0_2 = arith.constant 0 : index
    %1 = vector.load %arg2[%c0_1, %c0_2] : memref<512x128xbf16, #tpu.memory_space<vmem>>, vector<512x128xbf16>
    %cst = arith.constant dense<0.000000e+00> : vector<512x128xf32>
    %2 = tpu.matmul %0, %1, %cst {dimension_numbers = #tpu.dot_dimension_numbers<[1], [0], [0], [1], [0, 0, 1, 1], [], []>} : vector<512x512xbf16>, vector<512x128xbf16>, vector<512x128xf32> -> vector<512x128xf32>
    %c0_3 = arith.constant 0 : index
    %c0_4 = arith.constant 0 : index
    %3 = vector.load %arg3[%c0_3, %c0_4] : memref<1x128xf32, #tpu.memory_space<vmem>>, vector<1x128xf32>
    %4 = vector.broadcast %3 : vector<1x128xf32> to vector<512x128xf32>
    %5 = arith.addf %2, %4 : vector<512x128xf32>
    %6 = math.tanh %5 : vector<512x128xf32>
    %c0_5 = arith.constant 0 : index
    %c0_6 = arith.constant 0 : index
    %7 = vector.load %arg4[%c0_5, %c0_6] : memref<512x128xf32, #tpu.memory_space<vmem>>, vector<512x128xf32>
    tpu.vector_store %arg4[%c0_5, %c0_6], %6 {strides = array<i32>} : memref<512x128xf32, #tpu.memory_space<vmem>>, vector<512x128xf32>,
    return
  }
  func.func @transform_0(%arg0: i32) -> (i32, i32) {
    %c0_i32 = arith.constant 0 : i32
    %c0_i32_0 = arith.constant 0 : i32
    return %arg0, %c0_i32 : i32, i32
  }
  func.func @transform_1(%arg0: i32) -> (i32, i32) {
    %c0_i32 = arith.constant 0 : i32
    %c0_i32_0 = arith.constant 0 : i32
    %c0_i32_1 = arith.constant 0 : i32
    return %c0_i32, %c0_i32_0 : i32, i32
  }
  func.func @transform_2(%arg0: i32) -> (i32, i32) {
    %c0_i32 = arith.constant 0 : i32
    %c0_i32_0 = arith.constant 0 : i32
    %c0_i32_1 = arith.constant 0 : i32
    return %c0_i32, %c0_i32_0 : i32, i32
  }
  func.func @transform_3(%arg0: i32) -> (i32, i32) {
    %c0_i32 = arith.constant 0 : i32
    %c0_i32_0 = arith.constant 0 : i32
    return %arg0, %c0_i32 : i32, i32
  }
}

</mosaic_0001>

<llo_original>
// kernel: resnet_generator_forward.29
$region0: #{resnet_generator_forward.29}
  #allocation0 [shape = 'u32[]', space=smem, size = 0x4, offset = 0x4, fixed_abs, tag = 'smem constant byte address 0x4 - core index']
  #allocation1 [shape = 'u32[144,128]{1,0:T(1,128)}', space=vmem, size = 0x12000, scoped, tag = 'internal scratch']
  %s0 = inlined_call_operand.vmem [shape: bf16[512,128], index: 0, kind: input, shape index: {}]
  %s1 = inlined_call_operand.vmem [shape: f32[1,128], index: 1, kind: output, shape index: {0}]
  %s2 = inlined_call_operand.vmem [shape: f32[1,128], index: 2, kind: output, shape index: {1}]
  %3 = xla_tuple %s1, %s2
  %s4 = sld [smem:[#allocation0]]
  $region26: #{resnet_generator_forward.29} parent=0
    _
  %s6 = ssub.s32 1, %s4
  %s7 = scalar_select 0, %s6, %s4
  // Predicated region
  $region2: #{resnet_generator_forward.29} parent=0 // pred_check
    _
  $region3: #{resnet_generator_forward.29} parent=0 // pred_check_branch
    %9 = sbr.rel (0) target = $region5
  $region4: #{resnet_generator_forward.29} parent=0 // pred_region
    _
  $region5: #{resnet_generator_forward.29} parent=0 // pred_fallthru
    _
  %p10 = scmp.eq.s32.totalorder 0, 0
  // Predicated region
  $region6: #{resnet_generator_forward.29} parent=0 // pred_check
    %p11 = pneg %p10
  $region7: #{resnet_generator_forward.29} parent=0 // pred_check_branch
    %13 = sbr.rel (%p11) target = $region9
  $region8: #{resnet_generator_forward.29} parent=0 // pred_region
    %14 = vst [vmem:[%s1] sm:$0x1] 0.0
    %15 = vst [vmem:[%s2] sm:$0x1] 0.0
  $region9: #{resnet_generator_forward.29} parent=0 // pred_fallthru
    _
  %v16 = vld [vmem:[%s0] sm:$0xf]
  %v17 = vld [vmem:[%s0 + $0x4] sm:$0xf]
  %v18 = vld [vmem:[%s0 + $0x8] sm:$0xf]
  %v19 = vld [vmem:[%s0 + $0xc] sm:$0xf]
  %v20 = vld [vmem:[%s0 + $0x10] sm:$0xf]
  %v21 = vld [vmem:[%s0 + $0x14] sm:$0xf]
  %v22 = vld [vmem:[%s0 + $0x18] sm:$0xf]
  %v23 = vld [vmem:[%s0 + $0x1c] sm:$0xf]
  %v24 = vld [vmem:[%s0 + $0x20] sm:$0xf]
  %v25 = vld [vmem:[%s0 + $0x24] sm:$0xf]
  %v26 = vld [vmem:[%s0 + $0x28] sm:$0xf]
  %v27 = vld [vmem:[%s0 + $0x2c] sm:$0xf]
  %v28 = vld [vmem:[%s0 + $0x30] sm:$0xf]
  %v29 = vld [vmem:[%s0 + $0x34] sm:$0xf]
  %v30 = vld [vmem:[%s0 + $0x38] sm:$0xf]
  %v31 = vld [vmem:[%s0 + $0x3c] sm:$0xf]
  %v32 = vld [vmem:[%s0 + $0x40] sm:$0xf]
  %v33 = vld [vmem:[%s0 + $0x44] sm:$0xf]
  %v34 = vld [vmem:[%s0 + $0x48] sm:$0xf]
  %v35 = vld [vmem:[%s0 + $0x4c] sm:$0xf]
  %v36 = vld [vmem:[%s0 + $0x50] sm:$0xf]
  %v37 = vld [vmem:[%s0 + $0x54] sm:$0xf]
  %v38 = vld [vmem:[%s0 + $0x58] sm:$0xf]
  %v39 = vld [vmem:[%s0 + $0x5c] sm:$0xf]
  %v40 = vld [vmem:[%s0 + $0x60] sm:$0xf]
  %v41 = vld [vmem:[%s0 + $0x64] sm:$0xf]
  %v42 = vld [vmem:[%s0 + $0x68] sm:$0xf]
  %v43 = vld [vmem:[%s0 + $0x6c] sm:$0xf]
  %v44 = vld [vmem:[%s0 + $0x70] sm:$0xf]
  %v45 = vld [vmem:[%s0 + $0x74] sm:$0xf]
  %v46 = vld [vmem:[%s0 + $0x78] sm:$0xf]
  %v47 = vld [vmem:[%s0 + $0x7c] sm:$0xf]
  %v48 = vld [vmem:[%s0 + $0x80] sm:$0xf]
  %v49 = vld [vmem:[%s0 + $0x84] sm:$0xf]
  %v50 = vld [vmem:[%s0 + $0x88] sm:$0xf]
  %v51 = vld [vmem:[%s0 + $0x8c] sm:$0xf]
  %v52 = vld [vmem:[%s0 + $0x90] sm:$0xf]
  %v53 = vld [vmem:[%s0 + $0x94] sm:$0xf]
  %v54 = vld [vmem:[%s0 + $0x98] sm:$0xf]
  %v55 = vld [vmem:[%s0 + $0x9c] sm:$0xf]
  %v56 = vld [vmem:[%s0 + $0xa0] sm:$0xf]
  %v57 = vld [vmem:[%s0 + $0xa4] sm:$0xf]
  %v58 = vld [vmem:[%s0 + $0xa8] sm:$0xf]
  %v59 = vld [vmem:[%s0 + $0xac] sm:$0xf]
  %v60 = vld [vmem:[%s0 + $0xb0] sm:$0xf]
  %v61 = vld [vmem:[%s0 + $0xb4] sm:$0xf]
  %v62 = vld [vmem:[%s0 + $0xb8] sm:$0xf]
  %v63 = vld [vmem:[%s0 + $0xbc] sm:$0xf]
  %v64 = vld [vmem:[%s0 + $0xc0] sm:$0xf]
  %v65 = vld [vmem:[%s0 + $0xc4] sm:$0xf]
  %v66 = vld [vmem:[%s0 + $0xc8] sm:$0xf]
  %v67 = vld [vmem:[%s0 + $0xcc] sm:$0xf]
  %v68 = vld [vmem:[%s0 + $0xd0] sm:$0xf]
  %v69 = vld [vmem:[%s0 + $0xd4] sm:$0xf]
  %v70 = vld [vmem:[%s0 + $0xd8] sm:$0xf]
  %v71 = vld [vmem:[%s0 + $0xdc] sm:$0xf]
  %v72 = vld [vmem:[%s0 + $0xe0] sm:$0xf]
  %v73 = vld [vmem:[%s0 + $0xe4] sm:$0xf]
  %v74 = vld [vmem:[%s0 + $0xe8] sm:$0xf]
  %v75 = vld [vmem:[%s0 + $0xec] sm:$0xf]
  %v76 = vld [vmem:[%s0 + $0xf0] sm:$0xf]
  %v77 = vld [vmem:[%s0 + $0xf4] sm:$0xf]
  %v78 = vld [vmem:[%s0 + $0xf8] sm:$0xf]
  %v79 = vld [vmem:[%s0 + $0xfc] sm:$0xf]
  %v80 = vunpack.c.l.bf16 %v16
  %v81 = vunpack.c.l.bf16 %v17
  %v82 = vunpack.c.l.bf16 %v18
  %v83 = vunpack.c.l.bf16 %v19
  %v84 = vunpack.c.l.bf16 %v20
  %v85 = vunpack.c.l.bf16 %v21
  %v86 = vunpack.c.l.bf16 %v22
  %v87 = vunpack.c.l.bf16 %v23
  %v88 = vunpack.c.l.bf16 %v24
  %v89 = vunpack.c.l.bf16 %v25
  %v90 = vunpack.c.l.bf16 %v26
  %v91 = vunpack.c.l.bf16 %v27
  %v92 = vunpack.c.l.bf16 %v28
  %v93 = vunpack.c.l.bf16 %v29
  %v94 = vunpack.c.l.bf16 %v30
  %v95 = vunpack.c.l.bf16 %v31
  %v96 = vunpack.c.l.bf16 %v32
  %v97 = vunpack.c.l.bf16 %v33
  %v98 = vunpack.c.l.bf16 %v34
  %v99 = vunpack.c.l.bf16 %v35
  %v100 = vunpack.c.l.bf16 %v36
  %v101 = vunpack.c.l.bf16 %v37
  %v102 = vunpack.c.l.bf16 %v38
  %v103 = vunpack.c.l.bf16 %v39
  %v104 = vunpack.c.l.bf16 %v40
  %v105 = vunpack.c.l.bf16 %v41
  %v106 = vunpack.c.l.bf16 %v42
  %v107 = vunpack.c.l.bf16 %v43
  %v108 = vunpack.c.l.bf16 %v44
  %v109 = vunpack.c.l.bf16 %v45
  %v110 = vunpack.c.l.bf16 %v46
  %v111 = vunpack.c.l.bf16 %v47
  %v112 = vunpack.c.l.bf16 %v48
  %v113 = vunpack.c.l.bf16 %v49
  %v114 = vunpack.c.l.bf16 %v50
  %v115 = vunpack.c.l.bf16 %v51
  %v116 = vunpack.c.l.bf16 %v52
  %v117 = vunpack.c.l.bf16 %v53
  %v118 = vunpack.c.l.bf16 %v54
  %v119 = vunpack.c.l.bf16 %v55
  %v120 = vunpack.c.l.bf16 %v56
  %v121 = vunpack.c.l.bf16 %v57
  %v122 = vunpack.c.l.bf16 %v58
  %v123 = vunpack.c.l.bf16 %v59
  %v124 = vunpack.c.l.bf16 %v60
  %v125 = vunpack.c.l.bf16 %v61
  %v126 = vunpack.c.l.bf16 %v62
  %v127 = vunpack.c.l.bf16 %v63
  %v128 = vunpack.c.l.bf16 %v64
  %v129 = vunpack.c.l.bf16 %v65
  %v130 = vunpack.c.l.bf16 %v66
  %v131 = vunpack.c.l.bf16 %v67
  %v132 = vunpack.c.l.bf16 %v68
  %v133 = vunpack.c.l.bf16 %v69
  %v134 = vunpack.c.l.bf16 %v70
  %v135 = vunpack.c.l.bf16 %v71
  %v136 = vunpack.c.l.bf16 %v72
  %v137 = vunpack.c.l.bf16 %v73
  %v138 = vunpack.c.l.bf16 %v74
  %v139 = vunpack.c.l.bf16 %v75
  %v140 = vunpack.c.l.bf16 %v76
  %v141 = vunpack.c.l.bf16 %v77
  %v142 = vunpack.c.l.bf16 %v78
  %v143 = vunpack.c.l.bf16 %v79
  %v144 = vld [vmem:[%s1] sm:$0x1]
  %v145 = vadd.f32 %v80, %v81
  %v146 = vadd.f32 %v145, %v82
  %v147 = vadd.f32 %v146, %v83
  %v148 = vadd.f32 %v147, %v84
  %v149 = vadd.f32 %v148, %v85
  %v150 = vadd.f32 %v149, %v86
  %v151 = vadd.f32 %v150, %v87
  %v152 = vadd.f32 %v151, %v88
  %v153 = vadd.f32 %v152, %v89
  %v154 = vadd.f32 %v153, %v90
  %v155 = vadd.f32 %v154, %v91
  %v156 = vadd.f32 %v155, %v92
  %v157 = vadd.f32 %v156, %v93
  %v158 = vadd.f32 %v157, %v94
  %v159 = vadd.f32 %v158, %v95
  %v160 = vadd.f32 %v159, %v96
  %v161 = vadd.f32 %v160, %v97
  %v162 = vadd.f32 %v161, %v98
  %v163 = vadd.f32 %v162, %v99
  %v164 = vadd.f32 %v163, %v100
  %v165 = vadd.f32 %v164, %v101
  %v166 = vadd.f32 %v165, %v102
  %v167 = vadd.f32 %v166, %v103
  %v168 = vadd.f32 %v167, %v104
  %v169 = vadd.f32 %v168, %v105
  %v170 = vadd.f32 %v169, %v106
  %v171 = vadd.f32 %v170, %v107
  %v172 = vadd.f32 %v171, %v108
  %v173 = vadd.f32 %v172, %v109
  %v174 = vadd.f32 %v173, %v110
  %v175 = vadd.f32 %v174, %v111
  %v176 = vadd.f32 %v175, %v112
  %v177 = vadd.f32 %v176, %v113
  %v178 = vadd.f32 %v177, %v114
  %v179 = vadd.f32 %v178, %v115
  %v180 = vadd.f32 %v179, %v116
  %v181 = vadd.f32 %v180, %v117
  %v182 = vadd.f32 %v181, %v118
  %v183 = vadd.f32 %v182, %v119
  %v184 = vadd.f32 %v183, %v120
  %v185 = vadd.f32 %v184, %v121
  %v186 = vadd.f32 %v185, %v122
  %v187 = vadd.f32 %v186, %v123
  %v188 = vadd.f32 %v187, %v124
  %v189 = vadd.f32 %v188, %v125
  %v190 = vadd.f32 %v189, %v126
  %v191 = vadd.f32 %v190, %v127
  %v192 = vadd.f32 %v191, %v128
  %v193 = vadd.f32 %v192, %v129
  %v194 = vadd.f32 %v193, %v130
  %v195 = vadd.f32 %v194, %v131
  %v196 = vadd.f32 %v195, %v132
  %v197 = vadd.f32 %v196, %v133
  %v198 = vadd.f32 %v197, %v134
  %v199 = vadd.f32 %v198, %v135
  %v200 = vadd.f32 %v199, %v136
  %v201 = vadd.f32 %v200, %v137
  %v202 = vadd.f32 %v201, %v138
  %v203 = vadd.f32 %v202, %v139
  %v204 = vadd.f32 %v203, %v140
  %v205 = vadd.f32 %v204, %v141
  %v206 = vadd.f32 %v205, %v142
  %v207 = vadd.f32 %v206, %v143
  %v208 = vrot.slane %v207, 4
  %v209 = vadd.f32 %v207, %v208
  %v210 = vrot.slane %v209, 2
  %v211 = vadd.f32 %v209, %v210
  %v212 = vrot.slane %v211, 1
  %v213 = vadd.f32 %v211, %v212
  %v214 = vadd.f32 %v144, %v213
  %215 = vst [vmem:[%s1] sm:$0x1] %v214
  %v216 = vld [vmem:[%s2] sm:$0x1]
  %v217 = vmul.f32 %v80, %v80
  %v218 = vmul.f32 %v81, %v81
  %v219 = vmul.f32 %v82, %v82
  %v220 = vmul.f32 %v83, %v83
  %v221 = vmul.f32 %v84, %v84
  %v222 = vmul.f32 %v85, %v85
  %v223 = vmul.f32 %v86, %v86
  %v224 = vmul.f32 %v87, %v87
  %v225 = vmul.f32 %v88, %v88
  %v226 = vmul.f32 %v89, %v89
  %v227 = vmul.f32 %v90, %v90
  %v228 = vmul.f32 %v91, %v91
  %v229 = vmul.f32 %v92, %v92
  %v230 = vmul.f32 %v93, %v93
  %v231 = vmul.f32 %v94, %v94
  %v232 = vmul.f32 %v95, %v95
  %v233 = vmul.f32 %v96, %v96
  %v234 = vmul.f32 %v97, %v97
  %v235 = vmul.f32 %v98, %v98
  %v236 = vmul.f32 %v99, %v99
  %v237 = vmul.f32 %v100, %v100
  %v238 = vmul.f32 %v101, %v101
  %v239 = vmul.f32 %v102, %v102
  %v240 = vmul.f32 %v103, %v103
  %v241 = vmul.f32 %v104, %v104
  %v242 = vmul.f32 %v105, %v105
  %v243 = vmul.f32 %v106, %v106
  %v244 = vmul.f32 %v107, %v107
  %v245 = vmul.f32 %v108, %v108
  %v246 = vmul.f32 %v109, %v109
  %v247 = vmul.f32 %v110, %v110
  %v248 = vmul.f32 %v111, %v111
  %v249 = vmul.f32 %v112, %v112
  %v250 = vmul.f32 %v113, %v113
  %v251 = vmul.f32 %v114, %v114
  %v252 = vmul.f32 %v115, %v115
  %v253 = vmul.f32 %v116, %v116
  %v254 = vmul.f32 %v117, %v117
  %v255 = vmul.f32 %v118, %v118
  %v256 = vmul.f32 %v119, %v119
  %v257 = vmul.f32 %v120, %v120
  %v258 = vmul.f32 %v121, %v121
  %v259 = vmul.f32 %v122, %v122
  %v260 = vmul.f32 %v123, %v123
  %v261 = vmul.f32 %v124, %v124
  %v262 = vmul.f32 %v125, %v125
  %v263 = vmul.f32 %v126, %v126
  %v264 = vmul.f32 %v127, %v127
  %v265 = vmul.f32 %v128, %v128
  %v266 = vmul.f32 %v129, %v129
  %v267 = vmul.f32 %v130, %v130
  %v268 = vmul.f32 %v131, %v131
  %v269 = vmul.f32 %v132, %v132
  %v270 = vmul.f32 %v133, %v133
  %v271 = vmul.f32 %v134, %v134
  %v272 = vmul.f32 %v135, %v135
  %v273 = vmul.f32 %v136, %v136
  %v274 = vmul.f32 %v137, %v137
  %v275 = vmul.f32 %v138, %v138
  %v276 = vmul.f32 %v139, %v139
  %v277 = vmul.f32 %v140, %v140
  %v278 = vmul.f32 %v141, %v141
  %v279 = vmul.f32 %v142, %v142
  %v280 = vmul.f32 %v143, %v143
  %v281 = vadd.f32 %v217, %v218
  %v282 = vadd.f32 %v281, %v219
  %v283 = vadd.f32 %v282, %v220
  %v284 = vadd.f32 %v283, %v221
  %v285 = vadd.f32 %v284, %v222
  %v286 = vadd.f32 %v285, %v223
  %v287 = vadd.f32 %v286, %v224
  %v288 = vadd.f32 %v287, %v225
  %v289 = vadd.f32 %v288, %v226
  %v290 = vadd.f32 %v289, %v227
  %v291 = vadd.f32 %v290, %v228
  %v292 = vadd.f32 %v291, %v229
  %v293 = vadd.f32 %v292, %v230
  %v294 = vadd.f32 %v293, %v231
  %v295 = vadd.f32 %v294, %v232
  %v296 = vadd.f32 %v295, %v233
  %v297 = vadd.f32 %v296, %v234
  %v298 = vadd.f32 %v297, %v235
  %v299 = vadd.f32 %v298, %v236
  %v300 = vadd.f32 %v299, %v237
  %v301 = vadd.f32 %v300, %v238
  %v302 = vadd.f32 %v301, %v239
  %v303 = vadd.f32 %v302, %v240
  %v304 = vadd.f32 %v303, %v241
  %v305 = vadd.f32 %v304, %v242
  %v306 = vadd.f32 %v305, %v243
  %v307 = vadd.f32 %v306, %v244
  %v308 = vadd.f32 %v307, %v245
  %v309 = vadd.f32 %v308, %v246
  %v310 = vadd.f32 %v309, %v247
  %v311 = vadd.f32 %v310, %v248
  %v312 = vadd.f32 %v311, %v249
  %v313 = vadd.f32 %v312, %v250
  %v314 = vadd.f32 %v313, %v251
  %v315 = vadd.f32 %v314, %v252
  %v316 = vadd.f32 %v315, %v253
  %v317 = vadd.f32 %v316, %v254
  %v318 = vadd.f32 %v317, %v255
  %v319 = vadd.f32 %v318, %v256
  %v320 = vadd.f32 %v319, %v257
  %v321 = vadd.f32 %v320, %v258
  %v322 = vadd.f32 %v321, %v259
  %v323 = vadd.f32 %v322, %v260
  %v324 = vadd.f32 %v323, %v261
  %v325 = vadd.f32 %v324, %v262
  %v326 = vadd.f32 %v325, %v263
  %v327 = vadd.f32 %v326, %v264
  %v328 = vadd.f32 %v327, %v265
  %v329 = vadd.f32 %v328, %v266
  %v330 = vadd.f32 %v329, %v267
  %v331 = vadd.f32 %v330, %v268
  %v332 = vadd.f32 %v331, %v269
  %v333 = vadd.f32 %v332, %v270
  %v334 = vadd.f32 %v333, %v271
  %v335 = vadd.f32 %v334, %v272
  %v336 = vadd.f32 %v335, %v273
  %v337 = vadd.f32 %v336, %v274
  %v338 = vadd.f32 %v337, %v275
  %v339 = vadd.f32 %v338, %v276
  %v340 = vadd.f32 %v339, %v277
  %v341 = vadd.f32 %v340, %v278
  %v342 = vadd.f32 %v341, %v279
  %v343 = vadd.f32 %v342, %v280
  %v344 = vrot.slane %v343, 4
  %v345 = vadd.f32 %v343, %v344
  %v346 = vrot.slane %v345, 2
  %v347 = vadd.f32 %v345, %v346
  %v348 = vrot.slane %v347, 1
  %v349 = vadd.f32 %v347, %v348
  %v350 = vadd.f32 %v216, %v349
  %351 = vst [vmem:[%s2] sm:$0x1] %v350
  // Predicated region
  $region10: #{resnet_generator_forward.29} parent=0 // pred_check
    _
  $region11: #{resnet_generator_forward.29} parent=0 // pred_check_branch
    %353 = sbr.rel (0) target = $region13
  $region12: #{resnet_generator_forward.29} parent=0 // pred_region
    _
  $region13: #{resnet_generator_forward.29} parent=0 // pred_fallthru
    _
  // Predicated region
  $region14: #{resnet_generator_forward.29} parent=0 // pred_check
    _
  $region15: #{resnet_generator_forward.29} parent=0 // pred_check_branch
    %355 = sbr.rel (0) target = $region17
  $region16: #{resnet_generator_forward.29} parent=0 // pred_region
    _
  $region17: #{resnet_generator_forward.29} parent=0 // pred_fallthru
    _
  // Predicated region
  $region18: #{resnet_generator_forward.29} parent=0 // pred_check
    _
  $region19: #{resnet_generator_forward.29} parent=0 // pred_check_branch
    %357 = sbr.rel (0) target = $region21
  $region20: #{resnet_generator_forward.29} parent=0 // pred_region
    _
  $region21: #{resnet_generator_forward.29} parent=0 // pred_fallthru
    _
  // Predicated region
  $region22: #{resnet_generator_forward.29} parent=0 // pred_check
    _
  $region23: #{resnet_generator_forward.29} parent=0 // pred_check_branch
    %359 = sbr.rel (0) target = $region25
  $region24: #{resnet_generator_forward.29} parent=0 // pred_region
    _
  $region25: #{resnet_generator_forward.29} parent=0 // pred_fallthru
    _

// kernel: resnet_generator_forward.28
$region0: #{resnet_generator_forward.28}
  #allocation0 [shape = 'u32[]', space=smem, size = 0x4, offset = 0x4, fixed_abs, tag = 'smem constant byte address 0x4 - core index']
  #allocation1 [shape = 'u32[144,128]{1,0:T(1,128)}', space=vmem, size = 0x12000, scoped, tag = 'internal scratch']
  %s0 = inlined_call_operand.vmem [shape: bf16[512,256], index: 0, kind: input, shape index: {}]
  %s1 = inlined_call_operand.vmem [shape: bf16[256,128], index: 1, kind: input, shape index: {}]
  %s2 = inlined_call_operand.vmem [shape: f32[1,128], index: 2, kind: input, shape index: {}]
  %s3 = inlined_call_operand.vmem [shape: bf16[512,128], index: 3, kind: output, shape index: {}]
  %s4 = sld [smem:[#allocation0]]
  $region22: #{resnet_generator_forward.28} parent=0
    _
  %s6 = ssub.s32 1, %s4
  %s7 = scalar_select 0, %s6, %s4
  // Predicated region
  $region2: #{resnet_generator_forward.28} parent=0 // pred_check
    _
  $region3: #{resnet_generator_forward.28} parent=0 // pred_check_branch
    %9 = sbr.rel (0) target = $region5
  $region4: #{resnet_generator_forward.28} parent=0 // pred_region
    _
  $region5: #{resnet_generator_forward.28} parent=0 // pred_fallthru
    _
  // Predicated region
  $region6: #{resnet_generator_forward.28} parent=0 // pred_check
    _
  $region7: #{resnet_generator_forward.28} parent=0 // pred_check_branch
    %11 = sbr.rel (0) target = $region9
  $region8: #{resnet_generator_forward.28} parent=0 // pred_region
    _
  $region9: #{resnet_generator_forward.28} parent=0 // pred_fallthru
    _
  // Predicated region
  $region10: #{resnet_generator_forward.28} parent=0 // pred_check
    _
  $region11: #{resnet_generator_forward.28} parent=0 // pred_check_branch
    %13 = sbr.rel (0) target = $region13
  $region12: #{resnet_generator_forward.28} parent=0 // pred_region
    _
  $region13: #{resnet_generator_forward.28} parent=0 // pred_fallthru
    _
  %v15 = vld [vmem:[%s0] sm:$0xff]
  %v16 = vld [vmem:[%s0 + $0x8] sm:$0xff]
  %v17 = vld [vmem:[%s0 + $0x10] sm:$0xff]
  %v18 = vld [vmem:[%s0 + $0x18] sm:$0xff]
  %v19 = vld [vmem:[%s0 + $0x20] sm:$0xff]
  %v20 = vld [vmem:[%s0 + $0x28] sm:$0xff]
  %v21 = vld [vmem:[%s0 + $0x30] sm:$0xff]
  %v22 = vld [vmem:[%s0 + $0x38] sm:$0xff]
  %v23 = vld [vmem:[%s0 + $0x40] sm:$0xff]
  %v24 = vld [vmem:[%s0 + $0x48] sm:$0xff]
  %v25 = vld [vmem:[%s0 + $0x50] sm:$0xff]
  %v26 = vld [vmem:[%s0 + $0x58] sm:$0xff]
  %v27 = vld [vmem:[%s0 + $0x60] sm:$0xff]
  %v28 = vld [vmem:[%s0 + $0x68] sm:$0xff]
  %v29 = vld [vmem:[%s0 + $0x70] sm:$0xff]
  %v30 = vld [vmem:[%s0 + $0x78] sm:$0xff]
  %v31 = vld [vmem:[%s0 + $0x80] sm:$0xff]
  %v32 = vld [vmem:[%s0 + $0x88] sm:$0xff]
  %v33 = vld [vmem:[%s0 + $0x90] sm:$0xff]
  %v34 = vld [vmem:[%s0 + $0x98] sm:$0xff]
  %v35 = vld [vmem:[%s0 + $0xa0] sm:$0xff]
  %v36 = vld [vmem:[%s0 + $0xa8] sm:$0xff]
  %v37 = vld [vmem:[%s0 + $0xb0] sm:$0xff]
  %v38 = vld [vmem:[%s0 + $0xb8] sm:$0xff]
  %v39 = vld [vmem:[%s0 + $0xc0] sm:$0xff]
  %v40 = vld [vmem:[%s0 + $0xc8] sm:$0xff]
  %v41 = vld [vmem:[%s0 + $0xd0] sm:$0xff]
  %v42 = vld [vmem:[%s0 + $0xd8] sm:$0xff]
  %v43 = vld [vmem:[%s0 + $0xe0] sm:$0xff]
  %v44 = vld [vmem:[%s0 + $0xe8] sm:$0xff]
  %v45 = vld [vmem:[%s0 + $0xf0] sm:$0xff]
  %v46 = vld [vmem:[%s0 + $0xf8] sm:$0xff]
  %v47 = vld [vmem:[%s0 + $0x100] sm:$0xff]
  %v48 = vld [vmem:[%s0 + $0x108] sm:$0xff]
  %v49 = vld [vmem:[%s0 + $0x110] sm:$0xff]
  %v50 = vld [vmem:[%s0 + $0x118] sm:$0xff]
  %v51 = vld [vmem:[%s0 + $0x120] sm:$0xff]
  %v52 = vld [vmem:[%s0 + $0x128] sm:$0xff]
  %v53 = vld [vmem:[%s0 + $0x130] sm:$0xff]
  %v54 = vld [vmem:[%s0 + $0x138] sm:$0xff]
  %v55 = vld [vmem:[%s0 + $0x140] sm:$0xff]
  %v56 = vld [vmem:[%s0 + $0x148] sm:$0xff]
  %v57 = vld [vmem:[%s0 + $0x150] sm:$0xff]
  %v58 = vld [vmem:[%s0 + $0x158] sm:$0xff]
  %v59 = vld [vmem:[%s0 + $0x160] sm:$0xff]
  %v60 = vld [vmem:[%s0 + $0x168] sm:$0xff]
  %v61 = vld [vmem:[%s0 + $0x170] sm:$0xff]
  %v62 = vld [vmem:[%s0 + $0x178] sm:$0xff]
  %v63 = vld [vmem:[%s0 + $0x180] sm:$0xff]
  %v64 = vld [vmem:[%s0 + $0x188] sm:$0xff]
  %v65 = vld [vmem:[%s0 + $0x190] sm:$0xff]
  %v66 = vld [vmem:[%s0 + $0x198] sm:$0xff]
  %v67 = vld [vmem:[%s0 + $0x1a0] sm:$0xff]
  %v68 = vld [vmem:[%s0 + $0x1a8] sm:$0xff]
  %v69 = vld [vmem:[%s0 + $0x1b0] sm:$0xff]
  %v70 = vld [vmem:[%s0 + $0x1b8] sm:$0xff]
  %v71 = vld [vmem:[%s0 + $0x1c0] sm:$0xff]
  %v72 = vld [vmem:[%s0 + $0x1c8] sm:$0xff]
  %v73 = vld [vmem:[%s0 + $0x1d0] sm:$0xff]
  %v74 = vld [vmem:[%s0 + $0x1d8] sm:$0xff]
  %v75 = vld [vmem:[%s0 + $0x1e0] sm:$0xff]
  %v76 = vld [vmem:[%s0 + $0x1e8] sm:$0xff]
  %v77 = vld [vmem:[%s0 + $0x1f0] sm:$0xff]
  %v78 = vld [vmem:[%s0 + $0x1f8] sm:$0xff]
  %v79 = vld [vmem:[%s1] sm:$0xf]
  %v80 = vld [vmem:[%s1 + $0x4] sm:$0xf]
  %v81 = vld [vmem:[%s1 + $0x8] sm:$0xf]
  %v82 = vld [vmem:[%s1 + $0xc] sm:$0xf]
  %v83 = vld [vmem:[%s1 + $0x10] sm:$0xf]
  %v84 = vld [vmem:[%s1 + $0x14] sm:$0xf]
  %v85 = vld [vmem:[%s1 + $0x18] sm:$0xf]
  %v86 = vld [vmem:[%s1 + $0x1c] sm:$0xf]
  %v87 = vld [vmem:[%s1 + $0x20] sm:$0xf]
  %v88 = vld [vmem:[%s1 + $0x24] sm:$0xf]
  %v89 = vld [vmem:[%s1 + $0x28] sm:$0xf]
  %v90 = vld [vmem:[%s1 + $0x2c] sm:$0xf]
  %v91 = vld [vmem:[%s1 + $0x30] sm:$0xf]
  %v92 = vld [vmem:[%s1 + $0x34] sm:$0xf]
  %v93 = vld [vmem:[%s1 + $0x38] sm:$0xf]
  %v94 = vld [vmem:[%s1 + $0x3c] sm:$0xf]
  %v95 = vld [vmem:[%s1 + $0x40] sm:$0xf]
  %v96 = vld [vmem:[%s1 + $0x44] sm:$0xf]
  %v97 = vld [vmem:[%s1 + $0x48] sm:$0xf]
  %v98 = vld [vmem:[%s1 + $0x4c] sm:$0xf]
  %v99 = vld [vmem:[%s1 + $0x50] sm:$0xf]
  %v100 = vld [vmem:[%s1 + $0x54] sm:$0xf]
  %v101 = vld [vmem:[%s1 + $0x58] sm:$0xf]
  %v102 = vld [vmem:[%s1 + $0x5c] sm:$0xf]
  %v103 = vld [vmem:[%s1 + $0x60] sm:$0xf]
  %v104 = vld [vmem:[%s1 + $0x64] sm:$0xf]
  %v105 = vld [vmem:[%s1 + $0x68] sm:$0xf]
  %v106 = vld [vmem:[%s1 + $0x6c] sm:$0xf]
  %v107 = vld [vmem:[%s1 + $0x70] sm:$0xf]
  %v108 = vld [vmem:[%s1 + $0x74] sm:$0xf]
  %v109 = vld [vmem:[%s1 + $0x78] sm:$0xf]
  %v110 = vld [vmem:[%s1 + $0x7c] sm:$0xf]
  %v111 = vld [vmem:[%s2] sm:$0x1]
  %v113 = vlaneseq
  %v114 = vshrl.u32 %v113, 7
  %v115 = vsub.s32 0, %v114
  %v116 = vrot.slane %v111, %v115
  %v182 = vunpack.c.l.b16 %v15
  %v183 = vunpack.c.h.b16 %v15
  %v184 = vunpack.c.l.b16 %v16
  %v185 = vunpack.c.h.b16 %v16
  %v186 = vunpack.c.l.b16 %v17
  %v187 = vunpack.c.h.b16 %v17
  %v188 = vunpack.c.l.b16 %v18
  %v189 = vunpack.c.h.b16 %v18
  %v190 = vunpack.c.l.b16 %v19
  %v191 = vunpack.c.h.b16 %v19
  %v192 = vunpack.c.l.b16 %v20
  %v193 = vunpack.c.h.b16 %v20
  %v194 = vunpack.c.l.b16 %v21
  %v195 = vunpack.c.h.b16 %v21
  %v196 = vunpack.c.l.b16 %v22
  %v197 = vunpack.c.h.b16 %v22
  %v198 = vunpack.c.l.b16 %v23
  %v199 = vunpack.c.h.b16 %v23
  %v200 = vunpack.c.l.b16 %v24
  %v201 = vunpack.c.h.b16 %v24
  %v202 = vunpack.c.l.b16 %v25
  %v203 = vunpack.c.h.b16 %v25
  %v204 = vunpack.c.l.b16 %v26
  %v205 = vunpack.c.h.b16 %v26
  %v206 = vunpack.c.l.b16 %v27
  %v207 = vunpack.c.h.b16 %v27
  %v208 = vunpack.c.l.b16 %v28
  %v209 = vunpack.c.h.b16 %v28
  %v210 = vunpack.c.l.b16 %v29
  %v211 = vunpack.c.h.b16 %v29
  %v212 = vunpack.c.l.b16 %v30
  %v213 = vunpack.c.h.b16 %v30
  %v214 = vunpack.c.l.b16 %v31
  %v215 = vunpack.c.h.b16 %v31
  %v216 = vunpack.c.l.b16 %v32
  %v217 = vunpack.c.h.b16 %v32
  %v218 = vunpack.c.l.b16 %v33
  %v219 = vunpack.c.h.b16 %v33
  %v220 = vunpack.c.l.b16 %v34
  %v221 = vunpack.c.h.b16 %v34
  %v222 = vunpack.c.l.b16 %v35
  %v223 = vunpack.c.h.b16 %v35
  %v224 = vunpack.c.l.b16 %v36
  %v225 = vunpack.c.h.b16 %v36
  %v226 = vunpack.c.l.b16 %v37
  %v227 = vunpack.c.h.b16 %v37
  %v228 = vunpack.c.l.b16 %v38
  %v229 = vunpack.c.h.b16 %v38
  %v230 = vunpack.c.l.b16 %v39
  %v231 = vunpack.c.h.b16 %v39
  %v232 = vunpack.c.l.b16 %v40
  %v233 = vunpack.c.h.b16 %v40
  %v234 = vunpack.c.l.b16 %v41
  %v235 = vunpack.c.h.b16 %v41
  %v236 = vunpack.c.l.b16 %v42
  %v237 = vunpack.c.h.b16 %v42
  %v238 = vunpack.c.l.b16 %v43
  %v239 = vunpack.c.h.b16 %v43
  %v240 = vunpack.c.l.b16 %v44
  %v241 = vunpack.c.h.b16 %v44
  %v242 = vunpack.c.l.b16 %v45
  %v243 = vunpack.c.h.b16 %v45
  %v244 = vunpack.c.l.b16 %v46
  %v245 = vunpack.c.h.b16 %v46
  %v246 = vunpack.c.l.b16 %v47
  %v247 = vunpack.c.h.b16 %v47
  %v248 = vunpack.c.l.b16 %v48
  %v249 = vunpack.c.h.b16 %v48
  %v250 = vunpack.c.l.b16 %v49
  %v251 = vunpack.c.h.b16 %v49
  %v252 = vunpack.c.l.b16 %v50
  %v253 = vunpack.c.h.b16 %v50
  %v254 = vunpack.c.l.b16 %v51
  %v255 = vunpack.c.h.b16 %v51
  %v256 = vunpack.c.l.b16 %v52
  %v257 = vunpack.c.h.b16 %v52
  %v258 = vunpack.c.l.b16 %v53
  %v259 = vunpack.c.h.b16 %v53
  %v260 = vunpack.c.l.b16 %v54
  %v261 = vunpack.c.h.b16 %v54
  %v262 = vunpack.c.l.b16 %v55
  %v263 = vunpack.c.h.b16 %v55
  %v264 = vunpack.c.l.b16 %v56
  %v265 = vunpack.c.h.b16 %v56
  %v266 = vunpack.c.l.b16 %v57
  %v267 = vunpack.c.h.b16 %v57
  %v268 = vunpack.c.l.b16 %v58
  %v269 = vunpack.c.h.b16 %v58
  %v270 = vunpack.c.l.b16 %v59
  %v271 = vunpack.c.h.b16 %v59
  %v272 = vunpack.c.l.b16 %v60
  %v273 = vunpack.c.h.b16 %v60
  %v274 = vunpack.c.l.b16 %v61
  %v275 = vunpack.c.h.b16 %v61
  %v276 = vunpack.c.l.b16 %v62
  %v277 = vunpack.c.h.b16 %v62
  %v278 = vunpack.c.l.b16 %v63
  %v279 = vunpack.c.h.b16 %v63
  %v280 = vunpack.c.l.b16 %v64
  %v281 = vunpack.c.h.b16 %v64
  %v282 = vunpack.c.l.b16 %v65
  %v283 = vunpack.c.h.b16 %v65
  %v284 = vunpack.c.l.b16 %v66
  %v285 = vunpack.c.h.b16 %v66
  %v286 = vunpack.c.l.b16 %v67
  %v287 = vunpack.c.h.b16 %v67
  %v288 = vunpack.c.l.b16 %v68
  %v289 = vunpack.c.h.b16 %v68
  %v290 = vunpack.c.l.b16 %v69
  %v291 = vunpack.c.h.b16 %v69
  %v292 = vunpack.c.l.b16 %v70
  %v293 = vunpack.c.h.b16 %v70
  %v294 = vunpack.c.l.b16 %v71
  %v295 = vunpack.c.h.b16 %v71
  %v296 = vunpack.c.l.b16 %v72
  %v297 = vunpack.c.h.b16 %v72
  %v298 = vunpack.c.l.b16 %v73
  %v299 = vunpack.c.h.b16 %v73
  %v300 = vunpack.c.l.b16 %v74
  %v301 = vunpack.c.h.b16 %v74
  %v302 = vunpack.c.l.b16 %v75
  %v303 = vunpack.c.h.b16 %v75
  %v304 = vunpack.c.l.b16 %v76
  %v305 = vunpack.c.h.b16 %v76
  %v306 = vunpack.c.l.b16 %v77
  %v307 = vunpack.c.h.b16 %v77
  %v308 = vunpack.c.l.b16 %v78
  %v309 = vunpack.c.h.b16 %v78
  %v310 = vpack.c.b16 %v184, %v182
  %v311 = vpack.c.b16 %v185, %v183
  %v312 = vpack.c.b16 %v188, %v186
  %v313 = vpack.c.b16 %v189, %v187
  %v314 = vpack.c.b16 %v192, %v190
  %v315 = vpack.c.b16 %v193, %v191
  %v316 = vpack.c.b16 %v196, %v194
  %v317 = vpack.c.b16 %v197, %v195
  %v318 = vpack.c.b16 %v200, %v198
  %v319 = vpack.c.b16 %v201, %v199
  %v320 = vpack.c.b16 %v204, %v202
  %v321 = vpack.c.b16 %v205, %v203
  %v322 = vpack.c.b16 %v208, %v206
  %v323 = vpack.c.b16 %v209, %v207
  %v324 = vpack.c.b16 %v212, %v210
  %v325 = vpack.c.b16 %v213, %v211
  %v326 = vpack.c.b16 %v216, %v214
  %v327 = vpack.c.b16 %v217, %v215
  %v328 = vpack.c.b16 %v220, %v218
  %v329 = vpack.c.b16 %v221, %v219
  %v330 = vpack.c.b16 %v224, %v222
  %v331 = vpack.c.b16 %v225, %v223
  %v332 = vpack.c.b16 %v228, %v226
  %v333 = vpack.c.b16 %v229, %v227
  %v334 = vpack.c.b16 %v232, %v230
  %v335 = vpack.c.b16 %v233, %v231
  %v336 = vpack.c.b16 %v236, %v234
  %v337 = vpack.c.b16 %v237, %v235
  %v338 = vpack.c.b16 %v240, %v238
  %v339 = vpack.c.b16 %v241, %v239
  %v340 = vpack.c.b16 %v244, %v242
  %v341 = vpack.c.b16 %v245, %v243
  %v342 = vpack.c.b16 %v248, %v246
  %v343 = vpack.c.b16 %v249, %v247
  %v344 = vpack.c.b16 %v252, %v250
  %v345 = vpack.c.b16 %v253, %v251
  %v346 = vpack.c.b16 %v256, %v254
  %v347 = vpack.c.b16 %v257, %v255
  %v348 = vpack.c.b16 %v260, %v258
  %v349 = vpack.c.b16 %v261, %v259
  %v350 = vpack.c.b16 %v264, %v262
  %v351 = vpack.c.b16 %v265, %v263
  %v352 = vpack.c.b16 %v268, %v266
  %v353 = vpack.c.b16 %v269, %v267
  %v354 = vpack.c.b16 %v272, %v270
  %v355 = vpack.c.b16 %v273, %v271
  %v356 = vpack.c.b16 %v276, %v274
  %v357 = vpack.c.b16 %v277, %v275
  %v358 = vpack.c.b16 %v280, %v278
  %v359 = vpack.c.b16 %v281, %v279
  %v360 = vpack.c.b16 %v284, %v282
  %v361 = vpack.c.b16 %v285, %v283
  %v362 = vpack.c.b16 %v288, %v286
  %v363 = vpack.c.b16 %v289, %v287
  %v364 = vpack.c.b16 %v292, %v290
  %v365 = vpack.c.b16 %v293, %v291
  %v366 = vpack.c.b16 %v296, %v294
  %v367 = vpack.c.b16 %v297, %v295
  %v368 = vpack.c.b16 %v300, %v298
  %v369 = vpack.c.b16 %v301, %v299
  %v370 = vpack.c.b16 %v304, %v302
  %v371 = vpack.c.b16 %v305, %v303
  %v372 = vpack.c.b16 %v308, %v306
  %v373 = vpack.c.b16 %v309, %v307
  %v470 = vunpack.c.l.b16 %v79
  %v471 = vunpack.c.l.b16 %v80
  %v472 = vunpack.c.l.b16 %v81
  %v473 = vunpack.c.l.b16 %v82
  %v474 = vunpack.c.l.b16 %v83
  %v475 = vunpack.c.l.b16 %v84
  %v476 = vunpack.c.l.b16 %v85
  %v477 = vunpack.c.l.b16 %v86
  %v478 = vunpack.c.l.b16 %v87
  %v479 = vunpack.c.l.b16 %v88
  %v480 = vunpack.c.l.b16 %v89
  %v481 = vunpack.c.l.b16 %v90
  %v482 = vunpack.c.l.b16 %v91
  %v483 = vunpack.c.l.b16 %v92
  %v484 = vunpack.c.l.b16 %v93
  %v485 = vunpack.c.l.b16 %v94
  %v486 = vunpack.c.l.b16 %v95
  %v487 = vunpack.c.l.b16 %v96
  %v488 = vunpack.c.l.b16 %v97
  %v489 = vunpack.c.l.b16 %v98
  %v490 = vunpack.c.l.b16 %v99
  %v491 = vunpack.c.l.b16 %v100
  %v492 = vunpack.c.l.b16 %v101
  %v493 = vunpack.c.l.b16 %v102
  %v494 = vunpack.c.l.b16 %v103
  %v495 = vunpack.c.l.b16 %v104
  %v496 = vunpack.c.l.b16 %v105
  %v497 = vunpack.c.l.b16 %v106
  %v498 = vunpack.c.l.b16 %v107
  %v499 = vunpack.c.l.b16 %v108
  %v500 = vunpack.c.l.b16 %v109
  %v501 = vunpack.c.l.b16 %v110
  %v502 = vpack.c.b16 %v471, %v470
  %v503 = vpack.c.b16 %v473, %v472
  %v504 = vpack.c.b16 %v475, %v474
  %v505 = vpack.c.b16 %v477, %v476
  %v506 = vpack.c.b16 %v479, %v478
  %v507 = vpack.c.b16 %v481, %v480
  %v508 = vpack.c.b16 %v483, %v482
  %v509 = vpack.c.b16 %v485, %v484
  %v510 = vpack.c.b16 %v487, %v486
  %v511 = vpack.c.b16 %v489, %v488
  %v512 = vpack.c.b16 %v491, %v490
  %v513 = vpack.c.b16 %v493, %v492
  %v514 = vpack.c.b16 %v495, %v494
  %v515 = vpack.c.b16 %v497, %v496
  %v516 = vpack.c.b16 %v499, %v498
  %v517 = vpack.c.b16 %v501, %v500
  %534 = vmatprep.subr.bf16.mxu0 0
  %535 = vmatpush1.bf16.msra.mxu0 %v502
  %536 = vmatprep.subr.bf16.mxu0 0
  %537 = vmatpush1.bf16.msra.mxu0 %v503
  %538 = vmatprep.subr.bf16.mxu0 0
  %539 = vmatpush1.bf16.msra.mxu0 %v504
  %540 = vmatprep.subr.bf16.mxu0 0
  %541 = vmatpush1.bf16.msra.mxu0 %v505
  %542 = vmatprep.subr.bf16.mxu0 0
  %543 = vmatpush1.bf16.msra.mxu0 %v506
  %544 = vmatprep.subr.bf16.mxu0 0
  %545 = vmatpush1.bf16.msra.mxu0 %v507
  %546 = vmatprep.subr.bf16.mxu0 0
  %547 = vmatpush1.bf16.msra.mxu0 %v508
  %548 = vmatprep.subr.bf16.mxu0 0
  %549 = vmatpush1.bf16.msra.mxu0 %v509
  %550 = vmatprep.subr.bf16.mxu0 0
  %551 = vmatpush1.bf16.msra.mxu0 %v510
  %552 = vmatprep.subr.bf16.mxu0 0
  %553 = vmatpush1.bf16.msra.mxu0 %v511
  %554 = vmatprep.subr.bf16.mxu0 0
  %555 = vmatpush1.bf16.msra.mxu0 %v512
  %556 = vmatprep.subr.bf16.mxu0 0
  %557 = vmatpush1.bf16.msra.mxu0 %v513
  %558 = vmatprep.subr.bf16.mxu0 0
  %559 = vmatpush1.bf16.msra.mxu0 %v514
  %560 = vmatprep.subr.bf16.mxu0 0
  %561 = vmatpush1.bf16.msra.mxu0 %v515
  %562 = vmatprep.subr.bf16.mxu0 0
  %563 = vmatpush1.bf16.msra.mxu0 %v516
  %564 = vmatprep.subr.bf16.mxu0 0
  %565 = vmatpush1.bf16.msra.mxu0 %v517
  %566 = vmatprep.mubr.bf16.mxu0 %v311
  %567 = vmatmul.mubr.bf16.gmra.mrb[0].mxu0 %v310
  %v568 = vpop.f32.mrb[0].mxu0
  %v569 = vadd.f32 %v116, %v568
  %v570 = vpop.f32.mrb[0].mxu0
  %v571 = vpop.f32.mrb[0].mxu0
  %v572 = vadd.f32 %v116, %v571
  %v573 = vpop.f32.mrb[0].mxu0
  %574 = vmatprep.mubr.bf16.mxu0 %v313
  %575 = vmatmul.mubr.bf16.gmra.mrb[0].mxu0 %v312
  %v576 = vpop.f32.mrb[0].mxu0
  %v577 = vadd.f32 %v116, %v576
  %v578 = vpop.f32.mrb[0].mxu0
  %v579 = vpop.f32.mrb[0].mxu0
  %v580 = vadd.f32 %v116, %v579
  %v581 = vpop.f32.mrb[0].mxu0
  %582 = vmatprep.mubr.bf16.mxu0 %v315
  %583 = vmatmul.mubr.bf16.gmra.mrb[0].mxu0 %v314
  %v584 = vpop.f32.mrb[0].mxu0
  %v585 = vadd.f32 %v116, %v584
  %v586 = vpop.f32.mrb[0].mxu0
  %v587 = vpop.f32.mrb[0].mxu0
  %v588 = vadd.f32 %v116, %v587
  %v589 = vpop.f32.mrb[0].mxu0
  %590 = vmatprep.mubr.bf16.mxu0 %v317
  %591 = vmatmul.mubr.bf16.gmra.mrb[0].mxu0 %v316
  %v592 = vpop.f32.mrb[0].mxu0
  %v593 = vadd.f32 %v116, %v592
  %v594 = vpop.f32.mrb[0].mxu0
  %v595 = vpop.f32.mrb[0].mxu0
  %v596 = vadd.f32 %v116, %v595
  %v597 = vpop.f32.mrb[0].mxu0
  %598 = vmatprep.mubr.bf16.mxu0 %v319
  %599 = vmatmul.mubr.bf16.gmra.mrb[0].mxu0 %v318
  %v600 = vpop.f32.mrb[0].mxu0
  %v601 = vadd.f32 %v116, %v600
  %v602 = vpop.f32.mrb[0].mxu0
  %v603 = vpop.f32.mrb[0].mxu0
  %v604 = vadd.f32 %v116, %v603
  %v605 = vpop.f32.mrb[0].mxu0
  %606 = vmatprep.mubr.bf16.mxu0 %v321
  %607 = vmatmul.mubr.bf16.gmra.mrb[0].mxu0 %v320
  %v608 = vpop.f32.mrb[0].mxu0
  %v609 = vadd.f32 %v116, %v608
  %v610 = vpop.f32.mrb[0].mxu0
  %v611 = vpop.f32.mrb[0].mxu0
  %v612 = vadd.f32 %v116, %v611
  %v613 = vpop.f32.mrb[0].mxu0
  %614 = vmatprep.mubr.bf16.mxu0 %v323
  %615 = vmatmul.mubr.bf16.gmra.mrb[0].mxu0 %v322
  %v616 = vpop.f32.mrb[0].mxu0
  %v617 = vadd.f32 %v116, %v616
  %v618 = vpop.f32.mrb[0].mxu0
  %v619 = vpop.f32.mrb[0].mxu0
  %v620 = vadd.f32 %v116, %v619
  %v621 = vpop.f32.mrb[0].mxu0
  %622 = vmatprep.mubr.bf16.mxu0 %v325
  %623 = vmatmul.mubr.bf16.gmra.mrb[0].mxu0 %v324
  %v624 = vpop.f32.mrb[0].mxu0
  %v625 = vadd.f32 %v116, %v624
  %v626 = vpop.f32.mrb[0].mxu0
  %v627 = vpop.f32.mrb[0].mxu0
  %v628 = vadd.f32 %v116, %v627
  %v629 = vpop.f32.mrb[0].mxu0
  %630 = vmatprep.mubr.bf16.mxu0 %v327
  %631 = vmatmul.mubr.bf16.gmra.mrb[0].mxu0 %v326
  %v632 = vpop.f32.mrb[0].mxu0
  %v633 = vadd.f32 %v116, %v632
  %v634 = vpop.f32.mrb[0].mxu0
  %v635 = vpop.f32.mrb[0].mxu0
  %v636 = vadd.f32 %v116, %v635
  %v637 = vpop.f32.mrb[0].mxu0
  %638 = vmatprep.mubr.bf16.mxu0 %v329
  %639 = vmatmul.mubr.bf16.gmra.mrb[0].mxu0 %v328
  %v640 = vpop.f32.mrb[0].mxu0
  %v641 = vadd.f32 %v116, %v640
  %v642 = vpop.f32.mrb[0].mxu0
  %v643 = vpop.f32.mrb[0].mxu0
  %v644 = vadd.f32 %v116, %v643
  %v645 = vpop.f32.mrb[0].mxu0
  %646 = vmatprep.mubr.bf16.mxu0 %v331
  %647 = vmatmul.mubr.bf16.gmra.mrb[0].mxu0 %v330
  %v648 = vpop.f32.mrb[0].mxu0
  %v649 = vadd.f32 %v116, %v648
  %v650 = vpop.f32.mrb[0].mxu0
  %v651 = vpop.f32.mrb[0].mxu0
  %v652 = vadd.f32 %v116, %v651
  %v653 = vpop.f32.mrb[0].mxu0
  %654 = vmatprep.mubr.bf16.mxu0 %v333
  %655 = vmatmul.mubr.bf16.gmra.mrb[0].mxu0 %v332
  %v656 = vpop.f32.mrb[0].mxu0
  %v657 = vadd.f32 %v116, %v656
  %v658 = vpop.f32.mrb[0].mxu0
  %v659 = vpop.f32.mrb[0].mxu0
  %v660 = vadd.f32 %v116, %v659
  %v661 = vpop.f32.mrb[0].mxu0
  %662 = vmatprep.mubr.bf16.mxu0 %v335
  %663 = vmatmul.mubr.bf16.gmra.mrb[0].mxu0 %v334
  %v664 = vpop.f32.mrb[0].mxu0
  %v665 = vadd.f32 %v116, %v664
  %v666 = vpop.f32.mrb[0].mxu0
  %v667 = vpop.f32.mrb[0].mxu0
  %v668 = vadd.f32 %v116, %v667
  %v669 = vpop.f32.mrb[0].mxu0
  %670 = vmatprep.mubr.bf16.mxu0 %v337
  %671 = vmatmul.mubr.bf16.gmra.mrb[0].mxu0 %v336
  %v672 = vpop.f32.mrb[0].mxu0
  %v673 = vadd.f32 %v116, %v672
  %v674 = vpop.f32.mrb[0].mxu0
  %v675 = vpop.f32.mrb[0].mxu0
  %v676 = vadd.f32 %v116, %v675
  %v677 = vpop.f32.mrb[0].mxu0
  %678 = vmatprep.mubr.bf16.mxu0 %v339
  %679 = vmatmul.mubr.bf16.gmra.mrb[0].mxu0 %v338
  %v680 = vpop.f32.mrb[0].mxu0
  %v681 = vadd.f32 %v116, %v680
  %v682 = vpop.f32.mrb[0].mxu0
  %v683 = vpop.f32.mrb[0].mxu0
  %v684 = vadd.f32 %v116, %v683
  %v685 = vpop.f32.mrb[0].mxu0
  %686 = vmatprep.mubr.bf16.mxu0 %v341
  %687 = vmatmul.mubr.bf16.gmra.mrb[0].mxu0 %v340
  %v688 = vpop.f32.mrb[0].mxu0
  %v689 = vadd.f32 %v116, %v688
  %v690 = vpop.f32.mrb[0].mxu0
  %v691 = vpop.f32.mrb[0].mxu0
  %v692 = vadd.f32 %v116, %v691
  %v693 = vpop.f32.mrb[0].mxu0
  %694 = vmatprep.mubr.bf16.mxu0 %v343
  %695 = vmatmul.mubr.bf16.gmra.mrb[0].mxu0 %v342
  %v696 = vpop.f32.mrb[0].mxu0
  %v697 = vadd.f32 %v116, %v696
  %v698 = vpop.f32.mrb[0].mxu0
  %v699 = vpop.f32.mrb[0].mxu0
  %v700 = vadd.f32 %v116, %v699
  %v701 = vpop.f32.mrb[0].mxu0
  %702 = vmatprep.mubr.bf16.mxu0 %v345
  %703 = vmatmul.mubr.bf16.gmra.mrb[0].mxu0 %v344
  %v704 = vpop.f32.mrb[0].mxu0
  %v705 = vadd.f32 %v116, %v704
  %v706 = vpop.f32.mrb[0].mxu0
  %v707 = vpop.f32.mrb[0].mxu0
  %v708 = vadd.f32 %v116, %v707
  %v709 = vpop.f32.mrb[0].mxu0
  %710 = vmatprep.mubr.bf16.mxu0 %v347
  %711 = vmatmul.mubr.bf16.gmra.mrb[0].mxu0 %v346
  %v712 = vpop.f32.mrb[0].mxu0
  %v713 = vadd.f32 %v116, %v712
  %v714 = vpop.f32.mrb[0].mxu0
  %v715 = vpop.f32.mrb[0].mxu0
  %v716 = vadd.f32 %v116, %v715
  %v717 = vpop.f32.mrb[0].mxu0
  %718 = vmatprep.mubr.bf16.mxu0 %v349
  %719 = vmatmul.mubr.bf16.gmra.mrb[0].mxu0 %v348
  %v720 = vpop.f32.mrb[0].mxu0
  %v721 = vadd.f32 %v116, %v720
  %v722 = vpop.f32.mrb[0].mxu0
  %v723 = vpop.f32.mrb[0].mxu0
  %v724 = vadd.f32 %v116, %v723
  %v725 = vpop.f32.mrb[0].mxu0
  %726 = vmatprep.mubr.bf16.mxu0 %v351
  %727 = vmatmul.mubr.bf16.gmra.mrb[0].mxu0 %v350
  %v728 = vpop.f32.mrb[0].mxu0
  %v729 = vadd.f32 %v116, %v728
  %v730 = vpop.f32.mrb[0].mxu0
  %v731 = vpop.f32.mrb[0].mxu0
  %v732 = vadd.f32 %v116, %v731
  %v733 = vpop.f32.mrb[0].mxu0
  %734 = vmatprep.mubr.bf16.mxu0 %v353
  %735 = vmatmul.mubr.bf16.gmra.mrb[0].mxu0 %v352
  %v736 = vpop.f32.mrb[0].mxu0
  %v737 = vadd.f32 %v116, %v736
  %v738 = vpop.f32.mrb[0].mxu0
  %v739 = vpop.f32.mrb[0].mxu0
  %v740 = vadd.f32 %v116, %v739
  %v741 = vpop.f32.mrb[0].mxu0
  %742 = vmatprep.mubr.bf16.mxu0 %v355
  %743 = vmatmul.mubr.bf16.gmra.mrb[0].mxu0 %v354
  %v744 = vpop.f32.mrb[0].mxu0
  %v745 = vadd.f32 %v116, %v744
  %v746 = vpop.f32.mrb[0].mxu0
  %v747 = vpop.f32.mrb[0].mxu0
  %v748 = vadd.f32 %v116, %v747
  %v749 = vpop.f32.mrb[0].mxu0
  %750 = vmatprep.mubr.bf16.mxu0 %v357
  %751 = vmatmul.mubr.bf16.gmra.mrb[0].mxu0 %v356
  %v752 = vpop.f32.mrb[0].mxu0
  %v753 = vadd.f32 %v116, %v752
  %v754 = vpop.f32.mrb[0].mxu0
  %v755 = vpop.f32.mrb[0].mxu0
  %v756 = vadd.f32 %v116, %v755
  %v757 = vpop.f32.mrb[0].mxu0
  %758 = vmatprep.mubr.bf16.mxu0 %v359
  %759 = vmatmul.mubr.bf16.gmra.mrb[0].mxu0 %v358
  %v760 = vpop.f32.mrb[0].mxu0
  %v761 = vadd.f32 %v116, %v760
  %v762 = vpop.f32.mrb[0].mxu0
  %v763 = vpop.f32.mrb[0].mxu0
  %v764 = vadd.f32 %v116, %v763
  %v765 = vpop.f32.mrb[0].mxu0
  %766 = vmatprep.mubr.bf16.mxu0 %v361
  %767 = vmatmul.mubr.bf16.gmra.mrb[0].mxu0 %v360
  %v768 = vpop.f32.mrb[0].mxu0
  %v769 = vadd.f32 %v116, %v768
  %v770 = vpop.f32.mrb[0].mxu0
  %v771 = vpop.f32.mrb[0].mxu0
  %v772 = vadd.f32 %v116, %v771
  %v773 = vpop.f32.mrb[0].mxu0
  %774 = vmatprep.mubr.bf16.mxu0 %v363
  %775 = vmatmul.mubr.bf16.gmra.mrb[0].mxu0 %v362
  %v776 = vpop.f32.mrb[0].mxu0
  %v777 = vadd.f32 %v116, %v776
  %v778 = vpop.f32.mrb[0].mxu0
  %v779 = vpop.f32.mrb[0].mxu0
  %v780 = vadd.f32 %v116, %v779
  %v781 = vpop.f32.mrb[0].mxu0
  %782 = vmatprep.mubr.bf16.mxu0 %v365
  %783 = vmatmul.mubr.bf16.gmra.mrb[0].mxu0 %v364
  %v784 = vpop.f32.mrb[0].mxu0
  %v785 = vadd.f32 %v116, %v784
  %v786 = vpop.f32.mrb[0].mxu0
  %v787 = vpop.f32.mrb[0].mxu0
  %v788 = vadd.f32 %v116, %v787
  %v789 = vpop.f32.mrb[0].mxu0
  %790 = vmatprep.mubr.bf16.mxu0 %v367
  %791 = vmatmul.mubr.bf16.gmra.mrb[0].mxu0 %v366
  %v792 = vpop.f32.mrb[0].mxu0
  %v793 = vadd.f32 %v116, %v792
  %v794 = vpop.f32.mrb[0].mxu0
  %v795 = vpop.f32.mrb[0].mxu0
  %v796 = vadd.f32 %v116, %v795
  %v797 = vpop.f32.mrb[0].mxu0
  %798 = vmatprep.mubr.bf16.mxu0 %v369
  %799 = vmatmul.mubr.bf16.gmra.mrb[0].mxu0 %v368
  %v800 = vpop.f32.mrb[0].mxu0
  %v801 = vadd.f32 %v116, %v800
  %v802 = vpop.f32.mrb[0].mxu0
  %v803 = vpop.f32.mrb[0].mxu0
  %v804 = vadd.f32 %v116, %v803
  %v805 = vpop.f32.mrb[0].mxu0
  %806 = vmatprep.mubr.bf16.mxu0 %v371
  %807 = vmatmul.mubr.bf16.gmra.mrb[0].mxu0 %v370
  %v808 = vpop.f32.mrb[0].mxu0
  %v809 = vadd.f32 %v116, %v808
  %v810 = vpop.f32.mrb[0].mxu0
  %v811 = vpop.f32.mrb[0].mxu0
  %v812 = vadd.f32 %v116, %v811
  %v813 = vpop.f32.mrb[0].mxu0
  %814 = vmatprep.mubr.bf16.mxu0 %v373
  %815 = vmatmul.mubr.bf16.gmra.mrb[0].mxu0 %v372
  %v816 = vpop.f32.mrb[0].mxu0
  %v817 = vadd.f32 %v116, %v816
  %v818 = vpop.f32.mrb[0].mxu0
  %v819 = vpop.f32.mrb[0].mxu0
  %v820 = vadd.f32 %v116, %v819
  %v821 = vpop.f32.mrb[0].mxu0
  %822 = vdwg.mxu0
  %v823 = vpack.c.bf16 %v572, %v569
  %v824 = vpack.c.bf16 %v580, %v577
  %v825 = vpack.c.bf16 %v588, %v585
  %v826 = vpack.c.bf16 %v596, %v593
  %v827 = vpack.c.bf16 %v604, %v601
  %v828 = vpack.c.bf16 %v612, %v609
  %v829 = vpack.c.bf16 %v620, %v617
  %v830 = vpack.c.bf16 %v628, %v625
  %v831 = vpack.c.bf16 %v636, %v633
  %v832 = vpack.c.bf16 %v644, %v641
  %v833 = vpack.c.bf16 %v652, %v649
  %v834 = vpack.c.bf16 %v660, %v657
  %v835 = vpack.c.bf16 %v668, %v665
  %v836 = vpack.c.bf16 %v676, %v673
  %v837 = vpack.c.bf16 %v684, %v681
  %v838 = vpack.c.bf16 %v692, %v689
  %v839 = vpack.c.bf16 %v700, %v697
  %v840 = vpack.c.bf16 %v708, %v705
  %v841 = vpack.c.bf16 %v716, %v713
  %v842 = vpack.c.bf16 %v724, %v721
  %v843 = vpack.c.bf16 %v732, %v729
  %v844 = vpack.c.bf16 %v740, %v737
  %v845 = vpack.c.bf16 %v748, %v745
  %v846 = vpack.c.bf16 %v756, %v753
  %v847 = vpack.c.bf16 %v764, %v761
  %v848 = vpack.c.bf16 %v772, %v769
  %v849 = vpack.c.bf16 %v780, %v777
  %v850 = vpack.c.bf16 %v788, %v785
  %v851 = vpack.c.bf16 %v796, %v793
  %v852 = vpack.c.bf16 %v804, %v801
  %v853 = vpack.c.bf16 %v812, %v809
  %v854 = vpack.c.bf16 %v820, %v817
  %v887 = vunpack.c.l.b16 %v823
  %v888 = vunpack.c.h.b16 %v823
  %v889 = vunpack.c.l.b16 %v824
  %v890 = vunpack.c.h.b16 %v824
  %v891 = vunpack.c.l.b16 %v825
  %v892 = vunpack.c.h.b16 %v825
  %v893 = vunpack.c.l.b16 %v826
  %v894 = vunpack.c.h.b16 %v826
  %v895 = vunpack.c.l.b16 %v827
  %v896 = vunpack.c.h.b16 %v827
  %v897 = vunpack.c.l.b16 %v828
  %v898 = vunpack.c.h.b16 %v828
  %v899 = vunpack.c.l.b16 %v829
  %v900 = vunpack.c.h.b16 %v829
  %v901 = vunpack.c.l.b16 %v830
  %v902 = vunpack.c.h.b16 %v830
  %v903 = vunpack.c.l.b16 %v831
  %v904 = vunpack.c.h.b16 %v831
  %v905 = vunpack.c.l.b16 %v832
  %v906 = vunpack.c.h.b16 %v832
  %v907 = vunpack.c.l.b16 %v833
  %v908 = vunpack.c.h.b16 %v833
  %v909 = vunpack.c.l.b16 %v834
  %v910 = vunpack.c.h.b16 %v834
  %v911 = vunpack.c.l.b16 %v835
  %v912 = vunpack.c.h.b16 %v835
  %v913 = vunpack.c.l.b16 %v836
  %v914 = vunpack.c.h.b16 %v836
  %v915 = vunpack.c.l.b16 %v837
  %v916 = vunpack.c.h.b16 %v837
  %v917 = vunpack.c.l.b16 %v838
  %v918 = vunpack.c.h.b16 %v838
  %v919 = vunpack.c.l.b16 %v839
  %v920 = vunpack.c.h.b16 %v839
  %v921 = vunpack.c.l.b16 %v840
  %v922 = vunpack.c.h.b16 %v840
  %v923 = vunpack.c.l.b16 %v841
  %v924 = vunpack.c.h.b16 %v841
  %v925 = vunpack.c.l.b16 %v842
  %v926 = vunpack.c.h.b16 %v842
  %v927 = vunpack.c.l.b16 %v843
  %v928 = vunpack.c.h.b16 %v843
  %v929 = vunpack.c.l.b16 %v844
  %v930 = vunpack.c.h.b16 %v844
  %v931 = vunpack.c.l.b16 %v845
  %v932 = vunpack.c.h.b16 %v845
  %v933 = vunpack.c.l.b16 %v846
  %v934 = vunpack.c.h.b16 %v846
  %v935 = vunpack.c.l.b16 %v847
  %v936 = vunpack.c.h.b16 %v847
  %v937 = vunpack.c.l.b16 %v848
  %v938 = vunpack.c.h.b16 %v848
  %v939 = vunpack.c.l.b16 %v849
  %v940 = vunpack.c.h.b16 %v849
  %v941 = vunpack.c.l.b16 %v850
  %v942 = vunpack.c.h.b16 %v850
  %v943 = vunpack.c.l.b16 %v851
  %v944 = vunpack.c.h.b16 %v851
  %v945 = vunpack.c.l.b16 %v852
  %v946 = vunpack.c.h.b16 %v852
  %v947 = vunpack.c.l.b16 %v853
  %v948 = vunpack.c.h.b16 %v853
  %v949 = vunpack.c.l.b16 %v854
  %v950 = vunpack.c.h.b16 %v854
  %v951 = vpack.c.b16 %v887, %v887
  %v952 = vpack.c.b16 %v888, %v888
  %v953 = vpack.c.b16 %v889, %v889
  %v954 = vpack.c.b16 %v890, %v890
  %v955 = vpack.c.b16 %v891, %v891
  %v956 = vpack.c.b16 %v892, %v892
  %v957 = vpack.c.b16 %v893, %v893
  %v958 = vpack.c.b16 %v894, %v894
  %v959 = vpack.c.b16 %v895, %v895
  %v960 = vpack.c.b16 %v896, %v896
  %v961 = vpack.c.b16 %v897, %v897
  %v962 = vpack.c.b16 %v898, %v898
  %v963 = vpack.c.b16 %v899, %v899
  %v964 = vpack.c.b16 %v900, %v900
  %v965 = vpack.c.b16 %v901, %v901
  %v966 = vpack.c.b16 %v902, %v902
  %v967 = vpack.c.b16 %v903, %v903
  %v968 = vpack.c.b16 %v904, %v904
  %v969 = vpack.c.b16 %v905, %v905
  %v970 = vpack.c.b16 %v906, %v906
  %v971 = vpack.c.b16 %v907, %v907
  %v972 = vpack.c.b16 %v908, %v908
  %v973 = vpack.c.b16 %v909, %v909
  %v974 = vpack.c.b16 %v910, %v910
  %v975 = vpack.c.b16 %v911, %v911
  %v976 = vpack.c.b16 %v912, %v912
  %v977 = vpack.c.b16 %v913, %v913
  %v978 = vpack.c.b16 %v914, %v914
  %v979 = vpack.c.b16 %v915, %v915
  %v980 = vpack.c.b16 %v916, %v916
  %v981 = vpack.c.b16 %v917, %v917
  %v982 = vpack.c.b16 %v918, %v918
  %v983 = vpack.c.b16 %v919, %v919
  %v984 = vpack.c.b16 %v920, %v920
  %v985 = vpack.c.b16 %v921, %v921
  %v986 = vpack.c.b16 %v922, %v922
  %v987 = vpack.c.b16 %v923, %v923
  %v988 = vpack.c.b16 %v924, %v924
  %v989 = vpack.c.b16 %v925, %v925
  %v990 = vpack.c.b16 %v926, %v926
  %v991 = vpack.c.b16 %v927, %v927
  %v992 = vpack.c.b16 %v928, %v928
  %v993 = vpack.c.b16 %v929, %v929
  %v994 = vpack.c.b16 %v930, %v930
  %v995 = vpack.c.b16 %v931, %v931
  %v996 = vpack.c.b16 %v932, %v932
  %v997 = vpack.c.b16 %v933, %v933
  %v998 = vpack.c.b16 %v934, %v934
  %v999 = vpack.c.b16 %v935, %v935
  %v1000 = vpack.c.b16 %v936, %v936
  %v1001 = vpack.c.b16 %v937, %v937
  %v1002 = vpack.c.b16 %v938, %v938
  %v1003 = vpack.c.b16 %v939, %v939
  %v1004 = vpack.c.b16 %v940, %v940
  %v1005 = vpack.c.b16 %v941, %v941
  %v1006 = vpack.c.b16 %v942, %v942
  %v1007 = vpack.c.b16 %v943, %v943
  %v1008 = vpack.c.b16 %v944, %v944
  %v1009 = vpack.c.b16 %v945, %v945
  %v1010 = vpack.c.b16 %v946, %v946
  %v1011 = vpack.c.b16 %v947, %v947
  %v1012 = vpack.c.b16 %v948, %v948
  %v1013 = vpack.c.b16 %v949, %v949
  %v1014 = vpack.c.b16 %v950, %v950
  %1079 = vst [vmem:[%s3] sm:$0xf] %v951
  %1080 = vst [vmem:[%s3 + $0x4] sm:$0xf] %v952
  %1081 = vst [vmem:[%s3 + $0x8] sm:$0xf] %v953
  %1082 = vst [vmem:[%s3 + $0xc] sm:$0xf] %v954
  %1083 = vst [vmem:[%s3 + $0x10] sm:$0xf] %v955
  %1084 = vst [vmem:[%s3 + $0x14] sm:$0xf] %v956
  %1085 = vst [vmem:[%s3 + $0x18] sm:$0xf] %v957
  %1086 = vst [vmem:[%s3 + $0x1c] sm:$0xf] %v958
  %1087 = vst [vmem:[%s3 + $0x20] sm:$0xf] %v959
  %1088 = vst [vmem:[%s3 + $0x24] sm:$0xf] %v960
  %1089 = vst [vmem:[%s3 + $0x28] sm:$0xf] %v961
  %1090 = vst [vmem:[%s3 + $0x2c] sm:$0xf] %v962
  %1091 = vst [vmem:[%s3 + $0x30] sm:$0xf] %v963
  %1092 = vst [vmem:[%s3 + $0x34] sm:$0xf] %v964
  %1093 = vst [vmem:[%s3 + $0x38] sm:$0xf] %v965
  %1094 = vst [vmem:[%s3 + $0x3c] sm:$0xf] %v966
  %1095 = vst [vmem:[%s3 + $0x40] sm:$0xf] %v967
  %1096 = vst [vmem:[%s3 + $0x44] sm:$0xf] %v968
  %1097 = vst [vmem:[%s3 + $0x48] sm:$0xf] %v969
  %1098 = vst [vmem:[%s3 + $0x4c] sm:$0xf] %v970
  %1099 = vst [vmem:[%s3 + $0x50] sm:$0xf] %v971
  %1100 = vst [vmem:[%s3 + $0x54] sm:$0xf] %v972
  %1101 = vst [vmem:[%s3 + $0x58] sm:$0xf] %v973
  %1102 = vst [vmem:[%s3 + $0x5c] sm:$0xf] %v974
  %1103 = vst [vmem:[%s3 + $0x60] sm:$0xf] %v975
  %1104 = vst [vmem:[%s3 + $0x64] sm:$0xf] %v976
  %1105 = vst [vmem:[%s3 + $0x68] sm:$0xf] %v977
  %1106 = vst [vmem:[%s3 + $0x6c] sm:$0xf] %v978
  %1107 = vst [vmem:[%s3 + $0x70] sm:$0xf] %v979
  %1108 = vst [vmem:[%s3 + $0x74] sm:$0xf] %v980
  %1109 = vst [vmem:[%s3 + $0x78] sm:$0xf] %v981
  %1110 = vst [vmem:[%s3 + $0x7c] sm:$0xf] %v982
  %1111 = vst [vmem:[%s3 + $0x80] sm:$0xf] %v983
  %1112 = vst [vmem:[%s3 + $0x84] sm:$0xf] %v984
  %1113 = vst [vmem:[%s3 + $0x88] sm:$0xf] %v985
  %1114 = vst [vmem:[%s3 + $0x8c] sm:$0xf] %v986
  %1115 = vst [vmem:[%s3 + $0x90] sm:$0xf] %v987
  %1116 = vst [vmem:[%s3 + $0x94] sm:$0xf] %v988
  %1117 = vst [vmem:[%s3 + $0x98] sm:$0xf] %v989
  %1118 = vst [vmem:[%s3 + $0x9c] sm:$0xf] %v990
  %1119 = vst [vmem:[%s3 + $0xa0] sm:$0xf] %v991
  %1120 = vst [vmem:[%s3 + $0xa4] sm:$0xf] %v992
  %1121 = vst [vmem:[%s3 + $0xa8] sm:$0xf] %v993
  %1122 = vst [vmem:[%s3 + $0xac] sm:$0xf] %v994
  %1123 = vst [vmem:[%s3 + $0xb0] sm:$0xf] %v995
  %1124 = vst [vmem:[%s3 + $0xb4] sm:$0xf] %v996
  %1125 = vst [vmem:[%s3 + $0xb8] sm:$0xf] %v997
  %1126 = vst [vmem:[%s3 + $0xbc] sm:$0xf] %v998
  %1127 = vst [vmem:[%s3 + $0xc0] sm:$0xf] %v999
  %1128 = vst [vmem:[%s3 + $0xc4] sm:$0xf] %v1000
  %1129 = vst [vmem:[%s3 + $0xc8] sm:$0xf] %v1001
  %1130 = vst [vmem:[%s3 + $0xcc] sm:$0xf] %v1002
  %1131 = vst [vmem:[%s3 + $0xd0] sm:$0xf] %v1003
  %1132 = vst [vmem:[%s3 + $0xd4] sm:$0xf] %v1004
  %1133 = vst [vmem:[%s3 + $0xd8] sm:$0xf] %v1005
  %1134 = vst [vmem:[%s3 + $0xdc] sm:$0xf] %v1006
  %1135 = vst [vmem:[%s3 + $0xe0] sm:$0xf] %v1007
  %1136 = vst [vmem:[%s3 + $0xe4] sm:$0xf] %v1008
  %1137 = vst [vmem:[%s3 + $0xe8] sm:$0xf] %v1009
  %1138 = vst [vmem:[%s3 + $0xec] sm:$0xf] %v1010
  %1139 = vst [vmem:[%s3 + $0xf0] sm:$0xf] %v1011
  %1140 = vst [vmem:[%s3 + $0xf4] sm:$0xf] %v1012
  %1141 = vst [vmem:[%s3 + $0xf8] sm:$0xf] %v1013
  %1142 = vst [vmem:[%s3 + $0xfc] sm:$0xf] %v1014
  // Predicated region
  $region14: #{resnet_generator_forward.28} parent=0 // pred_check
    _
  $region15: #{resnet_generator_forward.28} parent=0 // pred_check_branch
    %1144 = sbr.rel (0) target = $region17
  $region16: #{resnet_generator_forward.28} parent=0 // pred_region
    _
  $region17: #{resnet_generator_forward.28} parent=0 // pred_fallthru
    _
  // Predicated region
  $region18: #{resnet_generator_forward.28} parent=0 // pred_check
    _
  $region19: #{resnet_generator_forward.28} parent=0 // pred_check_branch
    %1146 = sbr.rel (0) target = $region21
  $region20: #{resnet_generator_forward.28} parent=0 // pred_region
    _
  $region21: #{resnet_generator_forward.28} parent=0 // pred_fallthru
    _

// kernel: resnet_generator_forward.30
$region0: #{resnet_generator_forward.30}
  #allocation0 [shape = 'u32[]', space=smem, size = 0x4, offset = 0x4, fixed_abs, tag = 'smem constant byte address 0x4 - core index']
  #allocation1 [shape = 'u32[144,128]{1,0:T(1,128)}', space=vmem, size = 0x12000, scoped, tag = 'internal scratch']
  %s0 = inlined_call_operand.vmem [shape: bf16[512,128], index: 0, kind: input, shape index: {}]
  %s1 = inlined_call_operand.vmem [shape: f32[1,128], index: 1, kind: input, shape index: {}]
  %s2 = inlined_call_operand.vmem [shape: f32[1,128], index: 2, kind: input, shape index: {}]
  %s3 = inlined_call_operand.vmem [shape: f32[1,128], index: 3, kind: input, shape index: {}]
  %s4 = inlined_call_operand.vmem [shape: f32[1,128], index: 4, kind: input, shape index: {}]
  %s5 = inlined_call_operand.vmem [shape: bf16[512,128], index: 5, kind: output, shape index: {}]
  %s6 = sld [smem:[#allocation0]]
  $region30: #{resnet_generator_forward.30} parent=0
    _
  %s8 = ssub.s32 1, %s6
  %s9 = scalar_select 0, %s8, %s6
  // Predicated region
  $region2: #{resnet_generator_forward.30} parent=0 // pred_check
    _
  $region3: #{resnet_generator_forward.30} parent=0 // pred_check_branch
    %11 = sbr.rel (0) target = $region5
  $region4: #{resnet_generator_forward.30} parent=0 // pred_region
    _
  $region5: #{resnet_generator_forward.30} parent=0 // pred_fallthru
    _
  // Predicated region
  $region6: #{resnet_generator_forward.30} parent=0 // pred_check
    _
  $region7: #{resnet_generator_forward.30} parent=0 // pred_check_branch
    %13 = sbr.rel (0) target = $region9
  $region8: #{resnet_generator_forward.30} parent=0 // pred_region
    _
  $region9: #{resnet_generator_forward.30} parent=0 // pred_fallthru
    _
  // Predicated region
  $region10: #{resnet_generator_forward.30} parent=0 // pred_check
    _
  $region11: #{resnet_generator_forward.30} parent=0 // pred_check_branch
    %15 = sbr.rel (0) target = $region13
  $region12: #{resnet_generator_forward.30} parent=0 // pred_region
    _
  $region13: #{resnet_generator_forward.30} parent=0 // pred_fallthru
    _
  // Predicated region
  $region14: #{resnet_generator_forward.30} parent=0 // pred_check
    _
  $region15: #{resnet_generator_forward.30} parent=0 // pred_check_branch
    %17 = sbr.rel (0) target = $region17
  $region16: #{resnet_generator_forward.30} parent=0 // pred_region
    _
  $region17: #{resnet_generator_forward.30} parent=0 // pred_fallthru
    _
  // Predicated region
  $region18: #{resnet_generator_forward.30} parent=0 // pred_check
    _
  $region19: #{resnet_generator_forward.30} parent=0 // pred_check_branch
    %19 = sbr.rel (0) target = $region21
  $region20: #{resnet_generator_forward.30} parent=0 // pred_region
    _
  $region21: #{resnet_generator_forward.30} parent=0 // pred_fallthru
    _
  %v20 = vld [vmem:[%s1] sm:$0x1]
  %v21 = vld [vmem:[%s2] sm:$0x1]
  %v22 = vld [vmem:[%s3] sm:$0x1]
  %v23 = vld [vmem:[%s4] sm:$0x1]
  %v24 = vmul.f32 %v20, 0.001953125
  %v25 = vmul.f32 %v21, 0.001953125
  %v26 = vmul.f32 %v24, %v24
  %v27 = vsub.f32 %v25, %v26
  %v28 = vmax.f32 %v27, 0.0
  %v29 = vadd.f32 %v28, 1e-05
  %v30 = vrsqrt.pop %v29
  %v31 = vmul.f32 %v22, %v30
  %v32 = vmul.f32 %v24, %v31
  %v33 = vsub.f32 %v23, %v32
  %v34 = vld [vmem:[%s0] sm:$0xf]
  %v35 = vld [vmem:[%s0 + $0x4] sm:$0xf]
  %v36 = vld [vmem:[%s0 + $0x8] sm:$0xf]
  %v37 = vld [vmem:[%s0 + $0xc] sm:$0xf]
  %v38 = vld [vmem:[%s0 + $0x10] sm:$0xf]
  %v39 = vld [vmem:[%s0 + $0x14] sm:$0xf]
  %v40 = vld [vmem:[%s0 + $0x18] sm:$0xf]
  %v41 = vld [vmem:[%s0 + $0x1c] sm:$0xf]
  %v42 = vld [vmem:[%s0 + $0x20] sm:$0xf]
  %v43 = vld [vmem:[%s0 + $0x24] sm:$0xf]
  %v44 = vld [vmem:[%s0 + $0x28] sm:$0xf]
  %v45 = vld [vmem:[%s0 + $0x2c] sm:$0xf]
  %v46 = vld [vmem:[%s0 + $0x30] sm:$0xf]
  %v47 = vld [vmem:[%s0 + $0x34] sm:$0xf]
  %v48 = vld [vmem:[%s0 + $0x38] sm:$0xf]
  %v49 = vld [vmem:[%s0 + $0x3c] sm:$0xf]
  %v50 = vld [vmem:[%s0 + $0x40] sm:$0xf]
  %v51 = vld [vmem:[%s0 + $0x44] sm:$0xf]
  %v52 = vld [vmem:[%s0 + $0x48] sm:$0xf]
  %v53 = vld [vmem:[%s0 + $0x4c] sm:$0xf]
  %v54 = vld [vmem:[%s0 + $0x50] sm:$0xf]
  %v55 = vld [vmem:[%s0 + $0x54] sm:$0xf]
  %v56 = vld [vmem:[%s0 + $0x58] sm:$0xf]
  %v57 = vld [vmem:[%s0 + $0x5c] sm:$0xf]
  %v58 = vld [vmem:[%s0 + $0x60] sm:$0xf]
  %v59 = vld [vmem:[%s0 + $0x64] sm:$0xf]
  %v60 = vld [vmem:[%s0 + $0x68] sm:$0xf]
  %v61 = vld [vmem:[%s0 + $0x6c] sm:$0xf]
  %v62 = vld [vmem:[%s0 + $0x70] sm:$0xf]
  %v63 = vld [vmem:[%s0 + $0x74] sm:$0xf]
  %v64 = vld [vmem:[%s0 + $0x78] sm:$0xf]
  %v65 = vld [vmem:[%s0 + $0x7c] sm:$0xf]
  %v66 = vld [vmem:[%s0 + $0x80] sm:$0xf]
  %v67 = vld [vmem:[%s0 + $0x84] sm:$0xf]
  %v68 = vld [vmem:[%s0 + $0x88] sm:$0xf]
  %v69 = vld [vmem:[%s0 + $0x8c] sm:$0xf]
  %v70 = vld [vmem:[%s0 + $0x90] sm:$0xf]
  %v71 = vld [vmem:[%s0 + $0x94] sm:$0xf]
  %v72 = vld [vmem:[%s0 + $0x98] sm:$0xf]
  %v73 = vld [vmem:[%s0 + $0x9c] sm:$0xf]
  %v74 = vld [vmem:[%s0 + $0xa0] sm:$0xf]
  %v75 = vld [vmem:[%s0 + $0xa4] sm:$0xf]
  %v76 = vld [vmem:[%s0 + $0xa8] sm:$0xf]
  %v77 = vld [vmem:[%s0 + $0xac] sm:$0xf]
  %v78 = vld [vmem:[%s0 + $0xb0] sm:$0xf]
  %v79 = vld [vmem:[%s0 + $0xb4] sm:$0xf]
  %v80 = vld [vmem:[%s0 + $0xb8] sm:$0xf]
  %v81 = vld [vmem:[%s0 + $0xbc] sm:$0xf]
  %v82 = vld [vmem:[%s0 + $0xc0] sm:$0xf]
  %v83 = vld [vmem:[%s0 + $0xc4] sm:$0xf]
  %v84 = vld [vmem:[%s0 + $0xc8] sm:$0xf]
  %v85 = vld [vmem:[%s0 + $0xcc] sm:$0xf]
  %v86 = vld [vmem:[%s0 + $0xd0] sm:$0xf]
  %v87 = vld [vmem:[%s0 + $0xd4] sm:$0xf]
  %v88 = vld [vmem:[%s0 + $0xd8] sm:$0xf]
  %v89 = vld [vmem:[%s0 + $0xdc] sm:$0xf]
  %v90 = vld [vmem:[%s0 + $0xe0] sm:$0xf]
  %v91 = vld [vmem:[%s0 + $0xe4] sm:$0xf]
  %v92 = vld [vmem:[%s0 + $0xe8] sm:$0xf]
  %v93 = vld [vmem:[%s0 + $0xec] sm:$0xf]
  %v94 = vld [vmem:[%s0 + $0xf0] sm:$0xf]
  %v95 = vld [vmem:[%s0 + $0xf4] sm:$0xf]
  %v96 = vld [vmem:[%s0 + $0xf8] sm:$0xf]
  %v97 = vld [vmem:[%s0 + $0xfc] sm:$0xf]
  %v98 = vunpack.c.l.bf16 %v34
  %v99 = vunpack.c.l.bf16 %v35
  %v100 = vunpack.c.l.bf16 %v36
  %v101 = vunpack.c.l.bf16 %v37
  %v102 = vunpack.c.l.bf16 %v38
  %v103 = vunpack.c.l.bf16 %v39
  %v104 = vunpack.c.l.bf16 %v40
  %v105 = vunpack.c.l.bf16 %v41
  %v106 = vunpack.c.l.bf16 %v42
  %v107 = vunpack.c.l.bf16 %v43
  %v108 = vunpack.c.l.bf16 %v44
  %v109 = vunpack.c.l.bf16 %v45
  %v110 = vunpack.c.l.bf16 %v46
  %v111 = vunpack.c.l.bf16 %v47
  %v112 = vunpack.c.l.bf16 %v48
  %v113 = vunpack.c.l.bf16 %v49
  %v114 = vunpack.c.l.bf16 %v50
  %v115 = vunpack.c.l.bf16 %v51
  %v116 = vunpack.c.l.bf16 %v52
  %v117 = vunpack.c.l.bf16 %v53
  %v118 = vunpack.c.l.bf16 %v54
  %v119 = vunpack.c.l.bf16 %v55
  %v120 = vunpack.c.l.bf16 %v56
  %v121 = vunpack.c.l.bf16 %v57
  %v122 = vunpack.c.l.bf16 %v58
  %v123 = vunpack.c.l.bf16 %v59
  %v124 = vunpack.c.l.bf16 %v60
  %v125 = vunpack.c.l.bf16 %v61
  %v126 = vunpack.c.l.bf16 %v62
  %v127 = vunpack.c.l.bf16 %v63
  %v128 = vunpack.c.l.bf16 %v64
  %v129 = vunpack.c.l.bf16 %v65
  %v130 = vunpack.c.l.bf16 %v66
  %v131 = vunpack.c.l.bf16 %v67
  %v132 = vunpack.c.l.bf16 %v68
  %v133 = vunpack.c.l.bf16 %v69
  %v134 = vunpack.c.l.bf16 %v70
  %v135 = vunpack.c.l.bf16 %v71
  %v136 = vunpack.c.l.bf16 %v72
  %v137 = vunpack.c.l.bf16 %v73
  %v138 = vunpack.c.l.bf16 %v74
  %v139 = vunpack.c.l.bf16 %v75
  %v140 = vunpack.c.l.bf16 %v76
  %v141 = vunpack.c.l.bf16 %v77
  %v142 = vunpack.c.l.bf16 %v78
  %v143 = vunpack.c.l.bf16 %v79
  %v144 = vunpack.c.l.bf16 %v80
  %v145 = vunpack.c.l.bf16 %v81
  %v146 = vunpack.c.l.bf16 %v82
  %v147 = vunpack.c.l.bf16 %v83
  %v148 = vunpack.c.l.bf16 %v84
  %v149 = vunpack.c.l.bf16 %v85
  %v150 = vunpack.c.l.bf16 %v86
  %v151 = vunpack.c.l.bf16 %v87
  %v152 = vunpack.c.l.bf16 %v88
  %v153 = vunpack.c.l.bf16 %v89
  %v154 = vunpack.c.l.bf16 %v90
  %v155 = vunpack.c.l.bf16 %v91
  %v156 = vunpack.c.l.bf16 %v92
  %v157 = vunpack.c.l.bf16 %v93
  %v158 = vunpack.c.l.bf16 %v94
  %v159 = vunpack.c.l.bf16 %v95
  %v160 = vunpack.c.l.bf16 %v96
  %v161 = vunpack.c.l.bf16 %v97
  %v163 = vlaneseq
  %v164 = vshrl.u32 %v163, 7
  %v165 = vsub.s32 0, %v164
  %v166 = vrot.slane %v31, %v165
  %v168 = vmul.f32 %v98, %v166
  %v169 = vmul.f32 %v99, %v166
  %v170 = vmul.f32 %v100, %v166
  %v171 = vmul.f32 %v101, %v166
  %v172 = vmul.f32 %v102, %v166
  %v173 = vmul.f32 %v103, %v166
  %v174 = vmul.f32 %v104, %v166
  %v175 = vmul.f32 %v105, %v166
  %v176 = vmul.f32 %v106, %v166
  %v177 = vmul.f32 %v107, %v166
  %v178 = vmul.f32 %v108, %v166
  %v179 = vmul.f32 %v109, %v166
  %v180 = vmul.f32 %v110, %v166
  %v181 = vmul.f32 %v111, %v166
  %v182 = vmul.f32 %v112, %v166
  %v183 = vmul.f32 %v113, %v166
  %v184 = vmul.f32 %v114, %v166
  %v185 = vmul.f32 %v115, %v166
  %v186 = vmul.f32 %v116, %v166
  %v187 = vmul.f32 %v117, %v166
  %v188 = vmul.f32 %v118, %v166
  %v189 = vmul.f32 %v119, %v166
  %v190 = vmul.f32 %v120, %v166
  %v191 = vmul.f32 %v121, %v166
  %v192 = vmul.f32 %v122, %v166
  %v193 = vmul.f32 %v123, %v166
  %v194 = vmul.f32 %v124, %v166
  %v195 = vmul.f32 %v125, %v166
  %v196 = vmul.f32 %v126, %v166
  %v197 = vmul.f32 %v127, %v166
  %v198 = vmul.f32 %v128, %v166
  %v199 = vmul.f32 %v129, %v166
  %v200 = vmul.f32 %v130, %v166
  %v201 = vmul.f32 %v131, %v166
  %v202 = vmul.f32 %v132, %v166
  %v203 = vmul.f32 %v133, %v166
  %v204 = vmul.f32 %v134, %v166
  %v205 = vmul.f32 %v135, %v166
  %v206 = vmul.f32 %v136, %v166
  %v207 = vmul.f32 %v137, %v166
  %v208 = vmul.f32 %v138, %v166
  %v209 = vmul.f32 %v139, %v166
  %v210 = vmul.f32 %v140, %v166
  %v211 = vmul.f32 %v141, %v166
  %v212 = vmul.f32 %v142, %v166
  %v213 = vmul.f32 %v143, %v166
  %v214 = vmul.f32 %v144, %v166
  %v215 = vmul.f32 %v145, %v166
  %v216 = vmul.f32 %v146, %v166
  %v217 = vmul.f32 %v147, %v166
  %v218 = vmul.f32 %v148, %v166
  %v219 = vmul.f32 %v149, %v166
  %v220 = vmul.f32 %v150, %v166
  %v221 = vmul.f32 %v151, %v166
  %v222 = vmul.f32 %v152, %v166
  %v223 = vmul.f32 %v153, %v166
  %v224 = vmul.f32 %v154, %v166
  %v225 = vmul.f32 %v155, %v166
  %v226 = vmul.f32 %v156, %v166
  %v227 = vmul.f32 %v157, %v166
  %v228 = vmul.f32 %v158, %v166
  %v229 = vmul.f32 %v159, %v166
  %v230 = vmul.f32 %v160, %v166
  %v231 = vmul.f32 %v161, %v166
  %v233 = vlaneseq
  %v234 = vshrl.u32 %v233, 7
  %v235 = vsub.s32 0, %v234
  %v236 = vrot.slane %v33, %v235
  %v238 = vadd.f32 %v168, %v236
  %v239 = vadd.f32 %v169, %v236
  %v240 = vadd.f32 %v170, %v236
  %v241 = vadd.f32 %v171, %v236
  %v242 = vadd.f32 %v172, %v236
  %v243 = vadd.f32 %v173, %v236
  %v244 = vadd.f32 %v174, %v236
  %v245 = vadd.f32 %v175, %v236
  %v246 = vadd.f32 %v176, %v236
  %v247 = vadd.f32 %v177, %v236
  %v248 = vadd.f32 %v178, %v236
  %v249 = vadd.f32 %v179, %v236
  %v250 = vadd.f32 %v180, %v236
  %v251 = vadd.f32 %v181, %v236
  %v252 = vadd.f32 %v182, %v236
  %v253 = vadd.f32 %v183, %v236
  %v254 = vadd.f32 %v184, %v236
  %v255 = vadd.f32 %v185, %v236
  %v256 = vadd.f32 %v186, %v236
  %v257 = vadd.f32 %v187, %v236
  %v258 = vadd.f32 %v188, %v236
  %v259 = vadd.f32 %v189, %v236
  %v260 = vadd.f32 %v190, %v236
  %v261 = vadd.f32 %v191, %v236
  %v262 = vadd.f32 %v192, %v236
  %v263 = vadd.f32 %v193, %v236
  %v264 = vadd.f32 %v194, %v236
  %v265 = vadd.f32 %v195, %v236
  %v266 = vadd.f32 %v196, %v236
  %v267 = vadd.f32 %v197, %v236
  %v268 = vadd.f32 %v198, %v236
  %v269 = vadd.f32 %v199, %v236
  %v270 = vadd.f32 %v200, %v236
  %v271 = vadd.f32 %v201, %v236
  %v272 = vadd.f32 %v202, %v236
  %v273 = vadd.f32 %v203, %v236
  %v274 = vadd.f32 %v204, %v236
  %v275 = vadd.f32 %v205, %v236
  %v276 = vadd.f32 %v206, %v236
  %v277 = vadd.f32 %v207, %v236
  %v278 = vadd.f32 %v208, %v236
  %v279 = vadd.f32 %v209, %v236
  %v280 = vadd.f32 %v210, %v236
  %v281 = vadd.f32 %v211, %v236
  %v282 = vadd.f32 %v212, %v236
  %v283 = vadd.f32 %v213, %v236
  %v284 = vadd.f32 %v214, %v236
  %v285 = vadd.f32 %v215, %v236
  %v286 = vadd.f32 %v216, %v236
  %v287 = vadd.f32 %v217, %v236
  %v288 = vadd.f32 %v218, %v236
  %v289 = vadd.f32 %v219, %v236
  %v290 = vadd.f32 %v220, %v236
  %v291 = vadd.f32 %v221, %v236
  %v292 = vadd.f32 %v222, %v236
  %v293 = vadd.f32 %v223, %v236
  %v294 = vadd.f32 %v224, %v236
  %v295 = vadd.f32 %v225, %v236
  %v296 = vadd.f32 %v226, %v236
  %v297 = vadd.f32 %v227, %v236
  %v298 = vadd.f32 %v228, %v236
  %v299 = vadd.f32 %v229, %v236
  %v300 = vadd.f32 %v230, %v236
  %v301 = vadd.f32 %v231, %v236
  %v302 = vmax.f32 %v238, 0.0
  %v303 = vmax.f32 %v239, 0.0
  %v304 = vmax.f32 %v240, 0.0
  %v305 = vmax.f32 %v241, 0.0
  %v306 = vmax.f32 %v242, 0.0
  %v307 = vmax.f32 %v243, 0.0
  %v308 = vmax.f32 %v244, 0.0
  %v309 = vmax.f32 %v245, 0.0
  %v310 = vmax.f32 %v246, 0.0
  %v311 = vmax.f32 %v247, 0.0
  %v312 = vmax.f32 %v248, 0.0
  %v313 = vmax.f32 %v249, 0.0
  %v314 = vmax.f32 %v250, 0.0
  %v315 = vmax.f32 %v251, 0.0
  %v316 = vmax.f32 %v252, 0.0
  %v317 = vmax.f32 %v253, 0.0
  %v318 = vmax.f32 %v254, 0.0
  %v319 = vmax.f32 %v255, 0.0
  %v320 = vmax.f32 %v256, 0.0
  %v321 = vmax.f32 %v257, 0.0
  %v322 = vmax.f32 %v258, 0.0
  %v323 = vmax.f32 %v259, 0.0
  %v324 = vmax.f32 %v260, 0.0
  %v325 = vmax.f32 %v261, 0.0
  %v326 = vmax.f32 %v262, 0.0
  %v327 = vmax.f32 %v263, 0.0
  %v328 = vmax.f32 %v264, 0.0
  %v329 = vmax.f32 %v265, 0.0
  %v330 = vmax.f32 %v266, 0.0
  %v331 = vmax.f32 %v267, 0.0
  %v332 = vmax.f32 %v268, 0.0
  %v333 = vmax.f32 %v269, 0.0
  %v334 = vmax.f32 %v270, 0.0
  %v335 = vmax.f32 %v271, 0.0
  %v336 = vmax.f32 %v272, 0.0
  %v337 = vmax.f32 %v273, 0.0
  %v338 = vmax.f32 %v274, 0.0
  %v339 = vmax.f32 %v275, 0.0
  %v340 = vmax.f32 %v276, 0.0
  %v341 = vmax.f32 %v277, 0.0
  %v342 = vmax.f32 %v278, 0.0
  %v343 = vmax.f32 %v279, 0.0
  %v344 = vmax.f32 %v280, 0.0
  %v345 = vmax.f32 %v281, 0.0
  %v346 = vmax.f32 %v282, 0.0
  %v347 = vmax.f32 %v283, 0.0
  %v348 = vmax.f32 %v284, 0.0
  %v349 = vmax.f32 %v285, 0.0
  %v350 = vmax.f32 %v286, 0.0
  %v351 = vmax.f32 %v287, 0.0
  %v352 = vmax.f32 %v288, 0.0
  %v353 = vmax.f32 %v289, 0.0
  %v354 = vmax.f32 %v290, 0.0
  %v355 = vmax.f32 %v291, 0.0
  %v356 = vmax.f32 %v292, 0.0
  %v357 = vmax.f32 %v293, 0.0
  %v358 = vmax.f32 %v294, 0.0
  %v359 = vmax.f32 %v295, 0.0
  %v360 = vmax.f32 %v296, 0.0
  %v361 = vmax.f32 %v297, 0.0
  %v362 = vmax.f32 %v298, 0.0
  %v363 = vmax.f32 %v299, 0.0
  %v364 = vmax.f32 %v300, 0.0
  %v365 = vmax.f32 %v301, 0.0
  %v366 = vpack.c.bf16 %v303, %v302
  %v367 = vpack.c.bf16 %v305, %v304
  %v368 = vpack.c.bf16 %v307, %v306
  %v369 = vpack.c.bf16 %v309, %v308
  %v370 = vpack.c.bf16 %v311, %v310
  %v371 = vpack.c.bf16 %v313, %v312
  %v372 = vpack.c.bf16 %v315, %v314
  %v373 = vpack.c.bf16 %v317, %v316
  %v374 = vpack.c.bf16 %v319, %v318
  %v375 = vpack.c.bf16 %v321, %v320
  %v376 = vpack.c.bf16 %v323, %v322
  %v377 = vpack.c.bf16 %v325, %v324
  %v378 = vpack.c.bf16 %v327, %v326
  %v379 = vpack.c.bf16 %v329, %v328
  %v380 = vpack.c.bf16 %v331, %v330
  %v381 = vpack.c.bf16 %v333, %v332
  %v382 = vpack.c.bf16 %v335, %v334
  %v383 = vpack.c.bf16 %v337, %v336
  %v384 = vpack.c.bf16 %v339, %v338
  %v385 = vpack.c.bf16 %v341, %v340
  %v386 = vpack.c.bf16 %v343, %v342
  %v387 = vpack.c.bf16 %v345, %v344
  %v388 = vpack.c.bf16 %v347, %v346
  %v389 = vpack.c.bf16 %v349, %v348
  %v390 = vpack.c.bf16 %v351, %v350
  %v391 = vpack.c.bf16 %v353, %v352
  %v392 = vpack.c.bf16 %v355, %v354
  %v393 = vpack.c.bf16 %v357, %v356
  %v394 = vpack.c.bf16 %v359, %v358
  %v395 = vpack.c.bf16 %v361, %v360
  %v396 = vpack.c.bf16 %v363, %v362
  %v397 = vpack.c.bf16 %v365, %v364
  %v430 = vunpack.c.l.b16 %v366
  %v431 = vunpack.c.h.b16 %v366
  %v432 = vunpack.c.l.b16 %v367
  %v433 = vunpack.c.h.b16 %v367
  %v434 = vunpack.c.l.b16 %v368
  %v435 = vunpack.c.h.b16 %v368
  %v436 = vunpack.c.l.b16 %v369
  %v437 = vunpack.c.h.b16 %v369
  %v438 = vunpack.c.l.b16 %v370
  %v439 = vunpack.c.h.b16 %v370
  %v440 = vunpack.c.l.b16 %v371
  %v441 = vunpack.c.h.b16 %v371
  %v442 = vunpack.c.l.b16 %v372
  %v443 = vunpack.c.h.b16 %v372
  %v444 = vunpack.c.l.b16 %v373
  %v445 = vunpack.c.h.b16 %v373
  %v446 = vunpack.c.l.b16 %v374
  %v447 = vunpack.c.h.b16 %v374
  %v448 = vunpack.c.l.b16 %v375
  %v449 = vunpack.c.h.b16 %v375
  %v450 = vunpack.c.l.b16 %v376
  %v451 = vunpack.c.h.b16 %v376
  %v452 = vunpack.c.l.b16 %v377
  %v453 = vunpack.c.h.b16 %v377
  %v454 = vunpack.c.l.b16 %v378
  %v455 = vunpack.c.h.b16 %v378
  %v456 = vunpack.c.l.b16 %v379
  %v457 = vunpack.c.h.b16 %v379
  %v458 = vunpack.c.l.b16 %v380
  %v459 = vunpack.c.h.b16 %v380
  %v460 = vunpack.c.l.b16 %v381
  %v461 = vunpack.c.h.b16 %v381
  %v462 = vunpack.c.l.b16 %v382
  %v463 = vunpack.c.h.b16 %v382
  %v464 = vunpack.c.l.b16 %v383
  %v465 = vunpack.c.h.b16 %v383
  %v466 = vunpack.c.l.b16 %v384
  %v467 = vunpack.c.h.b16 %v384
  %v468 = vunpack.c.l.b16 %v385
  %v469 = vunpack.c.h.b16 %v385
  %v470 = vunpack.c.l.b16 %v386
  %v471 = vunpack.c.h.b16 %v386
  %v472 = vunpack.c.l.b16 %v387
  %v473 = vunpack.c.h.b16 %v387
  %v474 = vunpack.c.l.b16 %v388
  %v475 = vunpack.c.h.b16 %v388
  %v476 = vunpack.c.l.b16 %v389
  %v477 = vunpack.c.h.b16 %v389
  %v478 = vunpack.c.l.b16 %v390
  %v479 = vunpack.c.h.b16 %v390
  %v480 = vunpack.c.l.b16 %v391
  %v481 = vunpack.c.h.b16 %v391
  %v482 = vunpack.c.l.b16 %v392
  %v483 = vunpack.c.h.b16 %v392
  %v484 = vunpack.c.l.b16 %v393
  %v485 = vunpack.c.h.b16 %v393
  %v486 = vunpack.c.l.b16 %v394
  %v487 = vunpack.c.h.b16 %v394
  %v488 = vunpack.c.l.b16 %v395
  %v489 = vunpack.c.h.b16 %v395
  %v490 = vunpack.c.l.b16 %v396
  %v491 = vunpack.c.h.b16 %v396
  %v492 = vunpack.c.l.b16 %v397
  %v493 = vunpack.c.h.b16 %v397
  %v494 = vpack.c.b16 %v430, %v430
  %v495 = vpack.c.b16 %v431, %v431
  %v496 = vpack.c.b16 %v432, %v432
  %v497 = vpack.c.b16 %v433, %v433
  %v498 = vpack.c.b16 %v434, %v434
  %v499 = vpack.c.b16 %v435, %v435
  %v500 = vpack.c.b16 %v436, %v436
  %v501 = vpack.c.b16 %v437, %v437
  %v502 = vpack.c.b16 %v438, %v438
  %v503 = vpack.c.b16 %v439, %v439
  %v504 = vpack.c.b16 %v440, %v440
  %v505 = vpack.c.b16 %v441, %v441
  %v506 = vpack.c.b16 %v442, %v442
  %v507 = vpack.c.b16 %v443, %v443
  %v508 = vpack.c.b16 %v444, %v444
  %v509 = vpack.c.b16 %v445, %v445
  %v510 = vpack.c.b16 %v446, %v446
  %v511 = vpack.c.b16 %v447, %v447
  %v512 = vpack.c.b16 %v448, %v448
  %v513 = vpack.c.b16 %v449, %v449
  %v514 = vpack.c.b16 %v450, %v450
  %v515 = vpack.c.b16 %v451, %v451
  %v516 = vpack.c.b16 %v452, %v452
  %v517 = vpack.c.b16 %v453, %v453
  %v518 = vpack.c.b16 %v454, %v454
  %v519 = vpack.c.b16 %v455, %v455
  %v520 = vpack.c.b16 %v456, %v456
  %v521 = vpack.c.b16 %v457, %v457
  %v522 = vpack.c.b16 %v458, %v458
  %v523 = vpack.c.b16 %v459, %v459
  %v524 = vpack.c.b16 %v460, %v460
  %v525 = vpack.c.b16 %v461, %v461
  %v526 = vpack.c.b16 %v462, %v462
  %v527 = vpack.c.b16 %v463, %v463
  %v528 = vpack.c.b16 %v464, %v464
  %v529 = vpack.c.b16 %v465, %v465
  %v530 = vpack.c.b16 %v466, %v466
  %v531 = vpack.c.b16 %v467, %v467
  %v532 = vpack.c.b16 %v468, %v468
  %v533 = vpack.c.b16 %v469, %v469
  %v534 = vpack.c.b16 %v470, %v470
  %v535 = vpack.c.b16 %v471, %v471
  %v536 = vpack.c.b16 %v472, %v472
  %v537 = vpack.c.b16 %v473, %v473
  %v538 = vpack.c.b16 %v474, %v474
  %v539 = vpack.c.b16 %v475, %v475
  %v540 = vpack.c.b16 %v476, %v476
  %v541 = vpack.c.b16 %v477, %v477
  %v542 = vpack.c.b16 %v478, %v478
  %v543 = vpack.c.b16 %v479, %v479
  %v544 = vpack.c.b16 %v480, %v480
  %v545 = vpack.c.b16 %v481, %v481
  %v546 = vpack.c.b16 %v482, %v482
  %v547 = vpack.c.b16 %v483, %v483
  %v548 = vpack.c.b16 %v484, %v484
  %v549 = vpack.c.b16 %v485, %v485
  %v550 = vpack.c.b16 %v486, %v486
  %v551 = vpack.c.b16 %v487, %v487
  %v552 = vpack.c.b16 %v488, %v488
  %v553 = vpack.c.b16 %v489, %v489
  %v554 = vpack.c.b16 %v490, %v490
  %v555 = vpack.c.b16 %v491, %v491
  %v556 = vpack.c.b16 %v492, %v492
  %v557 = vpack.c.b16 %v493, %v493
  %622 = vst [vmem:[%s5] sm:$0xf] %v494
  %623 = vst [vmem:[%s5 + $0x4] sm:$0xf] %v495
  %624 = vst [vmem:[%s5 + $0x8] sm:$0xf] %v496
  %625 = vst [vmem:[%s5 + $0xc] sm:$0xf] %v497
  %626 = vst [vmem:[%s5 + $0x10] sm:$0xf] %v498
  %627 = vst [vmem:[%s5 + $0x14] sm:$0xf] %v499
  %628 = vst [vmem:[%s5 + $0x18] sm:$0xf] %v500
  %629 = vst [vmem:[%s5 + $0x1c] sm:$0xf] %v501
  %630 = vst [vmem:[%s5 + $0x20] sm:$0xf] %v502
  %631 = vst [vmem:[%s5 + $0x24] sm:$0xf] %v503
  %632 = vst [vmem:[%s5 + $0x28] sm:$0xf] %v504
  %633 = vst [vmem:[%s5 + $0x2c] sm:$0xf] %v505
  %634 = vst [vmem:[%s5 + $0x30] sm:$0xf] %v506
  %635 = vst [vmem:[%s5 + $0x34] sm:$0xf] %v507
  %636 = vst [vmem:[%s5 + $0x38] sm:$0xf] %v508
  %637 = vst [vmem:[%s5 + $0x3c] sm:$0xf] %v509
  %638 = vst [vmem:[%s5 + $0x40] sm:$0xf] %v510
  %639 = vst [vmem:[%s5 + $0x44] sm:$0xf] %v511
  %640 = vst [vmem:[%s5 + $0x48] sm:$0xf] %v512
  %641 = vst [vmem:[%s5 + $0x4c] sm:$0xf] %v513
  %642 = vst [vmem:[%s5 + $0x50] sm:$0xf] %v514
  %643 = vst [vmem:[%s5 + $0x54] sm:$0xf] %v515
  %644 = vst [vmem:[%s5 + $0x58] sm:$0xf] %v516
  %645 = vst [vmem:[%s5 + $0x5c] sm:$0xf] %v517
  %646 = vst [vmem:[%s5 + $0x60] sm:$0xf] %v518
  %647 = vst [vmem:[%s5 + $0x64] sm:$0xf] %v519
  %648 = vst [vmem:[%s5 + $0x68] sm:$0xf] %v520
  %649 = vst [vmem:[%s5 + $0x6c] sm:$0xf] %v521
  %650 = vst [vmem:[%s5 + $0x70] sm:$0xf] %v522
  %651 = vst [vmem:[%s5 + $0x74] sm:$0xf] %v523
  %652 = vst [vmem:[%s5 + $0x78] sm:$0xf] %v524
  %653 = vst [vmem:[%s5 + $0x7c] sm:$0xf] %v525
  %654 = vst [vmem:[%s5 + $0x80] sm:$0xf] %v526
  %655 = vst [vmem:[%s5 + $0x84] sm:$0xf] %v527
  %656 = vst [vmem:[%s5 + $0x88] sm:$0xf] %v528
  %657 = vst [vmem:[%s5 + $0x8c] sm:$0xf] %v529
  %658 = vst [vmem:[%s5 + $0x90] sm:$0xf] %v530
  %659 = vst [vmem:[%s5 + $0x94] sm:$0xf] %v531
  %660 = vst [vmem:[%s5 + $0x98] sm:$0xf] %v532
  %661 = vst [vmem:[%s5 + $0x9c] sm:$0xf] %v533
  %662 = vst [vmem:[%s5 + $0xa0] sm:$0xf] %v534
  %663 = vst [vmem:[%s5 + $0xa4] sm:$0xf] %v535
  %664 = vst [vmem:[%s5 + $0xa8] sm:$0xf] %v536
  %665 = vst [vmem:[%s5 + $0xac] sm:$0xf] %v537
  %666 = vst [vmem:[%s5 + $0xb0] sm:$0xf] %v538
  %667 = vst [vmem:[%s5 + $0xb4] sm:$0xf] %v539
  %668 = vst [vmem:[%s5 + $0xb8] sm:$0xf] %v540
  %669 = vst [vmem:[%s5 + $0xbc] sm:$0xf] %v541
  %670 = vst [vmem:[%s5 + $0xc0] sm:$0xf] %v542
  %671 = vst [vmem:[%s5 + $0xc4] sm:$0xf] %v543
  %672 = vst [vmem:[%s5 + $0xc8] sm:$0xf] %v544
  %673 = vst [vmem:[%s5 + $0xcc] sm:$0xf] %v545
  %674 = vst [vmem:[%s5 + $0xd0] sm:$0xf] %v546
  %675 = vst [vmem:[%s5 + $0xd4] sm:$0xf] %v547
  %676 = vst [vmem:[%s5 + $0xd8] sm:$0xf] %v548
  %677 = vst [vmem:[%s5 + $0xdc] sm:$0xf] %v549
  %678 = vst [vmem:[%s5 + $0xe0] sm:$0xf] %v550
  %679 = vst [vmem:[%s5 + $0xe4] sm:$0xf] %v551
  %680 = vst [vmem:[%s5 + $0xe8] sm:$0xf] %v552
  %681 = vst [vmem:[%s5 + $0xec] sm:$0xf] %v553
  %682 = vst [vmem:[%s5 + $0xf0] sm:$0xf] %v554
  %683 = vst [vmem:[%s5 + $0xf4] sm:$0xf] %v555
  %684 = vst [vmem:[%s5 + $0xf8] sm:$0xf] %v556
  %685 = vst [vmem:[%s5 + $0xfc] sm:$0xf] %v557
  // Predicated region
  $region22: #{resnet_generator_forward.30} parent=0 // pred_check
    _
  $region23: #{resnet_generator_forward.30} parent=0 // pred_check_branch
    %687 = sbr.rel (0) target = $region25
  $region24: #{resnet_generator_forward.30} parent=0 // pred_region
    _
  $region25: #{resnet_generator_forward.30} parent=0 // pred_fallthru
    _
  // Predicated region
  $region26: #{resnet_generator_forward.30} parent=0 // pred_check
    _
  $region27: #{resnet_generator_forward.30} parent=0 // pred_check_branch
    %689 = sbr.rel (0) target = $region29
  $region28: #{resnet_generator_forward.30} parent=0 // pred_region
    _
  $region29: #{resnet_generator_forward.30} parent=0 // pred_fallthru
    _

// kernel: resnet_generator_forward.31
$region0: #{resnet_generator_forward.31}
  #allocation0 [shape = 'u32[]', space=smem, size = 0x4, offset = 0x4, fixed_abs, tag = 'smem constant byte address 0x4 - core index']
  #allocation1 [shape = 'u32[144,128]{1,0:T(1,128)}', space=vmem, size = 0x12000, scoped, tag = 'internal scratch']
  %s0 = inlined_call_operand.vmem [shape: bf16[128,128], index: 0, kind: input, shape index: {}]
  %s1 = inlined_call_operand.vmem [shape: bf16[128,128], index: 1, kind: input, shape index: {}]
  %s2 = inlined_call_operand.vmem [shape: f32[1,128], index: 2, kind: input, shape index: {}]
  %s3 = inlined_call_operand.vmem [shape: bf16[128,128], index: 3, kind: output, shape index: {}]
  %s4 = sld [smem:[#allocation0]]
  $region22: #{resnet_generator_forward.31} parent=0
    _
  %s6 = ssub.s32 1, %s4
  %s7 = scalar_select 0, %s6, %s4
  // Predicated region
  $region2: #{resnet_generator_forward.31} parent=0 // pred_check
    _
  $region3: #{resnet_generator_forward.31} parent=0 // pred_check_branch
    %9 = sbr.rel (0) target = $region5
  $region4: #{resnet_generator_forward.31} parent=0 // pred_region
    _
  $region5: #{resnet_generator_forward.31} parent=0 // pred_fallthru
    _
  // Predicated region
  $region6: #{resnet_generator_forward.31} parent=0 // pred_check
    _
  $region7: #{resnet_generator_forward.31} parent=0 // pred_check_branch
    %11 = sbr.rel (0) target = $region9
  $region8: #{resnet_generator_forward.31} parent=0 // pred_region
    _
  $region9: #{resnet_generator_forward.31} parent=0 // pred_fallthru
    _
  // Predicated region
  $region10: #{resnet_generator_forward.31} parent=0 // pred_check
    _
  $region11: #{resnet_generator_forward.31} parent=0 // pred_check_branch
    %13 = sbr.rel (0) target = $region13
  $region12: #{resnet_generator_forward.31} parent=0 // pred_region
    _
  $region13: #{resnet_generator_forward.31} parent=0 // pred_fallthru
    _
  %v15 = vld [vmem:[%s0] sm:$0xf]
  %v16 = vld [vmem:[%s0 + $0x4] sm:$0xf]
  %v17 = vld [vmem:[%s0 + $0x8] sm:$0xf]
  %v18 = vld [vmem:[%s0 + $0xc] sm:$0xf]
  %v19 = vld [vmem:[%s0 + $0x10] sm:$0xf]
  %v20 = vld [vmem:[%s0 + $0x14] sm:$0xf]
  %v21 = vld [vmem:[%s0 + $0x18] sm:$0xf]
  %v22 = vld [vmem:[%s0 + $0x1c] sm:$0xf]
  %v23 = vld [vmem:[%s0 + $0x20] sm:$0xf]
  %v24 = vld [vmem:[%s0 + $0x24] sm:$0xf]
  %v25 = vld [vmem:[%s0 + $0x28] sm:$0xf]
  %v26 = vld [vmem:[%s0 + $0x2c] sm:$0xf]
  %v27 = vld [vmem:[%s0 + $0x30] sm:$0xf]
  %v28 = vld [vmem:[%s0 + $0x34] sm:$0xf]
  %v29 = vld [vmem:[%s0 + $0x38] sm:$0xf]
  %v30 = vld [vmem:[%s0 + $0x3c] sm:$0xf]
  %v31 = vld [vmem:[%s1] sm:$0xf]
  %v32 = vld [vmem:[%s1 + $0x4] sm:$0xf]
  %v33 = vld [vmem:[%s1 + $0x8] sm:$0xf]
  %v34 = vld [vmem:[%s1 + $0xc] sm:$0xf]
  %v35 = vld [vmem:[%s1 + $0x10] sm:$0xf]
  %v36 = vld [vmem:[%s1 + $0x14] sm:$0xf]
  %v37 = vld [vmem:[%s1 + $0x18] sm:$0xf]
  %v38 = vld [vmem:[%s1 + $0x1c] sm:$0xf]
  %v39 = vld [vmem:[%s1 + $0x20] sm:$0xf]
  %v40 = vld [vmem:[%s1 + $0x24] sm:$0xf]
  %v41 = vld [vmem:[%s1 + $0x28] sm:$0xf]
  %v42 = vld [vmem:[%s1 + $0x2c] sm:$0xf]
  %v43 = vld [vmem:[%s1 + $0x30] sm:$0xf]
  %v44 = vld [vmem:[%s1 + $0x34] sm:$0xf]
  %v45 = vld [vmem:[%s1 + $0x38] sm:$0xf]
  %v46 = vld [vmem:[%s1 + $0x3c] sm:$0xf]
  %v47 = vld [vmem:[%s2] sm:$0x1]
  %v49 = vlaneseq
  %v50 = vshrl.u32 %v49, 7
  %v51 = vsub.s32 0, %v50
  %v52 = vrot.slane %v47, %v51
  %v70 = vunpack.c.l.b16 %v15
  %v71 = vunpack.c.l.b16 %v16
  %v72 = vunpack.c.l.b16 %v17
  %v73 = vunpack.c.l.b16 %v18
  %v74 = vunpack.c.l.b16 %v19
  %v75 = vunpack.c.l.b16 %v20
  %v76 = vunpack.c.l.b16 %v21
  %v77 = vunpack.c.l.b16 %v22
  %v78 = vunpack.c.l.b16 %v23
  %v79 = vunpack.c.l.b16 %v24
  %v80 = vunpack.c.l.b16 %v25
  %v81 = vunpack.c.l.b16 %v26
  %v82 = vunpack.c.l.b16 %v27
  %v83 = vunpack.c.l.b16 %v28
  %v84 = vunpack.c.l.b16 %v29
  %v85 = vunpack.c.l.b16 %v30
  %v86 = vpack.c.b16 %v71, %v70
  %v87 = vpack.c.b16 %v73, %v72
  %v88 = vpack.c.b16 %v75, %v74
  %v89 = vpack.c.b16 %v77, %v76
  %v90 = vpack.c.b16 %v79, %v78
  %v91 = vpack.c.b16 %v81, %v80
  %v92 = vpack.c.b16 %v83, %v82
  %v93 = vpack.c.b16 %v85, %v84
  %v118 = vunpack.c.l.b16 %v31
  %v119 = vunpack.c.l.b16 %v32
  %v120 = vunpack.c.l.b16 %v33
  %v121 = vunpack.c.l.b16 %v34
  %v122 = vunpack.c.l.b16 %v35
  %v123 = vunpack.c.l.b16 %v36
  %v124 = vunpack.c.l.b16 %v37
  %v125 = vunpack.c.l.b16 %v38
  %v126 = vunpack.c.l.b16 %v39
  %v127 = vunpack.c.l.b16 %v40
  %v128 = vunpack.c.l.b16 %v41
  %v129 = vunpack.c.l.b16 %v42
  %v130 = vunpack.c.l.b16 %v43
  %v131 = vunpack.c.l.b16 %v44
  %v132 = vunpack.c.l.b16 %v45
  %v133 = vunpack.c.l.b16 %v46
  %v134 = vpack.c.b16 %v119, %v118
  %v135 = vpack.c.b16 %v121, %v120
  %v136 = vpack.c.b16 %v123, %v122
  %v137 = vpack.c.b16 %v125, %v124
  %v138 = vpack.c.b16 %v127, %v126
  %v139 = vpack.c.b16 %v129, %v128
  %v140 = vpack.c.b16 %v131, %v130
  %v141 = vpack.c.b16 %v133, %v132
  %150 = vmatprep.subr.bf16.mxu0 0
  %151 = vmatpush1.bf16.msra.mxu0 %v134
  %152 = vmatprep.subr.bf16.mxu0 0
  %153 = vmatpush1.bf16.msra.mxu0 %v135
  %154 = vmatprep.subr.bf16.mxu0 0
  %155 = vmatpush1.bf16.msra.mxu0 %v136
  %156 = vmatprep.subr.bf16.mxu0 0
  %157 = vmatpush1.bf16.msra.mxu0 %v137
  %158 = vmatprep.subr.bf16.mxu0 0
  %159 = vmatpush1.bf16.msra.mxu0 %v138
  %160 = vmatprep.subr.bf16.mxu0 0
  %161 = vmatpush1.bf16.msra.mxu0 %v139
  %162 = vmatprep.subr.bf16.mxu0 0
  %163 = vmatpush1.bf16.msra.mxu0 %v140
  %164 = vmatprep.subr.bf16.mxu0 0
  %165 = vmatpush1.bf16.msra.mxu0 %v141
  %166 = vmatprep.subr.bf16.mxu0 0
  %167 = vmatpush1.bf16.msra.mxu0 0
  %168 = vmatprep.subr.bf16.mxu0 0
  %169 = vmatpush1.bf16.msra.mxu0 0
  %170 = vmatprep.subr.bf16.mxu0 0
  %171 = vmatpush1.bf16.msra.mxu0 0
  %172 = vmatprep.subr.bf16.mxu0 0
  %173 = vmatpush1.bf16.msra.mxu0 0
  %174 = vmatprep.subr.bf16.mxu0 0
  %175 = vmatpush1.bf16.msra.mxu0 0
  %176 = vmatprep.subr.bf16.mxu0 0
  %177 = vmatpush1.bf16.msra.mxu0 0
  %178 = vmatprep.subr.bf16.mxu0 0
  %179 = vmatpush1.bf16.msra.mxu0 0
  %180 = vmatprep.subr.bf16.mxu0 0
  %181 = vmatpush1.bf16.msra.mxu0 0
  %182 = vmatprep.mubr.bf16.mxu0 0
  %183 = vmatmul.mubr.bf16.gmra.mrb[0].mxu0 %v86
  %v184 = vpop.f32.mrb[0].mxu0
  %v185 = vadd.f32 %v52, %v184
  %v186 = vpop.f32.mrb[0].mxu0
  %v187 = vpop.f32.mrb[0].mxu0
  %v188 = vadd.f32 %v52, %v187
  %v189 = vpop.f32.mrb[0].mxu0
  %190 = vmatprep.mubr.bf16.mxu0 0
  %191 = vmatmul.mubr.bf16.gmra.mrb[0].mxu0 %v87
  %v192 = vpop.f32.mrb[0].mxu0
  %v193 = vadd.f32 %v52, %v192
  %v194 = vpop.f32.mrb[0].mxu0
  %v195 = vpop.f32.mrb[0].mxu0
  %v196 = vadd.f32 %v52, %v195
  %v197 = vpop.f32.mrb[0].mxu0
  %198 = vmatprep.mubr.bf16.mxu0 0
  %199 = vmatmul.mubr.bf16.gmra.mrb[0].mxu0 %v88
  %v200 = vpop.f32.mrb[0].mxu0
  %v201 = vadd.f32 %v52, %v200
  %v202 = vpop.f32.mrb[0].mxu0
  %v203 = vpop.f32.mrb[0].mxu0
  %v204 = vadd.f32 %v52, %v203
  %v205 = vpop.f32.mrb[0].mxu0
  %206 = vmatprep.mubr.bf16.mxu0 0
  %207 = vmatmul.mubr.bf16.gmra.mrb[0].mxu0 %v89
  %v208 = vpop.f32.mrb[0].mxu0
  %v209 = vadd.f32 %v52, %v208
  %v210 = vpop.f32.mrb[0].mxu0
  %v211 = vpop.f32.mrb[0].mxu0
  %v212 = vadd.f32 %v52, %v211
  %v213 = vpop.f32.mrb[0].mxu0
  %214 = vmatprep.mubr.bf16.mxu0 0
  %215 = vmatmul.mubr.bf16.gmra.mrb[0].mxu0 %v90
  %v216 = vpop.f32.mrb[0].mxu0
  %v217 = vadd.f32 %v52, %v216
  %v218 = vpop.f32.mrb[0].mxu0
  %v219 = vpop.f32.mrb[0].mxu0
  %v220 = vadd.f32 %v52, %v219
  %v221 = vpop.f32.mrb[0].mxu0
  %222 = vmatprep.mubr.bf16.mxu0 0
  %223 = vmatmul.mubr.bf16.gmra.mrb[0].mxu0 %v91
  %v224 = vpop.f32.mrb[0].mxu0
  %v225 = vadd.f32 %v52, %v224
  %v226 = vpop.f32.mrb[0].mxu0
  %v227 = vpop.f32.mrb[0].mxu0
  %v228 = vadd.f32 %v52, %v227
  %v229 = vpop.f32.mrb[0].mxu0
  %230 = vmatprep.mubr.bf16.mxu0 0
  %231 = vmatmul.mubr.bf16.gmra.mrb[0].mxu0 %v92
  %v232 = vpop.f32.mrb[0].mxu0
  %v233 = vadd.f32 %v52, %v232
  %v234 = vpop.f32.mrb[0].mxu0
  %v235 = vpop.f32.mrb[0].mxu0
  %v236 = vadd.f32 %v52, %v235
  %v237 = vpop.f32.mrb[0].mxu0
  %238 = vmatprep.mubr.bf16.mxu0 0
  %239 = vmatmul.mubr.bf16.gmra.mrb[0].mxu0 %v93
  %v240 = vpop.f32.mrb[0].mxu0
  %v241 = vadd.f32 %v52, %v240
  %v242 = vpop.f32.mrb[0].mxu0
  %v243 = vpop.f32.mrb[0].mxu0
  %v244 = vadd.f32 %v52, %v243
  %v245 = vpop.f32.mrb[0].mxu0
  %246 = vdwg.mxu0
  %v247 = vpack.c.bf16 %v188, %v185
  %v248 = vpack.c.bf16 %v196, %v193
  %v249 = vpack.c.bf16 %v204, %v201
  %v250 = vpack.c.bf16 %v212, %v209
  %v251 = vpack.c.bf16 %v220, %v217
  %v252 = vpack.c.bf16 %v228, %v225
  %v253 = vpack.c.bf16 %v236, %v233
  %v254 = vpack.c.bf16 %v244, %v241
  %v263 = vunpack.c.l.b16 %v247
  %v264 = vunpack.c.h.b16 %v247
  %v265 = vunpack.c.l.b16 %v248
  %v266 = vunpack.c.h.b16 %v248
  %v267 = vunpack.c.l.b16 %v249
  %v268 = vunpack.c.h.b16 %v249
  %v269 = vunpack.c.l.b16 %v250
  %v270 = vunpack.c.h.b16 %v250
  %v271 = vunpack.c.l.b16 %v251
  %v272 = vunpack.c.h.b16 %v251
  %v273 = vunpack.c.l.b16 %v252
  %v274 = vunpack.c.h.b16 %v252
  %v275 = vunpack.c.l.b16 %v253
  %v276 = vunpack.c.h.b16 %v253
  %v277 = vunpack.c.l.b16 %v254
  %v278 = vunpack.c.h.b16 %v254
  %v279 = vpack.c.b16 %v263, %v263
  %v280 = vpack.c.b16 %v264, %v264
  %v281 = vpack.c.b16 %v265, %v265
  %v282 = vpack.c.b16 %v266, %v266
  %v283 = vpack.c.b16 %v267, %v267
  %v284 = vpack.c.b16 %v268, %v268
  %v285 = vpack.c.b16 %v269, %v269
  %v286 = vpack.c.b16 %v270, %v270
  %v287 = vpack.c.b16 %v271, %v271
  %v288 = vpack.c.b16 %v272, %v272
  %v289 = vpack.c.b16 %v273, %v273
  %v290 = vpack.c.b16 %v274, %v274
  %v291 = vpack.c.b16 %v275, %v275
  %v292 = vpack.c.b16 %v276, %v276
  %v293 = vpack.c.b16 %v277, %v277
  %v294 = vpack.c.b16 %v278, %v278
  %311 = vst [vmem:[%s3] sm:$0xf] %v279
  %312 = vst [vmem:[%s3 + $0x4] sm:$0xf] %v280
  %313 = vst [vmem:[%s3 + $0x8] sm:$0xf] %v281
  %314 = vst [vmem:[%s3 + $0xc] sm:$0xf] %v282
  %315 = vst [vmem:[%s3 + $0x10] sm:$0xf] %v283
  %316 = vst [vmem:[%s3 + $0x14] sm:$0xf] %v284
  %317 = vst [vmem:[%s3 + $0x18] sm:$0xf] %v285
  %318 = vst [vmem:[%s3 + $0x1c] sm:$0xf] %v286
  %319 = vst [vmem:[%s3 + $0x20] sm:$0xf] %v287
  %320 = vst [vmem:[%s3 + $0x24] sm:$0xf] %v288
  %321 = vst [vmem:[%s3 + $0x28] sm:$0xf] %v289
  %322 = vst [vmem:[%s3 + $0x2c] sm:$0xf] %v290
  %323 = vst [vmem:[%s3 + $0x30] sm:$0xf] %v291
  %324 = vst [vmem:[%s3 + $0x34] sm:$0xf] %v292
  %325 = vst [vmem:[%s3 + $0x38] sm:$0xf] %v293
  %326 = vst [vmem:[%s3 + $0x3c] sm:$0xf] %v294
  // Predicated region
  $region14: #{resnet_generator_forward.31} parent=0 // pred_check
    _
  $region15: #{resnet_generator_forward.31} parent=0 // pred_check_branch
    %328 = sbr.rel (0) target = $region17
  $region16: #{resnet_generator_forward.31} parent=0 // pred_region
    _
  $region17: #{resnet_generator_forward.31} parent=0 // pred_fallthru
    _
  // Predicated region
  $region18: #{resnet_generator_forward.31} parent=0 // pred_check
    _
  $region19: #{resnet_generator_forward.31} parent=0 // pred_check_branch
    %330 = sbr.rel (0) target = $region21
  $region20: #{resnet_generator_forward.31} parent=0 // pred_region
    _
  $region21: #{resnet_generator_forward.31} parent=0 // pred_fallthru
    _

// kernel: resnet_generator_forward.32
$region0: #{resnet_generator_forward.32}
  #allocation0 [shape = 'u32[]', space=smem, size = 0x4, offset = 0x4, fixed_abs, tag = 'smem constant byte address 0x4 - core index']
  #allocation1 [shape = 'u32[144,128]{1,0:T(1,128)}', space=vmem, size = 0x12000, scoped, tag = 'internal scratch']
  %s0 = inlined_call_operand.vmem [shape: bf16[128,128], index: 0, kind: input, shape index: {}]
  %s1 = inlined_call_operand.vmem [shape: f32[1,128], index: 1, kind: output, shape index: {0}]
  %s2 = inlined_call_operand.vmem [shape: f32[1,128], index: 2, kind: output, shape index: {1}]
  %3 = xla_tuple %s1, %s2
  %s4 = sld [smem:[#allocation0]]
  $region26: #{resnet_generator_forward.32} parent=0
    _
  %s6 = ssub.s32 1, %s4
  %s7 = scalar_select 0, %s6, %s4
  // Predicated region
  $region2: #{resnet_generator_forward.32} parent=0 // pred_check
    _
  $region3: #{resnet_generator_forward.32} parent=0 // pred_check_branch
    %9 = sbr.rel (0) target = $region5
  $region4: #{resnet_generator_forward.32} parent=0 // pred_region
    _
  $region5: #{resnet_generator_forward.32} parent=0 // pred_fallthru
    _
  %p10 = scmp.eq.s32.totalorder 0, 0
  // Predicated region
  $region6: #{resnet_generator_forward.32} parent=0 // pred_check
    %p11 = pneg %p10
  $region7: #{resnet_generator_forward.32} parent=0 // pred_check_branch
    %13 = sbr.rel (%p11) target = $region9
  $region8: #{resnet_generator_forward.32} parent=0 // pred_region
    %14 = vst [vmem:[%s1] sm:$0x1] 0.0
    %15 = vst [vmem:[%s2] sm:$0x1] 0.0
  $region9: #{resnet_generator_forward.32} parent=0 // pred_fallthru
    _
  %v16 = vld [vmem:[%s0] sm:$0xf]
  %v17 = vld [vmem:[%s0 + $0x4] sm:$0xf]
  %v18 = vld [vmem:[%s0 + $0x8] sm:$0xf]
  %v19 = vld [vmem:[%s0 + $0xc] sm:$0xf]
  %v20 = vld [vmem:[%s0 + $0x10] sm:$0xf]
  %v21 = vld [vmem:[%s0 + $0x14] sm:$0xf]
  %v22 = vld [vmem:[%s0 + $0x18] sm:$0xf]
  %v23 = vld [vmem:[%s0 + $0x1c] sm:$0xf]
  %v24 = vld [vmem:[%s0 + $0x20] sm:$0xf]
  %v25 = vld [vmem:[%s0 + $0x24] sm:$0xf]
  %v26 = vld [vmem:[%s0 + $0x28] sm:$0xf]
  %v27 = vld [vmem:[%s0 + $0x2c] sm:$0xf]
  %v28 = vld [vmem:[%s0 + $0x30] sm:$0xf]
  %v29 = vld [vmem:[%s0 + $0x34] sm:$0xf]
  %v30 = vld [vmem:[%s0 + $0x38] sm:$0xf]
  %v31 = vld [vmem:[%s0 + $0x3c] sm:$0xf]
  %v32 = vunpack.c.l.bf16 %v16
  %v33 = vunpack.c.l.bf16 %v17
  %v34 = vunpack.c.l.bf16 %v18
  %v35 = vunpack.c.l.bf16 %v19
  %v36 = vunpack.c.l.bf16 %v20
  %v37 = vunpack.c.l.bf16 %v21
  %v38 = vunpack.c.l.bf16 %v22
  %v39 = vunpack.c.l.bf16 %v23
  %v40 = vunpack.c.l.bf16 %v24
  %v41 = vunpack.c.l.bf16 %v25
  %v42 = vunpack.c.l.bf16 %v26
  %v43 = vunpack.c.l.bf16 %v27
  %v44 = vunpack.c.l.bf16 %v28
  %v45 = vunpack.c.l.bf16 %v29
  %v46 = vunpack.c.l.bf16 %v30
  %v47 = vunpack.c.l.bf16 %v31
  %v48 = vld [vmem:[%s1] sm:$0x1]
  %v49 = vadd.f32 %v32, %v33
  %v50 = vadd.f32 %v49, %v34
  %v51 = vadd.f32 %v50, %v35
  %v52 = vadd.f32 %v51, %v36
  %v53 = vadd.f32 %v52, %v37
  %v54 = vadd.f32 %v53, %v38
  %v55 = vadd.f32 %v54, %v39
  %v56 = vadd.f32 %v55, %v40
  %v57 = vadd.f32 %v56, %v41
  %v58 = vadd.f32 %v57, %v42
  %v59 = vadd.f32 %v58, %v43
  %v60 = vadd.f32 %v59, %v44
  %v61 = vadd.f32 %v60, %v45
  %v62 = vadd.f32 %v61, %v46
  %v63 = vadd.f32 %v62, %v47
  %v64 = vrot.slane %v63, 4
  %v65 = vadd.f32 %v63, %v64
  %v66 = vrot.slane %v65, 2
  %v67 = vadd.f32 %v65, %v66
  %v68 = vrot.slane %v67, 1
  %v69 = vadd.f32 %v67, %v68
  %v70 = vadd.f32 %v48, %v69
  %71 = vst [vmem:[%s1] sm:$0x1] %v70
  %v72 = vld [vmem:[%s2] sm:$0x1]
  %v73 = vmul.f32 %v32, %v32
  %v74 = vmul.f32 %v33, %v33
  %v75 = vmul.f32 %v34, %v34
  %v76 = vmul.f32 %v35, %v35
  %v77 = vmul.f32 %v36, %v36
  %v78 = vmul.f32 %v37, %v37
  %v79 = vmul.f32 %v38, %v38
  %v80 = vmul.f32 %v39, %v39
  %v81 = vmul.f32 %v40, %v40
  %v82 = vmul.f32 %v41, %v41
  %v83 = vmul.f32 %v42, %v42
  %v84 = vmul.f32 %v43, %v43
  %v85 = vmul.f32 %v44, %v44
  %v86 = vmul.f32 %v45, %v45
  %v87 = vmul.f32 %v46, %v46
  %v88 = vmul.f32 %v47, %v47
  %v89 = vadd.f32 %v73, %v74
  %v90 = vadd.f32 %v89, %v75
  %v91 = vadd.f32 %v90, %v76
  %v92 = vadd.f32 %v91, %v77
  %v93 = vadd.f32 %v92, %v78
  %v94 = vadd.f32 %v93, %v79
  %v95 = vadd.f32 %v94, %v80
  %v96 = vadd.f32 %v95, %v81
  %v97 = vadd.f32 %v96, %v82
  %v98 = vadd.f32 %v97, %v83
  %v99 = vadd.f32 %v98, %v84
  %v100 = vadd.f32 %v99, %v85
  %v101 = vadd.f32 %v100, %v86
  %v102 = vadd.f32 %v101, %v87
  %v103 = vadd.f32 %v102, %v88
  %v104 = vrot.slane %v103, 4
  %v105 = vadd.f32 %v103, %v104
  %v106 = vrot.slane %v105, 2
  %v107 = vadd.f32 %v105, %v106
  %v108 = vrot.slane %v107, 1
  %v109 = vadd.f32 %v107, %v108
  %v110 = vadd.f32 %v72, %v109
  %111 = vst [vmem:[%s2] sm:$0x1] %v110
  // Predicated region
  $region10: #{resnet_generator_forward.32} parent=0 // pred_check
    _
  $region11: #{resnet_generator_forward.32} parent=0 // pred_check_branch
    %113 = sbr.rel (0) target = $region13
  $region12: #{resnet_generator_forward.32} parent=0 // pred_region
    _
  $region13: #{resnet_generator_forward.32} parent=0 // pred_fallthru
    _
  // Predicated region
  $region14: #{resnet_generator_forward.32} parent=0 // pred_check
    _
  $region15: #{resnet_generator_forward.32} parent=0 // pred_check_branch
    %115 = sbr.rel (0) target = $region17
  $region16: #{resnet_generator_forward.32} parent=0 // pred_region
    _
  $region17: #{resnet_generator_forward.32} parent=0 // pred_fallthru
    _
  // Predicated region
  $region18: #{resnet_generator_forward.32} parent=0 // pred_check
    _
  $region19: #{resnet_generator_forward.32} parent=0 // pred_check_branch
    %117 = sbr.rel (0) target = $region21
  $region20: #{resnet_generator_forward.32} parent=0 // pred_region
    _
  $region21: #{resnet_generator_forward.32} parent=0 // pred_fallthru
    _
  // Predicated region
  $region22: #{resnet_generator_forward.32} parent=0 // pred_check
    _
  $region23: #{resnet_generator_forward.32} parent=0 // pred_check_branch
    %119 = sbr.rel (0) target = $region25
  $region24: #{resnet_generator_forward.32} parent=0 // pred_region
    _
  $region25: #{resnet_generator_forward.32} parent=0 // pred_fallthru
    _

// kernel: resnet_generator_forward.33
$region0: #{resnet_generator_forward.33}
  #allocation0 [shape = 'u32[]', space=smem, size = 0x4, offset = 0x4, fixed_abs, tag = 'smem constant byte address 0x4 - core index']
  #allocation1 [shape = 'u32[144,128]{1,0:T(1,128)}', space=vmem, size = 0x12000, scoped, tag = 'internal scratch']
  %s0 = inlined_call_operand.vmem [shape: bf16[128,128], index: 0, kind: input, shape index: {}]
  %s1 = inlined_call_operand.vmem [shape: f32[1,128], index: 1, kind: input, shape index: {}]
  %s2 = inlined_call_operand.vmem [shape: f32[1,128], index: 2, kind: input, shape index: {}]
  %s3 = inlined_call_operand.vmem [shape: f32[1,128], index: 3, kind: input, shape index: {}]
  %s4 = inlined_call_operand.vmem [shape: f32[1,128], index: 4, kind: input, shape index: {}]
  %s5 = inlined_call_operand.vmem [shape: bf16[128,128], index: 5, kind: output, shape index: {}]
  %s6 = sld [smem:[#allocation0]]
  $region30: #{resnet_generator_forward.33} parent=0
    _
  %s8 = ssub.s32 1, %s6
  %s9 = scalar_select 0, %s8, %s6
  // Predicated region
  $region2: #{resnet_generator_forward.33} parent=0 // pred_check
    _
  $region3: #{resnet_generator_forward.33} parent=0 // pred_check_branch
    %11 = sbr.rel (0) target = $region5
  $region4: #{resnet_generator_forward.33} parent=0 // pred_region
    _
  $region5: #{resnet_generator_forward.33} parent=0 // pred_fallthru
    _
  // Predicated region
  $region6: #{resnet_generator_forward.33} parent=0 // pred_check
    _
  $region7: #{resnet_generator_forward.33} parent=0 // pred_check_branch
    %13 = sbr.rel (0) target = $region9
  $region8: #{resnet_generator_forward.33} parent=0 // pred_region
    _
  $region9: #{resnet_generator_forward.33} parent=0 // pred_fallthru
    _
  // Predicated region
  $region10: #{resnet_generator_forward.33} parent=0 // pred_check
    _
  $region11: #{resnet_generator_forward.33} parent=0 // pred_check_branch
    %15 = sbr.rel (0) target = $region13
  $region12: #{resnet_generator_forward.33} parent=0 // pred_region
    _
  $region13: #{resnet_generator_forward.33} parent=0 // pred_fallthru
    _
  // Predicated region
  $region14: #{resnet_generator_forward.33} parent=0 // pred_check
    _
  $region15: #{resnet_generator_forward.33} parent=0 // pred_check_branch
    %17 = sbr.rel (0) target = $region17
  $region16: #{resnet_generator_forward.33} parent=0 // pred_region
    _
  $region17: #{resnet_generator_forward.33} parent=0 // pred_fallthru
    _
  // Predicated region
  $region18: #{resnet_generator_forward.33} parent=0 // pred_check
    _
  $region19: #{resnet_generator_forward.33} parent=0 // pred_check_branch
    %19 = sbr.rel (0) target = $region21
  $region20: #{resnet_generator_forward.33} parent=0 // pred_region
    _
  $region21: #{resnet_generator_forward.33} parent=0 // pred_fallthru
    _
  %v20 = vld [vmem:[%s1] sm:$0x1]
  %v21 = vld [vmem:[%s2] sm:$0x1]
  %v22 = vld [vmem:[%s3] sm:$0x1]
  %v23 = vld [vmem:[%s4] sm:$0x1]
  %v24 = vmul.f32 %v20, 0.0078125
  %v25 = vmul.f32 %v21, 0.0078125
  %v26 = vmul.f32 %v24, %v24
  %v27 = vsub.f32 %v25, %v26
  %v28 = vmax.f32 %v27, 0.0
  %v29 = vadd.f32 %v28, 1e-05
  %v30 = vrsqrt.pop %v29
  %v31 = vmul.f32 %v22, %v30
  %v32 = vmul.f32 %v24, %v31
  %v33 = vsub.f32 %v23, %v32
  %v34 = vld [vmem:[%s0] sm:$0xf]
  %v35 = vld [vmem:[%s0 + $0x4] sm:$0xf]
  %v36 = vld [vmem:[%s0 + $0x8] sm:$0xf]
  %v37 = vld [vmem:[%s0 + $0xc] sm:$0xf]
  %v38 = vld [vmem:[%s0 + $0x10] sm:$0xf]
  %v39 = vld [vmem:[%s0 + $0x14] sm:$0xf]
  %v40 = vld [vmem:[%s0 + $0x18] sm:$0xf]
  %v41 = vld [vmem:[%s0 + $0x1c] sm:$0xf]
  %v42 = vld [vmem:[%s0 + $0x20] sm:$0xf]
  %v43 = vld [vmem:[%s0 + $0x24] sm:$0xf]
  %v44 = vld [vmem:[%s0 + $0x28] sm:$0xf]
  %v45 = vld [vmem:[%s0 + $0x2c] sm:$0xf]
  %v46 = vld [vmem:[%s0 + $0x30] sm:$0xf]
  %v47 = vld [vmem:[%s0 + $0x34] sm:$0xf]
  %v48 = vld [vmem:[%s0 + $0x38] sm:$0xf]
  %v49 = vld [vmem:[%s0 + $0x3c] sm:$0xf]
  %v50 = vunpack.c.l.bf16 %v34
  %v51 = vunpack.c.l.bf16 %v35
  %v52 = vunpack.c.l.bf16 %v36
  %v53 = vunpack.c.l.bf16 %v37
  %v54 = vunpack.c.l.bf16 %v38
  %v55 = vunpack.c.l.bf16 %v39
  %v56 = vunpack.c.l.bf16 %v40
  %v57 = vunpack.c.l.bf16 %v41
  %v58 = vunpack.c.l.bf16 %v42
  %v59 = vunpack.c.l.bf16 %v43
  %v60 = vunpack.c.l.bf16 %v44
  %v61 = vunpack.c.l.bf16 %v45
  %v62 = vunpack.c.l.bf16 %v46
  %v63 = vunpack.c.l.bf16 %v47
  %v64 = vunpack.c.l.bf16 %v48
  %v65 = vunpack.c.l.bf16 %v49
  %v67 = vlaneseq
  %v68 = vshrl.u32 %v67, 7
  %v69 = vsub.s32 0, %v68
  %v70 = vrot.slane %v31, %v69
  %v72 = vmul.f32 %v50, %v70
  %v73 = vmul.f32 %v51, %v70
  %v74 = vmul.f32 %v52, %v70
  %v75 = vmul.f32 %v53, %v70
  %v76 = vmul.f32 %v54, %v70
  %v77 = vmul.f32 %v55, %v70
  %v78 = vmul.f32 %v56, %v70
  %v79 = vmul.f32 %v57, %v70
  %v80 = vmul.f32 %v58, %v70
  %v81 = vmul.f32 %v59, %v70
  %v82 = vmul.f32 %v60, %v70
  %v83 = vmul.f32 %v61, %v70
  %v84 = vmul.f32 %v62, %v70
  %v85 = vmul.f32 %v63, %v70
  %v86 = vmul.f32 %v64, %v70
  %v87 = vmul.f32 %v65, %v70
  %v89 = vlaneseq
  %v90 = vshrl.u32 %v89, 7
  %v91 = vsub.s32 0, %v90
  %v92 = vrot.slane %v33, %v91
  %v94 = vadd.f32 %v72, %v92
  %v95 = vadd.f32 %v73, %v92
  %v96 = vadd.f32 %v74, %v92
  %v97 = vadd.f32 %v75, %v92
  %v98 = vadd.f32 %v76, %v92
  %v99 = vadd.f32 %v77, %v92
  %v100 = vadd.f32 %v78, %v92
  %v101 = vadd.f32 %v79, %v92
  %v102 = vadd.f32 %v80, %v92
  %v103 = vadd.f32 %v81, %v92
  %v104 = vadd.f32 %v82, %v92
  %v105 = vadd.f32 %v83, %v92
  %v106 = vadd.f32 %v84, %v92
  %v107 = vadd.f32 %v85, %v92
  %v108 = vadd.f32 %v86, %v92
  %v109 = vadd.f32 %v87, %v92
  %v110 = vmax.f32 %v94, 0.0
  %v111 = vmax.f32 %v95, 0.0
  %v112 = vmax.f32 %v96, 0.0
  %v113 = vmax.f32 %v97, 0.0
  %v114 = vmax.f32 %v98, 0.0
  %v115 = vmax.f32 %v99, 0.0
  %v116 = vmax.f32 %v100, 0.0
  %v117 = vmax.f32 %v101, 0.0
  %v118 = vmax.f32 %v102, 0.0
  %v119 = vmax.f32 %v103, 0.0
  %v120 = vmax.f32 %v104, 0.0
  %v121 = vmax.f32 %v105, 0.0
  %v122 = vmax.f32 %v106, 0.0
  %v123 = vmax.f32 %v107, 0.0
  %v124 = vmax.f32 %v108, 0.0
  %v125 = vmax.f32 %v109, 0.0
  %v126 = vpack.c.bf16 %v111, %v110
  %v127 = vpack.c.bf16 %v113, %v112
  %v128 = vpack.c.bf16 %v115, %v114
  %v129 = vpack.c.bf16 %v117, %v116
  %v130 = vpack.c.bf16 %v119, %v118
  %v131 = vpack.c.bf16 %v121, %v120
  %v132 = vpack.c.bf16 %v123, %v122
  %v133 = vpack.c.bf16 %v125, %v124
  %v142 = vunpack.c.l.b16 %v126
  %v143 = vunpack.c.h.b16 %v126
  %v144 = vunpack.c.l.b16 %v127
  %v145 = vunpack.c.h.b16 %v127
  %v146 = vunpack.c.l.b16 %v128
  %v147 = vunpack.c.h.b16 %v128
  %v148 = vunpack.c.l.b16 %v129
  %v149 = vunpack.c.h.b16 %v129
  %v150 = vunpack.c.l.b16 %v130
  %v151 = vunpack.c.h.b16 %v130
  %v152 = vunpack.c.l.b16 %v131
  %v153 = vunpack.c.h.b16 %v131
  %v154 = vunpack.c.l.b16 %v132
  %v155 = vunpack.c.h.b16 %v132
  %v156 = vunpack.c.l.b16 %v133
  %v157 = vunpack.c.h.b16 %v133
  %v158 = vpack.c.b16 %v142, %v142
  %v159 = vpack.c.b16 %v143, %v143
  %v160 = vpack.c.b16 %v144, %v144
  %v161 = vpack.c.b16 %v145, %v145
  %v162 = vpack.c.b16 %v146, %v146
  %v163 = vpack.c.b16 %v147, %v147
  %v164 = vpack.c.b16 %v148, %v148
  %v165 = vpack.c.b16 %v149, %v149
  %v166 = vpack.c.b16 %v150, %v150
  %v167 = vpack.c.b16 %v151, %v151
  %v168 = vpack.c.b16 %v152, %v152
  %v169 = vpack.c.b16 %v153, %v153
  %v170 = vpack.c.b16 %v154, %v154
  %v171 = vpack.c.b16 %v155, %v155
  %v172 = vpack.c.b16 %v156, %v156
  %v173 = vpack.c.b16 %v157, %v157
  %190 = vst [vmem:[%s5] sm:$0xf] %v158
  %191 = vst [vmem:[%s5 + $0x4] sm:$0xf] %v159
  %192 = vst [vmem:[%s5 + $0x8] sm:$0xf] %v160
  %193 = vst [vmem:[%s5 + $0xc] sm:$0xf] %v161
  %194 = vst [vmem:[%s5 + $0x10] sm:$0xf] %v162
  %195 = vst [vmem:[%s5 + $0x14] sm:$0xf] %v163
  %196 = vst [vmem:[%s5 + $0x18] sm:$0xf] %v164
  %197 = vst [vmem:[%s5 + $0x1c] sm:$0xf] %v165
  %198 = vst [vmem:[%s5 + $0x20] sm:$0xf] %v166
  %199 = vst [vmem:[%s5 + $0x24] sm:$0xf] %v167
  %200 = vst [vmem:[%s5 + $0x28] sm:$0xf] %v168
  %201 = vst [vmem:[%s5 + $0x2c] sm:$0xf] %v169
  %202 = vst [vmem:[%s5 + $0x30] sm:$0xf] %v170
  %203 = vst [vmem:[%s5 + $0x34] sm:$0xf] %v171
  %204 = vst [vmem:[%s5 + $0x38] sm:$0xf] %v172
  %205 = vst [vmem:[%s5 + $0x3c] sm:$0xf] %v173
  // Predicated region
  $region22: #{resnet_generator_forward.33} parent=0 // pred_check
    _
  $region23: #{resnet_generator_forward.33} parent=0 // pred_check_branch
    %207 = sbr.rel (0) target = $region25
  $region24: #{resnet_generator_forward.33} parent=0 // pred_region
    _
  $region25: #{resnet_generator_forward.33} parent=0 // pred_fallthru
    _
  // Predicated region
  $region26: #{resnet_generator_forward.33} parent=0 // pred_check
    _
  $region27: #{resnet_generator_forward.33} parent=0 // pred_check_branch
    %209 = sbr.rel (0) target = $region29
  $region28: #{resnet_generator_forward.33} parent=0 // pred_region
    _
  $region29: #{resnet_generator_forward.33} parent=0 // pred_fallthru
    _

// kernel: resnet_generator_forward.34
$region0: #{resnet_generator_forward.34}
  #allocation0 [shape = 'u32[]', space=smem, size = 0x4, offset = 0x4, fixed_abs, tag = 'smem constant byte address 0x4 - core index']
  #allocation1 [shape = 'u32[144,128]{1,0:T(1,128)}', space=vmem, size = 0x12000, scoped, tag = 'internal scratch']
  %s0 = inlined_call_operand.vmem [shape: bf16[32,256], index: 0, kind: input, shape index: {}]
  %s1 = inlined_call_operand.vmem [shape: bf16[256,128], index: 1, kind: input, shape index: {}]
  %s2 = inlined_call_operand.vmem [shape: f32[1,128], index: 2, kind: input, shape index: {}]
  %s3 = inlined_call_operand.vmem [shape: bf16[32,128], index: 3, kind: output, shape index: {}]
  %s4 = sld [smem:[#allocation0]]
  $region22: #{resnet_generator_forward.34} parent=0
    _
  %s6 = ssub.s32 1, %s4
  %s7 = scalar_select 0, %s6, %s4
  // Predicated region
  $region2: #{resnet_generator_forward.34} parent=0 // pred_check
    _
  $region3: #{resnet_generator_forward.34} parent=0 // pred_check_branch
    %9 = sbr.rel (0) target = $region5
  $region4: #{resnet_generator_forward.34} parent=0 // pred_region
    _
  $region5: #{resnet_generator_forward.34} parent=0 // pred_fallthru
    _
  // Predicated region
  $region6: #{resnet_generator_forward.34} parent=0 // pred_check
    _
  $region7: #{resnet_generator_forward.34} parent=0 // pred_check_branch
    %11 = sbr.rel (0) target = $region9
  $region8: #{resnet_generator_forward.34} parent=0 // pred_region
    _
  $region9: #{resnet_generator_forward.34} parent=0 // pred_fallthru
    _
  // Predicated region
  $region10: #{resnet_generator_forward.34} parent=0 // pred_check
    _
  $region11: #{resnet_generator_forward.34} parent=0 // pred_check_branch
    %13 = sbr.rel (0) target = $region13
  $region12: #{resnet_generator_forward.34} parent=0 // pred_region
    _
  $region13: #{resnet_generator_forward.34} parent=0 // pred_fallthru
    _
  %v15 = vld [vmem:[%s0] sm:$0xff]
  %v16 = vld [vmem:[%s0 + $0x8] sm:$0xff]
  %v17 = vld [vmem:[%s0 + $0x10] sm:$0xff]
  %v18 = vld [vmem:[%s0 + $0x18] sm:$0xff]
  %v19 = vld [vmem:[%s1] sm:$0xf]
  %v20 = vld [vmem:[%s1 + $0x4] sm:$0xf]
  %v21 = vld [vmem:[%s1 + $0x8] sm:$0xf]
  %v22 = vld [vmem:[%s1 + $0xc] sm:$0xf]
  %v23 = vld [vmem:[%s1 + $0x10] sm:$0xf]
  %v24 = vld [vmem:[%s1 + $0x14] sm:$0xf]
  %v25 = vld [vmem:[%s1 + $0x18] sm:$0xf]
  %v26 = vld [vmem:[%s1 + $0x1c] sm:$0xf]
  %v27 = vld [vmem:[%s1 + $0x20] sm:$0xf]
  %v28 = vld [vmem:[%s1 + $0x24] sm:$0xf]
  %v29 = vld [vmem:[%s1 + $0x28] sm:$0xf]
  %v30 = vld [vmem:[%s1 + $0x2c] sm:$0xf]
  %v31 = vld [vmem:[%s1 + $0x30] sm:$0xf]
  %v32 = vld [vmem:[%s1 + $0x34] sm:$0xf]
  %v33 = vld [vmem:[%s1 + $0x38] sm:$0xf]
  %v34 = vld [vmem:[%s1 + $0x3c] sm:$0xf]
  %v35 = vld [vmem:[%s1 + $0x40] sm:$0xf]
  %v36 = vld [vmem:[%s1 + $0x44] sm:$0xf]
  %v37 = vld [vmem:[%s1 + $0x48] sm:$0xf]
  %v38 = vld [vmem:[%s1 + $0x4c] sm:$0xf]
  %v39 = vld [vmem:[%s1 + $0x50] sm:$0xf]
  %v40 = vld [vmem:[%s1 + $0x54] sm:$0xf]
  %v41 = vld [vmem:[%s1 + $0x58] sm:$0xf]
  %v42 = vld [vmem:[%s1 + $0x5c] sm:$0xf]
  %v43 = vld [vmem:[%s1 + $0x60] sm:$0xf]
  %v44 = vld [vmem:[%s1 + $0x64] sm:$0xf]
  %v45 = vld [vmem:[%s1 + $0x68] sm:$0xf]
  %v46 = vld [vmem:[%s1 + $0x6c] sm:$0xf]
  %v47 = vld [vmem:[%s1 + $0x70] sm:$0xf]
  %v48 = vld [vmem:[%s1 + $0x74] sm:$0xf]
  %v49 = vld [vmem:[%s1 + $0x78] sm:$0xf]
  %v50 = vld [vmem:[%s1 + $0x7c] sm:$0xf]
  %v51 = vld [vmem:[%s2] sm:$0x1]
  %v53 = vlaneseq
  %v54 = vshrl.u32 %v53, 7
  %v55 = vsub.s32 0, %v54
  %v56 = vrot.slane %v51, %v55
  %v62 = vunpack.c.l.b16 %v15
  %v63 = vunpack.c.h.b16 %v15
  %v64 = vunpack.c.l.b16 %v16
  %v65 = vunpack.c.h.b16 %v16
  %v66 = vunpack.c.l.b16 %v17
  %v67 = vunpack.c.h.b16 %v17
  %v68 = vunpack.c.l.b16 %v18
  %v69 = vunpack.c.h.b16 %v18
  %v70 = vpack.c.b16 %v64, %v62
  %v71 = vpack.c.b16 %v65, %v63
  %v72 = vpack.c.b16 %v68, %v66
  %v73 = vpack.c.b16 %v69, %v67
  %v110 = vunpack.c.l.b16 %v19
  %v111 = vunpack.c.l.b16 %v20
  %v112 = vunpack.c.l.b16 %v21
  %v113 = vunpack.c.l.b16 %v22
  %v114 = vunpack.c.l.b16 %v23
  %v115 = vunpack.c.l.b16 %v24
  %v116 = vunpack.c.l.b16 %v25
  %v117 = vunpack.c.l.b16 %v26
  %v118 = vunpack.c.l.b16 %v27
  %v119 = vunpack.c.l.b16 %v28
  %v120 = vunpack.c.l.b16 %v29
  %v121 = vunpack.c.l.b16 %v30
  %v122 = vunpack.c.l.b16 %v31
  %v123 = vunpack.c.l.b16 %v32
  %v124 = vunpack.c.l.b16 %v33
  %v125 = vunpack.c.l.b16 %v34
  %v126 = vunpack.c.l.b16 %v35
  %v127 = vunpack.c.l.b16 %v36
  %v128 = vunpack.c.l.b16 %v37
  %v129 = vunpack.c.l.b16 %v38
  %v130 = vunpack.c.l.b16 %v39
  %v131 = vunpack.c.l.b16 %v40
  %v132 = vunpack.c.l.b16 %v41
  %v133 = vunpack.c.l.b16 %v42
  %v134 = vunpack.c.l.b16 %v43
  %v135 = vunpack.c.l.b16 %v44
  %v136 = vunpack.c.l.b16 %v45
  %v137 = vunpack.c.l.b16 %v46
  %v138 = vunpack.c.l.b16 %v47
  %v139 = vunpack.c.l.b16 %v48
  %v140 = vunpack.c.l.b16 %v49
  %v141 = vunpack.c.l.b16 %v50
  %v142 = vpack.c.b16 %v111, %v110
  %v143 = vpack.c.b16 %v113, %v112
  %v144 = vpack.c.b16 %v115, %v114
  %v145 = vpack.c.b16 %v117, %v116
  %v146 = vpack.c.b16 %v119, %v118
  %v147 = vpack.c.b16 %v121, %v120
  %v148 = vpack.c.b16 %v123, %v122
  %v149 = vpack.c.b16 %v125, %v124
  %v150 = vpack.c.b16 %v127, %v126
  %v151 = vpack.c.b16 %v129, %v128
  %v152 = vpack.c.b16 %v131, %v130
  %v153 = vpack.c.b16 %v133, %v132
  %v154 = vpack.c.b16 %v135, %v134
  %v155 = vpack.c.b16 %v137, %v136
  %v156 = vpack.c.b16 %v139, %v138
  %v157 = vpack.c.b16 %v141, %v140
  %174 = vmatprep.subr.bf16.mxu0 0
  %175 = vmatpush1.bf16.msra.mxu0 %v142
  %176 = vmatprep.subr.bf16.mxu0 0
  %177 = vmatpush1.bf16.msra.mxu0 %v143
  %178 = vmatprep.subr.bf16.mxu0 0
  %179 = vmatpush1.bf16.msra.mxu0 %v144
  %180 = vmatprep.subr.bf16.mxu0 0
  %181 = vmatpush1.bf16.msra.mxu0 %v145
  %182 = vmatprep.subr.bf16.mxu0 0
  %183 = vmatpush1.bf16.msra.mxu0 %v146
  %184 = vmatprep.subr.bf16.mxu0 0
  %185 = vmatpush1.bf16.msra.mxu0 %v147
  %186 = vmatprep.subr.bf16.mxu0 0
  %187 = vmatpush1.bf16.msra.mxu0 %v148
  %188 = vmatprep.subr.bf16.mxu0 0
  %189 = vmatpush1.bf16.msra.mxu0 %v149
  %190 = vmatprep.subr.bf16.mxu0 0
  %191 = vmatpush1.bf16.msra.mxu0 %v150
  %192 = vmatprep.subr.bf16.mxu0 0
  %193 = vmatpush1.bf16.msra.mxu0 %v151
  %194 = vmatprep.subr.bf16.mxu0 0
  %195 = vmatpush1.bf16.msra.mxu0 %v152
  %196 = vmatprep.subr.bf16.mxu0 0
  %197 = vmatpush1.bf16.msra.mxu0 %v153
  %198 = vmatprep.subr.bf16.mxu0 0
  %199 = vmatpush1.bf16.msra.mxu0 %v154
  %200 = vmatprep.subr.bf16.mxu0 0
  %201 = vmatpush1.bf16.msra.mxu0 %v155
  %202 = vmatprep.subr.bf16.mxu0 0
  %203 = vmatpush1.bf16.msra.mxu0 %v156
  %204 = vmatprep.subr.bf16.mxu0 0
  %205 = vmatpush1.bf16.msra.mxu0 %v157
  %206 = vmatprep.mubr.bf16.mxu0 %v71
  %207 = vmatmul.mubr.bf16.gmra.mrb[0].mxu0 %v70
  %v208 = vpop.f32.mrb[0].mxu0
  %v209 = vadd.f32 %v56, %v208
  %v210 = vpop.f32.mrb[0].mxu0
  %v211 = vpop.f32.mrb[0].mxu0
  %v212 = vadd.f32 %v56, %v211
  %v213 = vpop.f32.mrb[0].mxu0
  %214 = vmatprep.mubr.bf16.mxu0 %v73
  %215 = vmatmul.mubr.bf16.gmra.mrb[0].mxu0 %v72
  %v216 = vpop.f32.mrb[0].mxu0
  %v217 = vadd.f32 %v56, %v216
  %v218 = vpop.f32.mrb[0].mxu0
  %v219 = vpop.f32.mrb[0].mxu0
  %v220 = vadd.f32 %v56, %v219
  %v221 = vpop.f32.mrb[0].mxu0
  %222 = vdwg.mxu0
  %v223 = vpack.c.bf16 %v212, %v209
  %v224 = vpack.c.bf16 %v220, %v217
  %v227 = vunpack.c.l.b16 %v223
  %v228 = vunpack.c.h.b16 %v223
  %v229 = vunpack.c.l.b16 %v224
  %v230 = vunpack.c.h.b16 %v224
  %v231 = vpack.c.b16 %v227, %v227
  %v232 = vpack.c.b16 %v228, %v228
  %v233 = vpack.c.b16 %v229, %v229
  %v234 = vpack.c.b16 %v230, %v230
  %239 = vst [vmem:[%s3] sm:$0xf] %v231
  %240 = vst [vmem:[%s3 + $0x4] sm:$0xf] %v232
  %241 = vst [vmem:[%s3 + $0x8] sm:$0xf] %v233
  %242 = vst [vmem:[%s3 + $0xc] sm:$0xf] %v234
  // Predicated region
  $region14: #{resnet_generator_forward.34} parent=0 // pred_check
    _
  $region15: #{resnet_generator_forward.34} parent=0 // pred_check_branch
    %244 = sbr.rel (0) target = $region17
  $region16: #{resnet_generator_forward.34} parent=0 // pred_region
    _
  $region17: #{resnet_generator_forward.34} parent=0 // pred_fallthru
    _
  // Predicated region
  $region18: #{resnet_generator_forward.34} parent=0 // pred_check
    _
  $region19: #{resnet_generator_forward.34} parent=0 // pred_check_branch
    %246 = sbr.rel (0) target = $region21
  $region20: #{resnet_generator_forward.34} parent=0 // pred_region
    _
  $region21: #{resnet_generator_forward.34} parent=0 // pred_fallthru
    _

// kernel: resnet_generator_forward.35
$region0: #{resnet_generator_forward.35}
  #allocation0 [shape = 'u32[]', space=smem, size = 0x4, offset = 0x4, fixed_abs, tag = 'smem constant byte address 0x4 - core index']
  #allocation1 [shape = 'u32[144,128]{1,0:T(1,128)}', space=vmem, size = 0x12000, scoped, tag = 'internal scratch']
  %s0 = inlined_call_operand.vmem [shape: bf16[32,128], index: 0, kind: input, shape index: {}]
  %s1 = inlined_call_operand.vmem [shape: f32[1,128], index: 1, kind: output, shape index: {0}]
  %s2 = inlined_call_operand.vmem [shape: f32[1,128], index: 2, kind: output, shape index: {1}]
  %3 = xla_tuple %s1, %s2
  %s4 = sld [smem:[#allocation0]]
  $region26: #{resnet_generator_forward.35} parent=0
    _
  %s6 = ssub.s32 1, %s4
  %s7 = scalar_select 0, %s6, %s4
  // Predicated region
  $region2: #{resnet_generator_forward.35} parent=0 // pred_check
    _
  $region3: #{resnet_generator_forward.35} parent=0 // pred_check_branch
    %9 = sbr.rel (0) target = $region5
  $region4: #{resnet_generator_forward.35} parent=0 // pred_region
    _
  $region5: #{resnet_generator_forward.35} parent=0 // pred_fallthru
    _
  %p10 = scmp.eq.s32.totalorder 0, 0
  // Predicated region
  $region6: #{resnet_generator_forward.35} parent=0 // pred_check
    %p11 = pneg %p10
  $region7: #{resnet_generator_forward.35} parent=0 // pred_check_branch
    %13 = sbr.rel (%p11) target = $region9
  $region8: #{resnet_generator_forward.35} parent=0 // pred_region
    %14 = vst [vmem:[%s1] sm:$0x1] 0.0
    %15 = vst [vmem:[%s2] sm:$0x1] 0.0
  $region9: #{resnet_generator_forward.35} parent=0 // pred_fallthru
    _
  %v16 = vld [vmem:[%s0] sm:$0xf]
  %v17 = vld [vmem:[%s0 + $0x4] sm:$0xf]
  %v18 = vld [vmem:[%s0 + $0x8] sm:$0xf]
  %v19 = vld [vmem:[%s0 + $0xc] sm:$0xf]
  %v20 = vunpack.c.l.bf16 %v16
  %v21 = vunpack.c.l.bf16 %v17
  %v22 = vunpack.c.l.bf16 %v18
  %v23 = vunpack.c.l.bf16 %v19
  %v24 = vld [vmem:[%s1] sm:$0x1]
  %v25 = vadd.f32 %v20, %v21
  %v26 = vadd.f32 %v25, %v22
  %v27 = vadd.f32 %v26, %v23
  %v28 = vrot.slane %v27, 4
  %v29 = vadd.f32 %v27, %v28
  %v30 = vrot.slane %v29, 2
  %v31 = vadd.f32 %v29, %v30
  %v32 = vrot.slane %v31, 1
  %v33 = vadd.f32 %v31, %v32
  %v34 = vadd.f32 %v24, %v33
  %35 = vst [vmem:[%s1] sm:$0x1] %v34
  %v36 = vld [vmem:[%s2] sm:$0x1]
  %v37 = vmul.f32 %v20, %v20
  %v38 = vmul.f32 %v21, %v21
  %v39 = vmul.f32 %v22, %v22
  %v40 = vmul.f32 %v23, %v23
  %v41 = vadd.f32 %v37, %v38
  %v42 = vadd.f32 %v41, %v39
  %v43 = vadd.f32 %v42, %v40
  %v44 = vrot.slane %v43, 4
  %v45 = vadd.f32 %v43, %v44
  %v46 = vrot.slane %v45, 2
  %v47 = vadd.f32 %v45, %v46
  %v48 = vrot.slane %v47, 1
  %v49 = vadd.f32 %v47, %v48
  %v50 = vadd.f32 %v36, %v49
  %51 = vst [vmem:[%s2] sm:$0x1] %v50
  // Predicated region
  $region10: #{resnet_generator_forward.35} parent=0 // pred_check
    _
  $region11: #{resnet_generator_forward.35} parent=0 // pred_check_branch
    %53 = sbr.rel (0) target = $region13
  $region12: #{resnet_generator_forward.35} parent=0 // pred_region
    _
  $region13: #{resnet_generator_forward.35} parent=0 // pred_fallthru
    _
  // Predicated region
  $region14: #{resnet_generator_forward.35} parent=0 // pred_check
    _
  $region15: #{resnet_generator_forward.35} parent=0 // pred_check_branch
    %55 = sbr.rel (0) target = $region17
  $region16: #{resnet_generator_forward.35} parent=0 // pred_region
    _
  $region17: #{resnet_generator_forward.35} parent=0 // pred_fallthru
    _
  // Predicated region
  $region18: #{resnet_generator_forward.35} parent=0 // pred_check
    _
  $region19: #{resnet_generator_forward.35} parent=0 // pred_check_branch
    %57 = sbr.rel (0) target = $region21
  $region20: #{resnet_generator_forward.35} parent=0 // pred_region
    _
  $region21: #{resnet_generator_forward.35} parent=0 // pred_fallthru
    _
  // Predicated region
  $region22: #{resnet_generator_forward.35} parent=0 // pred_check
    _
  $region23: #{resnet_generator_forward.35} parent=0 // pred_check_branch
    %59 = sbr.rel (0) target = $region25
  $region24: #{resnet_generator_forward.35} parent=0 // pred_region
    _
  $region25: #{resnet_generator_forward.35} parent=0 // pred_fallthru
    _

// kernel: resnet_generator_forward.36
$region0: #{resnet_generator_forward.36}
  #allocation0 [shape = 'u32[]', space=smem, size = 0x4, offset = 0x4, fixed_abs, tag = 'smem constant byte address 0x4 - core index']
  #allocation1 [shape = 'u32[144,128]{1,0:T(1,128)}', space=vmem, size = 0x12000, scoped, tag = 'internal scratch']
  %s0 = inlined_call_operand.vmem [shape: bf16[32,128], index: 0, kind: input, shape index: {}]
  %s1 = inlined_call_operand.vmem [shape: f32[1,128], index: 1, kind: input, shape index: {}]
  %s2 = inlined_call_operand.vmem [shape: f32[1,128], index: 2, kind: input, shape index: {}]
  %s3 = inlined_call_operand.vmem [shape: f32[1,128], index: 3, kind: input, shape index: {}]
  %s4 = inlined_call_operand.vmem [shape: f32[1,128], index: 4, kind: input, shape index: {}]
  %s5 = inlined_call_operand.vmem [shape: bf16[32,128], index: 5, kind: output, shape index: {}]
  %s6 = sld [smem:[#allocation0]]
  $region30: #{resnet_generator_forward.36} parent=0
    _
  %s8 = ssub.s32 1, %s6
  %s9 = scalar_select 0, %s8, %s6
  // Predicated region
  $region2: #{resnet_generator_forward.36} parent=0 // pred_check
    _
  $region3: #{resnet_generator_forward.36} parent=0 // pred_check_branch
    %11 = sbr.rel (0) target = $region5
  $region4: #{resnet_generator_forward.36} parent=0 // pred_region
    _
  $region5: #{resnet_generator_forward.36} parent=0 // pred_fallthru
    _
  // Predicated region
  $region6: #{resnet_generator_forward.36} parent=0 // pred_check
    _
  $region7: #{resnet_generator_forward.36} parent=0 // pred_check_branch
    %13 = sbr.rel (0) target = $region9
  $region8: #{resnet_generator_forward.36} parent=0 // pred_region
    _
  $region9: #{resnet_generator_forward.36} parent=0 // pred_fallthru
    _
  // Predicated region
  $region10: #{resnet_generator_forward.36} parent=0 // pred_check
    _
  $region11: #{resnet_generator_forward.36} parent=0 // pred_check_branch
    %15 = sbr.rel (0) target = $region13
  $region12: #{resnet_generator_forward.36} parent=0 // pred_region
    _
  $region13: #{resnet_generator_forward.36} parent=0 // pred_fallthru
    _
  // Predicated region
  $region14: #{resnet_generator_forward.36} parent=0 // pred_check
    _
  $region15: #{resnet_generator_forward.36} parent=0 // pred_check_branch
    %17 = sbr.rel (0) target = $region17
  $region16: #{resnet_generator_forward.36} parent=0 // pred_region
    _
  $region17: #{resnet_generator_forward.36} parent=0 // pred_fallthru
    _
  // Predicated region
  $region18: #{resnet_generator_forward.36} parent=0 // pred_check
    _
  $region19: #{resnet_generator_forward.36} parent=0 // pred_check_branch
    %19 = sbr.rel (0) target = $region21
  $region20: #{resnet_generator_forward.36} parent=0 // pred_region
    _
  $region21: #{resnet_generator_forward.36} parent=0 // pred_fallthru
    _
  %v20 = vld [vmem:[%s1] sm:$0x1]
  %v21 = vld [vmem:[%s2] sm:$0x1]
  %v22 = vld [vmem:[%s3] sm:$0x1]
  %v23 = vld [vmem:[%s4] sm:$0x1]
  %v24 = vmul.f32 %v20, 0.03125
  %v25 = vmul.f32 %v21, 0.03125
  %v26 = vmul.f32 %v24, %v24
  %v27 = vsub.f32 %v25, %v26
  %v28 = vmax.f32 %v27, 0.0
  %v29 = vadd.f32 %v28, 1e-05
  %v30 = vrsqrt.pop %v29
  %v31 = vmul.f32 %v22, %v30
  %v32 = vmul.f32 %v24, %v31
  %v33 = vsub.f32 %v23, %v32
  %v34 = vld [vmem:[%s0] sm:$0xf]
  %v35 = vld [vmem:[%s0 + $0x4] sm:$0xf]
  %v36 = vld [vmem:[%s0 + $0x8] sm:$0xf]
  %v37 = vld [vmem:[%s0 + $0xc] sm:$0xf]
  %v38 = vunpack.c.l.bf16 %v34
  %v39 = vunpack.c.l.bf16 %v35
  %v40 = vunpack.c.l.bf16 %v36
  %v41 = vunpack.c.l.bf16 %v37
  %v43 = vlaneseq
  %v44 = vshrl.u32 %v43, 7
  %v45 = vsub.s32 0, %v44
  %v46 = vrot.slane %v31, %v45
  %v48 = vmul.f32 %v38, %v46
  %v49 = vmul.f32 %v39, %v46
  %v50 = vmul.f32 %v40, %v46
  %v51 = vmul.f32 %v41, %v46
  %v53 = vlaneseq
  %v54 = vshrl.u32 %v53, 7
  %v55 = vsub.s32 0, %v54
  %v56 = vrot.slane %v33, %v55
  %v58 = vadd.f32 %v48, %v56
  %v59 = vadd.f32 %v49, %v56
  %v60 = vadd.f32 %v50, %v56
  %v61 = vadd.f32 %v51, %v56
  %v62 = vmax.f32 %v58, 0.0
  %v63 = vmax.f32 %v59, 0.0
  %v64 = vmax.f32 %v60, 0.0
  %v65 = vmax.f32 %v61, 0.0
  %v66 = vpack.c.bf16 %v63, %v62
  %v67 = vpack.c.bf16 %v65, %v64
  %v70 = vunpack.c.l.b16 %v66
  %v71 = vunpack.c.h.b16 %v66
  %v72 = vunpack.c.l.b16 %v67
  %v73 = vunpack.c.h.b16 %v67
  %v74 = vpack.c.b16 %v70, %v70
  %v75 = vpack.c.b16 %v71, %v71
  %v76 = vpack.c.b16 %v72, %v72
  %v77 = vpack.c.b16 %v73, %v73
  %82 = vst [vmem:[%s5] sm:$0xf] %v74
  %83 = vst [vmem:[%s5 + $0x4] sm:$0xf] %v75
  %84 = vst [vmem:[%s5 + $0x8] sm:$0xf] %v76
  %85 = vst [vmem:[%s5 + $0xc] sm:$0xf] %v77
  // Predicated region
  $region22: #{resnet_generator_forward.36} parent=0 // pred_check
    _
  $region23: #{resnet_generator_forward.36} parent=0 // pred_check_branch
    %87 = sbr.rel (0) target = $region25
  $region24: #{resnet_generator_forward.36} parent=0 // pred_region
    _
  $region25: #{resnet_generator_forward.36} parent=0 // pred_fallthru
    _
  // Predicated region
  $region26: #{resnet_generator_forward.36} parent=0 // pred_check
    _
  $region27: #{resnet_generator_forward.36} parent=0 // pred_check_branch
    %89 = sbr.rel (0) target = $region29
  $region28: #{resnet_generator_forward.36} parent=0 // pred_region
    _
  $region29: #{resnet_generator_forward.36} parent=0 // pred_fallthru
    _

// kernel: resnet_generator_forward.42
$region0: #{resnet_generator_forward.42}
  #allocation0 [shape = 'u32[]', space=smem, size = 0x4, offset = 0x4, fixed_abs, tag = 'smem constant byte address 0x4 - core index']
  #allocation1 [shape = 'u32[144,128]{1,0:T(1,128)}', space=vmem, size = 0x12000, scoped, tag = 'internal scratch']
  %s0 = inlined_call_operand.vmem [shape: bf16[32,128], index: 0, kind: input, shape index: {}]
  %s1 = inlined_call_operand.vmem [shape: f32[1,128], index: 1, kind: input, shape index: {}]
  %s2 = inlined_call_operand.vmem [shape: f32[1,128], index: 2, kind: input, shape index: {}]
  %s3 = inlined_call_operand.vmem [shape: f32[1,128], index: 3, kind: input, shape index: {}]
  %s4 = inlined_call_operand.vmem [shape: f32[1,128], index: 4, kind: input, shape index: {}]
  %s5 = inlined_call_operand.vmem [shape: bf16[32,128], index: 5, kind: input, shape index: {}]
  %s6 = inlined_call_operand.vmem [shape: bf16[32,128], index: 6, kind: output, shape index: {}]
  %s7 = sld [smem:[#allocation0]]
  $region34: #{resnet_generator_forward.42} parent=0
    _
  %s9 = ssub.s32 1, %s7
  %s10 = scalar_select 0, %s9, %s7
  // Predicated region
  $region2: #{resnet_generator_forward.42} parent=0 // pred_check
    _
  $region3: #{resnet_generator_forward.42} parent=0 // pred_check_branch
    %12 = sbr.rel (0) target = $region5
  $region4: #{resnet_generator_forward.42} parent=0 // pred_region
    _
  $region5: #{resnet_generator_forward.42} parent=0 // pred_fallthru
    _
  // Predicated region
  $region6: #{resnet_generator_forward.42} parent=0 // pred_check
    _
  $region7: #{resnet_generator_forward.42} parent=0 // pred_check_branch
    %14 = sbr.rel (0) target = $region9
  $region8: #{resnet_generator_forward.42} parent=0 // pred_region
    _
  $region9: #{resnet_generator_forward.42} parent=0 // pred_fallthru
    _
  // Predicated region
  $region10: #{resnet_generator_forward.42} parent=0 // pred_check
    _
  $region11: #{resnet_generator_forward.42} parent=0 // pred_check_branch
    %16 = sbr.rel (0) target = $region13
  $region12: #{resnet_generator_forward.42} parent=0 // pred_region
    _
  $region13: #{resnet_generator_forward.42} parent=0 // pred_fallthru
    _
  // Predicated region
  $region14: #{resnet_generator_forward.42} parent=0 // pred_check
    _
  $region15: #{resnet_generator_forward.42} parent=0 // pred_check_branch
    %18 = sbr.rel (0) target = $region17
  $region16: #{resnet_generator_forward.42} parent=0 // pred_region
    _
  $region17: #{resnet_generator_forward.42} parent=0 // pred_fallthru
    _
  // Predicated region
  $region18: #{resnet_generator_forward.42} parent=0 // pred_check
    _
  $region19: #{resnet_generator_forward.42} parent=0 // pred_check_branch
    %20 = sbr.rel (0) target = $region21
  $region20: #{resnet_generator_forward.42} parent=0 // pred_region
    _
  $region21: #{resnet_generator_forward.42} parent=0 // pred_fallthru
    _
  // Predicated region
  $region22: #{resnet_generator_forward.42} parent=0 // pred_check
    _
  $region23: #{resnet_generator_forward.42} parent=0 // pred_check_branch
    %22 = sbr.rel (0) target = $region25
  $region24: #{resnet_generator_forward.42} parent=0 // pred_region
    _
  $region25: #{resnet_generator_forward.42} parent=0 // pred_fallthru
    _
  %v23 = vld [vmem:[%s1] sm:$0x1]
  %v24 = vld [vmem:[%s2] sm:$0x1]
  %v25 = vld [vmem:[%s3] sm:$0x1]
  %v26 = vld [vmem:[%s4] sm:$0x1]
  %v27 = vmul.f32 %v23, 0.03125
  %v28 = vmul.f32 %v24, 0.03125
  %v29 = vmul.f32 %v27, %v27
  %v30 = vsub.f32 %v28, %v29
  %v31 = vmax.f32 %v30, 0.0
  %v32 = vadd.f32 %v31, 1e-05
  %v33 = vrsqrt.pop %v32
  %v34 = vmul.f32 %v25, %v33
  %v35 = vmul.f32 %v27, %v34
  %v36 = vsub.f32 %v26, %v35
  %v37 = vld [vmem:[%s0] sm:$0xf]
  %v38 = vld [vmem:[%s0 + $0x4] sm:$0xf]
  %v39 = vld [vmem:[%s0 + $0x8] sm:$0xf]
  %v40 = vld [vmem:[%s0 + $0xc] sm:$0xf]
  %v41 = vunpack.c.l.bf16 %v37
  %v42 = vunpack.c.l.bf16 %v38
  %v43 = vunpack.c.l.bf16 %v39
  %v44 = vunpack.c.l.bf16 %v40
  %v46 = vlaneseq
  %v47 = vshrl.u32 %v46, 7
  %v48 = vsub.s32 0, %v47
  %v49 = vrot.slane %v34, %v48
  %v51 = vmul.f32 %v41, %v49
  %v52 = vmul.f32 %v42, %v49
  %v53 = vmul.f32 %v43, %v49
  %v54 = vmul.f32 %v44, %v49
  %v56 = vlaneseq
  %v57 = vshrl.u32 %v56, 7
  %v58 = vsub.s32 0, %v57
  %v59 = vrot.slane %v36, %v58
  %v61 = vadd.f32 %v51, %v59
  %v62 = vadd.f32 %v52, %v59
  %v63 = vadd.f32 %v53, %v59
  %v64 = vadd.f32 %v54, %v59
  %v65 = vld [vmem:[%s5] sm:$0xf]
  %v66 = vld [vmem:[%s5 + $0x4] sm:$0xf]
  %v67 = vld [vmem:[%s5 + $0x8] sm:$0xf]
  %v68 = vld [vmem:[%s5 + $0xc] sm:$0xf]
  %v69 = vunpack.c.l.bf16 %v65
  %v70 = vunpack.c.l.bf16 %v66
  %v71 = vunpack.c.l.bf16 %v67
  %v72 = vunpack.c.l.bf16 %v68
  %v73 = vadd.f32 %v61, %v69
  %v74 = vadd.f32 %v62, %v70
  %v75 = vadd.f32 %v63, %v71
  %v76 = vadd.f32 %v64, %v72
  %v77 = vpack.c.bf16 %v74, %v73
  %v78 = vpack.c.bf16 %v76, %v75
  %v81 = vunpack.c.l.b16 %v77
  %v82 = vunpack.c.h.b16 %v77
  %v83 = vunpack.c.l.b16 %v78
  %v84 = vunpack.c.h.b16 %v78
  %v85 = vpack.c.b16 %v81, %v81
  %v86 = vpack.c.b16 %v82, %v82
  %v87 = vpack.c.b16 %v83, %v83
  %v88 = vpack.c.b16 %v84, %v84
  %93 = vst [vmem:[%s6] sm:$0xf] %v85
  %94 = vst [vmem:[%s6 + $0x4] sm:$0xf] %v86
  %95 = vst [vmem:[%s6 + $0x8] sm:$0xf] %v87
  %96 = vst [vmem:[%s6 + $0xc] sm:$0xf] %v88
  // Predicated region
  $region26: #{resnet_generator_forward.42} parent=0 // pred_check
    _
  $region27: #{resnet_generator_forward.42} parent=0 // pred_check_branch
    %98 = sbr.rel (0) target = $region29
  $region28: #{resnet_generator_forward.42} parent=0 // pred_region
    _
  $region29: #{resnet_generator_forward.42} parent=0 // pred_fallthru
    _
  // Predicated region
  $region30: #{resnet_generator_forward.42} parent=0 // pred_check
    _
  $region31: #{resnet_generator_forward.42} parent=0 // pred_check_branch
    %100 = sbr.rel (0) target = $region33
  $region32: #{resnet_generator_forward.42} parent=0 // pred_region
    _
  $region33: #{resnet_generator_forward.42} parent=0 // pred_fallthru
    _

// kernel: resnet_generator_forward.37
$region0: #{resnet_generator_forward.37}
  #allocation0 [shape = 'u32[]', space=smem, size = 0x4, offset = 0x4, fixed_abs, tag = 'smem constant byte address 0x4 - core index']
  #allocation1 [shape = 'u32[144,128]{1,0:T(1,128)}', space=vmem, size = 0x12000, scoped, tag = 'internal scratch']
  %s0 = inlined_call_operand.vmem [shape: bf16[32,384], index: 0, kind: input, shape index: {}]
  %s1 = inlined_call_operand.vmem [shape: bf16[384,128], index: 1, kind: input, shape index: {}]
  %s2 = inlined_call_operand.vmem [shape: f32[1,128], index: 2, kind: input, shape index: {}]
  %s3 = inlined_call_operand.vmem [shape: bf16[32,128], index: 3, kind: output, shape index: {}]
  %s4 = sld [smem:[#allocation0]]
  $region22: #{resnet_generator_forward.37} parent=0
    _
  %s6 = ssub.s32 1, %s4
  %s7 = scalar_select 0, %s6, %s4
  // Predicated region
  $region2: #{resnet_generator_forward.37} parent=0 // pred_check
    _
  $region3: #{resnet_generator_forward.37} parent=0 // pred_check_branch
    %9 = sbr.rel (0) target = $region5
  $region4: #{resnet_generator_forward.37} parent=0 // pred_region
    _
  $region5: #{resnet_generator_forward.37} parent=0 // pred_fallthru
    _
  // Predicated region
  $region6: #{resnet_generator_forward.37} parent=0 // pred_check
    _
  $region7: #{resnet_generator_forward.37} parent=0 // pred_check_branch
    %11 = sbr.rel (0) target = $region9
  $region8: #{resnet_generator_forward.37} parent=0 // pred_region
    _
  $region9: #{resnet_generator_forward.37} parent=0 // pred_fallthru
    _
  // Predicated region
  $region10: #{resnet_generator_forward.37} parent=0 // pred_check
    _
  $region11: #{resnet_generator_forward.37} parent=0 // pred_check_branch
    %13 = sbr.rel (0) target = $region13
  $region12: #{resnet_generator_forward.37} parent=0 // pred_region
    _
  $region13: #{resnet_generator_forward.37} parent=0 // pred_fallthru
    _
  %v15 = vld [vmem:[%s0] sm:$0xff]
  %v16 = vld [vmem:[%s0 + $0x8] sm:$0xf]
  %v17 = vld [vmem:[%s0 + $0xc] sm:$0xff]
  %v18 = vld [vmem:[%s0 + $0x14] sm:$0xf]
  %v19 = vld [vmem:[%s0 + $0x18] sm:$0xff]
  %v20 = vld [vmem:[%s0 + $0x20] sm:$0xf]
  %v21 = vld [vmem:[%s0 + $0x24] sm:$0xff]
  %v22 = vld [vmem:[%s0 + $0x2c] sm:$0xf]
  %v23 = vld [vmem:[%s1] sm:$0xf]
  %v24 = vld [vmem:[%s1 + $0x4] sm:$0xf]
  %v25 = vld [vmem:[%s1 + $0x8] sm:$0xf]
  %v26 = vld [vmem:[%s1 + $0xc] sm:$0xf]
  %v27 = vld [vmem:[%s1 + $0x10] sm:$0xf]
  %v28 = vld [vmem:[%s1 + $0x14] sm:$0xf]
  %v29 = vld [vmem:[%s1 + $0x18] sm:$0xf]
  %v30 = vld [vmem:[%s1 + $0x1c] sm:$0xf]
  %v31 = vld [vmem:[%s1 + $0x20] sm:$0xf]
  %v32 = vld [vmem:[%s1 + $0x24] sm:$0xf]
  %v33 = vld [vmem:[%s1 + $0x28] sm:$0xf]
  %v34 = vld [vmem:[%s1 + $0x2c] sm:$0xf]
  %v35 = vld [vmem:[%s1 + $0x30] sm:$0xf]
  %v36 = vld [vmem:[%s1 + $0x34] sm:$0xf]
  %v37 = vld [vmem:[%s1 + $0x38] sm:$0xf]
  %v38 = vld [vmem:[%s1 + $0x3c] sm:$0xf]
  %v39 = vld [vmem:[%s1 + $0x40] sm:$0xf]
  %v40 = vld [vmem:[%s1 + $0x44] sm:$0xf]
  %v41 = vld [vmem:[%s1 + $0x48] sm:$0xf]
  %v42 = vld [vmem:[%s1 + $0x4c] sm:$0xf]
  %v43 = vld [vmem:[%s1 + $0x50] sm:$0xf]
  %v44 = vld [vmem:[%s1 + $0x54] sm:$0xf]
  %v45 = vld [vmem:[%s1 + $0x58] sm:$0xf]
  %v46 = vld [vmem:[%s1 + $0x5c] sm:$0xf]
  %v47 = vld [vmem:[%s1 + $0x60] sm:$0xf]
  %v48 = vld [vmem:[%s1 + $0x64] sm:$0xf]
  %v49 = vld [vmem:[%s1 + $0x68] sm:$0xf]
  %v50 = vld [vmem:[%s1 + $0x6c] sm:$0xf]
  %v51 = vld [vmem:[%s1 + $0x70] sm:$0xf]
  %v52 = vld [vmem:[%s1 + $0x74] sm:$0xf]
  %v53 = vld [vmem:[%s1 + $0x78] sm:$0xf]
  %v54 = vld [vmem:[%s1 + $0x7c] sm:$0xf]
  %v55 = vld [vmem:[%s1 + $0x80] sm:$0xf]
  %v56 = vld [vmem:[%s1 + $0x84] sm:$0xf]
  %v57 = vld [vmem:[%s1 + $0x88] sm:$0xf]
  %v58 = vld [vmem:[%s1 + $0x8c] sm:$0xf]
  %v59 = vld [vmem:[%s1 + $0x90] sm:$0xf]
  %v60 = vld [vmem:[%s1 + $0x94] sm:$0xf]
  %v61 = vld [vmem:[%s1 + $0x98] sm:$0xf]
  %v62 = vld [vmem:[%s1 + $0x9c] sm:$0xf]
  %v63 = vld [vmem:[%s1 + $0xa0] sm:$0xf]
  %v64 = vld [vmem:[%s1 + $0xa4] sm:$0xf]
  %v65 = vld [vmem:[%s1 + $0xa8] sm:$0xf]
  %v66 = vld [vmem:[%s1 + $0xac] sm:$0xf]
  %v67 = vld [vmem:[%s1 + $0xb0] sm:$0xf]
  %v68 = vld [vmem:[%s1 + $0xb4] sm:$0xf]
  %v69 = vld [vmem:[%s1 + $0xb8] sm:$0xf]
  %v70 = vld [vmem:[%s1 + $0xbc] sm:$0xf]
  %v71 = vld [vmem:[%s2] sm:$0x1]
  %v73 = vlaneseq
  %v74 = vshrl.u32 %v73, 7
  %v75 = vsub.s32 0, %v74
  %v76 = vrot.slane %v71, %v75
  %v86 = vunpack.c.l.b16 %v15
  %v87 = vunpack.c.h.b16 %v15
  %v88 = vunpack.c.l.b16 %v16
  %v89 = vunpack.c.l.b16 %v17
  %v90 = vunpack.c.h.b16 %v17
  %v91 = vunpack.c.l.b16 %v18
  %v92 = vunpack.c.l.b16 %v19
  %v93 = vunpack.c.h.b16 %v19
  %v94 = vunpack.c.l.b16 %v20
  %v95 = vunpack.c.l.b16 %v21
  %v96 = vunpack.c.h.b16 %v21
  %v97 = vunpack.c.l.b16 %v22
  %v98 = vpack.c.b16 %v89, %v86
  %v99 = vpack.c.b16 %v90, %v87
  %v100 = vpack.c.b16 %v91, %v88
  %v101 = vpack.c.b16 %v95, %v92
  %v102 = vpack.c.b16 %v96, %v93
  %v103 = vpack.c.b16 %v97, %v94
  %v158 = vunpack.c.l.b16 %v23
  %v159 = vunpack.c.l.b16 %v24
  %v160 = vunpack.c.l.b16 %v25
  %v161 = vunpack.c.l.b16 %v26
  %v162 = vunpack.c.l.b16 %v27
  %v163 = vunpack.c.l.b16 %v28
  %v164 = vunpack.c.l.b16 %v29
  %v165 = vunpack.c.l.b16 %v30
  %v166 = vunpack.c.l.b16 %v31
  %v167 = vunpack.c.l.b16 %v32
  %v168 = vunpack.c.l.b16 %v33
  %v169 = vunpack.c.l.b16 %v34
  %v170 = vunpack.c.l.b16 %v35
  %v171 = vunpack.c.l.b16 %v36
  %v172 = vunpack.c.l.b16 %v37
  %v173 = vunpack.c.l.b16 %v38
  %v174 = vunpack.c.l.b16 %v39
  %v175 = vunpack.c.l.b16 %v40
  %v176 = vunpack.c.l.b16 %v41
  %v177 = vunpack.c.l.b16 %v42
  %v178 = vunpack.c.l.b16 %v43
  %v179 = vunpack.c.l.b16 %v44
  %v180 = vunpack.c.l.b16 %v45
  %v181 = vunpack.c.l.b16 %v46
  %v182 = vunpack.c.l.b16 %v47
  %v183 = vunpack.c.l.b16 %v48
  %v184 = vunpack.c.l.b16 %v49
  %v185 = vunpack.c.l.b16 %v50
  %v186 = vunpack.c.l.b16 %v51
  %v187 = vunpack.c.l.b16 %v52
  %v188 = vunpack.c.l.b16 %v53
  %v189 = vunpack.c.l.b16 %v54
  %v190 = vunpack.c.l.b16 %v55
  %v191 = vunpack.c.l.b16 %v56
  %v192 = vunpack.c.l.b16 %v57
  %v193 = vunpack.c.l.b16 %v58
  %v194 = vunpack.c.l.b16 %v59
  %v195 = vunpack.c.l.b16 %v60
  %v196 = vunpack.c.l.b16 %v61
  %v197 = vunpack.c.l.b16 %v62
  %v198 = vunpack.c.l.b16 %v63
  %v199 = vunpack.c.l.b16 %v64
  %v200 = vunpack.c.l.b16 %v65
  %v201 = vunpack.c.l.b16 %v66
  %v202 = vunpack.c.l.b16 %v67
  %v203 = vunpack.c.l.b16 %v68
  %v204 = vunpack.c.l.b16 %v69
  %v205 = vunpack.c.l.b16 %v70
  %v206 = vpack.c.b16 %v159, %v158
  %v207 = vpack.c.b16 %v161, %v160
  %v208 = vpack.c.b16 %v163, %v162
  %v209 = vpack.c.b16 %v165, %v164
  %v210 = vpack.c.b16 %v167, %v166
  %v211 = vpack.c.b16 %v169, %v168
  %v212 = vpack.c.b16 %v171, %v170
  %v213 = vpack.c.b16 %v173, %v172
  %v214 = vpack.c.b16 %v175, %v174
  %v215 = vpack.c.b16 %v177, %v176
  %v216 = vpack.c.b16 %v179, %v178
  %v217 = vpack.c.b16 %v181, %v180
  %v218 = vpack.c.b16 %v183, %v182
  %v219 = vpack.c.b16 %v185, %v184
  %v220 = vpack.c.b16 %v187, %v186
  %v221 = vpack.c.b16 %v189, %v188
  %v222 = vpack.c.b16 %v191, %v190
  %v223 = vpack.c.b16 %v193, %v192
  %v224 = vpack.c.b16 %v195, %v194
  %v225 = vpack.c.b16 %v197, %v196
  %v226 = vpack.c.b16 %v199, %v198
  %v227 = vpack.c.b16 %v201, %v200
  %v228 = vpack.c.b16 %v203, %v202
  %v229 = vpack.c.b16 %v205, %v204
  %254 = vmatprep.subr.bf16.mxu0 0
  %255 = vmatpush1.bf16.msra.mxu0 %v206
  %256 = vmatprep.subr.bf16.mxu0 0
  %257 = vmatpush1.bf16.msra.mxu0 %v207
  %258 = vmatprep.subr.bf16.mxu0 0
  %259 = vmatpush1.bf16.msra.mxu0 %v208
  %260 = vmatprep.subr.bf16.mxu0 0
  %261 = vmatpush1.bf16.msra.mxu0 %v209
  %262 = vmatprep.subr.bf16.mxu0 0
  %263 = vmatpush1.bf16.msra.mxu0 %v210
  %264 = vmatprep.subr.bf16.mxu0 0
  %265 = vmatpush1.bf16.msra.mxu0 %v211
  %266 = vmatprep.subr.bf16.mxu0 0
  %267 = vmatpush1.bf16.msra.mxu0 %v212
  %268 = vmatprep.subr.bf16.mxu0 0
  %269 = vmatpush1.bf16.msra.mxu0 %v213
  %270 = vmatprep.subr.bf16.mxu0 0
  %271 = vmatpush1.bf16.msra.mxu0 %v214
  %272 = vmatprep.subr.bf16.mxu0 0
  %273 = vmatpush1.bf16.msra.mxu0 %v215
  %274 = vmatprep.subr.bf16.mxu0 0
  %275 = vmatpush1.bf16.msra.mxu0 %v216
  %276 = vmatprep.subr.bf16.mxu0 0
  %277 = vmatpush1.bf16.msra.mxu0 %v217
  %278 = vmatprep.subr.bf16.mxu0 0
  %279 = vmatpush1.bf16.msra.mxu0 %v218
  %280 = vmatprep.subr.bf16.mxu0 0
  %281 = vmatpush1.bf16.msra.mxu0 %v219
  %282 = vmatprep.subr.bf16.mxu0 0
  %283 = vmatpush1.bf16.msra.mxu0 %v220
  %284 = vmatprep.subr.bf16.mxu0 0
  %285 = vmatpush1.bf16.msra.mxu0 %v221
  %286 = vmatprep.mubr.bf16.mxu0 %v99
  %287 = vmatmul.mubr.bf16.gmra.mrb[0].mxu0 %v98
  %v288 = vpop.f32.mrb[0].mxu0
  %v289 = vadd.f32 %v76, %v288
  %v290 = vpop.f32.mrb[0].mxu0
  %v291 = vpop.f32.mrb[0].mxu0
  %v292 = vadd.f32 %v76, %v291
  %v293 = vpop.f32.mrb[0].mxu0
  %294 = vmatprep.mubr.bf16.mxu0 %v102
  %295 = vmatmul.mubr.bf16.gmra.mrb[0].mxu0 %v101
  %v296 = vpop.f32.mrb[0].mxu0
  %v297 = vadd.f32 %v76, %v296
  %v298 = vpop.f32.mrb[0].mxu0
  %v299 = vpop.f32.mrb[0].mxu0
  %v300 = vadd.f32 %v76, %v299
  %v301 = vpop.f32.mrb[0].mxu0
  %302 = vdwg.mxu0
  %303 = vmatprep.subr.bf16.mxu0 0
  %304 = vmatpush1.bf16.msra.mxu0 %v222
  %305 = vmatprep.subr.bf16.mxu0 0
  %306 = vmatpush1.bf16.msra.mxu0 %v223
  %307 = vmatprep.subr.bf16.mxu0 0
  %308 = vmatpush1.bf16.msra.mxu0 %v224
  %309 = vmatprep.subr.bf16.mxu0 0
  %310 = vmatpush1.bf16.msra.mxu0 %v225
  %311 = vmatprep.subr.bf16.mxu0 0
  %312 = vmatpush1.bf16.msra.mxu0 %v226
  %313 = vmatprep.subr.bf16.mxu0 0
  %314 = vmatpush1.bf16.msra.mxu0 %v227
  %315 = vmatprep.subr.bf16.mxu0 0
  %316 = vmatpush1.bf16.msra.mxu0 %v228
  %317 = vmatprep.subr.bf16.mxu0 0
  %318 = vmatpush1.bf16.msra.mxu0 %v229
  %319 = vmatprep.subr.bf16.mxu0 0
  %320 = vmatpush1.bf16.msra.mxu0 0
  %321 = vmatprep.subr.bf16.mxu0 0
  %322 = vmatpush1.bf16.msra.mxu0 0
  %323 = vmatprep.subr.bf16.mxu0 0
  %324 = vmatpush1.bf16.msra.mxu0 0
  %325 = vmatprep.subr.bf16.mxu0 0
  %326 = vmatpush1.bf16.msra.mxu0 0
  %327 = vmatprep.subr.bf16.mxu0 0
  %328 = vmatpush1.bf16.msra.mxu0 0
  %329 = vmatprep.subr.bf16.mxu0 0
  %330 = vmatpush1.bf16.msra.mxu0 0
  %331 = vmatprep.subr.bf16.mxu0 0
  %332 = vmatpush1.bf16.msra.mxu0 0
  %333 = vmatprep.subr.bf16.mxu0 0
  %334 = vmatpush1.bf16.msra.mxu0 0
  %335 = vmatprep.mubr.bf16.mxu0 0
  %336 = vmatmul.mubr.bf16.gmra.mrb[0].mxu0 %v100
  %v337 = vpop.f32.mrb[0].mxu0
  %v338 = vadd.f32 %v289, %v337
  %v339 = vpop.f32.mrb[0].mxu0
  %v340 = vpop.f32.mrb[0].mxu0
  %v341 = vadd.f32 %v292, %v340
  %v342 = vpop.f32.mrb[0].mxu0
  %343 = vmatprep.mubr.bf16.mxu0 0
  %344 = vmatmul.mubr.bf16.gmra.mrb[0].mxu0 %v103
  %v345 = vpop.f32.mrb[0].mxu0
  %v346 = vadd.f32 %v297, %v345
  %v347 = vpop.f32.mrb[0].mxu0
  %v348 = vpop.f32.mrb[0].mxu0
  %v349 = vadd.f32 %v300, %v348
  %v350 = vpop.f32.mrb[0].mxu0
  %351 = vdwg.mxu0
  %v352 = vpack.c.bf16 %v341, %v338
  %v353 = vpack.c.bf16 %v349, %v346
  %v356 = vunpack.c.l.b16 %v352
  %v357 = vunpack.c.h.b16 %v352
  %v358 = vunpack.c.l.b16 %v353
  %v359 = vunpack.c.h.b16 %v353
  %v360 = vpack.c.b16 %v356, %v356
  %v361 = vpack.c.b16 %v357, %v357
  %v362 = vpack.c.b16 %v358, %v358
  %v363 = vpack.c.b16 %v359, %v359
  %368 = vst [vmem:[%s3] sm:$0xf] %v360
  %369 = vst [vmem:[%s3 + $0x4] sm:$0xf] %v361
  %370 = vst [vmem:[%s3 + $0x8] sm:$0xf] %v362
  %371 = vst [vmem:[%s3 + $0xc] sm:$0xf] %v363
  // Predicated region
  $region14: #{resnet_generator_forward.37} parent=0 // pred_check
    _
  $region15: #{resnet_generator_forward.37} parent=0 // pred_check_branch
    %373 = sbr.rel (0) target = $region17
  $region16: #{resnet_generator_forward.37} parent=0 // pred_region
    _
  $region17: #{resnet_generator_forward.37} parent=0 // pred_fallthru
    _
  // Predicated region
  $region18: #{resnet_generator_forward.37} parent=0 // pred_check
    _
  $region19: #{resnet_generator_forward.37} parent=0 // pred_check_branch
    %375 = sbr.rel (0) target = $region21
  $region20: #{resnet_generator_forward.37} parent=0 // pred_region
    _
  $region21: #{resnet_generator_forward.37} parent=0 // pred_fallthru
    _

// kernel: tile.13
$region0: #{tile.13}
  #allocation0 [shape = 's32[1]{0}', space=sflag, size = 0x4, scoped, tag = 'scoped memory for tile.13']
  %s0 = inlined_call_operand.vmem [shape: f32[128], index: 0, kind: input, shape index: {}]
  %s1 = inlined_call_operand.vmem [shape: f32[4,128], index: 1, kind: output, shape index: {}]
  // Predicated region
  $region2: #{tile.13} parent=0 // pred_check
    _
  $region3: #{tile.13} parent=0 // pred_check_branch
    %3 = sbr.rel (0) target = $region5
  $region4: #{tile.13} parent=0 // pred_region
    _
  $region5: #{tile.13} parent=0 // pred_fallthru
    _
  %v4 = vld [vmem:[%s0] ss:$0 sm:$0xff]
  %5 = vst [vmem:[%s1] sm:$0xf] %v4

// kernel: resnet_generator_forward.49
$region0: #{resnet_generator_forward.49}
  #allocation0 [shape = 'u32[]', space=smem, size = 0x4, offset = 0x4, fixed_abs, tag = 'smem constant byte address 0x4 - core index']
  #allocation1 [shape = 'u32[144,128]{1,0:T(1,128)}', space=vmem, size = 0x12000, scoped, tag = 'internal scratch']
  %s0 = inlined_call_operand.vmem [shape: bf16[32,128], index: 0, kind: input, shape index: {}]
  %s1 = inlined_call_operand.vmem [shape: bf16[128,512], index: 1, kind: input, shape index: {}]
  %s2 = inlined_call_operand.vmem [shape: f32[1,512], index: 2, kind: input, shape index: {}]
  %s3 = inlined_call_operand.vmem [shape: bf16[32,512], index: 3, kind: output, shape index: {}]
  %s4 = sld [smem:[#allocation0]]
  $region22: #{resnet_generator_forward.49} parent=0
    _
  %s6 = ssub.s32 1, %s4
  %s7 = scalar_select 0, %s6, %s4
  // Predicated region
  $region2: #{resnet_generator_forward.49} parent=0 // pred_check
    _
  $region3: #{resnet_generator_forward.49} parent=0 // pred_check_branch
    %9 = sbr.rel (0) target = $region5
  $region4: #{resnet_generator_forward.49} parent=0 // pred_region
    _
  $region5: #{resnet_generator_forward.49} parent=0 // pred_fallthru
    _
  // Predicated region
  $region6: #{resnet_generator_forward.49} parent=0 // pred_check
    _
  $region7: #{resnet_generator_forward.49} parent=0 // pred_check_branch
    %11 = sbr.rel (0) target = $region9
  $region8: #{resnet_generator_forward.49} parent=0 // pred_region
    _
  $region9: #{resnet_generator_forward.49} parent=0 // pred_fallthru
    _
  // Predicated region
  $region10: #{resnet_generator_forward.49} parent=0 // pred_check
    _
  $region11: #{resnet_generator_forward.49} parent=0 // pred_check_branch
    %13 = sbr.rel (0) target = $region13
  $region12: #{resnet_generator_forward.49} parent=0 // pred_region
    _
  $region13: #{resnet_generator_forward.49} parent=0 // pred_fallthru
    _
  %v15 = vld [vmem:[%s0] sm:$0xf]
  %v16 = vld [vmem:[%s0 + $0x4] sm:$0xf]
  %v17 = vld [vmem:[%s0 + $0x8] sm:$0xf]
  %v18 = vld [vmem:[%s0 + $0xc] sm:$0xf]
  %v19 = vld [vmem:[%s1] sm:$0xff]
  %v20 = vld [vmem:[%s1 + $0x8] sm:$0xff]
  %v21 = vld [vmem:[%s1 + $0x10] sm:$0xff]
  %v22 = vld [vmem:[%s1 + $0x18] sm:$0xff]
  %v23 = vld [vmem:[%s1 + $0x20] sm:$0xff]
  %v24 = vld [vmem:[%s1 + $0x28] sm:$0xff]
  %v25 = vld [vmem:[%s1 + $0x30] sm:$0xff]
  %v26 = vld [vmem:[%s1 + $0x38] sm:$0xff]
  %v27 = vld [vmem:[%s1 + $0x40] sm:$0xff]
  %v28 = vld [vmem:[%s1 + $0x48] sm:$0xff]
  %v29 = vld [vmem:[%s1 + $0x50] sm:$0xff]
  %v30 = vld [vmem:[%s1 + $0x58] sm:$0xff]
  %v31 = vld [vmem:[%s1 + $0x60] sm:$0xff]
  %v32 = vld [vmem:[%s1 + $0x68] sm:$0xff]
  %v33 = vld [vmem:[%s1 + $0x70] sm:$0xff]
  %v34 = vld [vmem:[%s1 + $0x78] sm:$0xff]
  %v35 = vld [vmem:[%s1 + $0x80] sm:$0xff]
  %v36 = vld [vmem:[%s1 + $0x88] sm:$0xff]
  %v37 = vld [vmem:[%s1 + $0x90] sm:$0xff]
  %v38 = vld [vmem:[%s1 + $0x98] sm:$0xff]
  %v39 = vld [vmem:[%s1 + $0xa0] sm:$0xff]
  %v40 = vld [vmem:[%s1 + $0xa8] sm:$0xff]
  %v41 = vld [vmem:[%s1 + $0xb0] sm:$0xff]
  %v42 = vld [vmem:[%s1 + $0xb8] sm:$0xff]
  %v43 = vld [vmem:[%s1 + $0xc0] sm:$0xff]
  %v44 = vld [vmem:[%s1 + $0xc8] sm:$0xff]
  %v45 = vld [vmem:[%s1 + $0xd0] sm:$0xff]
  %v46 = vld [vmem:[%s1 + $0xd8] sm:$0xff]
  %v47 = vld [vmem:[%s1 + $0xe0] sm:$0xff]
  %v48 = vld [vmem:[%s1 + $0xe8] sm:$0xff]
  %v49 = vld [vmem:[%s1 + $0xf0] sm:$0xff]
  %v50 = vld [vmem:[%s1 + $0xf8] sm:$0xff]
  %v51 = vld [vmem:[%s2] sm:$0xf]
  %v53 = vlaneseq
  %v54 = vshrl.u32 %v53, 7
  %v55 = vsub.s32 0, %v54
  %v56 = vrot.slane %v51, %v55
  %v57 = vlaneseq
  %v58 = vshrl.u32 %v57, 7
  %v59 = vsub.s32 1, %v58
  %v60 = vrot.slane %v51, %v59
  %v61 = vlaneseq
  %v62 = vshrl.u32 %v61, 7
  %v63 = vsub.s32 2, %v62
  %v64 = vrot.slane %v51, %v63
  %v65 = vlaneseq
  %v66 = vshrl.u32 %v65, 7
  %v67 = vsub.s32 3, %v66
  %v68 = vrot.slane %v51, %v67
  %v77 = vunpack.c.l.b16 %v15
  %v78 = vunpack.c.l.b16 %v16
  %v79 = vunpack.c.l.b16 %v17
  %v80 = vunpack.c.l.b16 %v18
  %v81 = vpack.c.b16 %v78, %v77
  %v82 = vpack.c.b16 %v80, %v79
  %v117 = vunpack.c.l.b16 %v19
  %v118 = vunpack.c.h.b16 %v19
  %v119 = vunpack.c.l.b16 %v20
  %v120 = vunpack.c.h.b16 %v20
  %v121 = vunpack.c.l.b16 %v21
  %v122 = vunpack.c.h.b16 %v21
  %v123 = vunpack.c.l.b16 %v22
  %v124 = vunpack.c.h.b16 %v22
  %v125 = vunpack.c.l.b16 %v23
  %v126 = vunpack.c.h.b16 %v23
  %v127 = vunpack.c.l.b16 %v24
  %v128 = vunpack.c.h.b16 %v24
  %v129 = vunpack.c.l.b16 %v25
  %v130 = vunpack.c.h.b16 %v25
  %v131 = vunpack.c.l.b16 %v26
  %v132 = vunpack.c.h.b16 %v26
  %v133 = vunpack.c.l.b16 %v27
  %v134 = vunpack.c.h.b16 %v27
  %v135 = vunpack.c.l.b16 %v28
  %v136 = vunpack.c.h.b16 %v28
  %v137 = vunpack.c.l.b16 %v29
  %v138 = vunpack.c.h.b16 %v29
  %v139 = vunpack.c.l.b16 %v30
  %v140 = vunpack.c.h.b16 %v30
  %v141 = vunpack.c.l.b16 %v31
  %v142 = vunpack.c.h.b16 %v31
  %v143 = vunpack.c.l.b16 %v32
  %v144 = vunpack.c.h.b16 %v32
  %v145 = vunpack.c.l.b16 %v33
  %v146 = vunpack.c.h.b16 %v33
  %v147 = vunpack.c.l.b16 %v34
  %v148 = vunpack.c.h.b16 %v34
  %v149 = vunpack.c.l.b16 %v35
  %v150 = vunpack.c.h.b16 %v35
  %v151 = vunpack.c.l.b16 %v36
  %v152 = vunpack.c.h.b16 %v36
  %v153 = vunpack.c.l.b16 %v37
  %v154 = vunpack.c.h.b16 %v37
  %v155 = vunpack.c.l.b16 %v38
  %v156 = vunpack.c.h.b16 %v38
  %v157 = vunpack.c.l.b16 %v39
  %v158 = vunpack.c.h.b16 %v39
  %v159 = vunpack.c.l.b16 %v40
  %v160 = vunpack.c.h.b16 %v40
  %v161 = vunpack.c.l.b16 %v41
  %v162 = vunpack.c.h.b16 %v41
  %v163 = vunpack.c.l.b16 %v42
  %v164 = vunpack.c.h.b16 %v42
  %v165 = vunpack.c.l.b16 %v43
  %v166 = vunpack.c.h.b16 %v43
  %v167 = vunpack.c.l.b16 %v44
  %v168 = vunpack.c.h.b16 %v44
  %v169 = vunpack.c.l.b16 %v45
  %v170 = vunpack.c.h.b16 %v45
  %v171 = vunpack.c.l.b16 %v46
  %v172 = vunpack.c.h.b16 %v46
  %v173 = vunpack.c.l.b16 %v47
  %v174 = vunpack.c.h.b16 %v47
  %v175 = vunpack.c.l.b16 %v48
  %v176 = vunpack.c.h.b16 %v48
  %v177 = vunpack.c.l.b16 %v49
  %v178 = vunpack.c.h.b16 %v49
  %v179 = vunpack.c.l.b16 %v50
  %v180 = vunpack.c.h.b16 %v50
  %v181 = vpack.c.b16 %v121, %v117
  %v182 = vpack.c.b16 %v122, %v118
  %v183 = vpack.c.b16 %v123, %v119
  %v184 = vpack.c.b16 %v124, %v120
  %v185 = vpack.c.b16 %v129, %v125
  %v186 = vpack.c.b16 %v130, %v126
  %v187 = vpack.c.b16 %v131, %v127
  %v188 = vpack.c.b16 %v132, %v128
  %v189 = vpack.c.b16 %v137, %v133
  %v190 = vpack.c.b16 %v138, %v134
  %v191 = vpack.c.b16 %v139, %v135
  %v192 = vpack.c.b16 %v140, %v136
  %v193 = vpack.c.b16 %v145, %v141
  %v194 = vpack.c.b16 %v146, %v142
  %v195 = vpack.c.b16 %v147, %v143
  %v196 = vpack.c.b16 %v148, %v144
  %v197 = vpack.c.b16 %v153, %v149
  %v198 = vpack.c.b16 %v154, %v150
  %v199 = vpack.c.b16 %v155, %v151
  %v200 = vpack.c.b16 %v156, %v152
  %v201 = vpack.c.b16 %v161, %v157
  %v202 = vpack.c.b16 %v162, %v158
  %v203 = vpack.c.b16 %v163, %v159
  %v204 = vpack.c.b16 %v164, %v160
  %v205 = vpack.c.b16 %v169, %v165
  %v206 = vpack.c.b16 %v170, %v166
  %v207 = vpack.c.b16 %v171, %v167
  %v208 = vpack.c.b16 %v172, %v168
  %v209 = vpack.c.b16 %v177, %v173
  %v210 = vpack.c.b16 %v178, %v174
  %v211 = vpack.c.b16 %v179, %v175
  %v212 = vpack.c.b16 %v180, %v176
  %245 = vmatprep.subr.bf16.mxu0 %v182
  %246 = vmatpush1.bf16.msra.mxu0 %v181
  %247 = vmatprep.subr.bf16.mxu0 %v186
  %248 = vmatpush1.bf16.msra.mxu0 %v185
  %249 = vmatprep.subr.bf16.mxu0 %v190
  %250 = vmatpush1.bf16.msra.mxu0 %v189
  %251 = vmatprep.subr.bf16.mxu0 %v194
  %252 = vmatpush1.bf16.msra.mxu0 %v193
  %253 = vmatprep.subr.bf16.mxu0 %v198
  %254 = vmatpush1.bf16.msra.mxu0 %v197
  %255 = vmatprep.subr.bf16.mxu0 %v202
  %256 = vmatpush1.bf16.msra.mxu0 %v201
  %257 = vmatprep.subr.bf16.mxu0 %v206
  %258 = vmatpush1.bf16.msra.mxu0 %v205
  %259 = vmatprep.subr.bf16.mxu0 %v210
  %260 = vmatpush1.bf16.msra.mxu0 %v209
  %261 = vmatprep.subr.bf16.mxu0 0
  %262 = vmatpush1.bf16.msra.mxu0 0
  %263 = vmatprep.subr.bf16.mxu0 0
  %264 = vmatpush1.bf16.msra.mxu0 0
  %265 = vmatprep.subr.bf16.mxu0 0
  %266 = vmatpush1.bf16.msra.mxu0 0
  %267 = vmatprep.subr.bf16.mxu0 0
  %268 = vmatpush1.bf16.msra.mxu0 0
  %269 = vmatprep.subr.bf16.mxu0 0
  %270 = vmatpush1.bf16.msra.mxu0 0
  %271 = vmatprep.subr.bf16.mxu0 0
  %272 = vmatpush1.bf16.msra.mxu0 0
  %273 = vmatprep.subr.bf16.mxu0 0
  %274 = vmatpush1.bf16.msra.mxu0 0
  %275 = vmatprep.subr.bf16.mxu0 0
  %276 = vmatpush1.bf16.msra.mxu0 0
  %277 = vmatprep.mubr.bf16.mxu0 0
  %278 = vmatmul.mubr.bf16.gmra.mrb[0].mxu0 %v81
  %v279 = vpop.f32.mrb[0].mxu0
  %v280 = vadd.f32 %v56, %v279
  %v281 = vpop.f32.mrb[0].mxu0
  %v282 = vadd.f32 %v60, %v281
  %v283 = vpop.f32.mrb[0].mxu0
  %v284 = vadd.f32 %v56, %v283
  %v285 = vpop.f32.mrb[0].mxu0
  %v286 = vadd.f32 %v60, %v285
  %287 = vmatprep.mubr.bf16.mxu0 0
  %288 = vmatmul.mubr.bf16.gmra.mrb[0].mxu0 %v82
  %v289 = vpop.f32.mrb[0].mxu0
  %v290 = vadd.f32 %v56, %v289
  %v291 = vpop.f32.mrb[0].mxu0
  %v292 = vadd.f32 %v60, %v291
  %v293 = vpop.f32.mrb[0].mxu0
  %v294 = vadd.f32 %v56, %v293
  %v295 = vpop.f32.mrb[0].mxu0
  %v296 = vadd.f32 %v60, %v295
  %297 = vdwg.mxu0
  %298 = vmatprep.subr.bf16.mxu0 %v184
  %299 = vmatpush1.bf16.msra.mxu0 %v183
  %300 = vmatprep.subr.bf16.mxu0 %v188
  %301 = vmatpush1.bf16.msra.mxu0 %v187
  %302 = vmatprep.subr.bf16.mxu0 %v192
  %303 = vmatpush1.bf16.msra.mxu0 %v191
  %304 = vmatprep.subr.bf16.mxu0 %v196
  %305 = vmatpush1.bf16.msra.mxu0 %v195
  %306 = vmatprep.subr.bf16.mxu0 %v200
  %307 = vmatpush1.bf16.msra.mxu0 %v199
  %308 = vmatprep.subr.bf16.mxu0 %v204
  %309 = vmatpush1.bf16.msra.mxu0 %v203
  %310 = vmatprep.subr.bf16.mxu0 %v208
  %311 = vmatpush1.bf16.msra.mxu0 %v207
  %312 = vmatprep.subr.bf16.mxu0 %v212
  %313 = vmatpush1.bf16.msra.mxu0 %v211
  %314 = vmatprep.subr.bf16.mxu0 0
  %315 = vmatpush1.bf16.msra.mxu0 0
  %316 = vmatprep.subr.bf16.mxu0 0
  %317 = vmatpush1.bf16.msra.mxu0 0
  %318 = vmatprep.subr.bf16.mxu0 0
  %319 = vmatpush1.bf16.msra.mxu0 0
  %320 = vmatprep.subr.bf16.mxu0 0
  %321 = vmatpush1.bf16.msra.mxu0 0
  %322 = vmatprep.subr.bf16.mxu0 0
  %323 = vmatpush1.bf16.msra.mxu0 0
  %324 = vmatprep.subr.bf16.mxu0 0
  %325 = vmatpush1.bf16.msra.mxu0 0
  %326 = vmatprep.subr.bf16.mxu0 0
  %327 = vmatpush1.bf16.msra.mxu0 0
  %328 = vmatprep.subr.bf16.mxu0 0
  %329 = vmatpush1.bf16.msra.mxu0 0
  %330 = vmatprep.mubr.bf16.mxu0 0
  %331 = vmatmul.mubr.bf16.gmra.mrb[0].mxu0 %v81
  %v332 = vpop.f32.mrb[0].mxu0
  %v333 = vadd.f32 %v64, %v332
  %v334 = vpop.f32.mrb[0].mxu0
  %v335 = vadd.f32 %v68, %v334
  %v336 = vpop.f32.mrb[0].mxu0
  %v337 = vadd.f32 %v64, %v336
  %v338 = vpop.f32.mrb[0].mxu0
  %v339 = vadd.f32 %v68, %v338
  %340 = vmatprep.mubr.bf16.mxu0 0
  %341 = vmatmul.mubr.bf16.gmra.mrb[0].mxu0 %v82
  %v342 = vpop.f32.mrb[0].mxu0
  %v343 = vadd.f32 %v64, %v342
  %v344 = vpop.f32.mrb[0].mxu0
  %v345 = vadd.f32 %v68, %v344
  %v346 = vpop.f32.mrb[0].mxu0
  %v347 = vadd.f32 %v64, %v346
  %v348 = vpop.f32.mrb[0].mxu0
  %v349 = vadd.f32 %v68, %v348
  %350 = vdwg.mxu0
  %v351 = vpack.c.bf16 %v284, %v280
  %v352 = vpack.c.bf16 %v286, %v282
  %v353 = vpack.c.bf16 %v337, %v333
  %v354 = vpack.c.bf16 %v339, %v335
  %v355 = vpack.c.bf16 %v294, %v290
  %v356 = vpack.c.bf16 %v296, %v292
  %v357 = vpack.c.bf16 %v347, %v343
  %v358 = vpack.c.bf16 %v349, %v345
  %v367 = vunpack.c.l.b16 %v351
  %v368 = vunpack.c.l.b16 %v352
  %v369 = vunpack.c.l.b16 %v353
  %v370 = vunpack.c.l.b16 %v354
  %v371 = vunpack.c.h.b16 %v351
  %v372 = vunpack.c.h.b16 %v352
  %v373 = vunpack.c.h.b16 %v353
  %v374 = vunpack.c.h.b16 %v354
  %v375 = vunpack.c.l.b16 %v355
  %v376 = vunpack.c.l.b16 %v356
  %v377 = vunpack.c.l.b16 %v357
  %v378 = vunpack.c.l.b16 %v358
  %v379 = vunpack.c.h.b16 %v355
  %v380 = vunpack.c.h.b16 %v356
  %v381 = vunpack.c.h.b16 %v357
  %v382 = vunpack.c.h.b16 %v358
  %v383 = vpack.c.b16 %v368, %v367
  %v384 = vpack.c.b16 %v370, %v369
  %v385 = vpack.c.b16 %v372, %v371
  %v386 = vpack.c.b16 %v374, %v373
  %v387 = vpack.c.b16 %v376, %v375
  %v388 = vpack.c.b16 %v378, %v377
  %v389 = vpack.c.b16 %v380, %v379
  %v390 = vpack.c.b16 %v382, %v381
  %399 = vst [vmem:[%s3] sm:$0xff] %v383
  %400 = vst [vmem:[%s3 + $0x8] sm:$0xff] %v384
  %401 = vst [vmem:[%s3 + $0x10] sm:$0xff] %v385
  %402 = vst [vmem:[%s3 + $0x18] sm:$0xff] %v386
  %403 = vst [vmem:[%s3 + $0x20] sm:$0xff] %v387
  %404 = vst [vmem:[%s3 + $0x28] sm:$0xff] %v388
  %405 = vst [vmem:[%s3 + $0x30] sm:$0xff] %v389
  %406 = vst [vmem:[%s3 + $0x38] sm:$0xff] %v390
  // Predicated region
  $region14: #{resnet_generator_forward.49} parent=0 // pred_check
    _
  $region15: #{resnet_generator_forward.49} parent=0 // pred_check_branch
    %408 = sbr.rel (0) target = $region17
  $region16: #{resnet_generator_forward.49} parent=0 // pred_region
    _
  $region17: #{resnet_generator_forward.49} parent=0 // pred_fallthru
    _
  // Predicated region
  $region18: #{resnet_generator_forward.49} parent=0 // pred_check
    _
  $region19: #{resnet_generator_forward.49} parent=0 // pred_check_branch
    %410 = sbr.rel (0) target = $region21
  $region20: #{resnet_generator_forward.49} parent=0 // pred_region
    _
  $region21: #{resnet_generator_forward.49} parent=0 // pred_fallthru
    _

// kernel: resnet_generator_forward.52
$region0: #{resnet_generator_forward.52}
  #allocation0 [shape = 'u32[]', space=smem, size = 0x4, offset = 0x4, fixed_abs, tag = 'smem constant byte address 0x4 - core index']
  #allocation1 [shape = 'u32[144,128]{1,0:T(1,128)}', space=vmem, size = 0x12000, scoped, tag = 'internal scratch']
  %s0 = inlined_call_operand.vmem [shape: bf16[128,128], index: 0, kind: input, shape index: {}]
  %s1 = inlined_call_operand.vmem [shape: bf16[128,512], index: 1, kind: input, shape index: {}]
  %s2 = inlined_call_operand.vmem [shape: f32[1,512], index: 2, kind: input, shape index: {}]
  %s3 = inlined_call_operand.vmem [shape: bf16[128,512], index: 3, kind: output, shape index: {}]
  %s4 = sld [smem:[#allocation0]]
  $region22: #{resnet_generator_forward.52} parent=0
    _
  %s6 = ssub.s32 1, %s4
  %s7 = scalar_select 0, %s6, %s4
  // Predicated region
  $region2: #{resnet_generator_forward.52} parent=0 // pred_check
    _
  $region3: #{resnet_generator_forward.52} parent=0 // pred_check_branch
    %9 = sbr.rel (0) target = $region5
  $region4: #{resnet_generator_forward.52} parent=0 // pred_region
    _
  $region5: #{resnet_generator_forward.52} parent=0 // pred_fallthru
    _
  // Predicated region
  $region6: #{resnet_generator_forward.52} parent=0 // pred_check
    _
  $region7: #{resnet_generator_forward.52} parent=0 // pred_check_branch
    %11 = sbr.rel (0) target = $region9
  $region8: #{resnet_generator_forward.52} parent=0 // pred_region
    _
  $region9: #{resnet_generator_forward.52} parent=0 // pred_fallthru
    _
  // Predicated region
  $region10: #{resnet_generator_forward.52} parent=0 // pred_check
    _
  $region11: #{resnet_generator_forward.52} parent=0 // pred_check_branch
    %13 = sbr.rel (0) target = $region13
  $region12: #{resnet_generator_forward.52} parent=0 // pred_region
    _
  $region13: #{resnet_generator_forward.52} parent=0 // pred_fallthru
    _
  %v15 = vld [vmem:[%s0] sm:$0xf]
  %v16 = vld [vmem:[%s0 + $0x4] sm:$0xf]
  %v17 = vld [vmem:[%s0 + $0x8] sm:$0xf]
  %v18 = vld [vmem:[%s0 + $0xc] sm:$0xf]
  %v19 = vld [vmem:[%s0 + $0x10] sm:$0xf]
  %v20 = vld [vmem:[%s0 + $0x14] sm:$0xf]
  %v21 = vld [vmem:[%s0 + $0x18] sm:$0xf]
  %v22 = vld [vmem:[%s0 + $0x1c] sm:$0xf]
  %v23 = vld [vmem:[%s0 + $0x20] sm:$0xf]
  %v24 = vld [vmem:[%s0 + $0x24] sm:$0xf]
  %v25 = vld [vmem:[%s0 + $0x28] sm:$0xf]
  %v26 = vld [vmem:[%s0 + $0x2c] sm:$0xf]
  %v27 = vld [vmem:[%s0 + $0x30] sm:$0xf]
  %v28 = vld [vmem:[%s0 + $0x34] sm:$0xf]
  %v29 = vld [vmem:[%s0 + $0x38] sm:$0xf]
  %v30 = vld [vmem:[%s0 + $0x3c] sm:$0xf]
  %v31 = vld [vmem:[%s1] sm:$0xff]
  %v32 = vld [vmem:[%s1 + $0x8] sm:$0xff]
  %v33 = vld [vmem:[%s1 + $0x10] sm:$0xff]
  %v34 = vld [vmem:[%s1 + $0x18] sm:$0xff]
  %v35 = vld [vmem:[%s1 + $0x20] sm:$0xff]
  %v36 = vld [vmem:[%s1 + $0x28] sm:$0xff]
  %v37 = vld [vmem:[%s1 + $0x30] sm:$0xff]
  %v38 = vld [vmem:[%s1 + $0x38] sm:$0xff]
  %v39 = vld [vmem:[%s1 + $0x40] sm:$0xff]
  %v40 = vld [vmem:[%s1 + $0x48] sm:$0xff]
  %v41 = vld [vmem:[%s1 + $0x50] sm:$0xff]
  %v42 = vld [vmem:[%s1 + $0x58] sm:$0xff]
  %v43 = vld [vmem:[%s1 + $0x60] sm:$0xff]
  %v44 = vld [vmem:[%s1 + $0x68] sm:$0xff]
  %v45 = vld [vmem:[%s1 + $0x70] sm:$0xff]
  %v46 = vld [vmem:[%s1 + $0x78] sm:$0xff]
  %v47 = vld [vmem:[%s1 + $0x80] sm:$0xff]
  %v48 = vld [vmem:[%s1 + $0x88] sm:$0xff]
  %v49 = vld [vmem:[%s1 + $0x90] sm:$0xff]
  %v50 = vld [vmem:[%s1 + $0x98] sm:$0xff]
  %v51 = vld [vmem:[%s1 + $0xa0] sm:$0xff]
  %v52 = vld [vmem:[%s1 + $0xa8] sm:$0xff]
  %v53 = vld [vmem:[%s1 + $0xb0] sm:$0xff]
  %v54 = vld [vmem:[%s1 + $0xb8] sm:$0xff]
  %v55 = vld [vmem:[%s1 + $0xc0] sm:$0xff]
  %v56 = vld [vmem:[%s1 + $0xc8] sm:$0xff]
  %v57 = vld [vmem:[%s1 + $0xd0] sm:$0xff]
  %v58 = vld [vmem:[%s1 + $0xd8] sm:$0xff]
  %v59 = vld [vmem:[%s1 + $0xe0] sm:$0xff]
  %v60 = vld [vmem:[%s1 + $0xe8] sm:$0xff]
  %v61 = vld [vmem:[%s1 + $0xf0] sm:$0xff]
  %v62 = vld [vmem:[%s1 + $0xf8] sm:$0xff]
  %v63 = vld [vmem:[%s2] sm:$0xf]
  %v65 = vlaneseq
  %v66 = vshrl.u32 %v65, 7
  %v67 = vsub.s32 0, %v66
  %v68 = vrot.slane %v63, %v67
  %v69 = vlaneseq
  %v70 = vshrl.u32 %v69, 7
  %v71 = vsub.s32 1, %v70
  %v72 = vrot.slane %v63, %v71
  %v73 = vlaneseq
  %v74 = vshrl.u32 %v73, 7
  %v75 = vsub.s32 2, %v74
  %v76 = vrot.slane %v63, %v75
  %v77 = vlaneseq
  %v78 = vshrl.u32 %v77, 7
  %v79 = vsub.s32 3, %v78
  %v80 = vrot.slane %v63, %v79
  %v101 = vunpack.c.l.b16 %v15
  %v102 = vunpack.c.l.b16 %v16
  %v103 = vunpack.c.l.b16 %v17
  %v104 = vunpack.c.l.b16 %v18
  %v105 = vunpack.c.l.b16 %v19
  %v106 = vunpack.c.l.b16 %v20
  %v107 = vunpack.c.l.b16 %v21
  %v108 = vunpack.c.l.b16 %v22
  %v109 = vunpack.c.l.b16 %v23
  %v110 = vunpack.c.l.b16 %v24
  %v111 = vunpack.c.l.b16 %v25
  %v112 = vunpack.c.l.b16 %v26
  %v113 = vunpack.c.l.b16 %v27
  %v114 = vunpack.c.l.b16 %v28
  %v115 = vunpack.c.l.b16 %v29
  %v116 = vunpack.c.l.b16 %v30
  %v117 = vpack.c.b16 %v102, %v101
  %v118 = vpack.c.b16 %v104, %v103
  %v119 = vpack.c.b16 %v106, %v105
  %v120 = vpack.c.b16 %v108, %v107
  %v121 = vpack.c.b16 %v110, %v109
  %v122 = vpack.c.b16 %v112, %v111
  %v123 = vpack.c.b16 %v114, %v113
  %v124 = vpack.c.b16 %v116, %v115
  %v165 = vunpack.c.l.b16 %v31
  %v166 = vunpack.c.h.b16 %v31
  %v167 = vunpack.c.l.b16 %v32
  %v168 = vunpack.c.h.b16 %v32
  %v169 = vunpack.c.l.b16 %v33
  %v170 = vunpack.c.h.b16 %v33
  %v171 = vunpack.c.l.b16 %v34
  %v172 = vunpack.c.h.b16 %v34
  %v173 = vunpack.c.l.b16 %v35
  %v174 = vunpack.c.h.b16 %v35
  %v175 = vunpack.c.l.b16 %v36
  %v176 = vunpack.c.h.b16 %v36
  %v177 = vunpack.c.l.b16 %v37
  %v178 = vunpack.c.h.b16 %v37
  %v179 = vunpack.c.l.b16 %v38
  %v180 = vunpack.c.h.b16 %v38
  %v181 = vunpack.c.l.b16 %v39
  %v182 = vunpack.c.h.b16 %v39
  %v183 = vunpack.c.l.b16 %v40
  %v184 = vunpack.c.h.b16 %v40
  %v185 = vunpack.c.l.b16 %v41
  %v186 = vunpack.c.h.b16 %v41
  %v187 = vunpack.c.l.b16 %v42
  %v188 = vunpack.c.h.b16 %v42
  %v189 = vunpack.c.l.b16 %v43
  %v190 = vunpack.c.h.b16 %v43
  %v191 = vunpack.c.l.b16 %v44
  %v192 = vunpack.c.h.b16 %v44
  %v193 = vunpack.c.l.b16 %v45
  %v194 = vunpack.c.h.b16 %v45
  %v195 = vunpack.c.l.b16 %v46
  %v196 = vunpack.c.h.b16 %v46
  %v197 = vunpack.c.l.b16 %v47
  %v198 = vunpack.c.h.b16 %v47
  %v199 = vunpack.c.l.b16 %v48
  %v200 = vunpack.c.h.b16 %v48
  %v201 = vunpack.c.l.b16 %v49
  %v202 = vunpack.c.h.b16 %v49
  %v203 = vunpack.c.l.b16 %v50
  %v204 = vunpack.c.h.b16 %v50
  %v205 = vunpack.c.l.b16 %v51
  %v206 = vunpack.c.h.b16 %v51
  %v207 = vunpack.c.l.b16 %v52
  %v208 = vunpack.c.h.b16 %v52
  %v209 = vunpack.c.l.b16 %v53
  %v210 = vunpack.c.h.b16 %v53
  %v211 = vunpack.c.l.b16 %v54
  %v212 = vunpack.c.h.b16 %v54
  %v213 = vunpack.c.l.b16 %v55
  %v214 = vunpack.c.h.b16 %v55
  %v215 = vunpack.c.l.b16 %v56
  %v216 = vunpack.c.h.b16 %v56
  %v217 = vunpack.c.l.b16 %v57
  %v218 = vunpack.c.h.b16 %v57
  %v219 = vunpack.c.l.b16 %v58
  %v220 = vunpack.c.h.b16 %v58
  %v221 = vunpack.c.l.b16 %v59
  %v222 = vunpack.c.h.b16 %v59
  %v223 = vunpack.c.l.b16 %v60
  %v224 = vunpack.c.h.b16 %v60
  %v225 = vunpack.c.l.b16 %v61
  %v226 = vunpack.c.h.b16 %v61
  %v227 = vunpack.c.l.b16 %v62
  %v228 = vunpack.c.h.b16 %v62
  %v229 = vpack.c.b16 %v169, %v165
  %v230 = vpack.c.b16 %v170, %v166
  %v231 = vpack.c.b16 %v171, %v167
  %v232 = vpack.c.b16 %v172, %v168
  %v233 = vpack.c.b16 %v177, %v173
  %v234 = vpack.c.b16 %v178, %v174
  %v235 = vpack.c.b16 %v179, %v175
  %v236 = vpack.c.b16 %v180, %v176
  %v237 = vpack.c.b16 %v185, %v181
  %v238 = vpack.c.b16 %v186, %v182
  %v239 = vpack.c.b16 %v187, %v183
  %v240 = vpack.c.b16 %v188, %v184
  %v241 = vpack.c.b16 %v193, %v189
  %v242 = vpack.c.b16 %v194, %v190
  %v243 = vpack.c.b16 %v195, %v191
  %v244 = vpack.c.b16 %v196, %v192
  %v245 = vpack.c.b16 %v201, %v197
  %v246 = vpack.c.b16 %v202, %v198
  %v247 = vpack.c.b16 %v203, %v199
  %v248 = vpack.c.b16 %v204, %v200
  %v249 = vpack.c.b16 %v209, %v205
  %v250 = vpack.c.b16 %v210, %v206
  %v251 = vpack.c.b16 %v211, %v207
  %v252 = vpack.c.b16 %v212, %v208
  %v253 = vpack.c.b16 %v217, %v213
  %v254 = vpack.c.b16 %v218, %v214
  %v255 = vpack.c.b16 %v219, %v215
  %v256 = vpack.c.b16 %v220, %v216
  %v257 = vpack.c.b16 %v225, %v221
  %v258 = vpack.c.b16 %v226, %v222
  %v259 = vpack.c.b16 %v227, %v223
  %v260 = vpack.c.b16 %v228, %v224
  %293 = vmatprep.subr.bf16.mxu0 %v230
  %294 = vmatpush1.bf16.msra.mxu0 %v229
  %295 = vmatprep.subr.bf16.mxu0 %v234
  %296 = vmatpush1.bf16.msra.mxu0 %v233
  %297 = vmatprep.subr.bf16.mxu0 %v238
  %298 = vmatpush1.bf16.msra.mxu0 %v237
  %299 = vmatprep.subr.bf16.mxu0 %v242
  %300 = vmatpush1.bf16.msra.mxu0 %v241
  %301 = vmatprep.subr.bf16.mxu0 %v246
  %302 = vmatpush1.bf16.msra.mxu0 %v245
  %303 = vmatprep.subr.bf16.mxu0 %v250
  %304 = vmatpush1.bf16.msra.mxu0 %v249
  %305 = vmatprep.subr.bf16.mxu0 %v254
  %306 = vmatpush1.bf16.msra.mxu0 %v253
  %307 = vmatprep.subr.bf16.mxu0 %v258
  %308 = vmatpush1.bf16.msra.mxu0 %v257
  %309 = vmatprep.subr.bf16.mxu0 0
  %310 = vmatpush1.bf16.msra.mxu0 0
  %311 = vmatprep.subr.bf16.mxu0 0
  %312 = vmatpush1.bf16.msra.mxu0 0
  %313 = vmatprep.subr.bf16.mxu0 0
  %314 = vmatpush1.bf16.msra.mxu0 0
  %315 = vmatprep.subr.bf16.mxu0 0
  %316 = vmatpush1.bf16.msra.mxu0 0
  %317 = vmatprep.subr.bf16.mxu0 0
  %318 = vmatpush1.bf16.msra.mxu0 0
  %319 = vmatprep.subr.bf16.mxu0 0
  %320 = vmatpush1.bf16.msra.mxu0 0
  %321 = vmatprep.subr.bf16.mxu0 0
  %322 = vmatpush1.bf16.msra.mxu0 0
  %323 = vmatprep.subr.bf16.mxu0 0
  %324 = vmatpush1.bf16.msra.mxu0 0
  %325 = vmatprep.mubr.bf16.mxu0 0
  %326 = vmatmul.mubr.bf16.gmra.mrb[0].mxu0 %v117
  %v327 = vpop.f32.mrb[0].mxu0
  %v328 = vadd.f32 %v68, %v327
  %v329 = vpop.f32.mrb[0].mxu0
  %v330 = vadd.f32 %v72, %v329
  %v331 = vpop.f32.mrb[0].mxu0
  %v332 = vadd.f32 %v68, %v331
  %v333 = vpop.f32.mrb[0].mxu0
  %v334 = vadd.f32 %v72, %v333
  %335 = vmatprep.mubr.bf16.mxu0 0
  %336 = vmatmul.mubr.bf16.gmra.mrb[0].mxu0 %v118
  %v337 = vpop.f32.mrb[0].mxu0
  %v338 = vadd.f32 %v68, %v337
  %v339 = vpop.f32.mrb[0].mxu0
  %v340 = vadd.f32 %v72, %v339
  %v341 = vpop.f32.mrb[0].mxu0
  %v342 = vadd.f32 %v68, %v341
  %v343 = vpop.f32.mrb[0].mxu0
  %v344 = vadd.f32 %v72, %v343
  %345 = vmatprep.mubr.bf16.mxu0 0
  %346 = vmatmul.mubr.bf16.gmra.mrb[0].mxu0 %v119
  %v347 = vpop.f32.mrb[0].mxu0
  %v348 = vadd.f32 %v68, %v347
  %v349 = vpop.f32.mrb[0].mxu0
  %v350 = vadd.f32 %v72, %v349
  %v351 = vpop.f32.mrb[0].mxu0
  %v352 = vadd.f32 %v68, %v351
  %v353 = vpop.f32.mrb[0].mxu0
  %v354 = vadd.f32 %v72, %v353
  %355 = vmatprep.mubr.bf16.mxu0 0
  %356 = vmatmul.mubr.bf16.gmra.mrb[0].mxu0 %v120
  %v357 = vpop.f32.mrb[0].mxu0
  %v358 = vadd.f32 %v68, %v357
  %v359 = vpop.f32.mrb[0].mxu0
  %v360 = vadd.f32 %v72, %v359
  %v361 = vpop.f32.mrb[0].mxu0
  %v362 = vadd.f32 %v68, %v361
  %v363 = vpop.f32.mrb[0].mxu0
  %v364 = vadd.f32 %v72, %v363
  %365 = vmatprep.mubr.bf16.mxu0 0
  %366 = vmatmul.mubr.bf16.gmra.mrb[0].mxu0 %v121
  %v367 = vpop.f32.mrb[0].mxu0
  %v368 = vadd.f32 %v68, %v367
  %v369 = vpop.f32.mrb[0].mxu0
  %v370 = vadd.f32 %v72, %v369
  %v371 = vpop.f32.mrb[0].mxu0
  %v372 = vadd.f32 %v68, %v371
  %v373 = vpop.f32.mrb[0].mxu0
  %v374 = vadd.f32 %v72, %v373
  %375 = vmatprep.mubr.bf16.mxu0 0
  %376 = vmatmul.mubr.bf16.gmra.mrb[0].mxu0 %v122
  %v377 = vpop.f32.mrb[0].mxu0
  %v378 = vadd.f32 %v68, %v377
  %v379 = vpop.f32.mrb[0].mxu0
  %v380 = vadd.f32 %v72, %v379
  %v381 = vpop.f32.mrb[0].mxu0
  %v382 = vadd.f32 %v68, %v381
  %v383 = vpop.f32.mrb[0].mxu0
  %v384 = vadd.f32 %v72, %v383
  %385 = vmatprep.mubr.bf16.mxu0 0
  %386 = vmatmul.mubr.bf16.gmra.mrb[0].mxu0 %v123
  %v387 = vpop.f32.mrb[0].mxu0
  %v388 = vadd.f32 %v68, %v387
  %v389 = vpop.f32.mrb[0].mxu0
  %v390 = vadd.f32 %v72, %v389
  %v391 = vpop.f32.mrb[0].mxu0
  %v392 = vadd.f32 %v68, %v391
  %v393 = vpop.f32.mrb[0].mxu0
  %v394 = vadd.f32 %v72, %v393
  %395 = vmatprep.mubr.bf16.mxu0 0
  %396 = vmatmul.mubr.bf16.gmra.mrb[0].mxu0 %v124
  %v397 = vpop.f32.mrb[0].mxu0
  %v398 = vadd.f32 %v68, %v397
  %v399 = vpop.f32.mrb[0].mxu0
  %v400 = vadd.f32 %v72, %v399
  %v401 = vpop.f32.mrb[0].mxu0
  %v402 = vadd.f32 %v68, %v401
  %v403 = vpop.f32.mrb[0].mxu0
  %v404 = vadd.f32 %v72, %v403
  %405 = vdwg.mxu0
  %406 = vmatprep.subr.bf16.mxu0 %v232
  %407 = vmatpush1.bf16.msra.mxu0 %v231
  %408 = vmatprep.subr.bf16.mxu0 %v236
  %409 = vmatpush1.bf16.msra.mxu0 %v235
  %410 = vmatprep.subr.bf16.mxu0 %v240
  %411 = vmatpush1.bf16.msra.mxu0 %v239
  %412 = vmatprep.subr.bf16.mxu0 %v244
  %413 = vmatpush1.bf16.msra.mxu0 %v243
  %414 = vmatprep.subr.bf16.mxu0 %v248
  %415 = vmatpush1.bf16.msra.mxu0 %v247
  %416 = vmatprep.subr.bf16.mxu0 %v252
  %417 = vmatpush1.bf16.msra.mxu0 %v251
  %418 = vmatprep.subr.bf16.mxu0 %v256
  %419 = vmatpush1.bf16.msra.mxu0 %v255
  %420 = vmatprep.subr.bf16.mxu0 %v260
  %421 = vmatpush1.bf16.msra.mxu0 %v259
  %422 = vmatprep.subr.bf16.mxu0 0
  %423 = vmatpush1.bf16.msra.mxu0 0
  %424 = vmatprep.subr.bf16.mxu0 0
  %425 = vmatpush1.bf16.msra.mxu0 0
  %426 = vmatprep.subr.bf16.mxu0 0
  %427 = vmatpush1.bf16.msra.mxu0 0
  %428 = vmatprep.subr.bf16.mxu0 0
  %429 = vmatpush1.bf16.msra.mxu0 0
  %430 = vmatprep.subr.bf16.mxu0 0
  %431 = vmatpush1.bf16.msra.mxu0 0
  %432 = vmatprep.subr.bf16.mxu0 0
  %433 = vmatpush1.bf16.msra.mxu0 0
  %434 = vmatprep.subr.bf16.mxu0 0
  %435 = vmatpush1.bf16.msra.mxu0 0
  %436 = vmatprep.subr.bf16.mxu0 0
  %437 = vmatpush1.bf16.msra.mxu0 0
  %438 = vmatprep.mubr.bf16.mxu0 0
  %439 = vmatmul.mubr.bf16.gmra.mrb[0].mxu0 %v117
  %v440 = vpop.f32.mrb[0].mxu0
  %v441 = vadd.f32 %v76, %v440
  %v442 = vpop.f32.mrb[0].mxu0
  %v443 = vadd.f32 %v80, %v442
  %v444 = vpop.f32.mrb[0].mxu0
  %v445 = vadd.f32 %v76, %v444
  %v446 = vpop.f32.mrb[0].mxu0
  %v447 = vadd.f32 %v80, %v446
  %448 = vmatprep.mubr.bf16.mxu0 0
  %449 = vmatmul.mubr.bf16.gmra.mrb[0].mxu0 %v118
  %v450 = vpop.f32.mrb[0].mxu0
  %v451 = vadd.f32 %v76, %v450
  %v452 = vpop.f32.mrb[0].mxu0
  %v453 = vadd.f32 %v80, %v452
  %v454 = vpop.f32.mrb[0].mxu0
  %v455 = vadd.f32 %v76, %v454
  %v456 = vpop.f32.mrb[0].mxu0
  %v457 = vadd.f32 %v80, %v456
  %458 = vmatprep.mubr.bf16.mxu0 0
  %459 = vmatmul.mubr.bf16.gmra.mrb[0].mxu0 %v119
  %v460 = vpop.f32.mrb[0].mxu0
  %v461 = vadd.f32 %v76, %v460
  %v462 = vpop.f32.mrb[0].mxu0
  %v463 = vadd.f32 %v80, %v462
  %v464 = vpop.f32.mrb[0].mxu0
  %v465 = vadd.f32 %v76, %v464
  %v466 = vpop.f32.mrb[0].mxu0
  %v467 = vadd.f32 %v80, %v466
  %468 = vmatprep.mubr.bf16.mxu0 0
  %469 = vmatmul.mubr.bf16.gmra.mrb[0].mxu0 %v120
  %v470 = vpop.f32.mrb[0].mxu0
  %v471 = vadd.f32 %v76, %v470
  %v472 = vpop.f32.mrb[0].mxu0
  %v473 = vadd.f32 %v80, %v472
  %v474 = vpop.f32.mrb[0].mxu0
  %v475 = vadd.f32 %v76, %v474
  %v476 = vpop.f32.mrb[0].mxu0
  %v477 = vadd.f32 %v80, %v476
  %478 = vmatprep.mubr.bf16.mxu0 0
  %479 = vmatmul.mubr.bf16.gmra.mrb[0].mxu0 %v121
  %v480 = vpop.f32.mrb[0].mxu0
  %v481 = vadd.f32 %v76, %v480
  %v482 = vpop.f32.mrb[0].mxu0
  %v483 = vadd.f32 %v80, %v482
  %v484 = vpop.f32.mrb[0].mxu0
  %v485 = vadd.f32 %v76, %v484
  %v486 = vpop.f32.mrb[0].mxu0
  %v487 = vadd.f32 %v80, %v486
  %488 = vmatprep.mubr.bf16.mxu0 0
  %489 = vmatmul.mubr.bf16.gmra.mrb[0].mxu0 %v122
  %v490 = vpop.f32.mrb[0].mxu0
  %v491 = vadd.f32 %v76, %v490
  %v492 = vpop.f32.mrb[0].mxu0
  %v493 = vadd.f32 %v80, %v492
  %v494 = vpop.f32.mrb[0].mxu0
  %v495 = vadd.f32 %v76, %v494
  %v496 = vpop.f32.mrb[0].mxu0
  %v497 = vadd.f32 %v80, %v496
  %498 = vmatprep.mubr.bf16.mxu0 0
  %499 = vmatmul.mubr.bf16.gmra.mrb[0].mxu0 %v123
  %v500 = vpop.f32.mrb[0].mxu0
  %v501 = vadd.f32 %v76, %v500
  %v502 = vpop.f32.mrb[0].mxu0
  %v503 = vadd.f32 %v80, %v502
  %v504 = vpop.f32.mrb[0].mxu0
  %v505 = vadd.f32 %v76, %v504
  %v506 = vpop.f32.mrb[0].mxu0
  %v507 = vadd.f32 %v80, %v506
  %508 = vmatprep.mubr.bf16.mxu0 0
  %509 = vmatmul.mubr.bf16.gmra.mrb[0].mxu0 %v124
  %v510 = vpop.f32.mrb[0].mxu0
  %v511 = vadd.f32 %v76, %v510
  %v512 = vpop.f32.mrb[0].mxu0
  %v513 = vadd.f32 %v80, %v512
  %v514 = vpop.f32.mrb[0].mxu0
  %v515 = vadd.f32 %v76, %v514
  %v516 = vpop.f32.mrb[0].mxu0
  %v517 = vadd.f32 %v80, %v516
  %518 = vdwg.mxu0
  %v519 = vpack.c.bf16 %v332, %v328
  %v520 = vpack.c.bf16 %v334, %v330
  %v521 = vpack.c.bf16 %v445, %v441
  %v522 = vpack.c.bf16 %v447, %v443
  %v523 = vpack.c.bf16 %v342, %v338
  %v524 = vpack.c.bf16 %v344, %v340
  %v525 = vpack.c.bf16 %v455, %v451
  %v526 = vpack.c.bf16 %v457, %v453
  %v527 = vpack.c.bf16 %v352, %v348
  %v528 = vpack.c.bf16 %v354, %v350
  %v529 = vpack.c.bf16 %v465, %v461
  %v530 = vpack.c.bf16 %v467, %v463
  %v531 = vpack.c.bf16 %v362, %v358
  %v532 = vpack.c.bf16 %v364, %v360
  %v533 = vpack.c.bf16 %v475, %v471
  %v534 = vpack.c.bf16 %v477, %v473
  %v535 = vpack.c.bf16 %v372, %v368
  %v536 = vpack.c.bf16 %v374, %v370
  %v537 = vpack.c.bf16 %v485, %v481
  %v538 = vpack.c.bf16 %v487, %v483
  %v539 = vpack.c.bf16 %v382, %v378
  %v540 = vpack.c.bf16 %v384, %v380
  %v541 = vpack.c.bf16 %v495, %v491
  %v542 = vpack.c.bf16 %v497, %v493
  %v543 = vpack.c.bf16 %v392, %v388
  %v544 = vpack.c.bf16 %v394, %v390
  %v545 = vpack.c.bf16 %v505, %v501
  %v546 = vpack.c.bf16 %v507, %v503
  %v547 = vpack.c.bf16 %v402, %v398
  %v548 = vpack.c.bf16 %v404, %v400
  %v549 = vpack.c.bf16 %v515, %v511
  %v550 = vpack.c.bf16 %v517, %v513
  %v583 = vunpack.c.l.b16 %v519
  %v584 = vunpack.c.l.b16 %v520
  %v585 = vunpack.c.l.b16 %v521
  %v586 = vunpack.c.l.b16 %v522
  %v587 = vunpack.c.h.b16 %v519
  %v588 = vunpack.c.h.b16 %v520
  %v589 = vunpack.c.h.b16 %v521
  %v590 = vunpack.c.h.b16 %v522
  %v591 = vunpack.c.l.b16 %v523
  %v592 = vunpack.c.l.b16 %v524
  %v593 = vunpack.c.l.b16 %v525
  %v594 = vunpack.c.l.b16 %v526
  %v595 = vunpack.c.h.b16 %v523
  %v596 = vunpack.c.h.b16 %v524
  %v597 = vunpack.c.h.b16 %v525
  %v598 = vunpack.c.h.b16 %v526
  %v599 = vunpack.c.l.b16 %v527
  %v600 = vunpack.c.l.b16 %v528
  %v601 = vunpack.c.l.b16 %v529
  %v602 = vunpack.c.l.b16 %v530
  %v603 = vunpack.c.h.b16 %v527
  %v604 = vunpack.c.h.b16 %v528
  %v605 = vunpack.c.h.b16 %v529
  %v606 = vunpack.c.h.b16 %v530
  %v607 = vunpack.c.l.b16 %v531
  %v608 = vunpack.c.l.b16 %v532
  %v609 = vunpack.c.l.b16 %v533
  %v610 = vunpack.c.l.b16 %v534
  %v611 = vunpack.c.h.b16 %v531
  %v612 = vunpack.c.h.b16 %v532
  %v613 = vunpack.c.h.b16 %v533
  %v614 = vunpack.c.h.b16 %v534
  %v615 = vunpack.c.l.b16 %v535
  %v616 = vunpack.c.l.b16 %v536
  %v617 = vunpack.c.l.b16 %v537
  %v618 = vunpack.c.l.b16 %v538
  %v619 = vunpack.c.h.b16 %v535
  %v620 = vunpack.c.h.b16 %v536
  %v621 = vunpack.c.h.b16 %v537
  %v622 = vunpack.c.h.b16 %v538
  %v623 = vunpack.c.l.b16 %v539
  %v624 = vunpack.c.l.b16 %v540
  %v625 = vunpack.c.l.b16 %v541
  %v626 = vunpack.c.l.b16 %v542
  %v627 = vunpack.c.h.b16 %v539
  %v628 = vunpack.c.h.b16 %v540
  %v629 = vunpack.c.h.b16 %v541
  %v630 = vunpack.c.h.b16 %v542
  %v631 = vunpack.c.l.b16 %v543
  %v632 = vunpack.c.l.b16 %v544
  %v633 = vunpack.c.l.b16 %v545
  %v634 = vunpack.c.l.b16 %v546
  %v635 = vunpack.c.h.b16 %v543
  %v636 = vunpack.c.h.b16 %v544
  %v637 = vunpack.c.h.b16 %v545
  %v638 = vunpack.c.h.b16 %v546
  %v639 = vunpack.c.l.b16 %v547
  %v640 = vunpack.c.l.b16 %v548
  %v641 = vunpack.c.l.b16 %v549
  %v642 = vunpack.c.l.b16 %v550
  %v643 = vunpack.c.h.b16 %v547
  %v644 = vunpack.c.h.b16 %v548
  %v645 = vunpack.c.h.b16 %v549
  %v646 = vunpack.c.h.b16 %v550
  %v647 = vpack.c.b16 %v584, %v583
  %v648 = vpack.c.b16 %v586, %v585
  %v649 = vpack.c.b16 %v588, %v587
  %v650 = vpack.c.b16 %v590, %v589
  %v651 = vpack.c.b16 %v592, %v591
  %v652 = vpack.c.b16 %v594, %v593
  %v653 = vpack.c.b16 %v596, %v595
  %v654 = vpack.c.b16 %v598, %v597
  %v655 = vpack.c.b16 %v600, %v599
  %v656 = vpack.c.b16 %v602, %v601
  %v657 = vpack.c.b16 %v604, %v603
  %v658 = vpack.c.b16 %v606, %v605
  %v659 = vpack.c.b16 %v608, %v607
  %v660 = vpack.c.b16 %v610, %v609
  %v661 = vpack.c.b16 %v612, %v611
  %v662 = vpack.c.b16 %v614, %v613
  %v663 = vpack.c.b16 %v616, %v615
  %v664 = vpack.c.b16 %v618, %v617
  %v665 = vpack.c.b16 %v620, %v619
  %v666 = vpack.c.b16 %v622, %v621
  %v667 = vpack.c.b16 %v624, %v623
  %v668 = vpack.c.b16 %v626, %v625
  %v669 = vpack.c.b16 %v628, %v627
  %v670 = vpack.c.b16 %v630, %v629
  %v671 = vpack.c.b16 %v632, %v631
  %v672 = vpack.c.b16 %v634, %v633
  %v673 = vpack.c.b16 %v636, %v635
  %v674 = vpack.c.b16 %v638, %v637
  %v675 = vpack.c.b16 %v640, %v639
  %v676 = vpack.c.b16 %v642, %v641
  %v677 = vpack.c.b16 %v644, %v643
  %v678 = vpack.c.b16 %v646, %v645
  %711 = vst [vmem:[%s3] sm:$0xff] %v647
  %712 = vst [vmem:[%s3 + $0x8] sm:$0xff] %v648
  %713 = vst [vmem:[%s3 + $0x10] sm:$0xff] %v649
  %714 = vst [vmem:[%s3 + $0x18] sm:$0xff] %v650
  %715 = vst [vmem:[%s3 + $0x20] sm:$0xff] %v651
  %716 = vst [vmem:[%s3 + $0x28] sm:$0xff] %v652
  %717 = vst [vmem:[%s3 + $0x30] sm:$0xff] %v653
  %718 = vst [vmem:[%s3 + $0x38] sm:$0xff] %v654
  %719 = vst [vmem:[%s3 + $0x40] sm:$0xff] %v655
  %720 = vst [vmem:[%s3 + $0x48] sm:$0xff] %v656
  %721 = vst [vmem:[%s3 + $0x50] sm:$0xff] %v657
  %722 = vst [vmem:[%s3 + $0x58] sm:$0xff] %v658
  %723 = vst [vmem:[%s3 + $0x60] sm:$0xff] %v659
  %724 = vst [vmem:[%s3 + $0x68] sm:$0xff] %v660
  %725 = vst [vmem:[%s3 + $0x70] sm:$0xff] %v661
  %726 = vst [vmem:[%s3 + $0x78] sm:$0xff] %v662
  %727 = vst [vmem:[%s3 + $0x80] sm:$0xff] %v663
  %728 = vst [vmem:[%s3 + $0x88] sm:$0xff] %v664
  %729 = vst [vmem:[%s3 + $0x90] sm:$0xff] %v665
  %730 = vst [vmem:[%s3 + $0x98] sm:$0xff] %v666
  %731 = vst [vmem:[%s3 + $0xa0] sm:$0xff] %v667
  %732 = vst [vmem:[%s3 + $0xa8] sm:$0xff] %v668
  %733 = vst [vmem:[%s3 + $0xb0] sm:$0xff] %v669
  %734 = vst [vmem:[%s3 + $0xb8] sm:$0xff] %v670
  %735 = vst [vmem:[%s3 + $0xc0] sm:$0xff] %v671
  %736 = vst [vmem:[%s3 + $0xc8] sm:$0xff] %v672
  %737 = vst [vmem:[%s3 + $0xd0] sm:$0xff] %v673
  %738 = vst [vmem:[%s3 + $0xd8] sm:$0xff] %v674
  %739 = vst [vmem:[%s3 + $0xe0] sm:$0xff] %v675
  %740 = vst [vmem:[%s3 + $0xe8] sm:$0xff] %v676
  %741 = vst [vmem:[%s3 + $0xf0] sm:$0xff] %v677
  %742 = vst [vmem:[%s3 + $0xf8] sm:$0xff] %v678
  // Predicated region
  $region14: #{resnet_generator_forward.52} parent=0 // pred_check
    _
  $region15: #{resnet_generator_forward.52} parent=0 // pred_check_branch
    %744 = sbr.rel (0) target = $region17
  $region16: #{resnet_generator_forward.52} parent=0 // pred_region
    _
  $region17: #{resnet_generator_forward.52} parent=0 // pred_fallthru
    _
  // Predicated region
  $region18: #{resnet_generator_forward.52} parent=0 // pred_check
    _
  $region19: #{resnet_generator_forward.52} parent=0 // pred_check_branch
    %746 = sbr.rel (0) target = $region21
  $region20: #{resnet_generator_forward.52} parent=0 // pred_region
    _
  $region21: #{resnet_generator_forward.52} parent=0 // pred_fallthru
    _

// kernel: resnet_generator_forward.55
$region0: #{resnet_generator_forward.55}
  #allocation0 [shape = 'u32[]', space=smem, size = 0x4, offset = 0x4, fixed_abs, tag = 'smem constant byte address 0x4 - core index']
  #allocation1 [shape = 'u32[144,128]{1,0:T(1,128)}', space=vmem, size = 0x12000, scoped, tag = 'internal scratch']
  %s0 = inlined_call_operand.vmem [shape: bf16[512,512], index: 0, kind: input, shape index: {}]
  %s1 = inlined_call_operand.vmem [shape: bf16[512,128], index: 1, kind: input, shape index: {}]
  %s2 = inlined_call_operand.vmem [shape: f32[1,128], index: 2, kind: input, shape index: {}]
  %s3 = inlined_call_operand.vmem [shape: f32[512,128], index: 3, kind: output, shape index: {}]
  %s4 = sld [smem:[#allocation0]]
  $region22: #{resnet_generator_forward.55} parent=0
    _
  %s6 = ssub.s32 1, %s4
  %s7 = scalar_select 0, %s6, %s4
  // Predicated region
  $region2: #{resnet_generator_forward.55} parent=0 // pred_check
    _
  $region3: #{resnet_generator_forward.55} parent=0 // pred_check_branch
    %9 = sbr.rel (0) target = $region5
  $region4: #{resnet_generator_forward.55} parent=0 // pred_region
    _
  $region5: #{resnet_generator_forward.55} parent=0 // pred_fallthru
    _
  // Predicated region
  $region6: #{resnet_generator_forward.55} parent=0 // pred_check
    _
  $region7: #{resnet_generator_forward.55} parent=0 // pred_check_branch
    %11 = sbr.rel (0) target = $region9
  $region8: #{resnet_generator_forward.55} parent=0 // pred_region
    _
  $region9: #{resnet_generator_forward.55} parent=0 // pred_fallthru
    _
  // Predicated region
  $region10: #{resnet_generator_forward.55} parent=0 // pred_check
    _
  $region11: #{resnet_generator_forward.55} parent=0 // pred_check_branch
    %13 = sbr.rel (0) target = $region13
  $region12: #{resnet_generator_forward.55} parent=0 // pred_region
    _
  $region13: #{resnet_generator_forward.55} parent=0 // pred_fallthru
    _
  %v15 = vld [vmem:[%s0] sm:$0xff]
  %v16 = vld [vmem:[%s0 + $0x8] sm:$0xff]
  %v17 = vld [vmem:[%s0 + $0x10] sm:$0xff]
  %v18 = vld [vmem:[%s0 + $0x18] sm:$0xff]
  %v19 = vld [vmem:[%s0 + $0x20] sm:$0xff]
  %v20 = vld [vmem:[%s0 + $0x28] sm:$0xff]
  %v21 = vld [vmem:[%s0 + $0x30] sm:$0xff]
  %v22 = vld [vmem:[%s0 + $0x38] sm:$0xff]
  %v23 = vld [vmem:[%s0 + $0x40] sm:$0xff]
  %v24 = vld [vmem:[%s0 + $0x48] sm:$0xff]
  %v25 = vld [vmem:[%s0 + $0x50] sm:$0xff]
  %v26 = vld [vmem:[%s0 + $0x58] sm:$0xff]
  %v27 = vld [vmem:[%s0 + $0x60] sm:$0xff]
  %v28 = vld [vmem:[%s0 + $0x68] sm:$0xff]
  %v29 = vld [vmem:[%s0 + $0x70] sm:$0xff]
  %v30 = vld [vmem:[%s0 + $0x78] sm:$0xff]
  %v31 = vld [vmem:[%s0 + $0x80] sm:$0xff]
  %v32 = vld [vmem:[%s0 + $0x88] sm:$0xff]
  %v33 = vld [vmem:[%s0 + $0x90] sm:$0xff]
  %v34 = vld [vmem:[%s0 + $0x98] sm:$0xff]
  %v35 = vld [vmem:[%s0 + $0xa0] sm:$0xff]
  %v36 = vld [vmem:[%s0 + $0xa8] sm:$0xff]
  %v37 = vld [vmem:[%s0 + $0xb0] sm:$0xff]
  %v38 = vld [vmem:[%s0 + $0xb8] sm:$0xff]
  %v39 = vld [vmem:[%s0 + $0xc0] sm:$0xff]
  %v40 = vld [vmem:[%s0 + $0xc8] sm:$0xff]
  %v41 = vld [vmem:[%s0 + $0xd0] sm:$0xff]
  %v42 = vld [vmem:[%s0 + $0xd8] sm:$0xff]
  %v43 = vld [vmem:[%s0 + $0xe0] sm:$0xff]
  %v44 = vld [vmem:[%s0 + $0xe8] sm:$0xff]
  %v45 = vld [vmem:[%s0 + $0xf0] sm:$0xff]
  %v46 = vld [vmem:[%s0 + $0xf8] sm:$0xff]
  %v47 = vld [vmem:[%s0 + $0x100] sm:$0xff]
  %v48 = vld [vmem:[%s0 + $0x108] sm:$0xff]
  %v49 = vld [vmem:[%s0 + $0x110] sm:$0xff]
  %v50 = vld [vmem:[%s0 + $0x118] sm:$0xff]
  %v51 = vld [vmem:[%s0 + $0x120] sm:$0xff]
  %v52 = vld [vmem:[%s0 + $0x128] sm:$0xff]
  %v53 = vld [vmem:[%s0 + $0x130] sm:$0xff]
  %v54 = vld [vmem:[%s0 + $0x138] sm:$0xff]
  %v55 = vld [vmem:[%s0 + $0x140] sm:$0xff]
  %v56 = vld [vmem:[%s0 + $0x148] sm:$0xff]
  %v57 = vld [vmem:[%s0 + $0x150] sm:$0xff]
  %v58 = vld [vmem:[%s0 + $0x158] sm:$0xff]
  %v59 = vld [vmem:[%s0 + $0x160] sm:$0xff]
  %v60 = vld [vmem:[%s0 + $0x168] sm:$0xff]
  %v61 = vld [vmem:[%s0 + $0x170] sm:$0xff]
  %v62 = vld [vmem:[%s0 + $0x178] sm:$0xff]
  %v63 = vld [vmem:[%s0 + $0x180] sm:$0xff]
  %v64 = vld [vmem:[%s0 + $0x188] sm:$0xff]
  %v65 = vld [vmem:[%s0 + $0x190] sm:$0xff]
  %v66 = vld [vmem:[%s0 + $0x198] sm:$0xff]
  %v67 = vld [vmem:[%s0 + $0x1a0] sm:$0xff]
  %v68 = vld [vmem:[%s0 + $0x1a8] sm:$0xff]
  %v69 = vld [vmem:[%s0 + $0x1b0] sm:$0xff]
  %v70 = vld [vmem:[%s0 + $0x1b8] sm:$0xff]
  %v71 = vld [vmem:[%s0 + $0x1c0] sm:$0xff]
  %v72 = vld [vmem:[%s0 + $0x1c8] sm:$0xff]
  %v73 = vld [vmem:[%s0 + $0x1d0] sm:$0xff]
  %v74 = vld [vmem:[%s0 + $0x1d8] sm:$0xff]
  %v75 = vld [vmem:[%s0 + $0x1e0] sm:$0xff]
  %v76 = vld [vmem:[%s0 + $0x1e8] sm:$0xff]
  %v77 = vld [vmem:[%s0 + $0x1f0] sm:$0xff]
  %v78 = vld [vmem:[%s0 + $0x1f8] sm:$0xff]
  %v79 = vld [vmem:[%s0 + $0x200] sm:$0xff]
  %v80 = vld [vmem:[%s0 + $0x208] sm:$0xff]
  %v81 = vld [vmem:[%s0 + $0x210] sm:$0xff]
  %v82 = vld [vmem:[%s0 + $0x218] sm:$0xff]
  %v83 = vld [vmem:[%s0 + $0x220] sm:$0xff]
  %v84 = vld [vmem:[%s0 + $0x228] sm:$0xff]
  %v85 = vld [vmem:[%s0 + $0x230] sm:$0xff]
  %v86 = vld [vmem:[%s0 + $0x238] sm:$0xff]
  %v87 = vld [vmem:[%s0 + $0x240] sm:$0xff]
  %v88 = vld [vmem:[%s0 + $0x248] sm:$0xff]
  %v89 = vld [vmem:[%s0 + $0x250] sm:$0xff]
  %v90 = vld [vmem:[%s0 + $0x258] sm:$0xff]
  %v91 = vld [vmem:[%s0 + $0x260] sm:$0xff]
  %v92 = vld [vmem:[%s0 + $0x268] sm:$0xff]
  %v93 = vld [vmem:[%s0 + $0x270] sm:$0xff]
  %v94 = vld [vmem:[%s0 + $0x278] sm:$0xff]
  %v95 = vld [vmem:[%s0 + $0x280] sm:$0xff]
  %v96 = vld [vmem:[%s0 + $0x288] sm:$0xff]
  %v97 = vld [vmem:[%s0 + $0x290] sm:$0xff]
  %v98 = vld [vmem:[%s0 + $0x298] sm:$0xff]
  %v99 = vld [vmem:[%s0 + $0x2a0] sm:$0xff]
  %v100 = vld [vmem:[%s0 + $0x2a8] sm:$0xff]
  %v101 = vld [vmem:[%s0 + $0x2b0] sm:$0xff]
  %v102 = vld [vmem:[%s0 + $0x2b8] sm:$0xff]
  %v103 = vld [vmem:[%s0 + $0x2c0] sm:$0xff]
  %v104 = vld [vmem:[%s0 + $0x2c8] sm:$0xff]
  %v105 = vld [vmem:[%s0 + $0x2d0] sm:$0xff]
  %v106 = vld [vmem:[%s0 + $0x2d8] sm:$0xff]
  %v107 = vld [vmem:[%s0 + $0x2e0] sm:$0xff]
  %v108 = vld [vmem:[%s0 + $0x2e8] sm:$0xff]
  %v109 = vld [vmem:[%s0 + $0x2f0] sm:$0xff]
  %v110 = vld [vmem:[%s0 + $0x2f8] sm:$0xff]
  %v111 = vld [vmem:[%s0 + $0x300] sm:$0xff]
  %v112 = vld [vmem:[%s0 + $0x308] sm:$0xff]
  %v113 = vld [vmem:[%s0 + $0x310] sm:$0xff]
  %v114 = vld [vmem:[%s0 + $0x318] sm:$0xff]
  %v115 = vld [vmem:[%s0 + $0x320] sm:$0xff]
  %v116 = vld [vmem:[%s0 + $0x328] sm:$0xff]
  %v117 = vld [vmem:[%s0 + $0x330] sm:$0xff]
  %v118 = vld [vmem:[%s0 + $0x338] sm:$0xff]
  %v119 = vld [vmem:[%s0 + $0x340] sm:$0xff]
  %v120 = vld [vmem:[%s0 + $0x348] sm:$0xff]
  %v121 = vld [vmem:[%s0 + $0x350] sm:$0xff]
  %v122 = vld [vmem:[%s0 + $0x358] sm:$0xff]
  %v123 = vld [vmem:[%s0 + $0x360] sm:$0xff]
  %v124 = vld [vmem:[%s0 + $0x368] sm:$0xff]
  %v125 = vld [vmem:[%s0 + $0x370] sm:$0xff]
  %v126 = vld [vmem:[%s0 + $0x378] sm:$0xff]
  %v127 = vld [vmem:[%s0 + $0x380] sm:$0xff]
  %v128 = vld [vmem:[%s0 + $0x388] sm:$0xff]
  %v129 = vld [vmem:[%s0 + $0x390] sm:$0xff]
  %v130 = vld [vmem:[%s0 + $0x398] sm:$0xff]
  %v131 = vld [vmem:[%s0 + $0x3a0] sm:$0xff]
  %v132 = vld [vmem:[%s0 + $0x3a8] sm:$0xff]
  %v133 = vld [vmem:[%s0 + $0x3b0] sm:$0xff]
  %v134 = vld [vmem:[%s0 + $0x3b8] sm:$0xff]
  %v135 = vld [vmem:[%s0 + $0x3c0] sm:$0xff]
  %v136 = vld [vmem:[%s0 + $0x3c8] sm:$0xff]
  %v137 = vld [vmem:[%s0 + $0x3d0] sm:$0xff]
  %v138 = vld [vmem:[%s0 + $0x3d8] sm:$0xff]
  %v139 = vld [vmem:[%s0 + $0x3e0] sm:$0xff]
  %v140 = vld [vmem:[%s0 + $0x3e8] sm:$0xff]
  %v141 = vld [vmem:[%s0 + $0x3f0] sm:$0xff]
  %v142 = vld [vmem:[%s0 + $0x3f8] sm:$0xff]
  %v143 = vld [vmem:[%s1] sm:$0xf]
  %v144 = vld [vmem:[%s1 + $0x4] sm:$0xf]
  %v145 = vld [vmem:[%s1 + $0x8] sm:$0xf]
  %v146 = vld [vmem:[%s1 + $0xc] sm:$0xf]
  %v147 = vld [vmem:[%s1 + $0x10] sm:$0xf]
  %v148 = vld [vmem:[%s1 + $0x14] sm:$0xf]
  %v149 = vld [vmem:[%s1 + $0x18] sm:$0xf]
  %v150 = vld [vmem:[%s1 + $0x1c] sm:$0xf]
  %v151 = vld [vmem:[%s1 + $0x20] sm:$0xf]
  %v152 = vld [vmem:[%s1 + $0x24] sm:$0xf]
  %v153 = vld [vmem:[%s1 + $0x28] sm:$0xf]
  %v154 = vld [vmem:[%s1 + $0x2c] sm:$0xf]
  %v155 = vld [vmem:[%s1 + $0x30] sm:$0xf]
  %v156 = vld [vmem:[%s1 + $0x34] sm:$0xf]
  %v157 = vld [vmem:[%s1 + $0x38] sm:$0xf]
  %v158 = vld [vmem:[%s1 + $0x3c] sm:$0xf]
  %v159 = vld [vmem:[%s1 + $0x40] sm:$0xf]
  %v160 = vld [vmem:[%s1 + $0x44] sm:$0xf]
  %v161 = vld [vmem:[%s1 + $0x48] sm:$0xf]
  %v162 = vld [vmem:[%s1 + $0x4c] sm:$0xf]
  %v163 = vld [vmem:[%s1 + $0x50] sm:$0xf]
  %v164 = vld [vmem:[%s1 + $0x54] sm:$0xf]
  %v165 = vld [vmem:[%s1 + $0x58] sm:$0xf]
  %v166 = vld [vmem:[%s1 + $0x5c] sm:$0xf]
  %v167 = vld [vmem:[%s1 + $0x60] sm:$0xf]
  %v168 = vld [vmem:[%s1 + $0x64] sm:$0xf]
  %v169 = vld [vmem:[%s1 + $0x68] sm:$0xf]
  %v170 = vld [vmem:[%s1 + $0x6c] sm:$0xf]
  %v171 = vld [vmem:[%s1 + $0x70] sm:$0xf]
  %v172 = vld [vmem:[%s1 + $0x74] sm:$0xf]
  %v173 = vld [vmem:[%s1 + $0x78] sm:$0xf]
  %v174 = vld [vmem:[%s1 + $0x7c] sm:$0xf]
  %v175 = vld [vmem:[%s1 + $0x80] sm:$0xf]
  %v176 = vld [vmem:[%s1 + $0x84] sm:$0xf]
  %v177 = vld [vmem:[%s1 + $0x88] sm:$0xf]
  %v178 = vld [vmem:[%s1 + $0x8c] sm:$0xf]
  %v179 = vld [vmem:[%s1 + $0x90] sm:$0xf]
  %v180 = vld [vmem:[%s1 + $0x94] sm:$0xf]
  %v181 = vld [vmem:[%s1 + $0x98] sm:$0xf]
  %v182 = vld [vmem:[%s1 + $0x9c] sm:$0xf]
  %v183 = vld [vmem:[%s1 + $0xa0] sm:$0xf]
  %v184 = vld [vmem:[%s1 + $0xa4] sm:$0xf]
  %v185 = vld [vmem:[%s1 + $0xa8] sm:$0xf]
  %v186 = vld [vmem:[%s1 + $0xac] sm:$0xf]
  %v187 = vld [vmem:[%s1 + $0xb0] sm:$0xf]
  %v188 = vld [vmem:[%s1 + $0xb4] sm:$0xf]
  %v189 = vld [vmem:[%s1 + $0xb8] sm:$0xf]
  %v190 = vld [vmem:[%s1 + $0xbc] sm:$0xf]
  %v191 = vld [vmem:[%s1 + $0xc0] sm:$0xf]
  %v192 = vld [vmem:[%s1 + $0xc4] sm:$0xf]
  %v193 = vld [vmem:[%s1 + $0xc8] sm:$0xf]
  %v194 = vld [vmem:[%s1 + $0xcc] sm:$0xf]
  %v195 = vld [vmem:[%s1 + $0xd0] sm:$0xf]
  %v196 = vld [vmem:[%s1 + $0xd4] sm:$0xf]
  %v197 = vld [vmem:[%s1 + $0xd8] sm:$0xf]
  %v198 = vld [vmem:[%s1 + $0xdc] sm:$0xf]
  %v199 = vld [vmem:[%s1 + $0xe0] sm:$0xf]
  %v200 = vld [vmem:[%s1 + $0xe4] sm:$0xf]
  %v201 = vld [vmem:[%s1 + $0xe8] sm:$0xf]
  %v202 = vld [vmem:[%s1 + $0xec] sm:$0xf]
  %v203 = vld [vmem:[%s1 + $0xf0] sm:$0xf]
  %v204 = vld [vmem:[%s1 + $0xf4] sm:$0xf]
  %v205 = vld [vmem:[%s1 + $0xf8] sm:$0xf]
  %v206 = vld [vmem:[%s1 + $0xfc] sm:$0xf]
  %v207 = vld [vmem:[%s2] sm:$0x1]
  %v209 = vlaneseq
  %v210 = vshrl.u32 %v209, 7
  %v211 = vsub.s32 0, %v210
  %v212 = vrot.slane %v207, %v211
  %v342 = vunpack.c.l.b16 %v15
  %v343 = vunpack.c.h.b16 %v15
  %v344 = vunpack.c.l.b16 %v16
  %v345 = vunpack.c.h.b16 %v16
  %v346 = vunpack.c.l.b16 %v17
  %v347 = vunpack.c.h.b16 %v17
  %v348 = vunpack.c.l.b16 %v18
  %v349 = vunpack.c.h.b16 %v18
  %v350 = vunpack.c.l.b16 %v19
  %v351 = vunpack.c.h.b16 %v19
  %v352 = vunpack.c.l.b16 %v20
  %v353 = vunpack.c.h.b16 %v20
  %v354 = vunpack.c.l.b16 %v21
  %v355 = vunpack.c.h.b16 %v21
  %v356 = vunpack.c.l.b16 %v22
  %v357 = vunpack.c.h.b16 %v22
  %v358 = vunpack.c.l.b16 %v23
  %v359 = vunpack.c.h.b16 %v23
  %v360 = vunpack.c.l.b16 %v24
  %v361 = vunpack.c.h.b16 %v24
  %v362 = vunpack.c.l.b16 %v25
  %v363 = vunpack.c.h.b16 %v25
  %v364 = vunpack.c.l.b16 %v26
  %v365 = vunpack.c.h.b16 %v26
  %v366 = vunpack.c.l.b16 %v27
  %v367 = vunpack.c.h.b16 %v27
  %v368 = vunpack.c.l.b16 %v28
  %v369 = vunpack.c.h.b16 %v28
  %v370 = vunpack.c.l.b16 %v29
  %v371 = vunpack.c.h.b16 %v29
  %v372 = vunpack.c.l.b16 %v30
  %v373 = vunpack.c.h.b16 %v30
  %v374 = vunpack.c.l.b16 %v31
  %v375 = vunpack.c.h.b16 %v31
  %v376 = vunpack.c.l.b16 %v32
  %v377 = vunpack.c.h.b16 %v32
  %v378 = vunpack.c.l.b16 %v33
  %v379 = vunpack.c.h.b16 %v33
  %v380 = vunpack.c.l.b16 %v34
  %v381 = vunpack.c.h.b16 %v34
  %v382 = vunpack.c.l.b16 %v35
  %v383 = vunpack.c.h.b16 %v35
  %v384 = vunpack.c.l.b16 %v36
  %v385 = vunpack.c.h.b16 %v36
  %v386 = vunpack.c.l.b16 %v37
  %v387 = vunpack.c.h.b16 %v37
  %v388 = vunpack.c.l.b16 %v38
  %v389 = vunpack.c.h.b16 %v38
  %v390 = vunpack.c.l.b16 %v39
  %v391 = vunpack.c.h.b16 %v39
  %v392 = vunpack.c.l.b16 %v40
  %v393 = vunpack.c.h.b16 %v40
  %v394 = vunpack.c.l.b16 %v41
  %v395 = vunpack.c.h.b16 %v41
  %v396 = vunpack.c.l.b16 %v42
  %v397 = vunpack.c.h.b16 %v42
  %v398 = vunpack.c.l.b16 %v43
  %v399 = vunpack.c.h.b16 %v43
  %v400 = vunpack.c.l.b16 %v44
  %v401 = vunpack.c.h.b16 %v44
  %v402 = vunpack.c.l.b16 %v45
  %v403 = vunpack.c.h.b16 %v45
  %v404 = vunpack.c.l.b16 %v46
  %v405 = vunpack.c.h.b16 %v46
  %v406 = vunpack.c.l.b16 %v47
  %v407 = vunpack.c.h.b16 %v47
  %v408 = vunpack.c.l.b16 %v48
  %v409 = vunpack.c.h.b16 %v48
  %v410 = vunpack.c.l.b16 %v49
  %v411 = vunpack.c.h.b16 %v49
  %v412 = vunpack.c.l.b16 %v50
  %v413 = vunpack.c.h.b16 %v50
  %v414 = vunpack.c.l.b16 %v51
  %v415 = vunpack.c.h.b16 %v51
  %v416 = vunpack.c.l.b16 %v52
  %v417 = vunpack.c.h.b16 %v52
  %v418 = vunpack.c.l.b16 %v53
  %v419 = vunpack.c.h.b16 %v53
  %v420 = vunpack.c.l.b16 %v54
  %v421 = vunpack.c.h.b16 %v54
  %v422 = vunpack.c.l.b16 %v55
  %v423 = vunpack.c.h.b16 %v55
  %v424 = vunpack.c.l.b16 %v56
  %v425 = vunpack.c.h.b16 %v56
  %v426 = vunpack.c.l.b16 %v57
  %v427 = vunpack.c.h.b16 %v57
  %v428 = vunpack.c.l.b16 %v58
  %v429 = vunpack.c.h.b16 %v58
  %v430 = vunpack.c.l.b16 %v59
  %v431 = vunpack.c.h.b16 %v59
  %v432 = vunpack.c.l.b16 %v60
  %v433 = vunpack.c.h.b16 %v60
  %v434 = vunpack.c.l.b16 %v61
  %v435 = vunpack.c.h.b16 %v61
  %v436 = vunpack.c.l.b16 %v62
  %v437 = vunpack.c.h.b16 %v62
  %v438 = vunpack.c.l.b16 %v63
  %v439 = vunpack.c.h.b16 %v63
  %v440 = vunpack.c.l.b16 %v64
  %v441 = vunpack.c.h.b16 %v64
  %v442 = vunpack.c.l.b16 %v65
  %v443 = vunpack.c.h.b16 %v65
  %v444 = vunpack.c.l.b16 %v66
  %v445 = vunpack.c.h.b16 %v66
  %v446 = vunpack.c.l.b16 %v67
  %v447 = vunpack.c.h.b16 %v67
  %v448 = vunpack.c.l.b16 %v68
  %v449 = vunpack.c.h.b16 %v68
  %v450 = vunpack.c.l.b16 %v69
  %v451 = vunpack.c.h.b16 %v69
  %v452 = vunpack.c.l.b16 %v70
  %v453 = vunpack.c.h.b16 %v70
  %v454 = vunpack.c.l.b16 %v71
  %v455 = vunpack.c.h.b16 %v71
  %v456 = vunpack.c.l.b16 %v72
  %v457 = vunpack.c.h.b16 %v72
  %v458 = vunpack.c.l.b16 %v73
  %v459 = vunpack.c.h.b16 %v73
  %v460 = vunpack.c.l.b16 %v74
  %v461 = vunpack.c.h.b16 %v74
  %v462 = vunpack.c.l.b16 %v75
  %v463 = vunpack.c.h.b16 %v75
  %v464 = vunpack.c.l.b16 %v76
  %v465 = vunpack.c.h.b16 %v76
  %v466 = vunpack.c.l.b16 %v77
  %v467 = vunpack.c.h.b16 %v77
  %v468 = vunpack.c.l.b16 %v78
  %v469 = vunpack.c.h.b16 %v78
  %v470 = vunpack.c.l.b16 %v79
  %v471 = vunpack.c.h.b16 %v79
  %v472 = vunpack.c.l.b16 %v80
  %v473 = vunpack.c.h.b16 %v80
  %v474 = vunpack.c.l.b16 %v81
  %v475 = vunpack.c.h.b16 %v81
  %v476 = vunpack.c.l.b16 %v82
  %v477 = vunpack.c.h.b16 %v82
  %v478 = vunpack.c.l.b16 %v83
  %v479 = vunpack.c.h.b16 %v83
  %v480 = vunpack.c.l.b16 %v84
  %v481 = vunpack.c.h.b16 %v84
  %v482 = vunpack.c.l.b16 %v85
  %v483 = vunpack.c.h.b16 %v85
  %v484 = vunpack.c.l.b16 %v86
  %v485 = vunpack.c.h.b16 %v86
  %v486 = vunpack.c.l.b16 %v87
  %v487 = vunpack.c.h.b16 %v87
  %v488 = vunpack.c.l.b16 %v88
  %v489 = vunpack.c.h.b16 %v88
  %v490 = vunpack.c.l.b16 %v89
  %v491 = vunpack.c.h.b16 %v89
  %v492 = vunpack.c.l.b16 %v90
  %v493 = vunpack.c.h.b16 %v90
  %v494 = vunpack.c.l.b16 %v91
  %v495 = vunpack.c.h.b16 %v91
  %v496 = vunpack.c.l.b16 %v92
  %v497 = vunpack.c.h.b16 %v92
  %v498 = vunpack.c.l.b16 %v93
  %v499 = vunpack.c.h.b16 %v93
  %v500 = vunpack.c.l.b16 %v94
  %v501 = vunpack.c.h.b16 %v94
  %v502 = vunpack.c.l.b16 %v95
  %v503 = vunpack.c.h.b16 %v95
  %v504 = vunpack.c.l.b16 %v96
  %v505 = vunpack.c.h.b16 %v96
  %v506 = vunpack.c.l.b16 %v97
  %v507 = vunpack.c.h.b16 %v97
  %v508 = vunpack.c.l.b16 %v98
  %v509 = vunpack.c.h.b16 %v98
  %v510 = vunpack.c.l.b16 %v99
  %v511 = vunpack.c.h.b16 %v99
  %v512 = vunpack.c.l.b16 %v100
  %v513 = vunpack.c.h.b16 %v100
  %v514 = vunpack.c.l.b16 %v101
  %v515 = vunpack.c.h.b16 %v101
  %v516 = vunpack.c.l.b16 %v102
  %v517 = vunpack.c.h.b16 %v102
  %v518 = vunpack.c.l.b16 %v103
  %v519 = vunpack.c.h.b16 %v103
  %v520 = vunpack.c.l.b16 %v104
  %v521 = vunpack.c.h.b16 %v104
  %v522 = vunpack.c.l.b16 %v105
  %v523 = vunpack.c.h.b16 %v105
  %v524 = vunpack.c.l.b16 %v106
  %v525 = vunpack.c.h.b16 %v106
  %v526 = vunpack.c.l.b16 %v107
  %v527 = vunpack.c.h.b16 %v107
  %v528 = vunpack.c.l.b16 %v108
  %v529 = vunpack.c.h.b16 %v108
  %v530 = vunpack.c.l.b16 %v109
  %v531 = vunpack.c.h.b16 %v109
  %v532 = vunpack.c.l.b16 %v110
  %v533 = vunpack.c.h.b16 %v110
  %v534 = vunpack.c.l.b16 %v111
  %v535 = vunpack.c.h.b16 %v111
  %v536 = vunpack.c.l.b16 %v112
  %v537 = vunpack.c.h.b16 %v112
  %v538 = vunpack.c.l.b16 %v113
  %v539 = vunpack.c.h.b16 %v113
  %v540 = vunpack.c.l.b16 %v114
  %v541 = vunpack.c.h.b16 %v114
  %v542 = vunpack.c.l.b16 %v115
  %v543 = vunpack.c.h.b16 %v115
  %v544 = vunpack.c.l.b16 %v116
  %v545 = vunpack.c.h.b16 %v116
  %v546 = vunpack.c.l.b16 %v117
  %v547 = vunpack.c.h.b16 %v117
  %v548 = vunpack.c.l.b16 %v118
  %v549 = vunpack.c.h.b16 %v118
  %v550 = vunpack.c.l.b16 %v119
  %v551 = vunpack.c.h.b16 %v119
  %v552 = vunpack.c.l.b16 %v120
  %v553 = vunpack.c.h.b16 %v120
  %v554 = vunpack.c.l.b16 %v121
  %v555 = vunpack.c.h.b16 %v121
  %v556 = vunpack.c.l.b16 %v122
  %v557 = vunpack.c.h.b16 %v122
  %v558 = vunpack.c.l.b16 %v123
  %v559 = vunpack.c.h.b16 %v123
  %v560 = vunpack.c.l.b16 %v124
  %v561 = vunpack.c.h.b16 %v124
  %v562 = vunpack.c.l.b16 %v125
  %v563 = vunpack.c.h.b16 %v125
  %v564 = vunpack.c.l.b16 %v126
  %v565 = vunpack.c.h.b16 %v126
  %v566 = vunpack.c.l.b16 %v127
  %v567 = vunpack.c.h.b16 %v127
  %v568 = vunpack.c.l.b16 %v128
  %v569 = vunpack.c.h.b16 %v128
  %v570 = vunpack.c.l.b16 %v129
  %v571 = vunpack.c.h.b16 %v129
  %v572 = vunpack.c.l.b16 %v130
  %v573 = vunpack.c.h.b16 %v130
  %v574 = vunpack.c.l.b16 %v131
  %v575 = vunpack.c.h.b16 %v131
  %v576 = vunpack.c.l.b16 %v132
  %v577 = vunpack.c.h.b16 %v132
  %v578 = vunpack.c.l.b16 %v133
  %v579 = vunpack.c.h.b16 %v133
  %v580 = vunpack.c.l.b16 %v134
  %v581 = vunpack.c.h.b16 %v134
  %v582 = vunpack.c.l.b16 %v135
  %v583 = vunpack.c.h.b16 %v135
  %v584 = vunpack.c.l.b16 %v136
  %v585 = vunpack.c.h.b16 %v136
  %v586 = vunpack.c.l.b16 %v137
  %v587 = vunpack.c.h.b16 %v137
  %v588 = vunpack.c.l.b16 %v138
  %v589 = vunpack.c.h.b16 %v138
  %v590 = vunpack.c.l.b16 %v139
  %v591 = vunpack.c.h.b16 %v139
  %v592 = vunpack.c.l.b16 %v140
  %v593 = vunpack.c.h.b16 %v140
  %v594 = vunpack.c.l.b16 %v141
  %v595 = vunpack.c.h.b16 %v141
  %v596 = vunpack.c.l.b16 %v142
  %v597 = vunpack.c.h.b16 %v142
  %v598 = vpack.c.b16 %v346, %v342
  %v599 = vpack.c.b16 %v347, %v343
  %v600 = vpack.c.b16 %v348, %v344
  %v601 = vpack.c.b16 %v349, %v345
  %v602 = vpack.c.b16 %v354, %v350
  %v603 = vpack.c.b16 %v355, %v351
  %v604 = vpack.c.b16 %v356, %v352
  %v605 = vpack.c.b16 %v357, %v353
  %v606 = vpack.c.b16 %v362, %v358
  %v607 = vpack.c.b16 %v363, %v359
  %v608 = vpack.c.b16 %v364, %v360
  %v609 = vpack.c.b16 %v365, %v361
  %v610 = vpack.c.b16 %v370, %v366
  %v611 = vpack.c.b16 %v371, %v367
  %v612 = vpack.c.b16 %v372, %v368
  %v613 = vpack.c.b16 %v373, %v369
  %v614 = vpack.c.b16 %v378, %v374
  %v615 = vpack.c.b16 %v379, %v375
  %v616 = vpack.c.b16 %v380, %v376
  %v617 = vpack.c.b16 %v381, %v377
  %v618 = vpack.c.b16 %v386, %v382
  %v619 = vpack.c.b16 %v387, %v383
  %v620 = vpack.c.b16 %v388, %v384
  %v621 = vpack.c.b16 %v389, %v385
  %v622 = vpack.c.b16 %v394, %v390
  %v623 = vpack.c.b16 %v395, %v391
  %v624 = vpack.c.b16 %v396, %v392
  %v625 = vpack.c.b16 %v397, %v393
  %v626 = vpack.c.b16 %v402, %v398
  %v627 = vpack.c.b16 %v403, %v399
  %v628 = vpack.c.b16 %v404, %v400
  %v629 = vpack.c.b16 %v405, %v401
  %v630 = vpack.c.b16 %v410, %v406
  %v631 = vpack.c.b16 %v411, %v407
  %v632 = vpack.c.b16 %v412, %v408
  %v633 = vpack.c.b16 %v413, %v409
  %v634 = vpack.c.b16 %v418, %v414
  %v635 = vpack.c.b16 %v419, %v415
  %v636 = vpack.c.b16 %v420, %v416
  %v637 = vpack.c.b16 %v421, %v417
  %v638 = vpack.c.b16 %v426, %v422
  %v639 = vpack.c.b16 %v427, %v423
  %v640 = vpack.c.b16 %v428, %v424
  %v641 = vpack.c.b16 %v429, %v425
  %v642 = vpack.c.b16 %v434, %v430
  %v643 = vpack.c.b16 %v435, %v431
  %v644 = vpack.c.b16 %v436, %v432
  %v645 = vpack.c.b16 %v437, %v433
  %v646 = vpack.c.b16 %v442, %v438
  %v647 = vpack.c.b16 %v443, %v439
  %v648 = vpack.c.b16 %v444, %v440
  %v649 = vpack.c.b16 %v445, %v441
  %v650 = vpack.c.b16 %v450, %v446
  %v651 = vpack.c.b16 %v451, %v447
  %v652 = vpack.c.b16 %v452, %v448
  %v653 = vpack.c.b16 %v453, %v449
  %v654 = vpack.c.b16 %v458, %v454
  %v655 = vpack.c.b16 %v459, %v455
  %v656 = vpack.c.b16 %v460, %v456
  %v657 = vpack.c.b16 %v461, %v457
  %v658 = vpack.c.b16 %v466, %v462
  %v659 = vpack.c.b16 %v467, %v463
  %v660 = vpack.c.b16 %v468, %v464
  %v661 = vpack.c.b16 %v469, %v465
  %v662 = vpack.c.b16 %v474, %v470
  %v663 = vpack.c.b16 %v475, %v471
  %v664 = vpack.c.b16 %v476, %v472
  %v665 = vpack.c.b16 %v477, %v473
  %v666 = vpack.c.b16 %v482, %v478
  %v667 = vpack.c.b16 %v483, %v479
  %v668 = vpack.c.b16 %v484, %v480
  %v669 = vpack.c.b16 %v485, %v481
  %v670 = vpack.c.b16 %v490, %v486
  %v671 = vpack.c.b16 %v491, %v487
  %v672 = vpack.c.b16 %v492, %v488
  %v673 = vpack.c.b16 %v493, %v489
  %v674 = vpack.c.b16 %v498, %v494
  %v675 = vpack.c.b16 %v499, %v495
  %v676 = vpack.c.b16 %v500, %v496
  %v677 = vpack.c.b16 %v501, %v497
  %v678 = vpack.c.b16 %v506, %v502
  %v679 = vpack.c.b16 %v507, %v503
  %v680 = vpack.c.b16 %v508, %v504
  %v681 = vpack.c.b16 %v509, %v505
  %v682 = vpack.c.b16 %v514, %v510
  %v683 = vpack.c.b16 %v515, %v511
  %v684 = vpack.c.b16 %v516, %v512
  %v685 = vpack.c.b16 %v517, %v513
  %v686 = vpack.c.b16 %v522, %v518
  %v687 = vpack.c.b16 %v523, %v519
  %v688 = vpack.c.b16 %v524, %v520
  %v689 = vpack.c.b16 %v525, %v521
  %v690 = vpack.c.b16 %v530, %v526
  %v691 = vpack.c.b16 %v531, %v527
  %v692 = vpack.c.b16 %v532, %v528
  %v693 = vpack.c.b16 %v533, %v529
  %v694 = vpack.c.b16 %v538, %v534
  %v695 = vpack.c.b16 %v539, %v535
  %v696 = vpack.c.b16 %v540, %v536
  %v697 = vpack.c.b16 %v541, %v537
  %v698 = vpack.c.b16 %v546, %v542
  %v699 = vpack.c.b16 %v547, %v543
  %v700 = vpack.c.b16 %v548, %v544
  %v701 = vpack.c.b16 %v549, %v545
  %v702 = vpack.c.b16 %v554, %v550
  %v703 = vpack.c.b16 %v555, %v551
  %v704 = vpack.c.b16 %v556, %v552
  %v705 = vpack.c.b16 %v557, %v553
  %v706 = vpack.c.b16 %v562, %v558
  %v707 = vpack.c.b16 %v563, %v559
  %v708 = vpack.c.b16 %v564, %v560
  %v709 = vpack.c.b16 %v565, %v561
  %v710 = vpack.c.b16 %v570, %v566
  %v711 = vpack.c.b16 %v571, %v567
  %v712 = vpack.c.b16 %v572, %v568
  %v713 = vpack.c.b16 %v573, %v569
  %v714 = vpack.c.b16 %v578, %v574
  %v715 = vpack.c.b16 %v579, %v575
  %v716 = vpack.c.b16 %v580, %v576
  %v717 = vpack.c.b16 %v581, %v577
  %v718 = vpack.c.b16 %v586, %v582
  %v719 = vpack.c.b16 %v587, %v583
  %v720 = vpack.c.b16 %v588, %v584
  %v721 = vpack.c.b16 %v589, %v585
  %v722 = vpack.c.b16 %v594, %v590
  %v723 = vpack.c.b16 %v595, %v591
  %v724 = vpack.c.b16 %v596, %v592
  %v725 = vpack.c.b16 %v597, %v593
  %v918 = vunpack.c.l.b16 %v143
  %v919 = vunpack.c.l.b16 %v144
  %v920 = vunpack.c.l.b16 %v145
  %v921 = vunpack.c.l.b16 %v146
  %v922 = vunpack.c.l.b16 %v147
  %v923 = vunpack.c.l.b16 %v148
  %v924 = vunpack.c.l.b16 %v149
  %v925 = vunpack.c.l.b16 %v150
  %v926 = vunpack.c.l.b16 %v151
  %v927 = vunpack.c.l.b16 %v152
  %v928 = vunpack.c.l.b16 %v153
  %v929 = vunpack.c.l.b16 %v154
  %v930 = vunpack.c.l.b16 %v155
  %v931 = vunpack.c.l.b16 %v156
  %v932 = vunpack.c.l.b16 %v157
  %v933 = vunpack.c.l.b16 %v158
  %v934 = vunpack.c.l.b16 %v159
  %v935 = vunpack.c.l.b16 %v160
  %v936 = vunpack.c.l.b16 %v161
  %v937 = vunpack.c.l.b16 %v162
  %v938 = vunpack.c.l.b16 %v163
  %v939 = vunpack.c.l.b16 %v164
  %v940 = vunpack.c.l.b16 %v165
  %v941 = vunpack.c.l.b16 %v166
  %v942 = vunpack.c.l.b16 %v167
  %v943 = vunpack.c.l.b16 %v168
  %v944 = vunpack.c.l.b16 %v169
  %v945 = vunpack.c.l.b16 %v170
  %v946 = vunpack.c.l.b16 %v171
  %v947 = vunpack.c.l.b16 %v172
  %v948 = vunpack.c.l.b16 %v173
  %v949 = vunpack.c.l.b16 %v174
  %v950 = vunpack.c.l.b16 %v175
  %v951 = vunpack.c.l.b16 %v176
  %v952 = vunpack.c.l.b16 %v177
  %v953 = vunpack.c.l.b16 %v178
  %v954 = vunpack.c.l.b16 %v179
  %v955 = vunpack.c.l.b16 %v180
  %v956 = vunpack.c.l.b16 %v181
  %v957 = vunpack.c.l.b16 %v182
  %v958 = vunpack.c.l.b16 %v183
  %v959 = vunpack.c.l.b16 %v184
  %v960 = vunpack.c.l.b16 %v185
  %v961 = vunpack.c.l.b16 %v186
  %v962 = vunpack.c.l.b16 %v187
  %v963 = vunpack.c.l.b16 %v188
  %v964 = vunpack.c.l.b16 %v189
  %v965 = vunpack.c.l.b16 %v190
  %v966 = vunpack.c.l.b16 %v191
  %v967 = vunpack.c.l.b16 %v192
  %v968 = vunpack.c.l.b16 %v193
  %v969 = vunpack.c.l.b16 %v194
  %v970 = vunpack.c.l.b16 %v195
  %v971 = vunpack.c.l.b16 %v196
  %v972 = vunpack.c.l.b16 %v197
  %v973 = vunpack.c.l.b16 %v198
  %v974 = vunpack.c.l.b16 %v199
  %v975 = vunpack.c.l.b16 %v200
  %v976 = vunpack.c.l.b16 %v201
  %v977 = vunpack.c.l.b16 %v202
  %v978 = vunpack.c.l.b16 %v203
  %v979 = vunpack.c.l.b16 %v204
  %v980 = vunpack.c.l.b16 %v205
  %v981 = vunpack.c.l.b16 %v206
  %v982 = vpack.c.b16 %v919, %v918
  %v983 = vpack.c.b16 %v921, %v920
  %v984 = vpack.c.b16 %v923, %v922
  %v985 = vpack.c.b16 %v925, %v924
  %v986 = vpack.c.b16 %v927, %v926
  %v987 = vpack.c.b16 %v929, %v928
  %v988 = vpack.c.b16 %v931, %v930
  %v989 = vpack.c.b16 %v933, %v932
  %v990 = vpack.c.b16 %v935, %v934
  %v991 = vpack.c.b16 %v937, %v936
  %v992 = vpack.c.b16 %v939, %v938
  %v993 = vpack.c.b16 %v941, %v940
  %v994 = vpack.c.b16 %v943, %v942
  %v995 = vpack.c.b16 %v945, %v944
  %v996 = vpack.c.b16 %v947, %v946
  %v997 = vpack.c.b16 %v949, %v948
  %v998 = vpack.c.b16 %v951, %v950
  %v999 = vpack.c.b16 %v953, %v952
  %v1000 = vpack.c.b16 %v955, %v954
  %v1001 = vpack.c.b16 %v957, %v956
  %v1002 = vpack.c.b16 %v959, %v958
  %v1003 = vpack.c.b16 %v961, %v960
  %v1004 = vpack.c.b16 %v963, %v962
  %v1005 = vpack.c.b16 %v965, %v964
  %v1006 = vpack.c.b16 %v967, %v966
  %v1007 = vpack.c.b16 %v969, %v968
  %v1008 = vpack.c.b16 %v971, %v970
  %v1009 = vpack.c.b16 %v973, %v972
  %v1010 = vpack.c.b16 %v975, %v974
  %v1011 = vpack.c.b16 %v977, %v976
  %v1012 = vpack.c.b16 %v979, %v978
  %v1013 = vpack.c.b16 %v981, %v980
  %1046 = vmatprep.subr.bf16.mxu0 0
  %1047 = vmatpush1.bf16.msra.mxu0 %v982
  %1048 = vmatprep.subr.bf16.mxu0 0
  %1049 = vmatpush1.bf16.msra.mxu0 %v983
  %1050 = vmatprep.subr.bf16.mxu0 0
  %1051 = vmatpush1.bf16.msra.mxu0 %v984
  %1052 = vmatprep.subr.bf16.mxu0 0
  %1053 = vmatpush1.bf16.msra.mxu0 %v985
  %1054 = vmatprep.subr.bf16.mxu0 0
  %1055 = vmatpush1.bf16.msra.mxu0 %v986
  %1056 = vmatprep.subr.bf16.mxu0 0
  %1057 = vmatpush1.bf16.msra.mxu0 %v987
  %1058 = vmatprep.subr.bf16.mxu0 0
  %1059 = vmatpush1.bf16.msra.mxu0 %v988
  %1060 = vmatprep.subr.bf16.mxu0 0
  %1061 = vmatpush1.bf16.msra.mxu0 %v989
  %1062 = vmatprep.subr.bf16.mxu0 0
  %1063 = vmatpush1.bf16.msra.mxu0 %v990
  %1064 = vmatprep.subr.bf16.mxu0 0
  %1065 = vmatpush1.bf16.msra.mxu0 %v991
  %1066 = vmatprep.subr.bf16.mxu0 0
  %1067 = vmatpush1.bf16.msra.mxu0 %v992
  %1068 = vmatprep.subr.bf16.mxu0 0
  %1069 = vmatpush1.bf16.msra.mxu0 %v993
  %1070 = vmatprep.subr.bf16.mxu0 0
  %1071 = vmatpush1.bf16.msra.mxu0 %v994
  %1072 = vmatprep.subr.bf16.mxu0 0
  %1073 = vmatpush1.bf16.msra.mxu0 %v995
  %1074 = vmatprep.subr.bf16.mxu0 0
  %1075 = vmatpush1.bf16.msra.mxu0 %v996
  %1076 = vmatprep.subr.bf16.mxu0 0
  %1077 = vmatpush1.bf16.msra.mxu0 %v997
  %1078 = vmatprep.mubr.bf16.mxu0 %v599
  %1079 = vmatmul.mubr.bf16.gmra.mrb[0].mxu0 %v598
  %v1080 = vpop.f32.mrb[0].mxu0
  %v1081 = vadd.f32 %v212, %v1080
  %v1082 = vpop.f32.mrb[0].mxu0
  %v1083 = vpop.f32.mrb[0].mxu0
  %v1084 = vadd.f32 %v212, %v1083
  %v1085 = vpop.f32.mrb[0].mxu0
  %1086 = vmatprep.mubr.bf16.mxu0 %v603
  %1087 = vmatmul.mubr.bf16.gmra.mrb[0].mxu0 %v602
  %v1088 = vpop.f32.mrb[0].mxu0
  %v1089 = vadd.f32 %v212, %v1088
  %v1090 = vpop.f32.mrb[0].mxu0
  %v1091 = vpop.f32.mrb[0].mxu0
  %v1092 = vadd.f32 %v212, %v1091
  %v1093 = vpop.f32.mrb[0].mxu0
  %1094 = vmatprep.mubr.bf16.mxu0 %v607
  %1095 = vmatmul.mubr.bf16.gmra.mrb[0].mxu0 %v606
  %v1096 = vpop.f32.mrb[0].mxu0
  %v1097 = vadd.f32 %v212, %v1096
  %v1098 = vpop.f32.mrb[0].mxu0
  %v1099 = vpop.f32.mrb[0].mxu0
  %v1100 = vadd.f32 %v212, %v1099
  %v1101 = vpop.f32.mrb[0].mxu0
  %1102 = vmatprep.mubr.bf16.mxu0 %v611
  %1103 = vmatmul.mubr.bf16.gmra.mrb[0].mxu0 %v610
  %v1104 = vpop.f32.mrb[0].mxu0
  %v1105 = vadd.f32 %v212, %v1104
  %v1106 = vpop.f32.mrb[0].mxu0
  %v1107 = vpop.f32.mrb[0].mxu0
  %v1108 = vadd.f32 %v212, %v1107
  %v1109 = vpop.f32.mrb[0].mxu0
  %1110 = vmatprep.mubr.bf16.mxu0 %v615
  %1111 = vmatmul.mubr.bf16.gmra.mrb[0].mxu0 %v614
  %v1112 = vpop.f32.mrb[0].mxu0
  %v1113 = vadd.f32 %v212, %v1112
  %v1114 = vpop.f32.mrb[0].mxu0
  %v1115 = vpop.f32.mrb[0].mxu0
  %v1116 = vadd.f32 %v212, %v1115
  %v1117 = vpop.f32.mrb[0].mxu0
  %1118 = vmatprep.mubr.bf16.mxu0 %v619
  %1119 = vmatmul.mubr.bf16.gmra.mrb[0].mxu0 %v618
  %v1120 = vpop.f32.mrb[0].mxu0
  %v1121 = vadd.f32 %v212, %v1120
  %v1122 = vpop.f32.mrb[0].mxu0
  %v1123 = vpop.f32.mrb[0].mxu0
  %v1124 = vadd.f32 %v212, %v1123
  %v1125 = vpop.f32.mrb[0].mxu0
  %1126 = vmatprep.mubr.bf16.mxu0 %v623
  %1127 = vmatmul.mubr.bf16.gmra.mrb[0].mxu0 %v622
  %v1128 = vpop.f32.mrb[0].mxu0
  %v1129 = vadd.f32 %v212, %v1128
  %v1130 = vpop.f32.mrb[0].mxu0
  %v1131 = vpop.f32.mrb[0].mxu0
  %v1132 = vadd.f32 %v212, %v1131
  %v1133 = vpop.f32.mrb[0].mxu0
  %1134 = vmatprep.mubr.bf16.mxu0 %v627
  %1135 = vmatmul.mubr.bf16.gmra.mrb[0].mxu0 %v626
  %v1136 = vpop.f32.mrb[0].mxu0
  %v1137 = vadd.f32 %v212, %v1136
  %v1138 = vpop.f32.mrb[0].mxu0
  %v1139 = vpop.f32.mrb[0].mxu0
  %v1140 = vadd.f32 %v212, %v1139
  %v1141 = vpop.f32.mrb[0].mxu0
  %1142 = vmatprep.mubr.bf16.mxu0 %v631
  %1143 = vmatmul.mubr.bf16.gmra.mrb[0].mxu0 %v630
  %v1144 = vpop.f32.mrb[0].mxu0
  %v1145 = vadd.f32 %v212, %v1144
  %v1146 = vpop.f32.mrb[0].mxu0
  %v1147 = vpop.f32.mrb[0].mxu0
  %v1148 = vadd.f32 %v212, %v1147
  %v1149 = vpop.f32.mrb[0].mxu0
  %1150 = vmatprep.mubr.bf16.mxu0 %v635
  %1151 = vmatmul.mubr.bf16.gmra.mrb[0].mxu0 %v634
  %v1152 = vpop.f32.mrb[0].mxu0
  %v1153 = vadd.f32 %v212, %v1152
  %v1154 = vpop.f32.mrb[0].mxu0
  %v1155 = vpop.f32.mrb[0].mxu0
  %v1156 = vadd.f32 %v212, %v1155
  %v1157 = vpop.f32.mrb[0].mxu0
  %1158 = vmatprep.mubr.bf16.mxu0 %v639
  %1159 = vmatmul.mubr.bf16.gmra.mrb[0].mxu0 %v638
  %v1160 = vpop.f32.mrb[0].mxu0
  %v1161 = vadd.f32 %v212, %v1160
  %v1162 = vpop.f32.mrb[0].mxu0
  %v1163 = vpop.f32.mrb[0].mxu0
  %v1164 = vadd.f32 %v212, %v1163
  %v1165 = vpop.f32.mrb[0].mxu0
  %1166 = vmatprep.mubr.bf16.mxu0 %v643
  %1167 = vmatmul.mubr.bf16.gmra.mrb[0].mxu0 %v642
  %v1168 = vpop.f32.mrb[0].mxu0
  %v1169 = vadd.f32 %v212, %v1168
  %v1170 = vpop.f32.mrb[0].mxu0
  %v1171 = vpop.f32.mrb[0].mxu0
  %v1172 = vadd.f32 %v212, %v1171
  %v1173 = vpop.f32.mrb[0].mxu0
  %1174 = vmatprep.mubr.bf16.mxu0 %v647
  %1175 = vmatmul.mubr.bf16.gmra.mrb[0].mxu0 %v646
  %v1176 = vpop.f32.mrb[0].mxu0
  %v1177 = vadd.f32 %v212, %v1176
  %v1178 = vpop.f32.mrb[0].mxu0
  %v1179 = vpop.f32.mrb[0].mxu0
  %v1180 = vadd.f32 %v212, %v1179
  %v1181 = vpop.f32.mrb[0].mxu0
  %1182 = vmatprep.mubr.bf16.mxu0 %v651
  %1183 = vmatmul.mubr.bf16.gmra.mrb[0].mxu0 %v650
  %v1184 = vpop.f32.mrb[0].mxu0
  %v1185 = vadd.f32 %v212, %v1184
  %v1186 = vpop.f32.mrb[0].mxu0
  %v1187 = vpop.f32.mrb[0].mxu0
  %v1188 = vadd.f32 %v212, %v1187
  %v1189 = vpop.f32.mrb[0].mxu0
  %1190 = vmatprep.mubr.bf16.mxu0 %v655
  %1191 = vmatmul.mubr.bf16.gmra.mrb[0].mxu0 %v654
  %v1192 = vpop.f32.mrb[0].mxu0
  %v1193 = vadd.f32 %v212, %v1192
  %v1194 = vpop.f32.mrb[0].mxu0
  %v1195 = vpop.f32.mrb[0].mxu0
  %v1196 = vadd.f32 %v212, %v1195
  %v1197 = vpop.f32.mrb[0].mxu0
  %1198 = vmatprep.mubr.bf16.mxu0 %v659
  %1199 = vmatmul.mubr.bf16.gmra.mrb[0].mxu0 %v658
  %v1200 = vpop.f32.mrb[0].mxu0
  %v1201 = vadd.f32 %v212, %v1200
  %v1202 = vpop.f32.mrb[0].mxu0
  %v1203 = vpop.f32.mrb[0].mxu0
  %v1204 = vadd.f32 %v212, %v1203
  %v1205 = vpop.f32.mrb[0].mxu0
  %1206 = vmatprep.mubr.bf16.mxu0 %v663
  %1207 = vmatmul.mubr.bf16.gmra.mrb[0].mxu0 %v662
  %v1208 = vpop.f32.mrb[0].mxu0
  %v1209 = vadd.f32 %v212, %v1208
  %v1210 = vpop.f32.mrb[0].mxu0
  %v1211 = vpop.f32.mrb[0].mxu0
  %v1212 = vadd.f32 %v212, %v1211
  %v1213 = vpop.f32.mrb[0].mxu0
  %1214 = vmatprep.mubr.bf16.mxu0 %v667
  %1215 = vmatmul.mubr.bf16.gmra.mrb[0].mxu0 %v666
  %v1216 = vpop.f32.mrb[0].mxu0
  %v1217 = vadd.f32 %v212, %v1216
  %v1218 = vpop.f32.mrb[0].mxu0
  %v1219 = vpop.f32.mrb[0].mxu0
  %v1220 = vadd.f32 %v212, %v1219
  %v1221 = vpop.f32.mrb[0].mxu0
  %1222 = vmatprep.mubr.bf16.mxu0 %v671
  %1223 = vmatmul.mubr.bf16.gmra.mrb[0].mxu0 %v670
  %v1224 = vpop.f32.mrb[0].mxu0
  %v1225 = vadd.f32 %v212, %v1224
  %v1226 = vpop.f32.mrb[0].mxu0
  %v1227 = vpop.f32.mrb[0].mxu0
  %v1228 = vadd.f32 %v212, %v1227
  %v1229 = vpop.f32.mrb[0].mxu0
  %1230 = vmatprep.mubr.bf16.mxu0 %v675
  %1231 = vmatmul.mubr.bf16.gmra.mrb[0].mxu0 %v674
  %v1232 = vpop.f32.mrb[0].mxu0
  %v1233 = vadd.f32 %v212, %v1232
  %v1234 = vpop.f32.mrb[0].mxu0
  %v1235 = vpop.f32.mrb[0].mxu0
  %v1236 = vadd.f32 %v212, %v1235
  %v1237 = vpop.f32.mrb[0].mxu0
  %1238 = vmatprep.mubr.bf16.mxu0 %v679
  %1239 = vmatmul.mubr.bf16.gmra.mrb[0].mxu0 %v678
  %v1240 = vpop.f32.mrb[0].mxu0
  %v1241 = vadd.f32 %v212, %v1240
  %v1242 = vpop.f32.mrb[0].mxu0
  %v1243 = vpop.f32.mrb[0].mxu0
  %v1244 = vadd.f32 %v212, %v1243
  %v1245 = vpop.f32.mrb[0].mxu0
  %1246 = vmatprep.mubr.bf16.mxu0 %v683
  %1247 = vmatmul.mubr.bf16.gmra.mrb[0].mxu0 %v682
  %v1248 = vpop.f32.mrb[0].mxu0
  %v1249 = vadd.f32 %v212, %v1248
  %v1250 = vpop.f32.mrb[0].mxu0
  %v1251 = vpop.f32.mrb[0].mxu0
  %v1252 = vadd.f32 %v212, %v1251
  %v1253 = vpop.f32.mrb[0].mxu0
  %1254 = vmatprep.mubr.bf16.mxu0 %v687
  %1255 = vmatmul.mubr.bf16.gmra.mrb[0].mxu0 %v686
  %v1256 = vpop.f32.mrb[0].mxu0
  %v1257 = vadd.f32 %v212, %v1256
  %v1258 = vpop.f32.mrb[0].mxu0
  %v1259 = vpop.f32.mrb[0].mxu0
  %v1260 = vadd.f32 %v212, %v1259
  %v1261 = vpop.f32.mrb[0].mxu0
  %1262 = vmatprep.mubr.bf16.mxu0 %v691
  %1263 = vmatmul.mubr.bf16.gmra.mrb[0].mxu0 %v690
  %v1264 = vpop.f32.mrb[0].mxu0
  %v1265 = vadd.f32 %v212, %v1264
  %v1266 = vpop.f32.mrb[0].mxu0
  %v1267 = vpop.f32.mrb[0].mxu0
  %v1268 = vadd.f32 %v212, %v1267
  %v1269 = vpop.f32.mrb[0].mxu0
  %1270 = vmatprep.mubr.bf16.mxu0 %v695
  %1271 = vmatmul.mubr.bf16.gmra.mrb[0].mxu0 %v694
  %v1272 = vpop.f32.mrb[0].mxu0
  %v1273 = vadd.f32 %v212, %v1272
  %v1274 = vpop.f32.mrb[0].mxu0
  %v1275 = vpop.f32.mrb[0].mxu0
  %v1276 = vadd.f32 %v212, %v1275
  %v1277 = vpop.f32.mrb[0].mxu0
  %1278 = vmatprep.mubr.bf16.mxu0 %v699
  %1279 = vmatmul.mubr.bf16.gmra.mrb[0].mxu0 %v698
  %v1280 = vpop.f32.mrb[0].mxu0
  %v1281 = vadd.f32 %v212, %v1280
  %v1282 = vpop.f32.mrb[0].mxu0
  %v1283 = vpop.f32.mrb[0].mxu0
  %v1284 = vadd.f32 %v212, %v1283
  %v1285 = vpop.f32.mrb[0].mxu0
  %1286 = vmatprep.mubr.bf16.mxu0 %v703
  %1287 = vmatmul.mubr.bf16.gmra.mrb[0].mxu0 %v702
  %v1288 = vpop.f32.mrb[0].mxu0
  %v1289 = vadd.f32 %v212, %v1288
  %v1290 = vpop.f32.mrb[0].mxu0
  %v1291 = vpop.f32.mrb[0].mxu0
  %v1292 = vadd.f32 %v212, %v1291
  %v1293 = vpop.f32.mrb[0].mxu0
  %1294 = vmatprep.mubr.bf16.mxu0 %v707
  %1295 = vmatmul.mubr.bf16.gmra.mrb[0].mxu0 %v706
  %v1296 = vpop.f32.mrb[0].mxu0
  %v1297 = vadd.f32 %v212, %v1296
  %v1298 = vpop.f32.mrb[0].mxu0
  %v1299 = vpop.f32.mrb[0].mxu0
  %v1300 = vadd.f32 %v212, %v1299
  %v1301 = vpop.f32.mrb[0].mxu0
  %1302 = vmatprep.mubr.bf16.mxu0 %v711
  %1303 = vmatmul.mubr.bf16.gmra.mrb[0].mxu0 %v710
  %v1304 = vpop.f32.mrb[0].mxu0
  %v1305 = vadd.f32 %v212, %v1304
  %v1306 = vpop.f32.mrb[0].mxu0
  %v1307 = vpop.f32.mrb[0].mxu0
  %v1308 = vadd.f32 %v212, %v1307
  %v1309 = vpop.f32.mrb[0].mxu0
  %1310 = vmatprep.mubr.bf16.mxu0 %v715
  %1311 = vmatmul.mubr.bf16.gmra.mrb[0].mxu0 %v714
  %v1312 = vpop.f32.mrb[0].mxu0
  %v1313 = vadd.f32 %v212, %v1312
  %v1314 = vpop.f32.mrb[0].mxu0
  %v1315 = vpop.f32.mrb[0].mxu0
  %v1316 = vadd.f32 %v212, %v1315
  %v1317 = vpop.f32.mrb[0].mxu0
  %1318 = vmatprep.mubr.bf16.mxu0 %v719
  %1319 = vmatmul.mubr.bf16.gmra.mrb[0].mxu0 %v718
  %v1320 = vpop.f32.mrb[0].mxu0
  %v1321 = vadd.f32 %v212, %v1320
  %v1322 = vpop.f32.mrb[0].mxu0
  %v1323 = vpop.f32.mrb[0].mxu0
  %v1324 = vadd.f32 %v212, %v1323
  %v1325 = vpop.f32.mrb[0].mxu0
  %1326 = vmatprep.mubr.bf16.mxu0 %v723
  %1327 = vmatmul.mubr.bf16.gmra.mrb[0].mxu0 %v722
  %v1328 = vpop.f32.mrb[0].mxu0
  %v1329 = vadd.f32 %v212, %v1328
  %v1330 = vpop.f32.mrb[0].mxu0
  %v1331 = vpop.f32.mrb[0].mxu0
  %v1332 = vadd.f32 %v212, %v1331
  %v1333 = vpop.f32.mrb[0].mxu0
  %1334 = vdwg.mxu0
  %1335 = vmatprep.subr.bf16.mxu0 0
  %1336 = vmatpush1.bf16.msra.mxu0 %v998
  %1337 = vmatprep.subr.bf16.mxu0 0
  %1338 = vmatpush1.bf16.msra.mxu0 %v999
  %1339 = vmatprep.subr.bf16.mxu0 0
  %1340 = vmatpush1.bf16.msra.mxu0 %v1000
  %1341 = vmatprep.subr.bf16.mxu0 0
  %1342 = vmatpush1.bf16.msra.mxu0 %v1001
  %1343 = vmatprep.subr.bf16.mxu0 0
  %1344 = vmatpush1.bf16.msra.mxu0 %v1002
  %1345 = vmatprep.subr.bf16.mxu0 0
  %1346 = vmatpush1.bf16.msra.mxu0 %v1003
  %1347 = vmatprep.subr.bf16.mxu0 0
  %1348 = vmatpush1.bf16.msra.mxu0 %v1004
  %1349 = vmatprep.subr.bf16.mxu0 0
  %1350 = vmatpush1.bf16.msra.mxu0 %v1005
  %1351 = vmatprep.subr.bf16.mxu0 0
  %1352 = vmatpush1.bf16.msra.mxu0 %v1006
  %1353 = vmatprep.subr.bf16.mxu0 0
  %1354 = vmatpush1.bf16.msra.mxu0 %v1007
  %1355 = vmatprep.subr.bf16.mxu0 0
  %1356 = vmatpush1.bf16.msra.mxu0 %v1008
  %1357 = vmatprep.subr.bf16.mxu0 0
  %1358 = vmatpush1.bf16.msra.mxu0 %v1009
  %1359 = vmatprep.subr.bf16.mxu0 0
  %1360 = vmatpush1.bf16.msra.mxu0 %v1010
  %1361 = vmatprep.subr.bf16.mxu0 0
  %1362 = vmatpush1.bf16.msra.mxu0 %v1011
  %1363 = vmatprep.subr.bf16.mxu0 0
  %1364 = vmatpush1.bf16.msra.mxu0 %v1012
  %1365 = vmatprep.subr.bf16.mxu0 0
  %1366 = vmatpush1.bf16.msra.mxu0 %v1013
  %1367 = vmatprep.mubr.bf16.mxu0 %v601
  %1368 = vmatmul.mubr.bf16.gmra.mrb[0].mxu0 %v600
  %v1369 = vpop.f32.mrb[0].mxu0
  %v1370 = vadd.f32 %v1081, %v1369
  %v1371 = vpop.f32.mrb[0].mxu0
  %v1372 = vpop.f32.mrb[0].mxu0
  %v1373 = vadd.f32 %v1084, %v1372
  %v1374 = vpop.f32.mrb[0].mxu0
  %1375 = vmatprep.mubr.bf16.mxu0 %v605
  %1376 = vmatmul.mubr.bf16.gmra.mrb[0].mxu0 %v604
  %v1377 = vpop.f32.mrb[0].mxu0
  %v1378 = vadd.f32 %v1089, %v1377
  %v1379 = vpop.f32.mrb[0].mxu0
  %v1380 = vpop.f32.mrb[0].mxu0
  %v1381 = vadd.f32 %v1092, %v1380
  %v1382 = vpop.f32.mrb[0].mxu0
  %1383 = vmatprep.mubr.bf16.mxu0 %v609
  %1384 = vmatmul.mubr.bf16.gmra.mrb[0].mxu0 %v608
  %v1385 = vpop.f32.mrb[0].mxu0
  %v1386 = vadd.f32 %v1097, %v1385
  %v1387 = vpop.f32.mrb[0].mxu0
  %v1388 = vpop.f32.mrb[0].mxu0
  %v1389 = vadd.f32 %v1100, %v1388
  %v1390 = vpop.f32.mrb[0].mxu0
  %1391 = vmatprep.mubr.bf16.mxu0 %v613
  %1392 = vmatmul.mubr.bf16.gmra.mrb[0].mxu0 %v612
  %v1393 = vpop.f32.mrb[0].mxu0
  %v1394 = vadd.f32 %v1105, %v1393
  %v1395 = vpop.f32.mrb[0].mxu0
  %v1396 = vpop.f32.mrb[0].mxu0
  %v1397 = vadd.f32 %v1108, %v1396
  %v1398 = vpop.f32.mrb[0].mxu0
  %1399 = vmatprep.mubr.bf16.mxu0 %v617
  %1400 = vmatmul.mubr.bf16.gmra.mrb[0].mxu0 %v616
  %v1401 = vpop.f32.mrb[0].mxu0
  %v1402 = vadd.f32 %v1113, %v1401
  %v1403 = vpop.f32.mrb[0].mxu0
  %v1404 = vpop.f32.mrb[0].mxu0
  %v1405 = vadd.f32 %v1116, %v1404
  %v1406 = vpop.f32.mrb[0].mxu0
  %1407 = vmatprep.mubr.bf16.mxu0 %v621
  %1408 = vmatmul.mubr.bf16.gmra.mrb[0].mxu0 %v620
  %v1409 = vpop.f32.mrb[0].mxu0
  %v1410 = vadd.f32 %v1121, %v1409
  %v1411 = vpop.f32.mrb[0].mxu0
  %v1412 = vpop.f32.mrb[0].mxu0
  %v1413 = vadd.f32 %v1124, %v1412
  %v1414 = vpop.f32.mrb[0].mxu0
  %1415 = vmatprep.mubr.bf16.mxu0 %v625
  %1416 = vmatmul.mubr.bf16.gmra.mrb[0].mxu0 %v624
  %v1417 = vpop.f32.mrb[0].mxu0
  %v1418 = vadd.f32 %v1129, %v1417
  %v1419 = vpop.f32.mrb[0].mxu0
  %v1420 = vpop.f32.mrb[0].mxu0
  %v1421 = vadd.f32 %v1132, %v1420
  %v1422 = vpop.f32.mrb[0].mxu0
  %1423 = vmatprep.mubr.bf16.mxu0 %v629
  %1424 = vmatmul.mubr.bf16.gmra.mrb[0].mxu0 %v628
  %v1425 = vpop.f32.mrb[0].mxu0
  %v1426 = vadd.f32 %v1137, %v1425
  %v1427 = vpop.f32.mrb[0].mxu0
  %v1428 = vpop.f32.mrb[0].mxu0
  %v1429 = vadd.f32 %v1140, %v1428
  %v1430 = vpop.f32.mrb[0].mxu0
  %1431 = vmatprep.mubr.bf16.mxu0 %v633
  %1432 = vmatmul.mubr.bf16.gmra.mrb[0].mxu0 %v632
  %v1433 = vpop.f32.mrb[0].mxu0
  %v1434 = vadd.f32 %v1145, %v1433
  %v1435 = vpop.f32.mrb[0].mxu0
  %v1436 = vpop.f32.mrb[0].mxu0
  %v1437 = vadd.f32 %v1148, %v1436
  %v1438 = vpop.f32.mrb[0].mxu0
  %1439 = vmatprep.mubr.bf16.mxu0 %v637
  %1440 = vmatmul.mubr.bf16.gmra.mrb[0].mxu0 %v636
  %v1441 = vpop.f32.mrb[0].mxu0
  %v1442 = vadd.f32 %v1153, %v1441
  %v1443 = vpop.f32.mrb[0].mxu0
  %v1444 = vpop.f32.mrb[0].mxu0
  %v1445 = vadd.f32 %v1156, %v1444
  %v1446 = vpop.f32.mrb[0].mxu0
  %1447 = vmatprep.mubr.bf16.mxu0 %v641
  %1448 = vmatmul.mubr.bf16.gmra.mrb[0].mxu0 %v640
  %v1449 = vpop.f32.mrb[0].mxu0
  %v1450 = vadd.f32 %v1161, %v1449
  %v1451 = vpop.f32.mrb[0].mxu0
  %v1452 = vpop.f32.mrb[0].mxu0
  %v1453 = vadd.f32 %v1164, %v1452
  %v1454 = vpop.f32.mrb[0].mxu0
  %1455 = vmatprep.mubr.bf16.mxu0 %v645
  %1456 = vmatmul.mubr.bf16.gmra.mrb[0].mxu0 %v644
  %v1457 = vpop.f32.mrb[0].mxu0
  %v1458 = vadd.f32 %v1169, %v1457
  %v1459 = vpop.f32.mrb[0].mxu0
  %v1460 = vpop.f32.mrb[0].mxu0
  %v1461 = vadd.f32 %v1172, %v1460
  %v1462 = vpop.f32.mrb[0].mxu0
  %1463 = vmatprep.mubr.bf16.mxu0 %v649
  %1464 = vmatmul.mubr.bf16.gmra.mrb[0].mxu0 %v648
  %v1465 = vpop.f32.mrb[0].mxu0
  %v1466 = vadd.f32 %v1177, %v1465
  %v1467 = vpop.f32.mrb[0].mxu0
  %v1468 = vpop.f32.mrb[0].mxu0
  %v1469 = vadd.f32 %v1180, %v1468
  %v1470 = vpop.f32.mrb[0].mxu0
  %1471 = vmatprep.mubr.bf16.mxu0 %v653
  %1472 = vmatmul.mubr.bf16.gmra.mrb[0].mxu0 %v652
  %v1473 = vpop.f32.mrb[0].mxu0
  %v1474 = vadd.f32 %v1185, %v1473
  %v1475 = vpop.f32.mrb[0].mxu0
  %v1476 = vpop.f32.mrb[0].mxu0
  %v1477 = vadd.f32 %v1188, %v1476
  %v1478 = vpop.f32.mrb[0].mxu0
  %1479 = vmatprep.mubr.bf16.mxu0 %v657
  %1480 = vmatmul.mubr.bf16.gmra.mrb[0].mxu0 %v656
  %v1481 = vpop.f32.mrb[0].mxu0
  %v1482 = vadd.f32 %v1193, %v1481
  %v1483 = vpop.f32.mrb[0].mxu0
  %v1484 = vpop.f32.mrb[0].mxu0
  %v1485 = vadd.f32 %v1196, %v1484
  %v1486 = vpop.f32.mrb[0].mxu0
  %1487 = vmatprep.mubr.bf16.mxu0 %v661
  %1488 = vmatmul.mubr.bf16.gmra.mrb[0].mxu0 %v660
  %v1489 = vpop.f32.mrb[0].mxu0
  %v1490 = vadd.f32 %v1201, %v1489
  %v1491 = vpop.f32.mrb[0].mxu0
  %v1492 = vpop.f32.mrb[0].mxu0
  %v1493 = vadd.f32 %v1204, %v1492
  %v1494 = vpop.f32.mrb[0].mxu0
  %1495 = vmatprep.mubr.bf16.mxu0 %v665
  %1496 = vmatmul.mubr.bf16.gmra.mrb[0].mxu0 %v664
  %v1497 = vpop.f32.mrb[0].mxu0
  %v1498 = vadd.f32 %v1209, %v1497
  %v1499 = vpop.f32.mrb[0].mxu0
  %v1500 = vpop.f32.mrb[0].mxu0
  %v1501 = vadd.f32 %v1212, %v1500
  %v1502 = vpop.f32.mrb[0].mxu0
  %1503 = vmatprep.mubr.bf16.mxu0 %v669
  %1504 = vmatmul.mubr.bf16.gmra.mrb[0].mxu0 %v668
  %v1505 = vpop.f32.mrb[0].mxu0
  %v1506 = vadd.f32 %v1217, %v1505
  %v1507 = vpop.f32.mrb[0].mxu0
  %v1508 = vpop.f32.mrb[0].mxu0
  %v1509 = vadd.f32 %v1220, %v1508
  %v1510 = vpop.f32.mrb[0].mxu0
  %1511 = vmatprep.mubr.bf16.mxu0 %v673
  %1512 = vmatmul.mubr.bf16.gmra.mrb[0].mxu0 %v672
  %v1513 = vpop.f32.mrb[0].mxu0
  %v1514 = vadd.f32 %v1225, %v1513
  %v1515 = vpop.f32.mrb[0].mxu0
  %v1516 = vpop.f32.mrb[0].mxu0
  %v1517 = vadd.f32 %v1228, %v1516
  %v1518 = vpop.f32.mrb[0].mxu0
  %1519 = vmatprep.mubr.bf16.mxu0 %v677
  %1520 = vmatmul.mubr.bf16.gmra.mrb[0].mxu0 %v676
  %v1521 = vpop.f32.mrb[0].mxu0
  %v1522 = vadd.f32 %v1233, %v1521
  %v1523 = vpop.f32.mrb[0].mxu0
  %v1524 = vpop.f32.mrb[0].mxu0
  %v1525 = vadd.f32 %v1236, %v1524
  %v1526 = vpop.f32.mrb[0].mxu0
  %1527 = vmatprep.mubr.bf16.mxu0 %v681
  %1528 = vmatmul.mubr.bf16.gmra.mrb[0].mxu0 %v680
  %v1529 = vpop.f32.mrb[0].mxu0
  %v1530 = vadd.f32 %v1241, %v1529
  %v1531 = vpop.f32.mrb[0].mxu0
  %v1532 = vpop.f32.mrb[0].mxu0
  %v1533 = vadd.f32 %v1244, %v1532
  %v1534 = vpop.f32.mrb[0].mxu0
  %1535 = vmatprep.mubr.bf16.mxu0 %v685
  %1536 = vmatmul.mubr.bf16.gmra.mrb[0].mxu0 %v684
  %v1537 = vpop.f32.mrb[0].mxu0
  %v1538 = vadd.f32 %v1249, %v1537
  %v1539 = vpop.f32.mrb[0].mxu0
  %v1540 = vpop.f32.mrb[0].mxu0
  %v1541 = vadd.f32 %v1252, %v1540
  %v1542 = vpop.f32.mrb[0].mxu0
  %1543 = vmatprep.mubr.bf16.mxu0 %v689
  %1544 = vmatmul.mubr.bf16.gmra.mrb[0].mxu0 %v688
  %v1545 = vpop.f32.mrb[0].mxu0
  %v1546 = vadd.f32 %v1257, %v1545
  %v1547 = vpop.f32.mrb[0].mxu0
  %v1548 = vpop.f32.mrb[0].mxu0
  %v1549 = vadd.f32 %v1260, %v1548
  %v1550 = vpop.f32.mrb[0].mxu0
  %1551 = vmatprep.mubr.bf16.mxu0 %v693
  %1552 = vmatmul.mubr.bf16.gmra.mrb[0].mxu0 %v692
  %v1553 = vpop.f32.mrb[0].mxu0
  %v1554 = vadd.f32 %v1265, %v1553
  %v1555 = vpop.f32.mrb[0].mxu0
  %v1556 = vpop.f32.mrb[0].mxu0
  %v1557 = vadd.f32 %v1268, %v1556
  %v1558 = vpop.f32.mrb[0].mxu0
  %1559 = vmatprep.mubr.bf16.mxu0 %v697
  %1560 = vmatmul.mubr.bf16.gmra.mrb[0].mxu0 %v696
  %v1561 = vpop.f32.mrb[0].mxu0
  %v1562 = vadd.f32 %v1273, %v1561
  %v1563 = vpop.f32.mrb[0].mxu0
  %v1564 = vpop.f32.mrb[0].mxu0
  %v1565 = vadd.f32 %v1276, %v1564
  %v1566 = vpop.f32.mrb[0].mxu0
  %1567 = vmatprep.mubr.bf16.mxu0 %v701
  %1568 = vmatmul.mubr.bf16.gmra.mrb[0].mxu0 %v700
  %v1569 = vpop.f32.mrb[0].mxu0
  %v1570 = vadd.f32 %v1281, %v1569
  %v1571 = vpop.f32.mrb[0].mxu0
  %v1572 = vpop.f32.mrb[0].mxu0
  %v1573 = vadd.f32 %v1284, %v1572
  %v1574 = vpop.f32.mrb[0].mxu0
  %1575 = vmatprep.mubr.bf16.mxu0 %v705
  %1576 = vmatmul.mubr.bf16.gmra.mrb[0].mxu0 %v704
  %v1577 = vpop.f32.mrb[0].mxu0
  %v1578 = vadd.f32 %v1289, %v1577
  %v1579 = vpop.f32.mrb[0].mxu0
  %v1580 = vpop.f32.mrb[0].mxu0
  %v1581 = vadd.f32 %v1292, %v1580
  %v1582 = vpop.f32.mrb[0].mxu0
  %1583 = vmatprep.mubr.bf16.mxu0 %v709
  %1584 = vmatmul.mubr.bf16.gmra.mrb[0].mxu0 %v708
  %v1585 = vpop.f32.mrb[0].mxu0
  %v1586 = vadd.f32 %v1297, %v1585
  %v1587 = vpop.f32.mrb[0].mxu0
  %v1588 = vpop.f32.mrb[0].mxu0
  %v1589 = vadd.f32 %v1300, %v1588
  %v1590 = vpop.f32.mrb[0].mxu0
  %1591 = vmatprep.mubr.bf16.mxu0 %v713
  %1592 = vmatmul.mubr.bf16.gmra.mrb[0].mxu0 %v712
  %v1593 = vpop.f32.mrb[0].mxu0
  %v1594 = vadd.f32 %v1305, %v1593
  %v1595 = vpop.f32.mrb[0].mxu0
  %v1596 = vpop.f32.mrb[0].mxu0
  %v1597 = vadd.f32 %v1308, %v1596
  %v1598 = vpop.f32.mrb[0].mxu0
  %1599 = vmatprep.mubr.bf16.mxu0 %v717
  %1600 = vmatmul.mubr.bf16.gmra.mrb[0].mxu0 %v716
  %v1601 = vpop.f32.mrb[0].mxu0
  %v1602 = vadd.f32 %v1313, %v1601
  %v1603 = vpop.f32.mrb[0].mxu0
  %v1604 = vpop.f32.mrb[0].mxu0
  %v1605 = vadd.f32 %v1316, %v1604
  %v1606 = vpop.f32.mrb[0].mxu0
  %1607 = vmatprep.mubr.bf16.mxu0 %v721
  %1608 = vmatmul.mubr.bf16.gmra.mrb[0].mxu0 %v720
  %v1609 = vpop.f32.mrb[0].mxu0
  %v1610 = vadd.f32 %v1321, %v1609
  %v1611 = vpop.f32.mrb[0].mxu0
  %v1612 = vpop.f32.mrb[0].mxu0
  %v1613 = vadd.f32 %v1324, %v1612
  %v1614 = vpop.f32.mrb[0].mxu0
  %1615 = vmatprep.mubr.bf16.mxu0 %v725
  %1616 = vmatmul.mubr.bf16.gmra.mrb[0].mxu0 %v724
  %v1617 = vpop.f32.mrb[0].mxu0
  %v1618 = vadd.f32 %v1329, %v1617
  %v1619 = vpop.f32.mrb[0].mxu0
  %v1620 = vpop.f32.mrb[0].mxu0
  %v1621 = vadd.f32 %v1332, %v1620
  %v1622 = vpop.f32.mrb[0].mxu0
  %1623 = vdwg.mxu0
  %v1624 = vtanh.pop %v1370
  %v1625 = vtanh.pop %v1373
  %v1626 = vtanh.pop %v1378
  %v1627 = vtanh.pop %v1381
  %v1628 = vtanh.pop %v1386
  %v1629 = vtanh.pop %v1389
  %v1630 = vtanh.pop %v1394
  %v1631 = vtanh.pop %v1397
  %v1632 = vtanh.pop %v1402
  %v1633 = vtanh.pop %v1405
  %v1634 = vtanh.pop %v1410
  %v1635 = vtanh.pop %v1413
  %v1636 = vtanh.pop %v1418
  %v1637 = vtanh.pop %v1421
  %v1638 = vtanh.pop %v1426
  %v1639 = vtanh.pop %v1429
  %v1640 = vtanh.pop %v1434
  %v1641 = vtanh.pop %v1437
  %v1642 = vtanh.pop %v1442
  %v1643 = vtanh.pop %v1445
  %v1644 = vtanh.pop %v1450
  %v1645 = vtanh.pop %v1453
  %v1646 = vtanh.pop %v1458
  %v1647 = vtanh.pop %v1461
  %v1648 = vtanh.pop %v1466
  %v1649 = vtanh.pop %v1469
  %v1650 = vtanh.pop %v1474
  %v1651 = vtanh.pop %v1477
  %v1652 = vtanh.pop %v1482
  %v1653 = vtanh.pop %v1485
  %v1654 = vtanh.pop %v1490
  %v1655 = vtanh.pop %v1493
  %v1656 = vtanh.pop %v1498
  %v1657 = vtanh.pop %v1501
  %v1658 = vtanh.pop %v1506
  %v1659 = vtanh.pop %v1509
  %v1660 = vtanh.pop %v1514
  %v1661 = vtanh.pop %v1517
  %v1662 = vtanh.pop %v1522
  %v1663 = vtanh.pop %v1525
  %v1664 = vtanh.pop %v1530
  %v1665 = vtanh.pop %v1533
  %v1666 = vtanh.pop %v1538
  %v1667 = vtanh.pop %v1541
  %v1668 = vtanh.pop %v1546
  %v1669 = vtanh.pop %v1549
  %v1670 = vtanh.pop %v1554
  %v1671 = vtanh.pop %v1557
  %v1672 = vtanh.pop %v1562
  %v1673 = vtanh.pop %v1565
  %v1674 = vtanh.pop %v1570
  %v1675 = vtanh.pop %v1573
  %v1676 = vtanh.pop %v1578
  %v1677 = vtanh.pop %v1581
  %v1678 = vtanh.pop %v1586
  %v1679 = vtanh.pop %v1589
  %v1680 = vtanh.pop %v1594
  %v1681 = vtanh.pop %v1597
  %v1682 = vtanh.pop %v1602
  %v1683 = vtanh.pop %v1605
  %v1684 = vtanh.pop %v1610
  %v1685 = vtanh.pop %v1613
  %v1686 = vtanh.pop %v1618
  %v1687 = vtanh.pop %v1621
  %1688 = vst [vmem:[%s3] sm:$0xff] %v1624
  %1689 = vst [vmem:[%s3 + $0x8] sm:$0xff] %v1625
  %1690 = vst [vmem:[%s3 + $0x10] sm:$0xff] %v1626
  %1691 = vst [vmem:[%s3 + $0x18] sm:$0xff] %v1627
  %1692 = vst [vmem:[%s3 + $0x20] sm:$0xff] %v1628
  %1693 = vst [vmem:[%s3 + $0x28] sm:$0xff] %v1629
  %1694 = vst [vmem:[%s3 + $0x30] sm:$0xff] %v1630
  %1695 = vst [vmem:[%s3 + $0x38] sm:$0xff] %v1631
  %1696 = vst [vmem:[%s3 + $0x40] sm:$0xff] %v1632
  %1697 = vst [vmem:[%s3 + $0x48] sm:$0xff] %v1633
  %1698 = vst [vmem:[%s3 + $0x50] sm:$0xff] %v1634
  %1699 = vst [vmem:[%s3 + $0x58] sm:$0xff] %v1635
  %1700 = vst [vmem:[%s3 + $0x60] sm:$0xff] %v1636
  %1701 = vst [vmem:[%s3 + $0x68] sm:$0xff] %v1637
  %1702 = vst [vmem:[%s3 + $0x70] sm:$0xff] %v1638
  %1703 = vst [vmem:[%s3 + $0x78] sm:$0xff] %v1639
  %1704 = vst [vmem:[%s3 + $0x80] sm:$0xff] %v1640
  %1705 = vst [vmem:[%s3 + $0x88] sm:$0xff] %v1641
  %1706 = vst [vmem:[%s3 + $0x90] sm:$0xff] %v1642
  %1707 = vst [vmem:[%s3 + $0x98] sm:$0xff] %v1643
  %1708 = vst [vmem:[%s3 + $0xa0] sm:$0xff] %v1644
  %1709 = vst [vmem:[%s3 + $0xa8] sm:$0xff] %v1645
  %1710 = vst [vmem:[%s3 + $0xb0] sm:$0xff] %v1646
  %1711 = vst [vmem:[%s3 + $0xb8] sm:$0xff] %v1647
  %1712 = vst [vmem:[%s3 + $0xc0] sm:$0xff] %v1648
  %1713 = vst [vmem:[%s3 + $0xc8] sm:$0xff] %v1649
  %1714 = vst [vmem:[%s3 + $0xd0] sm:$0xff] %v1650
  %1715 = vst [vmem:[%s3 + $0xd8] sm:$0xff] %v1651
  %1716 = vst [vmem:[%s3 + $0xe0] sm:$0xff] %v1652
  %1717 = vst [vmem:[%s3 + $0xe8] sm:$0xff] %v1653
  %1718 = vst [vmem:[%s3 + $0xf0] sm:$0xff] %v1654
  %1719 = vst [vmem:[%s3 + $0xf8] sm:$0xff] %v1655
  %1720 = vst [vmem:[%s3 + $0x100] sm:$0xff] %v1656
  %1721 = vst [vmem:[%s3 + $0x108] sm:$0xff] %v1657
  %1722 = vst [vmem:[%s3 + $0x110] sm:$0xff] %v1658
  %1723 = vst [vmem:[%s3 + $0x118] sm:$0xff] %v1659
  %1724 = vst [vmem:[%s3 + $0x120] sm:$0xff] %v1660
  %1725 = vst [vmem:[%s3 + $0x128] sm:$0xff] %v1661
  %1726 = vst [vmem:[%s3 + $0x130] sm:$0xff] %v1662
  %1727 = vst [vmem:[%s3 + $0x138] sm:$0xff] %v1663
  %1728 = vst [vmem:[%s3 + $0x140] sm:$0xff] %v1664
  %1729 = vst [vmem:[%s3 + $0x148] sm:$0xff] %v1665
  %1730 = vst [vmem:[%s3 + $0x150] sm:$0xff] %v1666
  %1731 = vst [vmem:[%s3 + $0x158] sm:$0xff] %v1667
  %1732 = vst [vmem:[%s3 + $0x160] sm:$0xff] %v1668
  %1733 = vst [vmem:[%s3 + $0x168] sm:$0xff] %v1669
  %1734 = vst [vmem:[%s3 + $0x170] sm:$0xff] %v1670
  %1735 = vst [vmem:[%s3 + $0x178] sm:$0xff] %v1671
  %1736 = vst [vmem:[%s3 + $0x180] sm:$0xff] %v1672
  %1737 = vst [vmem:[%s3 + $0x188] sm:$0xff] %v1673
  %1738 = vst [vmem:[%s3 + $0x190] sm:$0xff] %v1674
  %1739 = vst [vmem:[%s3 + $0x198] sm:$0xff] %v1675
  %1740 = vst [vmem:[%s3 + $0x1a0] sm:$0xff] %v1676
  %1741 = vst [vmem:[%s3 + $0x1a8] sm:$0xff] %v1677
  %1742 = vst [vmem:[%s3 + $0x1b0] sm:$0xff] %v1678
  %1743 = vst [vmem:[%s3 + $0x1b8] sm:$0xff] %v1679
  %1744 = vst [vmem:[%s3 + $0x1c0] sm:$0xff] %v1680
  %1745 = vst [vmem:[%s3 + $0x1c8] sm:$0xff] %v1681
  %1746 = vst [vmem:[%s3 + $0x1d0] sm:$0xff] %v1682
  %1747 = vst [vmem:[%s3 + $0x1d8] sm:$0xff] %v1683
  %1748 = vst [vmem:[%s3 + $0x1e0] sm:$0xff] %v1684
  %1749 = vst [vmem:[%s3 + $0x1e8] sm:$0xff] %v1685
  %1750 = vst [vmem:[%s3 + $0x1f0] sm:$0xff] %v1686
  %1751 = vst [vmem:[%s3 + $0x1f8] sm:$0xff] %v1687
  // Predicated region
  $region14: #{resnet_generator_forward.55} parent=0 // pred_check
    _
  $region15: #{resnet_generator_forward.55} parent=0 // pred_check_branch
    %1753 = sbr.rel (0) target = $region17
  $region16: #{resnet_generator_forward.55} parent=0 // pred_region
    _
  $region17: #{resnet_generator_forward.55} parent=0 // pred_fallthru
    _
  // Predicated region
  $region18: #{resnet_generator_forward.55} parent=0 // pred_check
    _
  $region19: #{resnet_generator_forward.55} parent=0 // pred_check_branch
    %1755 = sbr.rel (0) target = $region21
  $region20: #{resnet_generator_forward.55} parent=0 // pred_region
    _
  $region21: #{resnet_generator_forward.55} parent=0 // pred_fallthru
    _

</llo_original>
